<compile_context>
chip_gen: v7x
topology: tpu7x:2x2x1
jax: 0.10.0
libtpu: 0.0.40
codegen_flags: <defaults>
</compile_context>

<pallas_src>
import functools

import jax
import jax.numpy as jnp
from jax.experimental import pallas as pl
from jax.experimental.pallas import tpu as pltpu

_VMEM = pl.BlockSpec(memory_space=pltpu.MemorySpace.VMEM)
_SMEM = pl.BlockSpec(memory_space=pltpu.MemorySpace.SMEM)


# ----------------------------- weight-slab layout (rows, 8-aligned) -------------------
def _rnd8(x):
    return -(-x // 8) * 8


def slab_layout(D, A, NR):
    off = {}
    r = 0
    for name, rows in (('EMB', NR), ('TP', 4), ('ATT', 4 * D), ('BATT', 1),
                       ('WALT', 1), ('BAL', 1), ('WOUT', 2 * D), ('WGRU', 4 * D),
                       ('BGRU', 1)):
        off[name] = r
        r += _rnd8(rows)
    off['ROWS'] = r
    return off


# ----------------------- fused per-layer kernel (GNN + both GRUs) ---------------------
def make_layer_kernel(D, A, NR, Nmax, E, off):
    def kernel(qtau_ref, rels_ref, idxc_ref, idxr_ref, hid_prev_ref, w_ref, out_ref):
        f32 = jnp.float32
        qtau = qtau_ref[0]                                       # scalar f32 (SMEM)

        # packed per-edge indices (column form)
        sub = idxc_ref[:, 0:1]                                   # (E,1) int32
        rel = idxc_ref[:, 1:2]
        ridx = idxc_ref[:, 2:3]
        tau = idxc_ref[:, 3:4].astype(f32)

        # static slices of the single weight slab (all row offsets 8-aligned)
        emb = w_ref[off['EMB']:off['EMB'] + NR, 0:D]             # (NR, D)
        tp = w_ref[off['TP']:off['TP'] + 4, 0:D]                 # (4, D) [wt1;bt1;wt2;bt2]
        watt = w_ref[off['ATT']:off['ATT'] + 4 * D, 0:A]         # (4D, A) [Ws;Wr;Wqr;Wtau]
        batt = w_ref[off['BATT']:off['BATT'] + 1, 0:A]           # (1, A)
        walT = w_ref[off['WALT']:off['WALT'] + 1, 0:A]           # (1, A)  w_alpha^T
        balpha = w_ref[off['BAL']:off['BAL'] + 1, 0:1]           # (1, 1)
        wh = w_ref[off['WOUT']:off['WOUT'] + D, 0:D]             # (D, D)
        whs = w_ref[off['WOUT'] + D:off['WOUT'] + 2 * D, 0:D]    # (D, D)
        bgru = w_ref[off['BGRU']:off['BGRU'] + 1, 0:8 * D]       # (1, 8D)

        # ---- gathers via one-hot matmuls (indices fused into the kernel) ----
        lane_EN = jax.lax.broadcasted_iota(jnp.int32, (E, Nmax), 1)
        lane_ER = jax.lax.broadcasted_iota(jnp.int32, (E, NR), 1)
        lane_MR = jax.lax.broadcasted_iota(jnp.int32, (Nmax, NR), 1)

        oh_sub = (lane_EN == sub).astype(f32)                    # (E, Nmax)
        oh_rel = (lane_ER == rel).astype(f32)                    # (E, NR)
        oh_ridx = (lane_EN == ridx).astype(f32)                  # (E, Nmax)
        oh_rels = (lane_MR == rels_ref[...]).astype(f32)         # (Nmax, NR)  (pad rows = -1)

        hs = jnp.dot(oh_sub, hid_prev_ref[:, 0:D], preferred_element_type=f32)   # (E, D)
        hr = jnp.dot(oh_rel, emb, preferred_element_type=f32)                    # (E, D)
        h_q = jnp.dot(oh_rels, emb, preferred_element_type=f32)                  # (Nmax, D)
        h_qr = jnp.dot(oh_ridx, h_q, preferred_element_type=f32)                 # (E, D)

        # ---- time encoding ----
        tau_v = jnp.where(tau >= 0.0, tau, qtau)
        dtau = tau_v - qtau                                      # (E, 1)
        h_hau = (tp[0:1, :] * dtau + tp[1:2, :]) + jnp.sin(tp[2:3, :] * dtau + tp[3:4, :])

        message = hs + hr + h_hau                                # (E, D)

        # ---- attention: 4 lane-aligned K=D dots (no lane concat) ----
        att = (jnp.dot(hs, watt[0 * D:1 * D], preferred_element_type=f32)
               + jnp.dot(hr, watt[1 * D:2 * D], preferred_element_type=f32)
               + jnp.dot(h_qr, watt[2 * D:3 * D], preferred_element_type=f32)
               + jnp.dot(h_hau, watt[3 * D:4 * D], preferred_element_type=f32)
               + batt)                                           # (E, A)
        att = jnp.maximum(att, 0.0)
        alpha = jax.nn.sigmoid(jnp.sum(att * walT, axis=-1, keepdims=True) + balpha)

        # ---- gated streams + scatter-sum via one-hot matmuls (f32 end-to-end) ----
        # Reference: message = alpha*message ; message_s = (1-alpha) * (alpha*message)
        msg_a = alpha * message
        msg_s = (1.0 - alpha) * msg_a
        obj_row = idxr_ref[0:1, 0:E]                             # (1, E)  (oob obj would be
        row_ME = jax.lax.broadcasted_iota(jnp.int32, (Nmax, E), 0)   # silently dropped)
        oh_obj = (row_ME == obj_row).astype(f32)                 # (Nmax, E)
        agg_a = jnp.dot(oh_obj, msg_a, preferred_element_type=f32)   # (Nmax, D)
        agg_s = jnp.dot(oh_obj, msg_s, preferred_element_type=f32)   # (Nmax, D)

        hn = jnp.maximum(jnp.dot(agg_a, wh, preferred_element_type=f32), 0.0)
        hns = jnp.maximum(jnp.dot(agg_s, whs, preferred_element_type=f32), 0.0)

        # ---- h0 index_copy via one-hot scatter ----
        old_row = idxr_ref[1:2, 0:Nmax]                          # (1, Nmax), pad = -1
        row_MM = jax.lax.broadcasted_iota(jnp.int32, (Nmax, Nmax), 0)
        oh_old = (row_MM == old_row).astype(f32)                 # (Nmax, Nmax)
        h0_cat = jnp.dot(oh_old, hid_prev_ref[:, 0:2 * D], preferred_element_type=f32)

        # ---- both GRUCells: one fused (4D, 8D) gate block, 3 lane-aligned dots ----
        g = (jnp.dot(hn, w_ref[off['WGRU']:off['WGRU'] + D, :], preferred_element_type=f32)
             + jnp.dot(hns, w_ref[off['WGRU'] + D:off['WGRU'] + 2 * D, :],
                       preferred_element_type=f32)
             + jnp.dot(h0_cat, w_ref[off['WGRU'] + 2 * D:off['WGRU'] + 4 * D, :],
                       preferred_element_type=f32)
             + bgru)                                             # (Nmax, 8D)
        r_cat = jax.nn.sigmoid(g[:, 0:2 * D])
        z_cat = jax.nn.sigmoid(g[:, 2 * D:4 * D])
        n_cat = jnp.tanh(g[:, 4 * D:6 * D] + r_cat * g[:, 6 * D:8 * D])
        h_new = (1.0 - z_cat) * n_cat + z_cat * h0_cat           # (Nmax, 2D)

        # lane-dense 128-wide store: [hidden | hidden_s | zero pad]
        out_ref[...] = jnp.concatenate([h_new, jnp.zeros_like(h_new)], axis=1)

    return kernel


# ------------------------------ fused final scoring kernel ----------------------------
def make_final_kernel(D, Nmax):
    def kernel(perm_ref, hid_ref, wf_ref, out_ref):
        f32 = jnp.float32
        hid2 = hid_ref[:, 0:2 * D]                               # (N, 2D) = [h | h_s]
        h_s = hid_ref[:, D:2 * D]                                # (N, D)
        lane_MM = jax.lax.broadcasted_iota(jnp.int32, (Nmax, Nmax), 1)
        oh_perm = (lane_MM == perm_ref[...]).astype(f32)         # (N, N)
        perm_hs = jnp.dot(oh_perm, h_s, preferred_element_type=f32)   # hidden_s[random_idx]
        out_ref[...] = (jnp.dot(hid2, wf_ref[0:2 * D, :], preferred_element_type=f32)
                        + jnp.dot(perm_hs, wf_ref[2 * D:3 * D, :],
                                  preferred_element_type=f32))   # (N, 128), cols 0..2 used

    return kernel


# ------------------------------------ parameters --------------------------------------
def init_params(key, D, A, n_rel, n_layer):
    keys = iter(jax.random.split(key, 256))

    def r(shape, scale=0.1):
        return scale * jax.random.normal(next(keys), shape, dtype=jnp.float32)

    gnn = []
    for _ in range(n_layer):
        gnn.append(dict(
            rela_embed=r((2 * n_rel + 1, D)),
            wt1=r((1, D)), bt1=r((1, D)), wt2=r((1, D)), bt2=r((1, D)),
            Ws=r((D, A)), Wr=r((D, A)), Wqr=r((D, A)), bqr=r((1, A)),
            Wtau=r((D, A)), walpha=r((A, 1)), balpha=r((1, 1)),
            Wh=r((D, D)), Whs=r((D, D)),
        ))

    def gru():
        return dict(wir=r((D, D)), wiz=r((D, D)), win=r((D, D)),
                    whr=r((D, D)), whz=r((D, D)), whn=r((D, D)),
                    bir=r((1, D)), biz=r((1, D)), bin=r((1, D)),
                    bhr=r((1, D)), bhz=r((1, D)), bhn=r((1, D)))

    return dict(gnn=gnn, gate=gru(), gate_s=gru(),
                W_final=r((D, 1)), W_final_s=r((D, 1)), W_final_caus=r((D, 1)))


def build_gru_all(g, gs, D):
    """Fused (4D, 8D) weight + (1, 8D) bias for both GRUCells (gate, gate_s)."""
    W = jnp.zeros((4 * D, 8 * D), jnp.float32)
    # input rows: 0:D = hidden_new (gate), D:2D = hidden_new_s (gate_s),
    #             2D:3D = h0 (gate), 3D:4D = h0_s (gate_s)
    # output cols: [r | r_s | z | z_s | ni | ni_s | nh | nh_s]
    W = W.at[0:D, 0 * D:1 * D].set(g['wir']).at[2 * D:3 * D, 0 * D:1 * D].set(g['whr'])
    W = W.at[D:2 * D, 1 * D:2 * D].set(gs['wir']).at[3 * D:4 * D, 1 * D:2 * D].set(gs['whr'])
    W = W.at[0:D, 2 * D:3 * D].set(g['wiz']).at[2 * D:3 * D, 2 * D:3 * D].set(g['whz'])
    W = W.at[D:2 * D, 3 * D:4 * D].set(gs['wiz']).at[3 * D:4 * D, 3 * D:4 * D].set(gs['whz'])
    W = W.at[0:D, 4 * D:5 * D].set(g['win'])
    W = W.at[D:2 * D, 5 * D:6 * D].set(gs['win'])
    W = W.at[2 * D:3 * D, 6 * D:7 * D].set(g['whn'])
    W = W.at[3 * D:4 * D, 7 * D:8 * D].set(gs['whn'])
    b = jnp.concatenate([g['bir'] + g['bhr'], gs['bir'] + gs['bhr'],
                         g['biz'] + g['bhz'], gs['biz'] + gs['bhz'],
                         g['bin'], gs['bin'], g['bhn'], gs['bhn']], axis=1)   # (1, 8D)
    return W, b


def build_final_slab(params, D):
    wf = jnp.zeros((3 * D, 4 * D), jnp.float32)                  # (3D, 128)
    wf = wf.at[0:D, 0].set(params['W_final'][:, 0])
    wf = wf.at[0:D, 2].set(params['W_final_caus'][:, 0])         # caus uses hidden ...
    wf = wf.at[D:2 * D, 1].set(params['W_final_s'][:, 0])
    wf = wf.at[2 * D:3 * D, 2].set(params['W_final_caus'][:, 0])  # ... + permuted hidden_s
    return wf


def pack_params(params, n_rel):
    D = params['W_final'].shape[0]
    A = params['gnn'][0]['Ws'].shape[1]
    NR = 2 * n_rel + 1
    off = slab_layout(D, A, NR)
    Wg, bg = build_gru_all(params['gate'], params['gate_s'], D)

    slabs = []
    for lp in params['gnn']:
        s = jnp.zeros((off['ROWS'], 8 * D), jnp.float32)
        s = s.at[off['EMB']:off['EMB'] + NR, 0:D].set(lp['rela_embed'])
        s = s.at[off['TP']:off['TP'] + 4, 0:D].set(
            jnp.concatenate([lp['wt1'], lp['bt1'], lp['wt2'], lp['bt2']], axis=0))
        s = s.at[off['ATT']:off['ATT'] + 4 * D, 0:A].set(
            jnp.concatenate([lp['Ws'], lp['Wr'], lp['Wqr'], lp['Wtau']], axis=0))
        s = s.at[off['BATT'], 0:A].set(lp['bqr'][0])
        s = s.at[off['WALT'], 0:A].set(lp['walpha'][:, 0])
        s = s.at[off['BAL'], 0].set(lp['balpha'][0, 0])
        s = s.at[off['WOUT']:off['WOUT'] + D, 0:D].set(lp['Wh'])
        s = s.at[off['WOUT'] + D:off['WOUT'] + 2 * D, 0:D].set(lp['Whs'])
        s = s.at[off['WGRU']:off['WGRU'] + 4 * D, :].set(Wg)
        s = s.at[off['BGRU'], :].set(bg[0])
        slabs.append(s)

    return dict(slabs=slabs, wf=build_final_slab(params, D), off=off, D=D, A=A, NR=NR)


# ----------------------- synthetic loader (deterministic edges) -----------------------
def make_layer_data(key, n, n_layer, n_ent, n_rel, E, node_growth):
    prev_n = n
    data = []
    for i in range(n_layer):
        k = jax.random.fold_in(key, i)
        new_n = node_growth[i]
        batch_col = (jnp.arange(new_n) % n).astype(jnp.int32)
        ent_col = ((jnp.arange(new_n) // n) % n_ent).astype(jnp.int32)
        nodes = jnp.stack([batch_col, ent_col], axis=1)          # unique (batch, ent) pairs
        k1, k2, k3, k4, k5 = jax.random.split(k, 5)
        r_idx = jax.random.randint(k1, (E,), 0, n, dtype=jnp.int32)
        rel = jax.random.randint(k2, (E,), 0, 2 * n_rel + 1, dtype=jnp.int32)
        tau = jax.random.randint(k3, (E,), -1, 20, dtype=jnp.int32)   # -1 means "missing"
        sub = jax.random.randint(k4, (E,), 0, prev_n, dtype=jnp.int32)
        obj = jax.random.randint(k5, (E,), 0, new_n, dtype=jnp.int32)
        zeros = jnp.zeros((E,), jnp.int32)
        edges = jnp.stack([r_idx, zeros, rel, zeros, tau, sub, obj], axis=1)
        old_idx = jnp.arange(prev_n, dtype=jnp.int32)
        data.append((nodes, edges, old_idx))
        prev_n = new_n
    return data


def prep_layer_inputs(layer_data, E, Nmax):
    """Pre-pack per-layer index arrays once, outside the hot path."""
    W = max(E, Nmax)
    idx_cols, idx_rows = [], []
    for nodes_new, edges, old_idx in layer_data:
        sub, rel, r_idx = edges[:, 5], edges[:, 2], edges[:, 0]
        tau, obj = edges[:, 4], edges[:, 6]
        z = jnp.zeros((E,), jnp.int32)
        idx_cols.append(jnp.stack([sub, rel, r_idx, tau, z, z, z, z], axis=1).astype(jnp.int32))
        obj_row = jnp.full((W,), -1, jnp.int32).at[:E].set(obj.astype(jnp.int32))
        old_row = jnp.full((W,), -1, jnp.int32).at[:old_idx.shape[0]].set(old_idx)
        idx_rows.append(jnp.zeros((8, W), jnp.int32).at[0].set(obj_row).at[1].set(old_row))
    nodes_last = layer_data[-1][0].astype(jnp.int32)
    return idx_cols, idx_rows, nodes_last


# ------------------------------------ cost hints ---------------------------------------
def _layer_cost(D, A, NR, Nmax, E, rows):
    mm = (2 * E * Nmax * D * 2 + 2 * E * NR * D + 2 * Nmax * NR * D
          + 4 * 2 * E * D * A + 2 * 2 * Nmax * E * D + 2 * 2 * Nmax * D * D
          + 2 * Nmax * Nmax * 2 * D + 2 * Nmax * 4 * D * 8 * D)
    trans = E * D + E + 6 * Nmax * D
    byt = 4 * (E * 8 + 8 * max(E, Nmax) + Nmax + 1 + 2 * Nmax * 4 * D + rows * 8 * D)
    return pl.CostEstimate(flops=int(mm), transcendentals=int(trans), bytes_accessed=int(byt))


def _final_cost(D, Nmax):
    mm = 2 * Nmax * Nmax * D + 2 * Nmax * 2 * D * 4 * D + 2 * Nmax * D * 4 * D
    byt = 4 * (Nmax + 2 * Nmax * 4 * D + 3 * D * 4 * D)
    return pl.CostEstimate(flops=int(mm), transcendentals=0, bytes_accessed=int(byt))


# ---------------------------------- CSI_trans forward ----------------------------------
def make_forward(off, D, A, NR, Nmax, E, n_layer, n_ent):
    cp = pltpu.CompilerParams(vmem_limit_bytes=32 * 1024 * 1024)

    layer_call = pl.pallas_call(
        make_layer_kernel(D, A, NR, Nmax, E, off),
        out_shape=jax.ShapeDtypeStruct((Nmax, 4 * D), jnp.float32),
        in_specs=[_SMEM, _VMEM, _VMEM, _VMEM, _VMEM, _VMEM],
        out_specs=_VMEM,
        compiler_params=cp,
        cost_estimate=_layer_cost(D, A, NR, Nmax, E, off['ROWS']),
    )
    final_call = pl.pallas_call(
        make_final_kernel(D, Nmax),
        out_shape=jax.ShapeDtypeStruct((Nmax, 4 * D), jnp.float32),
        in_specs=[_VMEM, _VMEM, _VMEM],
        out_specs=_VMEM,
        compiler_params=cp,
        cost_estimate=_final_cost(D, Nmax),
    )

    def forward(slabs, wf, idx_cols, idx_rows, subs, rels, q_tau, nodes_last):
        n = subs.shape[0]
        n_last = nodes_last.shape[0]
        qtau_f = q_tau.astype(jnp.float32).reshape(1)
        rels_col = jnp.full((Nmax, 1), -1, jnp.int32).at[0:n, 0].set(rels.astype(jnp.int32))

        # fixed-shape hidden carry: [hidden | hidden_s | pad] -> single Mosaic compile
        hid = jnp.zeros((Nmax, 4 * D), jnp.float32)
        for i in range(n_layer):
            hid = layer_call(qtau_f, rels_col, idx_cols[i], idx_rows[i], hid, slabs[i])

        # deterministic stand-in for python random.shuffle
        perm = jax.random.permutation(jax.random.PRNGKey(42), n_last)
        perm_col = jnp.full((Nmax, 1), -1, jnp.int32).at[0:n_last, 0].set(perm.astype(jnp.int32))
        scores = final_call(perm_col, hid, wf)                   # (Nmax, 128), cols 0..2 used

        rows, cols = nodes_last[:, 0], nodes_last[:, 1]
        zeros_all = jnp.zeros((n, n_ent), jnp.float32)
        scores_all = zeros_all.at[rows, cols].set(scores[0:n_last, 0])
        scores_all_s = jax.nn.log_softmax(
            zeros_all.at[rows, cols].set(scores[0:n_last, 1]), axis=-1)
        scores_all_caus = zeros_all.at[rows, cols].set(scores[0:n_last, 2])
        return scores_all, scores_all_s, scores_all_caus

    return jax.jit(forward)


# ---------------------------------------- main -----------------------------------------
if __name__ == "__main__":
    key = jax.random.PRNGKey(0)
    n, D, A = 2, 32, 16          # batch, hidden_dim, attn_dim
    n_rel, n_ent = 4, 32
    n_layer, E = 2, 64
    node_growth = [8, 16]
    Nmax = max([n] + node_growth)

    kp, kd = jax.random.split(key)
    params = init_params(kp, D, A, n_rel, n_layer)
    packed = pack_params(params, n_rel)
    layer_data = make_layer_data(kd, n, n_layer, n_ent, n_rel, E, node_growth)
    idx_cols, idx_rows, nodes_last = prep_layer_inputs(layer_data, E, Nmax)

    fwd = make_forward(packed['off'], D, A, 2 * n_rel + 1, Nmax, E, n_layer, n_ent)

    subs = jnp.array([1, 3], dtype=jnp.int32)
    rels = jnp.array([0, 2], dtype=jnp.int32)
    q_tau = jnp.int32(5)

    out = fwd(tuple(packed['slabs']), packed['wf'], tuple(idx_cols), tuple(idx_rows),
              subs, rels, q_tau, nodes_last)
    out = jax.block_until_ready(out)
    assert out[0].shape == (n, n_ent)
    assert out[1].shape == (n, n_ent)
    assert out[2].shape == (n, n_ent)
    assert all(bool(jnp.all(jnp.isfinite(o))) for o in out)
    print("KERNEL_OK")
</pallas_src>

<mosaic_0001>
module attributes {stable_mosaic.version = 11 : i64} {
  func.func @kernel(%arg0: memref<1xf32, #tpu.memory_space<smem>>, %arg1: memref<16x1xi32, #tpu.memory_space<vmem>>, %arg2: memref<64x8xi32, #tpu.memory_space<vmem>>, %arg3: memref<8x64xi32, #tpu.memory_space<vmem>>, %arg4: memref<16x128xf32, #tpu.memory_space<vmem>>, %arg5: memref<376x256xf32, #tpu.memory_space<vmem>>, %arg6: memref<16x128xf32, #tpu.memory_space<vmem>>) attributes {dimension_semantics = [], scalar_prefetch = 0 : i64, scratch_operands = 0 : i64, tpu.core_type = #tpu.core_type<tc>} {
    %c0 = arith.constant 0 : index
    %0 = memref.load %arg0[%c0] : memref<1xf32, #tpu.memory_space<smem>>
    %c0_0 = arith.constant 0 : index
    %c0_1 = arith.constant 0 : index
    %1 = vector.load %arg2[%c0_0, %c0_1] : memref<64x8xi32, #tpu.memory_space<vmem>>, vector<64x1xi32>
    %c0_2 = arith.constant 0 : index
    %c1 = arith.constant 1 : index
    %2 = vector.load %arg2[%c0_2, %c1] : memref<64x8xi32, #tpu.memory_space<vmem>>, vector<64x1xi32>
    %c0_3 = arith.constant 0 : index
    %c2 = arith.constant 2 : index
    %3 = vector.load %arg2[%c0_3, %c2] : memref<64x8xi32, #tpu.memory_space<vmem>>, vector<64x1xi32>
    %c0_4 = arith.constant 0 : index
    %c3 = arith.constant 3 : index
    %4 = vector.load %arg2[%c0_4, %c3] : memref<64x8xi32, #tpu.memory_space<vmem>>, vector<64x1xi32>
    %5 = arith.sitofp %4 : vector<64x1xi32> to vector<64x1xf32>
    %c0_5 = arith.constant 0 : index
    %c0_6 = arith.constant 0 : index
    %6 = vector.load %arg5[%c0_5, %c0_6] : memref<376x256xf32, #tpu.memory_space<vmem>>, vector<9x32xf32>
    %c16 = arith.constant 16 : index
    %c0_7 = arith.constant 0 : index
    %7 = vector.load %arg5[%c16, %c0_7] : memref<376x256xf32, #tpu.memory_space<vmem>>, vector<4x32xf32>
    %c24 = arith.constant 24 : index
    %c0_8 = arith.constant 0 : index
    %8 = vector.load %arg5[%c24, %c0_8] : memref<376x256xf32, #tpu.memory_space<vmem>>, vector<128x16xf32>
    %c152 = arith.constant 152 : index
    %c0_9 = arith.constant 0 : index
    %9 = vector.load %arg5[%c152, %c0_9] : memref<376x256xf32, #tpu.memory_space<vmem>>, vector<1x16xf32>
    %c160 = arith.constant 160 : index
    %c0_10 = arith.constant 0 : index
    %10 = vector.load %arg5[%c160, %c0_10] : memref<376x256xf32, #tpu.memory_space<vmem>>, vector<1x16xf32>
    %c168 = arith.constant 168 : index
    %c0_11 = arith.constant 0 : index
    %11 = vector.load %arg5[%c168, %c0_11] : memref<376x256xf32, #tpu.memory_space<vmem>>, vector<1x1xf32>
    %c176 = arith.constant 176 : index
    %c0_12 = arith.constant 0 : index
    %12 = vector.load %arg5[%c176, %c0_12] : memref<376x256xf32, #tpu.memory_space<vmem>>, vector<32x32xf32>
    %c208 = arith.constant 208 : index
    %c0_13 = arith.constant 0 : index
    %13 = vector.load %arg5[%c208, %c0_13] : memref<376x256xf32, #tpu.memory_space<vmem>>, vector<32x32xf32>
    %c368 = arith.constant 368 : index
    %c0_14 = arith.constant 0 : index
    %14 = vector.load %arg5[%c368, %c0_14] : memref<376x256xf32, #tpu.memory_space<vmem>>, vector<1x256xf32>
    %15 = tpu.iota {dimensions = array<i32: 1>} : vector<64x16xi32>
    %16 = tpu.iota {dimensions = array<i32: 1>} : vector<64x9xi32>
    %17 = tpu.iota {dimensions = array<i32: 1>} : vector<16x9xi32>
    %18 = vector.broadcast %1 : vector<64x1xi32> to vector<64x16xi32>
    %19 = arith.cmpi eq, %15, %18 : vector<64x16xi32>
    %20 = arith.extui %19 : vector<64x16xi1> to vector<64x16xi32>
    %21 = arith.sitofp %20 : vector<64x16xi32> to vector<64x16xf32>
    %22 = vector.broadcast %2 : vector<64x1xi32> to vector<64x9xi32>
    %23 = arith.cmpi eq, %16, %22 : vector<64x9xi32>
    %24 = arith.extui %23 : vector<64x9xi1> to vector<64x9xi32>
    %25 = arith.sitofp %24 : vector<64x9xi32> to vector<64x9xf32>
    %26 = vector.broadcast %3 : vector<64x1xi32> to vector<64x16xi32>
    %27 = arith.cmpi eq, %15, %26 : vector<64x16xi32>
    %28 = arith.extui %27 : vector<64x16xi1> to vector<64x16xi32>
    %29 = arith.sitofp %28 : vector<64x16xi32> to vector<64x16xf32>
    %c0_15 = arith.constant 0 : index
    %c0_16 = arith.constant 0 : index
    %30 = vector.load %arg1[%c0_15, %c0_16] : memref<16x1xi32, #tpu.memory_space<vmem>>, vector<16x1xi32>
    %31 = vector.broadcast %30 : vector<16x1xi32> to vector<16x9xi32>
    %32 = arith.cmpi eq, %17, %31 : vector<16x9xi32>
    %33 = arith.extui %32 : vector<16x9xi1> to vector<16x9xi32>
    %34 = arith.sitofp %33 : vector<16x9xi32> to vector<16x9xf32>
    %c0_17 = arith.constant 0 : index
    %c0_18 = arith.constant 0 : index
    %35 = vector.load %arg4[%c0_17, %c0_18] : memref<16x128xf32, #tpu.memory_space<vmem>>, vector<16x32xf32>
    %cst = arith.constant dense<0.000000e+00> : vector<64x32xf32>
    %36 = tpu.matmul %21, %35, %cst {dimension_numbers = #tpu.dot_dimension_numbers<[1], [0], [0], [1], [0, 0, 1, 1], [], []>} : vector<64x16xf32>, vector<16x32xf32>, vector<64x32xf32> -> vector<64x32xf32>
    %cst_19 = arith.constant dense<0.000000e+00> : vector<64x32xf32>
    %37 = tpu.matmul %25, %6, %cst_19 {dimension_numbers = #tpu.dot_dimension_numbers<[1], [0], [0], [1], [0, 0, 1, 1], [], []>} : vector<64x9xf32>, vector<9x32xf32>, vector<64x32xf32> -> vector<64x32xf32>
    %cst_20 = arith.constant dense<0.000000e+00> : vector<16x32xf32>
    %38 = tpu.matmul %34, %6, %cst_20 {dimension_numbers = #tpu.dot_dimension_numbers<[1], [0], [0], [1], [0, 0, 1, 1], [], []>} : vector<16x9xf32>, vector<9x32xf32>, vector<16x32xf32> -> vector<16x32xf32>
    %cst_21 = arith.constant dense<0.000000e+00> : vector<64x32xf32>
    %39 = tpu.matmul %29, %38, %cst_21 {dimension_numbers = #tpu.dot_dimension_numbers<[1], [0], [0], [1], [0, 0, 1, 1], [], []>} : vector<64x16xf32>, vector<16x32xf32>, vector<64x32xf32> -> vector<64x32xf32>
    %cst_22 = arith.constant 0.000000e+00 : f32
    %40 = vector.broadcast %cst_22 : f32 to vector<64x1xf32>
    %41 = arith.cmpf oge, %5, %40 : vector<64x1xf32>
    %42 = vector.broadcast %0 : f32 to vector<64x1xf32>
    %43 = arith.select %41, %5, %42 : vector<64x1xi1>, vector<64x1xf32>
    %44 = vector.broadcast %0 : f32 to vector<64x1xf32>
    %45 = arith.subf %43, %44 : vector<64x1xf32>
    %46 = vector.extract_strided_slice %7 {offsets = [0, 0], sizes = [1, 32], strides = [1, 1]} : vector<4x32xf32> to vector<1x32xf32>
    %47 = vector.broadcast %46 : vector<1x32xf32> to vector<64x32xf32>
    %48 = vector.broadcast %45 : vector<64x1xf32> to vector<64x32xf32>
    %49 = arith.mulf %47, %48 : vector<64x32xf32>
    %50 = vector.extract_strided_slice %7 {offsets = [1, 0], sizes = [1, 32], strides = [1, 1]} : vector<4x32xf32> to vector<1x32xf32>
    %51 = vector.broadcast %50 : vector<1x32xf32> to vector<64x32xf32>
    %52 = arith.addf %49, %51 : vector<64x32xf32>
    %53 = vector.extract_strided_slice %7 {offsets = [2, 0], sizes = [1, 32], strides = [1, 1]} : vector<4x32xf32> to vector<1x32xf32>
    %54 = vector.broadcast %53 : vector<1x32xf32> to vector<64x32xf32>
    %55 = vector.broadcast %45 : vector<64x1xf32> to vector<64x32xf32>
    %56 = arith.mulf %54, %55 : vector<64x32xf32>
    %57 = vector.extract_strided_slice %7 {offsets = [3, 0], sizes = [1, 32], strides = [1, 1]} : vector<4x32xf32> to vector<1x32xf32>
    %58 = vector.broadcast %57 : vector<1x32xf32> to vector<64x32xf32>
    %59 = arith.addf %56, %58 : vector<64x32xf32>
    %60 = math.sin %59 : vector<64x32xf32>
    %61 = arith.addf %52, %60 : vector<64x32xf32>
    %62 = arith.addf %36, %37 : vector<64x32xf32>
    %63 = arith.addf %62, %61 : vector<64x32xf32>
    %64 = vector.extract_strided_slice %8 {offsets = [0, 0], sizes = [32, 16], strides = [1, 1]} : vector<128x16xf32> to vector<32x16xf32>
    %cst_23 = arith.constant dense<0.000000e+00> : vector<64x16xf32>
    %65 = tpu.matmul %36, %64, %cst_23 {dimension_numbers = #tpu.dot_dimension_numbers<[1], [0], [0], [1], [0, 0, 1, 1], [], []>} : vector<64x32xf32>, vector<32x16xf32>, vector<64x16xf32> -> vector<64x16xf32>
    %66 = vector.extract_strided_slice %8 {offsets = [32, 0], sizes = [32, 16], strides = [1, 1]} : vector<128x16xf32> to vector<32x16xf32>
    %cst_24 = arith.constant dense<0.000000e+00> : vector<64x16xf32>
    %67 = tpu.matmul %37, %66, %cst_24 {dimension_numbers = #tpu.dot_dimension_numbers<[1], [0], [0], [1], [0, 0, 1, 1], [], []>} : vector<64x32xf32>, vector<32x16xf32>, vector<64x16xf32> -> vector<64x16xf32>
    %68 = arith.addf %65, %67 : vector<64x16xf32>
    %69 = vector.extract_strided_slice %8 {offsets = [64, 0], sizes = [32, 16], strides = [1, 1]} : vector<128x16xf32> to vector<32x16xf32>
    %cst_25 = arith.constant dense<0.000000e+00> : vector<64x16xf32>
    %70 = tpu.matmul %39, %69, %cst_25 {dimension_numbers = #tpu.dot_dimension_numbers<[1], [0], [0], [1], [0, 0, 1, 1], [], []>} : vector<64x32xf32>, vector<32x16xf32>, vector<64x16xf32> -> vector<64x16xf32>
    %71 = arith.addf %68, %70 : vector<64x16xf32>
    %72 = vector.extract_strided_slice %8 {offsets = [96, 0], sizes = [32, 16], strides = [1, 1]} : vector<128x16xf32> to vector<32x16xf32>
    %cst_26 = arith.constant dense<0.000000e+00> : vector<64x16xf32>
    %73 = tpu.matmul %61, %72, %cst_26 {dimension_numbers = #tpu.dot_dimension_numbers<[1], [0], [0], [1], [0, 0, 1, 1], [], []>} : vector<64x32xf32>, vector<32x16xf32>, vector<64x16xf32> -> vector<64x16xf32>
    %74 = arith.addf %71, %73 : vector<64x16xf32>
    %75 = vector.broadcast %9 : vector<1x16xf32> to vector<64x16xf32>
    %76 = arith.addf %74, %75 : vector<64x16xf32>
    %cst_27 = arith.constant 0.000000e+00 : f32
    %77 = vector.broadcast %cst_27 : f32 to vector<64x16xf32>
    %78 = arith.maximumf %76, %77 : vector<64x16xf32>
    %79 = vector.broadcast %10 : vector<1x16xf32> to vector<64x16xf32>
    %80 = arith.mulf %78, %79 : vector<64x16xf32>
    %cst_28 = arith.constant dense<0.000000e+00> : vector<64xf32>
    %81 = vector.multi_reduction <add>, %80, %cst_28 [1] : vector<64x16xf32> to vector<64xf32>
    %82 = vector.shape_cast %81 : vector<64xf32> to vector<64x1xf32>
    %83 = vector.broadcast %11 : vector<1x1xf32> to vector<64x1xf32>
    %84 = arith.addf %82, %83 : vector<64x1xf32>
    %85 = arith.negf %84 : vector<64x1xf32>
    %86 = math.exp %85 : vector<64x1xf32>
    %cst_29 = arith.constant 1.000000e+00 : f32
    %87 = vector.broadcast %cst_29 : f32 to vector<64x1xf32>
    %88 = arith.addf %87, %86 : vector<64x1xf32>
    %89 = arith.divf %87, %88 : vector<64x1xf32>
    %90 = vector.broadcast %89 : vector<64x1xf32> to vector<64x32xf32>
    %91 = arith.mulf %90, %63 : vector<64x32xf32>
    %cst_30 = arith.constant 1.000000e+00 : f32
    %92 = vector.broadcast %cst_30 : f32 to vector<64x1xf32>
    %93 = arith.subf %92, %89 : vector<64x1xf32>
    %94 = vector.broadcast %93 : vector<64x1xf32> to vector<64x32xf32>
    %95 = arith.mulf %94, %91 : vector<64x32xf32>
    %c0_31 = arith.constant 0 : index
    %c0_32 = arith.constant 0 : index
    %96 = vector.load %arg3[%c0_31, %c0_32] : memref<8x64xi32, #tpu.memory_space<vmem>>, vector<1x64xi32>
    %97 = tpu.iota {dimensions = array<i32: 0>} : vector<16x64xi32>
    %98 = vector.broadcast %96 : vector<1x64xi32> to vector<16x64xi32>
    %99 = arith.cmpi eq, %97, %98 : vector<16x64xi32>
    %100 = arith.extui %99 : vector<16x64xi1> to vector<16x64xi32>
    %101 = arith.sitofp %100 : vector<16x64xi32> to vector<16x64xf32>
    %cst_33 = arith.constant dense<0.000000e+00> : vector<16x32xf32>
    %102 = tpu.matmul %101, %91, %cst_33 {dimension_numbers = #tpu.dot_dimension_numbers<[1], [0], [0], [1], [0, 0, 1, 1], [], []>} : vector<16x64xf32>, vector<64x32xf32>, vector<16x32xf32> -> vector<16x32xf32>
    %cst_34 = arith.constant dense<0.000000e+00> : vector<16x32xf32>
    %103 = tpu.matmul %101, %95, %cst_34 {dimension_numbers = #tpu.dot_dimension_numbers<[1], [0], [0], [1], [0, 0, 1, 1], [], []>} : vector<16x64xf32>, vector<64x32xf32>, vector<16x32xf32> -> vector<16x32xf32>
    %cst_35 = arith.constant dense<0.000000e+00> : vector<16x32xf32>
    %104 = tpu.matmul %102, %12, %cst_35 {dimension_numbers = #tpu.dot_dimension_numbers<[1], [0], [0], [1], [0, 0, 1, 1], [], []>} : vector<16x32xf32>, vector<32x32xf32>, vector<16x32xf32> -> vector<16x32xf32>
    %cst_36 = arith.constant 0.000000e+00 : f32
    %105 = vector.broadcast %cst_36 : f32 to vector<16x32xf32>
    %106 = arith.maximumf %104, %105 : vector<16x32xf32>
    %cst_37 = arith.constant dense<0.000000e+00> : vector<16x32xf32>
    %107 = tpu.matmul %103, %13, %cst_37 {dimension_numbers = #tpu.dot_dimension_numbers<[1], [0], [0], [1], [0, 0, 1, 1], [], []>} : vector<16x32xf32>, vector<32x32xf32>, vector<16x32xf32> -> vector<16x32xf32>
    %cst_38 = arith.constant 0.000000e+00 : f32
    %108 = vector.broadcast %cst_38 : f32 to vector<16x32xf32>
    %109 = arith.maximumf %107, %108 : vector<16x32xf32>
    %c1_39 = arith.constant 1 : index
    %c0_40 = arith.constant 0 : index
    %110 = vector.load %arg3[%c1_39, %c0_40] : memref<8x64xi32, #tpu.memory_space<vmem>>, vector<1x16xi32>
    %111 = tpu.iota {dimensions = array<i32: 0>} : vector<16x16xi32>
    %112 = vector.broadcast %110 : vector<1x16xi32> to vector<16x16xi32>
    %113 = arith.cmpi eq, %111, %112 : vector<16x16xi32>
    %114 = arith.extui %113 : vector<16x16xi1> to vector<16x16xi32>
    %115 = arith.sitofp %114 : vector<16x16xi32> to vector<16x16xf32>
    %c0_41 = arith.constant 0 : index
    %c0_42 = arith.constant 0 : index
    %116 = vector.load %arg4[%c0_41, %c0_42] : memref<16x128xf32, #tpu.memory_space<vmem>>, vector<16x64xf32>
    %cst_43 = arith.constant dense<0.000000e+00> : vector<16x64xf32>
    %117 = tpu.matmul %115, %116, %cst_43 {dimension_numbers = #tpu.dot_dimension_numbers<[1], [0], [0], [1], [0, 0, 1, 1], [], []>} : vector<16x16xf32>, vector<16x64xf32>, vector<16x64xf32> -> vector<16x64xf32>
    %c240 = arith.constant 240 : index
    %c0_44 = arith.constant 0 : index
    %118 = vector.load %arg5[%c240, %c0_44] : memref<376x256xf32, #tpu.memory_space<vmem>>, vector<32x256xf32>
    %cst_45 = arith.constant dense<0.000000e+00> : vector<16x256xf32>
    %119 = tpu.matmul %106, %118, %cst_45 {dimension_numbers = #tpu.dot_dimension_numbers<[1], [0], [0], [1], [0, 0, 1, 1], [], []>} : vector<16x32xf32>, vector<32x256xf32>, vector<16x256xf32> -> vector<16x256xf32>
    %c272 = arith.constant 272 : index
    %c0_46 = arith.constant 0 : index
    %120 = vector.load %arg5[%c272, %c0_46] : memref<376x256xf32, #tpu.memory_space<vmem>>, vector<32x256xf32>
    %cst_47 = arith.constant dense<0.000000e+00> : vector<16x256xf32>
    %121 = tpu.matmul %109, %120, %cst_47 {dimension_numbers = #tpu.dot_dimension_numbers<[1], [0], [0], [1], [0, 0, 1, 1], [], []>} : vector<16x32xf32>, vector<32x256xf32>, vector<16x256xf32> -> vector<16x256xf32>
    %122 = arith.addf %119, %121 : vector<16x256xf32>
    %c304 = arith.constant 304 : index
    %c0_48 = arith.constant 0 : index
    %123 = vector.load %arg5[%c304, %c0_48] : memref<376x256xf32, #tpu.memory_space<vmem>>, vector<64x256xf32>
    %cst_49 = arith.constant dense<0.000000e+00> : vector<16x256xf32>
    %124 = tpu.matmul %117, %123, %cst_49 {dimension_numbers = #tpu.dot_dimension_numbers<[1], [0], [0], [1], [0, 0, 1, 1], [], []>} : vector<16x64xf32>, vector<64x256xf32>, vector<16x256xf32> -> vector<16x256xf32>
    %125 = arith.addf %122, %124 : vector<16x256xf32>
    %126 = vector.broadcast %14 : vector<1x256xf32> to vector<16x256xf32>
    %127 = arith.addf %125, %126 : vector<16x256xf32>
    %128 = vector.extract_strided_slice %127 {offsets = [0, 0], sizes = [16, 64], strides = [1, 1]} : vector<16x256xf32> to vector<16x64xf32>
    %129 = arith.negf %128 : vector<16x64xf32>
    %130 = math.exp %129 : vector<16x64xf32>
    %cst_50 = arith.constant 1.000000e+00 : f32
    %131 = vector.broadcast %cst_50 : f32 to vector<16x64xf32>
    %132 = arith.addf %131, %130 : vector<16x64xf32>
    %133 = arith.divf %131, %132 : vector<16x64xf32>
    %134 = vector.extract_strided_slice %127 {offsets = [0, 64], sizes = [16, 64], strides = [1, 1]} : vector<16x256xf32> to vector<16x64xf32>
    %135 = arith.negf %134 : vector<16x64xf32>
    %136 = math.exp %135 : vector<16x64xf32>
    %cst_51 = arith.constant 1.000000e+00 : f32
    %137 = vector.broadcast %cst_51 : f32 to vector<16x64xf32>
    %138 = arith.addf %137, %136 : vector<16x64xf32>
    %139 = arith.divf %137, %138 : vector<16x64xf32>
    %140 = vector.extract_strided_slice %127 {offsets = [0, 128], sizes = [16, 64], strides = [1, 1]} : vector<16x256xf32> to vector<16x64xf32>
    %141 = vector.extract_strided_slice %127 {offsets = [0, 192], sizes = [16, 64], strides = [1, 1]} : vector<16x256xf32> to vector<16x64xf32>
    %142 = arith.mulf %133, %141 : vector<16x64xf32>
    %143 = arith.addf %140, %142 : vector<16x64xf32>
    %144 = math.tanh %143 : vector<16x64xf32>
    %cst_52 = arith.constant 1.000000e+00 : f32
    %145 = vector.broadcast %cst_52 : f32 to vector<16x64xf32>
    %146 = arith.subf %145, %139 : vector<16x64xf32>
    %147 = arith.mulf %146, %144 : vector<16x64xf32>
    %148 = arith.mulf %139, %117 : vector<16x64xf32>
    %149 = arith.addf %147, %148 : vector<16x64xf32>
    %cst_53 = arith.constant 0.000000e+00 : f32
    %150 = vector.broadcast %cst_53 : f32 to vector<16x64xf32>
    %151 = tpu.concatenate %149, %150 in 1 : vector<16x64xf32>, vector<16x64xf32> -> vector<16x128xf32>
    %c0_54 = arith.constant 0 : index
    %c0_55 = arith.constant 0 : index
    %152 = vector.load %arg6[%c0_54, %c0_55] : memref<16x128xf32, #tpu.memory_space<vmem>>, vector<16x128xf32>
    tpu.vector_store %arg6[%c0_54, %c0_55], %151 {strides = array<i32>} : memref<16x128xf32, #tpu.memory_space<vmem>>, vector<16x128xf32>,
    return
  }
}

module attributes {stable_mosaic.version = 11 : i64} {
  func.func @kernel(%arg0: memref<16x1xi32, #tpu.memory_space<vmem>>, %arg1: memref<16x128xf32, #tpu.memory_space<vmem>>, %arg2: memref<96x128xf32, #tpu.memory_space<vmem>>, %arg3: memref<16x128xf32, #tpu.memory_space<vmem>>) attributes {dimension_semantics = [], scalar_prefetch = 0 : i64, scratch_operands = 0 : i64, tpu.core_type = #tpu.core_type<tc>} {
    %c0 = arith.constant 0 : index
    %c0_0 = arith.constant 0 : index
    %0 = vector.load %arg1[%c0, %c0_0] : memref<16x128xf32, #tpu.memory_space<vmem>>, vector<16x64xf32>
    %c0_1 = arith.constant 0 : index
    %c32 = arith.constant 32 : index
    %1 = vector.load %arg1[%c0_1, %c32] : memref<16x128xf32, #tpu.memory_space<vmem>>, vector<16x32xf32>
    %2 = tpu.iota {dimensions = array<i32: 1>} : vector<16x16xi32>
    %c0_2 = arith.constant 0 : index
    %c0_3 = arith.constant 0 : index
    %3 = vector.load %arg0[%c0_2, %c0_3] : memref<16x1xi32, #tpu.memory_space<vmem>>, vector<16x1xi32>
    %4 = vector.broadcast %3 : vector<16x1xi32> to vector<16x16xi32>
    %5 = arith.cmpi eq, %2, %4 : vector<16x16xi32>
    %6 = arith.extui %5 : vector<16x16xi1> to vector<16x16xi32>
    %7 = arith.sitofp %6 : vector<16x16xi32> to vector<16x16xf32>
    %cst = arith.constant dense<0.000000e+00> : vector<16x32xf32>
    %8 = tpu.matmul %7, %1, %cst {dimension_numbers = #tpu.dot_dimension_numbers<[1], [0], [0], [1], [0, 0, 1, 1], [], []>} : vector<16x16xf32>, vector<16x32xf32>, vector<16x32xf32> -> vector<16x32xf32>
    %c0_4 = arith.constant 0 : index
    %c0_5 = arith.constant 0 : index
    %9 = vector.load %arg2[%c0_4, %c0_5] : memref<96x128xf32, #tpu.memory_space<vmem>>, vector<64x128xf32>
    %cst_6 = arith.constant dense<0.000000e+00> : vector<16x128xf32>
    %10 = tpu.matmul %0, %9, %cst_6 {dimension_numbers = #tpu.dot_dimension_numbers<[1], [0], [0], [1], [0, 0, 1, 1], [], []>} : vector<16x64xf32>, vector<64x128xf32>, vector<16x128xf32> -> vector<16x128xf32>
    %c64 = arith.constant 64 : index
    %c0_7 = arith.constant 0 : index
    %11 = vector.load %arg2[%c64, %c0_7] : memref<96x128xf32, #tpu.memory_space<vmem>>, vector<32x128xf32>
    %cst_8 = arith.constant dense<0.000000e+00> : vector<16x128xf32>
    %12 = tpu.matmul %8, %11, %cst_8 {dimension_numbers = #tpu.dot_dimension_numbers<[1], [0], [0], [1], [0, 0, 1, 1], [], []>} : vector<16x32xf32>, vector<32x128xf32>, vector<16x128xf32> -> vector<16x128xf32>
    %13 = arith.addf %10, %12 : vector<16x128xf32>
    %c0_9 = arith.constant 0 : index
    %c0_10 = arith.constant 0 : index
    %14 = vector.load %arg3[%c0_9, %c0_10] : memref<16x128xf32, #tpu.memory_space<vmem>>, vector<16x128xf32>
    tpu.vector_store %arg3[%c0_9, %c0_10], %13 {strides = array<i32>} : memref<16x128xf32, #tpu.memory_space<vmem>>, vector<16x128xf32>,
    return
  }
}

module attributes {stable_mosaic.version = 11 : i64} {
  func.func @kernel(%arg0: memref<1xf32, #tpu.memory_space<smem>>, %arg1: memref<16x1xi32, #tpu.memory_space<vmem>>, %arg2: memref<64x8xi32, #tpu.memory_space<vmem>>, %arg3: memref<8x64xi32, #tpu.memory_space<vmem>>, %arg4: memref<16x128xf32, #tpu.memory_space<vmem>>, %arg5: memref<376x256xf32, #tpu.memory_space<vmem>>, %arg6: memref<16x128xf32, #tpu.memory_space<vmem>>) attributes {dimension_semantics = [], scalar_prefetch = 0 : i64, scratch_operands = 0 : i64, tpu.core_type = #tpu.core_type<tc>} {
    %c0 = arith.constant 0 : index
    %0 = memref.load %arg0[%c0] : memref<1xf32, #tpu.memory_space<smem>>
    %c0_0 = arith.constant 0 : index
    %c0_1 = arith.constant 0 : index
    %1 = vector.load %arg2[%c0_0, %c0_1] : memref<64x8xi32, #tpu.memory_space<vmem>>, vector<64x1xi32>
    %c0_2 = arith.constant 0 : index
    %c1 = arith.constant 1 : index
    %2 = vector.load %arg2[%c0_2, %c1] : memref<64x8xi32, #tpu.memory_space<vmem>>, vector<64x1xi32>
    %c0_3 = arith.constant 0 : index
    %c2 = arith.constant 2 : index
    %3 = vector.load %arg2[%c0_3, %c2] : memref<64x8xi32, #tpu.memory_space<vmem>>, vector<64x1xi32>
    %c0_4 = arith.constant 0 : index
    %c3 = arith.constant 3 : index
    %4 = vector.load %arg2[%c0_4, %c3] : memref<64x8xi32, #tpu.memory_space<vmem>>, vector<64x1xi32>
    %5 = arith.sitofp %4 : vector<64x1xi32> to vector<64x1xf32>
    %c0_5 = arith.constant 0 : index
    %c0_6 = arith.constant 0 : index
    %6 = vector.load %arg5[%c0_5, %c0_6] : memref<376x256xf32, #tpu.memory_space<vmem>>, vector<9x32xf32>
    %c16 = arith.constant 16 : index
    %c0_7 = arith.constant 0 : index
    %7 = vector.load %arg5[%c16, %c0_7] : memref<376x256xf32, #tpu.memory_space<vmem>>, vector<4x32xf32>
    %c24 = arith.constant 24 : index
    %c0_8 = arith.constant 0 : index
    %8 = vector.load %arg5[%c24, %c0_8] : memref<376x256xf32, #tpu.memory_space<vmem>>, vector<128x16xf32>
    %c152 = arith.constant 152 : index
    %c0_9 = arith.constant 0 : index
    %9 = vector.load %arg5[%c152, %c0_9] : memref<376x256xf32, #tpu.memory_space<vmem>>, vector<1x16xf32>
    %c160 = arith.constant 160 : index
    %c0_10 = arith.constant 0 : index
    %10 = vector.load %arg5[%c160, %c0_10] : memref<376x256xf32, #tpu.memory_space<vmem>>, vector<1x16xf32>
    %c168 = arith.constant 168 : index
    %c0_11 = arith.constant 0 : index
    %11 = vector.load %arg5[%c168, %c0_11] : memref<376x256xf32, #tpu.memory_space<vmem>>, vector<1x1xf32>
    %c176 = arith.constant 176 : index
    %c0_12 = arith.constant 0 : index
    %12 = vector.load %arg5[%c176, %c0_12] : memref<376x256xf32, #tpu.memory_space<vmem>>, vector<32x32xf32>
    %c208 = arith.constant 208 : index
    %c0_13 = arith.constant 0 : index
    %13 = vector.load %arg5[%c208, %c0_13] : memref<376x256xf32, #tpu.memory_space<vmem>>, vector<32x32xf32>
    %c368 = arith.constant 368 : index
    %c0_14 = arith.constant 0 : index
    %14 = vector.load %arg5[%c368, %c0_14] : memref<376x256xf32, #tpu.memory_space<vmem>>, vector<1x256xf32>
    %15 = tpu.iota {dimensions = array<i32: 1>} : vector<64x16xi32>
    %16 = tpu.iota {dimensions = array<i32: 1>} : vector<64x9xi32>
    %17 = tpu.iota {dimensions = array<i32: 1>} : vector<16x9xi32>
    %18 = vector.broadcast %1 : vector<64x1xi32> to vector<64x16xi32>
    %19 = arith.cmpi eq, %15, %18 : vector<64x16xi32>
    %20 = arith.extui %19 : vector<64x16xi1> to vector<64x16xi32>
    %21 = arith.sitofp %20 : vector<64x16xi32> to vector<64x16xf32>
    %22 = vector.broadcast %2 : vector<64x1xi32> to vector<64x9xi32>
    %23 = arith.cmpi eq, %16, %22 : vector<64x9xi32>
    %24 = arith.extui %23 : vector<64x9xi1> to vector<64x9xi32>
    %25 = arith.sitofp %24 : vector<64x9xi32> to vector<64x9xf32>
    %26 = vector.broadcast %3 : vector<64x1xi32> to vector<64x16xi32>
    %27 = arith.cmpi eq, %15, %26 : vector<64x16xi32>
    %28 = arith.extui %27 : vector<64x16xi1> to vector<64x16xi32>
    %29 = arith.sitofp %28 : vector<64x16xi32> to vector<64x16xf32>
    %c0_15 = arith.constant 0 : index
    %c0_16 = arith.constant 0 : index
    %30 = vector.load %arg1[%c0_15, %c0_16] : memref<16x1xi32, #tpu.memory_space<vmem>>, vector<16x1xi32>
    %31 = vector.broadcast %30 : vector<16x1xi32> to vector<16x9xi32>
    %32 = arith.cmpi eq, %17, %31 : vector<16x9xi32>
    %33 = arith.extui %32 : vector<16x9xi1> to vector<16x9xi32>
    %34 = arith.sitofp %33 : vector<16x9xi32> to vector<16x9xf32>
    %c0_17 = arith.constant 0 : index
    %c0_18 = arith.constant 0 : index
    %35 = vector.load %arg4[%c0_17, %c0_18] : memref<16x128xf32, #tpu.memory_space<vmem>>, vector<16x32xf32>
    %cst = arith.constant dense<0.000000e+00> : vector<64x32xf32>
    %36 = tpu.matmul %21, %35, %cst {dimension_numbers = #tpu.dot_dimension_numbers<[1], [0], [0], [1], [0, 0, 1, 1], [], []>} : vector<64x16xf32>, vector<16x32xf32>, vector<64x32xf32> -> vector<64x32xf32>
    %cst_19 = arith.constant dense<0.000000e+00> : vector<64x32xf32>
    %37 = tpu.matmul %25, %6, %cst_19 {dimension_numbers = #tpu.dot_dimension_numbers<[1], [0], [0], [1], [0, 0, 1, 1], [], []>} : vector<64x9xf32>, vector<9x32xf32>, vector<64x32xf32> -> vector<64x32xf32>
    %cst_20 = arith.constant dense<0.000000e+00> : vector<16x32xf32>
    %38 = tpu.matmul %34, %6, %cst_20 {dimension_numbers = #tpu.dot_dimension_numbers<[1], [0], [0], [1], [0, 0, 1, 1], [], []>} : vector<16x9xf32>, vector<9x32xf32>, vector<16x32xf32> -> vector<16x32xf32>
    %cst_21 = arith.constant dense<0.000000e+00> : vector<64x32xf32>
    %39 = tpu.matmul %29, %38, %cst_21 {dimension_numbers = #tpu.dot_dimension_numbers<[1], [0], [0], [1], [0, 0, 1, 1], [], []>} : vector<64x16xf32>, vector<16x32xf32>, vector<64x32xf32> -> vector<64x32xf32>
    %cst_22 = arith.constant 0.000000e+00 : f32
    %40 = vector.broadcast %cst_22 : f32 to vector<64x1xf32>
    %41 = arith.cmpf oge, %5, %40 : vector<64x1xf32>
    %42 = vector.broadcast %0 : f32 to vector<64x1xf32>
    %43 = arith.select %41, %5, %42 : vector<64x1xi1>, vector<64x1xf32>
    %44 = vector.broadcast %0 : f32 to vector<64x1xf32>
    %45 = arith.subf %43, %44 : vector<64x1xf32>
    %46 = vector.extract_strided_slice %7 {offsets = [0, 0], sizes = [1, 32], strides = [1, 1]} : vector<4x32xf32> to vector<1x32xf32>
    %47 = vector.broadcast %46 : vector<1x32xf32> to vector<64x32xf32>
    %48 = vector.broadcast %45 : vector<64x1xf32> to vector<64x32xf32>
    %49 = arith.mulf %47, %48 : vector<64x32xf32>
    %50 = vector.extract_strided_slice %7 {offsets = [1, 0], sizes = [1, 32], strides = [1, 1]} : vector<4x32xf32> to vector<1x32xf32>
    %51 = vector.broadcast %50 : vector<1x32xf32> to vector<64x32xf32>
    %52 = arith.addf %49, %51 : vector<64x32xf32>
    %53 = vector.extract_strided_slice %7 {offsets = [2, 0], sizes = [1, 32], strides = [1, 1]} : vector<4x32xf32> to vector<1x32xf32>
    %54 = vector.broadcast %53 : vector<1x32xf32> to vector<64x32xf32>
    %55 = vector.broadcast %45 : vector<64x1xf32> to vector<64x32xf32>
    %56 = arith.mulf %54, %55 : vector<64x32xf32>
    %57 = vector.extract_strided_slice %7 {offsets = [3, 0], sizes = [1, 32], strides = [1, 1]} : vector<4x32xf32> to vector<1x32xf32>
    %58 = vector.broadcast %57 : vector<1x32xf32> to vector<64x32xf32>
    %59 = arith.addf %56, %58 : vector<64x32xf32>
    %60 = math.sin %59 : vector<64x32xf32>
    %61 = arith.addf %52, %60 : vector<64x32xf32>
    %62 = arith.addf %36, %37 : vector<64x32xf32>
    %63 = arith.addf %62, %61 : vector<64x32xf32>
    %64 = vector.extract_strided_slice %8 {offsets = [0, 0], sizes = [32, 16], strides = [1, 1]} : vector<128x16xf32> to vector<32x16xf32>
    %cst_23 = arith.constant dense<0.000000e+00> : vector<64x16xf32>
    %65 = tpu.matmul %36, %64, %cst_23 {dimension_numbers = #tpu.dot_dimension_numbers<[1], [0], [0], [1], [0, 0, 1, 1], [], []>} : vector<64x32xf32>, vector<32x16xf32>, vector<64x16xf32> -> vector<64x16xf32>
    %66 = vector.extract_strided_slice %8 {offsets = [32, 0], sizes = [32, 16], strides = [1, 1]} : vector<128x16xf32> to vector<32x16xf32>
    %cst_24 = arith.constant dense<0.000000e+00> : vector<64x16xf32>
    %67 = tpu.matmul %37, %66, %cst_24 {dimension_numbers = #tpu.dot_dimension_numbers<[1], [0], [0], [1], [0, 0, 1, 1], [], []>} : vector<64x32xf32>, vector<32x16xf32>, vector<64x16xf32> -> vector<64x16xf32>
    %68 = arith.addf %65, %67 : vector<64x16xf32>
    %69 = vector.extract_strided_slice %8 {offsets = [64, 0], sizes = [32, 16], strides = [1, 1]} : vector<128x16xf32> to vector<32x16xf32>
    %cst_25 = arith.constant dense<0.000000e+00> : vector<64x16xf32>
    %70 = tpu.matmul %39, %69, %cst_25 {dimension_numbers = #tpu.dot_dimension_numbers<[1], [0], [0], [1], [0, 0, 1, 1], [], []>} : vector<64x32xf32>, vector<32x16xf32>, vector<64x16xf32> -> vector<64x16xf32>
    %71 = arith.addf %68, %70 : vector<64x16xf32>
    %72 = vector.extract_strided_slice %8 {offsets = [96, 0], sizes = [32, 16], strides = [1, 1]} : vector<128x16xf32> to vector<32x16xf32>
    %cst_26 = arith.constant dense<0.000000e+00> : vector<64x16xf32>
    %73 = tpu.matmul %61, %72, %cst_26 {dimension_numbers = #tpu.dot_dimension_numbers<[1], [0], [0], [1], [0, 0, 1, 1], [], []>} : vector<64x32xf32>, vector<32x16xf32>, vector<64x16xf32> -> vector<64x16xf32>
    %74 = arith.addf %71, %73 : vector<64x16xf32>
    %75 = vector.broadcast %9 : vector<1x16xf32> to vector<64x16xf32>
    %76 = arith.addf %74, %75 : vector<64x16xf32>
    %cst_27 = arith.constant 0.000000e+00 : f32
    %77 = vector.broadcast %cst_27 : f32 to vector<64x16xf32>
    %78 = arith.maximumf %76, %77 : vector<64x16xf32>
    %79 = vector.broadcast %10 : vector<1x16xf32> to vector<64x16xf32>
    %80 = arith.mulf %78, %79 : vector<64x16xf32>
    %cst_28 = arith.constant dense<0.000000e+00> : vector<64xf32>
    %81 = vector.multi_reduction <add>, %80, %cst_28 [1] : vector<64x16xf32> to vector<64xf32>
    %82 = vector.shape_cast %81 : vector<64xf32> to vector<64x1xf32>
    %83 = vector.broadcast %11 : vector<1x1xf32> to vector<64x1xf32>
    %84 = arith.addf %82, %83 : vector<64x1xf32>
    %85 = arith.negf %84 : vector<64x1xf32>
    %86 = math.exp %85 : vector<64x1xf32>
    %cst_29 = arith.constant 1.000000e+00 : f32
    %87 = vector.broadcast %cst_29 : f32 to vector<64x1xf32>
    %88 = arith.addf %87, %86 : vector<64x1xf32>
    %89 = arith.divf %87, %88 : vector<64x1xf32>
    %90 = vector.broadcast %89 : vector<64x1xf32> to vector<64x32xf32>
    %91 = arith.mulf %90, %63 : vector<64x32xf32>
    %cst_30 = arith.constant 1.000000e+00 : f32
    %92 = vector.broadcast %cst_30 : f32 to vector<64x1xf32>
    %93 = arith.subf %92, %89 : vector<64x1xf32>
    %94 = vector.broadcast %93 : vector<64x1xf32> to vector<64x32xf32>
    %95 = arith.mulf %94, %91 : vector<64x32xf32>
    %c0_31 = arith.constant 0 : index
    %c0_32 = arith.constant 0 : index
    %96 = vector.load %arg3[%c0_31, %c0_32] : memref<8x64xi32, #tpu.memory_space<vmem>>, vector<1x64xi32>
    %97 = tpu.iota {dimensions = array<i32: 0>} : vector<16x64xi32>
    %98 = vector.broadcast %96 : vector<1x64xi32> to vector<16x64xi32>
    %99 = arith.cmpi eq, %97, %98 : vector<16x64xi32>
    %100 = arith.extui %99 : vector<16x64xi1> to vector<16x64xi32>
    %101 = arith.sitofp %100 : vector<16x64xi32> to vector<16x64xf32>
    %cst_33 = arith.constant dense<0.000000e+00> : vector<16x32xf32>
    %102 = tpu.matmul %101, %91, %cst_33 {dimension_numbers = #tpu.dot_dimension_numbers<[1], [0], [0], [1], [0, 0, 1, 1], [], []>} : vector<16x64xf32>, vector<64x32xf32>, vector<16x32xf32> -> vector<16x32xf32>
    %cst_34 = arith.constant dense<0.000000e+00> : vector<16x32xf32>
    %103 = tpu.matmul %101, %95, %cst_34 {dimension_numbers = #tpu.dot_dimension_numbers<[1], [0], [0], [1], [0, 0, 1, 1], [], []>} : vector<16x64xf32>, vector<64x32xf32>, vector<16x32xf32> -> vector<16x32xf32>
    %cst_35 = arith.constant dense<0.000000e+00> : vector<16x32xf32>
    %104 = tpu.matmul %102, %12, %cst_35 {dimension_numbers = #tpu.dot_dimension_numbers<[1], [0], [0], [1], [0, 0, 1, 1], [], []>} : vector<16x32xf32>, vector<32x32xf32>, vector<16x32xf32> -> vector<16x32xf32>
    %cst_36 = arith.constant 0.000000e+00 : f32
    %105 = vector.broadcast %cst_36 : f32 to vector<16x32xf32>
    %106 = arith.maximumf %104, %105 : vector<16x32xf32>
    %cst_37 = arith.constant dense<0.000000e+00> : vector<16x32xf32>
    %107 = tpu.matmul %103, %13, %cst_37 {dimension_numbers = #tpu.dot_dimension_numbers<[1], [0], [0], [1], [0, 0, 1, 1], [], []>} : vector<16x32xf32>, vector<32x32xf32>, vector<16x32xf32> -> vector<16x32xf32>
    %cst_38 = arith.constant 0.000000e+00 : f32
    %108 = vector.broadcast %cst_38 : f32 to vector<16x32xf32>
    %109 = arith.maximumf %107, %108 : vector<16x32xf32>
    %c1_39 = arith.constant 1 : index
    %c0_40 = arith.constant 0 : index
    %110 = vector.load %arg3[%c1_39, %c0_40] : memref<8x64xi32, #tpu.memory_space<vmem>>, vector<1x16xi32>
    %111 = tpu.iota {dimensions = array<i32: 0>} : vector<16x16xi32>
    %112 = vector.broadcast %110 : vector<1x16xi32> to vector<16x16xi32>
    %113 = arith.cmpi eq, %111, %112 : vector<16x16xi32>
    %114 = arith.extui %113 : vector<16x16xi1> to vector<16x16xi32>
    %115 = arith.sitofp %114 : vector<16x16xi32> to vector<16x16xf32>
    %c0_41 = arith.constant 0 : index
    %c0_42 = arith.constant 0 : index
    %116 = vector.load %arg4[%c0_41, %c0_42] : memref<16x128xf32, #tpu.memory_space<vmem>>, vector<16x64xf32>
    %cst_43 = arith.constant dense<0.000000e+00> : vector<16x64xf32>
    %117 = tpu.matmul %115, %116, %cst_43 {dimension_numbers = #tpu.dot_dimension_numbers<[1], [0], [0], [1], [0, 0, 1, 1], [], []>} : vector<16x16xf32>, vector<16x64xf32>, vector<16x64xf32> -> vector<16x64xf32>
    %c240 = arith.constant 240 : index
    %c0_44 = arith.constant 0 : index
    %118 = vector.load %arg5[%c240, %c0_44] : memref<376x256xf32, #tpu.memory_space<vmem>>, vector<32x256xf32>
    %cst_45 = arith.constant dense<0.000000e+00> : vector<16x256xf32>
    %119 = tpu.matmul %106, %118, %cst_45 {dimension_numbers = #tpu.dot_dimension_numbers<[1], [0], [0], [1], [0, 0, 1, 1], [], []>} : vector<16x32xf32>, vector<32x256xf32>, vector<16x256xf32> -> vector<16x256xf32>
    %c272 = arith.constant 272 : index
    %c0_46 = arith.constant 0 : index
    %120 = vector.load %arg5[%c272, %c0_46] : memref<376x256xf32, #tpu.memory_space<vmem>>, vector<32x256xf32>
    %cst_47 = arith.constant dense<0.000000e+00> : vector<16x256xf32>
    %121 = tpu.matmul %109, %120, %cst_47 {dimension_numbers = #tpu.dot_dimension_numbers<[1], [0], [0], [1], [0, 0, 1, 1], [], []>} : vector<16x32xf32>, vector<32x256xf32>, vector<16x256xf32> -> vector<16x256xf32>
    %122 = arith.addf %119, %121 : vector<16x256xf32>
    %c304 = arith.constant 304 : index
    %c0_48 = arith.constant 0 : index
    %123 = vector.load %arg5[%c304, %c0_48] : memref<376x256xf32, #tpu.memory_space<vmem>>, vector<64x256xf32>
    %cst_49 = arith.constant dense<0.000000e+00> : vector<16x256xf32>
    %124 = tpu.matmul %117, %123, %cst_49 {dimension_numbers = #tpu.dot_dimension_numbers<[1], [0], [0], [1], [0, 0, 1, 1], [], []>} : vector<16x64xf32>, vector<64x256xf32>, vector<16x256xf32> -> vector<16x256xf32>
    %125 = arith.addf %122, %124 : vector<16x256xf32>
    %126 = vector.broadcast %14 : vector<1x256xf32> to vector<16x256xf32>
    %127 = arith.addf %125, %126 : vector<16x256xf32>
    %128 = vector.extract_strided_slice %127 {offsets = [0, 0], sizes = [16, 64], strides = [1, 1]} : vector<16x256xf32> to vector<16x64xf32>
    %129 = arith.negf %128 : vector<16x64xf32>
    %130 = math.exp %129 : vector<16x64xf32>
    %cst_50 = arith.constant 1.000000e+00 : f32
    %131 = vector.broadcast %cst_50 : f32 to vector<16x64xf32>
    %132 = arith.addf %131, %130 : vector<16x64xf32>
    %133 = arith.divf %131, %132 : vector<16x64xf32>
    %134 = vector.extract_strided_slice %127 {offsets = [0, 64], sizes = [16, 64], strides = [1, 1]} : vector<16x256xf32> to vector<16x64xf32>
    %135 = arith.negf %134 : vector<16x64xf32>
    %136 = math.exp %135 : vector<16x64xf32>
    %cst_51 = arith.constant 1.000000e+00 : f32
    %137 = vector.broadcast %cst_51 : f32 to vector<16x64xf32>
    %138 = arith.addf %137, %136 : vector<16x64xf32>
    %139 = arith.divf %137, %138 : vector<16x64xf32>
    %140 = vector.extract_strided_slice %127 {offsets = [0, 128], sizes = [16, 64], strides = [1, 1]} : vector<16x256xf32> to vector<16x64xf32>
    %141 = vector.extract_strided_slice %127 {offsets = [0, 192], sizes = [16, 64], strides = [1, 1]} : vector<16x256xf32> to vector<16x64xf32>
    %142 = arith.mulf %133, %141 : vector<16x64xf32>
    %143 = arith.addf %140, %142 : vector<16x64xf32>
    %144 = math.tanh %143 : vector<16x64xf32>
    %cst_52 = arith.constant 1.000000e+00 : f32
    %145 = vector.broadcast %cst_52 : f32 to vector<16x64xf32>
    %146 = arith.subf %145, %139 : vector<16x64xf32>
    %147 = arith.mulf %146, %144 : vector<16x64xf32>
    %148 = arith.mulf %139, %117 : vector<16x64xf32>
    %149 = arith.addf %147, %148 : vector<16x64xf32>
    %cst_53 = arith.constant 0.000000e+00 : f32
    %150 = vector.broadcast %cst_53 : f32 to vector<16x64xf32>
    %151 = tpu.concatenate %149, %150 in 1 : vector<16x64xf32>, vector<16x64xf32> -> vector<16x128xf32>
    %c0_54 = arith.constant 0 : index
    %c0_55 = arith.constant 0 : index
    %152 = vector.load %arg6[%c0_54, %c0_55] : memref<16x128xf32, #tpu.memory_space<vmem>>, vector<16x128xf32>
    tpu.vector_store %arg6[%c0_54, %c0_55], %151 {strides = array<i32>} : memref<16x128xf32, #tpu.memory_space<vmem>>, vector<16x128xf32>,
    return
  }
}

</mosaic_0001>

<llo_original>
// kernel: forward.5
$region0: #{forward.5}
  #allocation0 [shape = 'u32[]', space=smem, size = 0x4, offset = 0x4, fixed_abs, tag = 'smem constant byte address 0x4 - core index']
  #allocation1 [shape = 'u32[144,128]{1,0:T(1,128)}', space=vmem, size = 0x12000, scoped, tag = 'internal scratch']
  %s0 = inlined_call_operand.vmem [shape: s32[16,1], index: 0, kind: input, shape index: {}]
  %s1 = inlined_call_operand.vmem [shape: f32[16,128], index: 1, kind: input, shape index: {}]
  %s2 = inlined_call_operand.vmem [shape: f32[96,128], index: 2, kind: input, shape index: {}]
  %s3 = inlined_call_operand.vmem [shape: f32[16,128], index: 3, kind: output, shape index: {}]
  %s4 = sld [smem:[#allocation0]]
  $region22: #{forward.5} parent=0
    _
  %s6 = ssub.s32 1, %s4
  %s7 = scalar_select 0, %s6, %s4
  // Predicated region
  $region2: #{forward.5} parent=0 // pred_check
    _
  $region3: #{forward.5} parent=0 // pred_check_branch
    %9 = sbr.rel (0) target = $region5
  $region4: #{forward.5} parent=0 // pred_region
    _
  $region5: #{forward.5} parent=0 // pred_fallthru
    _
  // Predicated region
  $region6: #{forward.5} parent=0 // pred_check
    _
  $region7: #{forward.5} parent=0 // pred_check_branch
    %11 = sbr.rel (0) target = $region9
  $region8: #{forward.5} parent=0 // pred_region
    _
  $region9: #{forward.5} parent=0 // pred_fallthru
    _
  // Predicated region
  $region10: #{forward.5} parent=0 // pred_check
    _
  $region11: #{forward.5} parent=0 // pred_check_branch
    %13 = sbr.rel (0) target = $region13
  $region12: #{forward.5} parent=0 // pred_region
    _
  $region13: #{forward.5} parent=0 // pred_fallthru
    _
  %v14 = vld [vmem:[%s1] sm:$0xff]
  %v15 = vld [vmem:[%s1 + $0x8] sm:$0xff]
  %v16 = vlaneseq
  %v17 = vand.u32 %v16, 127
  %v18 = vld [vmem:[%s0] sm:$0xff]
  %v19 = vld [vmem:[%s0 + $0x8] sm:$0xff]
  %20 = vset.pattern.permute.xlu0 0
  %21 = vperm.xlu0 %20, %v18
  %v22 = vpop.permute.xlu0 %21
  %23 = vset.pattern.permute.xlu0 0
  %24 = vperm.xlu0 %23, %v19
  %v25 = vpop.permute.xlu0 %24
  %vm26 = vcmp.eq.s32.totalorder %v17, %v22
  %vm27 = vcmp.eq.s32.totalorder %v17, %v25
  %v28 = vsel %vm26, 1, 0
  %v29 = vsel %vm27, 1, 0
  %v30 = vcvt.s32.f32 %v28
  %v31 = vcvt.s32.f32 %v29
  %34 = vrot.lane.b32.xlu0 %v14, 96
  %v35 = vpop.permute.xlu0 %34
  %36 = vrot.lane.b32.xlu0 %v15, 96
  %v37 = vpop.permute.xlu0 %36
  %vm40 = vcmask 130048
  %v42 = vsel %vm40, %v30, 0
  %v45 = vsel %vm40, %v31, 0
  %47 = vmatprep.subr.mxu0 0.0
  %48 = vmatpush1.msra.mxu0 %v35
  %49 = vmatprep.subr.mxu0 0.0
  %50 = vmatpush1.msra.mxu0 %v37
  %51 = vmatprep.subr.mxu0 0.0
  %52 = vmatpush1.msra.mxu0 0.0
  %53 = vmatprep.subr.mxu0 0.0
  %54 = vmatpush1.msra.mxu0 0.0
  %55 = vmatprep.subr.mxu0 0.0
  %56 = vmatpush1.msra.mxu0 0.0
  %57 = vmatprep.subr.mxu0 0.0
  %58 = vmatpush1.msra.mxu0 0.0
  %59 = vmatprep.subr.mxu0 0.0
  %60 = vmatpush1.msra.mxu0 0.0
  %61 = vmatprep.subr.mxu0 0.0
  %62 = vmatpush1.msra.mxu0 0.0
  %63 = vmatprep.subr.mxu0 0.0
  %64 = vmatpush1.msra.mxu0 0.0
  %65 = vmatprep.subr.mxu0 0.0
  %66 = vmatpush1.msra.mxu0 0.0
  %67 = vmatprep.subr.mxu0 0.0
  %68 = vmatpush1.msra.mxu0 0.0
  %69 = vmatprep.subr.mxu0 0.0
  %70 = vmatpush1.msra.mxu0 0.0
  %71 = vmatprep.subr.mxu0 0.0
  %72 = vmatpush1.msra.mxu0 0.0
  %73 = vmatprep.subr.mxu0 0.0
  %74 = vmatpush1.msra.mxu0 0.0
  %75 = vmatprep.subr.mxu0 0.0
  %76 = vmatpush1.msra.mxu0 0.0
  %77 = vmatprep.subr.mxu0 0.0
  %78 = vmatpush1.msra.mxu0 0.0
  %79 = vmatprep.subr.mxu0 0.0
  %80 = vmatpush1.msra.mxu0 0.0
  %81 = vmatprep.subr.mxu0 0.0
  %82 = vmatpush1.msra.mxu0 0.0
  %83 = vmatprep.subr.mxu0 0.0
  %84 = vmatpush1.msra.mxu0 0.0
  %85 = vmatprep.subr.mxu0 0.0
  %86 = vmatpush1.msra.mxu0 0.0
  %87 = vmatprep.subr.mxu0 0.0
  %88 = vmatpush1.msra.mxu0 0.0
  %89 = vmatprep.subr.mxu0 0.0
  %90 = vmatpush1.msra.mxu0 0.0
  %91 = vmatprep.subr.mxu0 0.0
  %92 = vmatpush1.msra.mxu0 0.0
  %93 = vmatprep.subr.mxu0 0.0
  %94 = vmatpush1.msra.mxu0 0.0
  %95 = vmatprep.subr.mxu0 0.0
  %96 = vmatpush1.msra.mxu0 0.0
  %97 = vmatprep.subr.mxu0 0.0
  %98 = vmatpush1.msra.mxu0 0.0
  %99 = vmatprep.subr.mxu0 0.0
  %100 = vmatpush1.msra.mxu0 0.0
  %101 = vmatprep.subr.mxu0 0.0
  %102 = vmatpush1.msra.mxu0 0.0
  %103 = vmatprep.subr.mxu0 0.0
  %104 = vmatpush1.msra.mxu0 0.0
  %105 = vmatprep.subr.mxu0 0.0
  %106 = vmatpush1.msra.mxu0 0.0
  %107 = vmatprep.subr.mxu0 0.0
  %108 = vmatpush1.msra.mxu0 0.0
  %109 = vmatprep.subr.mxu0 0.0
  %110 = vmatpush1.msra.mxu0 0.0
  %111 = vmatprep.mubr.f32.mxu0 0.0
  %112 = vmatmul.mubr.f32.gmra.mrb[0].mxu0 %v42
  %v113 = vpop.f32.mrb[0].mxu0
  %v114 = vadd.f32 0.0, %v113
  %v115 = vpop.f32.mrb[0].mxu0
  %116 = vmatprep.mubr.f32.mxu0 0.0
  %117 = vmatmul.mubr.f32.gmra.mrb[0].mxu0 %v45
  %v118 = vpop.f32.mrb[0].mxu0
  %v119 = vadd.f32 0.0, %v118
  %v120 = vpop.f32.mrb[0].mxu0
  %121 = vdwg.mxu0
  %v122 = vld [vmem:[%s2] sm:$0xff]
  %v123 = vld [vmem:[%s2 + $0x8] sm:$0xff]
  %v124 = vld [vmem:[%s2 + $0x10] sm:$0xff]
  %v125 = vld [vmem:[%s2 + $0x18] sm:$0xff]
  %v126 = vld [vmem:[%s2 + $0x20] sm:$0xff]
  %v127 = vld [vmem:[%s2 + $0x28] sm:$0xff]
  %v128 = vld [vmem:[%s2 + $0x30] sm:$0xff]
  %v129 = vld [vmem:[%s2 + $0x38] sm:$0xff]
  %v130 = vld [vmem:[%s2 + $0x40] sm:$0xff]
  %v131 = vld [vmem:[%s2 + $0x48] sm:$0xff]
  %v132 = vld [vmem:[%s2 + $0x50] sm:$0xff]
  %v133 = vld [vmem:[%s2 + $0x58] sm:$0xff]
  %vm134 = vcmask 261120
  %v136 = vsel %vm134, %v114, 0
  %v139 = vsel %vm134, %v119, 0
  %141 = vmatprep.subr.mxu0 0.0
  %142 = vmatpush1.msra.mxu0 %v130
  %143 = vmatprep.subr.mxu0 0.0
  %144 = vmatpush1.msra.mxu0 %v131
  %145 = vmatprep.subr.mxu0 0.0
  %146 = vmatpush1.msra.mxu0 %v132
  %147 = vmatprep.subr.mxu0 0.0
  %148 = vmatpush1.msra.mxu0 %v133
  %149 = vmatprep.subr.mxu0 0.0
  %150 = vmatpush1.msra.mxu0 0.0
  %151 = vmatprep.subr.mxu0 0.0
  %152 = vmatpush1.msra.mxu0 0.0
  %153 = vmatprep.subr.mxu0 0.0
  %154 = vmatpush1.msra.mxu0 0.0
  %155 = vmatprep.subr.mxu0 0.0
  %156 = vmatpush1.msra.mxu0 0.0
  %157 = vmatprep.subr.mxu0 0.0
  %158 = vmatpush1.msra.mxu0 0.0
  %159 = vmatprep.subr.mxu0 0.0
  %160 = vmatpush1.msra.mxu0 0.0
  %161 = vmatprep.subr.mxu0 0.0
  %162 = vmatpush1.msra.mxu0 0.0
  %163 = vmatprep.subr.mxu0 0.0
  %164 = vmatpush1.msra.mxu0 0.0
  %165 = vmatprep.subr.mxu0 0.0
  %166 = vmatpush1.msra.mxu0 0.0
  %167 = vmatprep.subr.mxu0 0.0
  %168 = vmatpush1.msra.mxu0 0.0
  %169 = vmatprep.subr.mxu0 0.0
  %170 = vmatpush1.msra.mxu0 0.0
  %171 = vmatprep.subr.mxu0 0.0
  %172 = vmatpush1.msra.mxu0 0.0
  %173 = vmatprep.subr.mxu0 0.0
  %174 = vmatpush1.msra.mxu0 0.0
  %175 = vmatprep.subr.mxu0 0.0
  %176 = vmatpush1.msra.mxu0 0.0
  %177 = vmatprep.subr.mxu0 0.0
  %178 = vmatpush1.msra.mxu0 0.0
  %179 = vmatprep.subr.mxu0 0.0
  %180 = vmatpush1.msra.mxu0 0.0
  %181 = vmatprep.subr.mxu0 0.0
  %182 = vmatpush1.msra.mxu0 0.0
  %183 = vmatprep.subr.mxu0 0.0
  %184 = vmatpush1.msra.mxu0 0.0
  %185 = vmatprep.subr.mxu0 0.0
  %186 = vmatpush1.msra.mxu0 0.0
  %187 = vmatprep.subr.mxu0 0.0
  %188 = vmatpush1.msra.mxu0 0.0
  %189 = vmatprep.subr.mxu0 0.0
  %190 = vmatpush1.msra.mxu0 0.0
  %191 = vmatprep.subr.mxu0 0.0
  %192 = vmatpush1.msra.mxu0 0.0
  %193 = vmatprep.subr.mxu0 0.0
  %194 = vmatpush1.msra.mxu0 0.0
  %195 = vmatprep.subr.mxu0 0.0
  %196 = vmatpush1.msra.mxu0 0.0
  %197 = vmatprep.subr.mxu0 0.0
  %198 = vmatpush1.msra.mxu0 0.0
  %199 = vmatprep.subr.mxu0 0.0
  %200 = vmatpush1.msra.mxu0 0.0
  %201 = vmatprep.subr.mxu0 0.0
  %202 = vmatpush1.msra.mxu0 0.0
  %203 = vmatprep.subr.mxu0 0.0
  %204 = vmatpush1.msra.mxu0 0.0
  %205 = vmatprep.mubr.f32.mxu0 0.0
  %206 = vmatmul.mubr.f32.gmra.mrb[0].mxu0 %v136
  %v207 = vpop.f32.mrb[0].mxu0
  %v208 = vadd.f32 0.0, %v207
  %v209 = vpop.f32.mrb[0].mxu0
  %210 = vmatprep.mubr.f32.mxu0 0.0
  %211 = vmatmul.mubr.f32.gmra.mrb[0].mxu0 %v139
  %v212 = vpop.f32.mrb[0].mxu0
  %v213 = vadd.f32 0.0, %v212
  %v214 = vpop.f32.mrb[0].mxu0
  %215 = vdwg.mxu0
  %vm216 = vcmask 523264
  %v217 = vsel %vm216, %v14, 0
  %v219 = vsel %vm216, %v15, 0
  %221 = vmatprep.subr.mxu0 0.0
  %222 = vmatpush1.msra.mxu0 %v122
  %223 = vmatprep.subr.mxu0 0.0
  %224 = vmatpush1.msra.mxu0 %v123
  %225 = vmatprep.subr.mxu0 0.0
  %226 = vmatpush1.msra.mxu0 %v124
  %227 = vmatprep.subr.mxu0 0.0
  %228 = vmatpush1.msra.mxu0 %v125
  %229 = vmatprep.subr.mxu0 0.0
  %230 = vmatpush1.msra.mxu0 %v126
  %231 = vmatprep.subr.mxu0 0.0
  %232 = vmatpush1.msra.mxu0 %v127
  %233 = vmatprep.subr.mxu0 0.0
  %234 = vmatpush1.msra.mxu0 %v128
  %235 = vmatprep.subr.mxu0 0.0
  %236 = vmatpush1.msra.mxu0 %v129
  %237 = vmatprep.subr.mxu0 0.0
  %238 = vmatpush1.msra.mxu0 0.0
  %239 = vmatprep.subr.mxu0 0.0
  %240 = vmatpush1.msra.mxu0 0.0
  %241 = vmatprep.subr.mxu0 0.0
  %242 = vmatpush1.msra.mxu0 0.0
  %243 = vmatprep.subr.mxu0 0.0
  %244 = vmatpush1.msra.mxu0 0.0
  %245 = vmatprep.subr.mxu0 0.0
  %246 = vmatpush1.msra.mxu0 0.0
  %247 = vmatprep.subr.mxu0 0.0
  %248 = vmatpush1.msra.mxu0 0.0
  %249 = vmatprep.subr.mxu0 0.0
  %250 = vmatpush1.msra.mxu0 0.0
  %251 = vmatprep.subr.mxu0 0.0
  %252 = vmatpush1.msra.mxu0 0.0
  %253 = vmatprep.subr.mxu0 0.0
  %254 = vmatpush1.msra.mxu0 0.0
  %255 = vmatprep.subr.mxu0 0.0
  %256 = vmatpush1.msra.mxu0 0.0
  %257 = vmatprep.subr.mxu0 0.0
  %258 = vmatpush1.msra.mxu0 0.0
  %259 = vmatprep.subr.mxu0 0.0
  %260 = vmatpush1.msra.mxu0 0.0
  %261 = vmatprep.subr.mxu0 0.0
  %262 = vmatpush1.msra.mxu0 0.0
  %263 = vmatprep.subr.mxu0 0.0
  %264 = vmatpush1.msra.mxu0 0.0
  %265 = vmatprep.subr.mxu0 0.0
  %266 = vmatpush1.msra.mxu0 0.0
  %267 = vmatprep.subr.mxu0 0.0
  %268 = vmatpush1.msra.mxu0 0.0
  %269 = vmatprep.subr.mxu0 0.0
  %270 = vmatpush1.msra.mxu0 0.0
  %271 = vmatprep.subr.mxu0 0.0
  %272 = vmatpush1.msra.mxu0 0.0
  %273 = vmatprep.subr.mxu0 0.0
  %274 = vmatpush1.msra.mxu0 0.0
  %275 = vmatprep.subr.mxu0 0.0
  %276 = vmatpush1.msra.mxu0 0.0
  %277 = vmatprep.subr.mxu0 0.0
  %278 = vmatpush1.msra.mxu0 0.0
  %279 = vmatprep.subr.mxu0 0.0
  %280 = vmatpush1.msra.mxu0 0.0
  %281 = vmatprep.subr.mxu0 0.0
  %282 = vmatpush1.msra.mxu0 0.0
  %283 = vmatprep.subr.mxu0 0.0
  %284 = vmatpush1.msra.mxu0 0.0
  %285 = vmatprep.mubr.f32.mxu0 0.0
  %286 = vmatmul.mubr.f32.gmra.mrb[0].mxu0 %v217
  %v287 = vpop.f32.mrb[0].mxu0
  %v288 = vadd.f32 %v208, %v287
  %v289 = vpop.f32.mrb[0].mxu0
  %290 = vmatprep.mubr.f32.mxu0 0.0
  %291 = vmatmul.mubr.f32.gmra.mrb[0].mxu0 %v219
  %v292 = vpop.f32.mrb[0].mxu0
  %v293 = vadd.f32 %v213, %v292
  %v294 = vpop.f32.mrb[0].mxu0
  %295 = vdwg.mxu0
  %296 = vst [vmem:[%s3] sm:$0xff] %v288
  %297 = vst [vmem:[%s3 + $0x8] sm:$0xff] %v293
  // Predicated region
  $region14: #{forward.5} parent=0 // pred_check
    _
  $region15: #{forward.5} parent=0 // pred_check_branch
    %299 = sbr.rel (0) target = $region17
  $region16: #{forward.5} parent=0 // pred_region
    _
  $region17: #{forward.5} parent=0 // pred_fallthru
    _
  // Predicated region
  $region18: #{forward.5} parent=0 // pred_check
    _
  $region19: #{forward.5} parent=0 // pred_check_branch
    %301 = sbr.rel (0) target = $region21
  $region20: #{forward.5} parent=0 // pred_region
    _
  $region21: #{forward.5} parent=0 // pred_fallthru
    _

// kernel: forward.4
$region0: #{forward.4}
  #allocation0 [shape = 'u32[]', space=smem, size = 0x4, offset = 0x4, fixed_abs, tag = 'smem constant byte address 0x4 - core index']
  #allocation1 [shape = 'u32[144,128]{1,0:T(1,128)}', space=vmem, size = 0x12000, scoped, tag = 'internal scratch']
  #allocation2 [shape = 'f32[1]{0:T(128)S(6)}', space=smem, size = 0x200, scoped, tag = 'scoped memory for forward.4']
  %s0 = inlined_call_operand.<no memory space> [shape: f32[1], index: 0, kind: input, shape index: {}]
  %s1 = inlined_call_operand.vmem [shape: s32[16,1], index: 1, kind: input, shape index: {}]
  %s2 = inlined_call_operand.vmem [shape: s32[64,8], index: 2, kind: input, shape index: {}]
  %s3 = inlined_call_operand.vmem [shape: s32[8,64], index: 3, kind: input, shape index: {}]
  %s4 = inlined_call_operand.vmem [shape: f32[16,128], index: 4, kind: input, shape index: {}]
  %s5 = inlined_call_operand.vmem [shape: f32[376,256], index: 5, kind: input, shape index: {}]
  %s6 = inlined_call_operand.vmem [shape: f32[16,128], index: 6, kind: output, shape index: {}]
  %s7 = sld [smem:[#allocation0]]
  $region34: #{forward.4} parent=0
    _
  %s9 = ssub.s32 1, %s7
  %s10 = scalar_select 0, %s9, %s7
  %11 = sst [smem:[#allocation2]] %s0
  // Predicated region
  $region2: #{forward.4} parent=0 // pred_check
    _
  $region3: #{forward.4} parent=0 // pred_check_branch
    %13 = sbr.rel (0) target = $region5
  $region4: #{forward.4} parent=0 // pred_region
    _
  $region5: #{forward.4} parent=0 // pred_fallthru
    _
  // Predicated region
  $region6: #{forward.4} parent=0 // pred_check
    _
  $region7: #{forward.4} parent=0 // pred_check_branch
    %15 = sbr.rel (0) target = $region9
  $region8: #{forward.4} parent=0 // pred_region
    _
  $region9: #{forward.4} parent=0 // pred_fallthru
    _
  // Predicated region
  $region10: #{forward.4} parent=0 // pred_check
    _
  $region11: #{forward.4} parent=0 // pred_check_branch
    %17 = sbr.rel (0) target = $region13
  $region12: #{forward.4} parent=0 // pred_region
    _
  $region13: #{forward.4} parent=0 // pred_fallthru
    _
  // Predicated region
  $region14: #{forward.4} parent=0 // pred_check
    _
  $region15: #{forward.4} parent=0 // pred_check_branch
    %19 = sbr.rel (0) target = $region17
  $region16: #{forward.4} parent=0 // pred_region
    _
  $region17: #{forward.4} parent=0 // pred_fallthru
    _
  // Predicated region
  $region18: #{forward.4} parent=0 // pred_check
    _
  $region19: #{forward.4} parent=0 // pred_check_branch
    %21 = sbr.rel (0) target = $region21
  $region20: #{forward.4} parent=0 // pred_region
    _
  $region21: #{forward.4} parent=0 // pred_fallthru
    _
  // Predicated region
  $region22: #{forward.4} parent=0 // pred_check
    _
  $region23: #{forward.4} parent=0 // pred_check_branch
    %23 = sbr.rel (0) target = $region25
  $region24: #{forward.4} parent=0 // pred_region
    _
  $region25: #{forward.4} parent=0 // pred_fallthru
    _
  %s24 = sld [smem:[#allocation2]]
  %v25 = vld [vmem:[%s2] sm:$0xff]
  %v26 = vld [vmem:[%s2 + $0x8] sm:$0xff]
  %v27 = vld [vmem:[%s2 + $0x10] sm:$0xff]
  %v28 = vld [vmem:[%s2 + $0x18] sm:$0xff]
  %v29 = vld [vmem:[%s2 + $0x20] sm:$0xff]
  %v30 = vld [vmem:[%s2 + $0x28] sm:$0xff]
  %v31 = vld [vmem:[%s2 + $0x30] sm:$0xff]
  %v32 = vld [vmem:[%s2 + $0x38] sm:$0xff]
  %v33 = vcvt.s32.f32 %v25
  %v34 = vcvt.s32.f32 %v26
  %v35 = vcvt.s32.f32 %v27
  %v36 = vcvt.s32.f32 %v28
  %v37 = vcvt.s32.f32 %v29
  %v38 = vcvt.s32.f32 %v30
  %v39 = vcvt.s32.f32 %v31
  %v40 = vcvt.s32.f32 %v32
  %v41 = vld [vmem:[%s5] sm:$0xff]
  %v42 = vld [vmem:[%s5 + $0x10] sm:$0x1]
  %v43 = vld [vmem:[%s5 + $0x20] sm:$0xf]
  %v44 = vld [vmem:[%s5 + $0x30] sm:$0xff]
  %v45 = vld [vmem:[%s5 + $0x40] sm:$0xff]
  %v46 = vld [vmem:[%s5 + $0x50] sm:$0xff]
  %v47 = vld [vmem:[%s5 + $0x60] sm:$0xff]
  %v48 = vld [vmem:[%s5 + $0x70] sm:$0xff]
  %v49 = vld [vmem:[%s5 + $0x80] sm:$0xff]
  %v50 = vld [vmem:[%s5 + $0x90] sm:$0xff]
  %v51 = vld [vmem:[%s5 + $0xa0] sm:$0xff]
  %v52 = vld [vmem:[%s5 + $0xb0] sm:$0xff]
  %v53 = vld [vmem:[%s5 + $0xc0] sm:$0xff]
  %v54 = vld [vmem:[%s5 + $0xd0] sm:$0xff]
  %v55 = vld [vmem:[%s5 + $0xe0] sm:$0xff]
  %v56 = vld [vmem:[%s5 + $0xf0] sm:$0xff]
  %v57 = vld [vmem:[%s5 + $0x100] sm:$0xff]
  %v58 = vld [vmem:[%s5 + $0x110] sm:$0xff]
  %v59 = vld [vmem:[%s5 + $0x120] sm:$0xff]
  %v60 = vld [vmem:[%s5 + $0x130] ss:$0 sm:$0xff]
  %v61 = vld [vmem:[%s5 + $0x140] ss:$0 sm:$0xff]
  %v62 = vld [vmem:[%s5 + $0x150] ss:$0 sm:$0xff]
  %v63 = vld [vmem:[%s5 + $0x160] sm:$0xff]
  %v64 = vld [vmem:[%s5 + $0x170] sm:$0xff]
  %v65 = vld [vmem:[%s5 + $0x180] sm:$0xff]
  %v66 = vld [vmem:[%s5 + $0x190] sm:$0xff]
  %v67 = vld [vmem:[%s5 + $0x1a0] sm:$0xff]
  %v68 = vld [vmem:[%s5 + $0x1b0] sm:$0xff]
  %v69 = vld [vmem:[%s5 + $0x1c0] sm:$0xff]
  %v70 = vld [vmem:[%s5 + $0x1d0] sm:$0xff]
  %s71 = scalar_lea.vmem %s5, 736
  %v72 = vld [vmem:[%s71] ss:$8 sm:$0x3]
  %v73 = vlaneseq
  %v74 = vand.u32 %v73, 127
  %75 = vset.pattern.permute.xlu0 0
  %76 = vperm.xlu0 %75, %v25
  %v77 = vpop.permute.xlu0 %76
  %78 = vset.pattern.permute.xlu0 0
  %79 = vperm.xlu0 %78, %v26
  %v80 = vpop.permute.xlu0 %79
  %81 = vset.pattern.permute.xlu0 0
  %82 = vperm.xlu0 %81, %v27
  %v83 = vpop.permute.xlu0 %82
  %84 = vset.pattern.permute.xlu0 0
  %85 = vperm.xlu0 %84, %v28
  %v86 = vpop.permute.xlu0 %85
  %87 = vset.pattern.permute.xlu0 0
  %88 = vperm.xlu0 %87, %v29
  %v89 = vpop.permute.xlu0 %88
  %90 = vset.pattern.permute.xlu0 0
  %91 = vperm.xlu0 %90, %v30
  %v92 = vpop.permute.xlu0 %91
  %93 = vset.pattern.permute.xlu0 0
  %94 = vperm.xlu0 %93, %v31
  %v95 = vpop.permute.xlu0 %94
  %96 = vset.pattern.permute.xlu0 0
  %97 = vperm.xlu0 %96, %v32
  %v98 = vpop.permute.xlu0 %97
  %vm99 = vcmp.eq.s32.totalorder %v74, %v77
  %vm100 = vcmp.eq.s32.totalorder %v74, %v80
  %vm101 = vcmp.eq.s32.totalorder %v74, %v83
  %vm102 = vcmp.eq.s32.totalorder %v74, %v86
  %vm103 = vcmp.eq.s32.totalorder %v74, %v89
  %vm104 = vcmp.eq.s32.totalorder %v74, %v92
  %vm105 = vcmp.eq.s32.totalorder %v74, %v95
  %vm106 = vcmp.eq.s32.totalorder %v74, %v98
  %v107 = vsel %vm99, 1, 0
  %v108 = vsel %vm100, 1, 0
  %v109 = vsel %vm101, 1, 0
  %v110 = vsel %vm102, 1, 0
  %v111 = vsel %vm103, 1, 0
  %v112 = vsel %vm104, 1, 0
  %v113 = vsel %vm105, 1, 0
  %v114 = vsel %vm106, 1, 0
  %v115 = vcvt.s32.f32 %v107
  %v116 = vcvt.s32.f32 %v108
  %v117 = vcvt.s32.f32 %v109
  %v118 = vcvt.s32.f32 %v110
  %v119 = vcvt.s32.f32 %v111
  %v120 = vcvt.s32.f32 %v112
  %v121 = vcvt.s32.f32 %v113
  %v122 = vcvt.s32.f32 %v114
  %123 = vset.pattern.permute.xlu0 1
  %124 = vperm.xlu0 %123, %v25
  %v125 = vpop.permute.xlu0 %124
  %126 = vset.pattern.permute.xlu0 1
  %127 = vperm.xlu0 %126, %v26
  %v128 = vpop.permute.xlu0 %127
  %129 = vset.pattern.permute.xlu0 1
  %130 = vperm.xlu0 %129, %v27
  %v131 = vpop.permute.xlu0 %130
  %132 = vset.pattern.permute.xlu0 1
  %133 = vperm.xlu0 %132, %v28
  %v134 = vpop.permute.xlu0 %133
  %135 = vset.pattern.permute.xlu0 1
  %136 = vperm.xlu0 %135, %v29
  %v137 = vpop.permute.xlu0 %136
  %138 = vset.pattern.permute.xlu0 1
  %139 = vperm.xlu0 %138, %v30
  %v140 = vpop.permute.xlu0 %139
  %141 = vset.pattern.permute.xlu0 1
  %142 = vperm.xlu0 %141, %v31
  %v143 = vpop.permute.xlu0 %142
  %144 = vset.pattern.permute.xlu0 1
  %145 = vperm.xlu0 %144, %v32
  %v146 = vpop.permute.xlu0 %145
  %vm147 = vcmp.eq.s32.totalorder %v74, %v125
  %vm148 = vcmp.eq.s32.totalorder %v74, %v128
  %vm149 = vcmp.eq.s32.totalorder %v74, %v131
  %vm150 = vcmp.eq.s32.totalorder %v74, %v134
  %vm151 = vcmp.eq.s32.totalorder %v74, %v137
  %vm152 = vcmp.eq.s32.totalorder %v74, %v140
  %vm153 = vcmp.eq.s32.totalorder %v74, %v143
  %vm154 = vcmp.eq.s32.totalorder %v74, %v146
  %v155 = vsel %vm147, 1, 0
  %v156 = vsel %vm148, 1, 0
  %v157 = vsel %vm149, 1, 0
  %v158 = vsel %vm150, 1, 0
  %v159 = vsel %vm151, 1, 0
  %v160 = vsel %vm152, 1, 0
  %v161 = vsel %vm153, 1, 0
  %v162 = vsel %vm154, 1, 0
  %v163 = vcvt.s32.f32 %v155
  %v164 = vcvt.s32.f32 %v156
  %v165 = vcvt.s32.f32 %v157
  %v166 = vcvt.s32.f32 %v158
  %v167 = vcvt.s32.f32 %v159
  %v168 = vcvt.s32.f32 %v160
  %v169 = vcvt.s32.f32 %v161
  %v170 = vcvt.s32.f32 %v162
  %171 = vset.pattern.permute.xlu0 2
  %172 = vperm.xlu0 %171, %v25
  %v173 = vpop.permute.xlu0 %172
  %174 = vset.pattern.permute.xlu0 2
  %175 = vperm.xlu0 %174, %v26
  %v176 = vpop.permute.xlu0 %175
  %177 = vset.pattern.permute.xlu0 2
  %178 = vperm.xlu0 %177, %v27
  %v179 = vpop.permute.xlu0 %178
  %180 = vset.pattern.permute.xlu0 2
  %181 = vperm.xlu0 %180, %v28
  %v182 = vpop.permute.xlu0 %181
  %183 = vset.pattern.permute.xlu0 2
  %184 = vperm.xlu0 %183, %v29
  %v185 = vpop.permute.xlu0 %184
  %186 = vset.pattern.permute.xlu0 2
  %187 = vperm.xlu0 %186, %v30
  %v188 = vpop.permute.xlu0 %187
  %189 = vset.pattern.permute.xlu0 2
  %190 = vperm.xlu0 %189, %v31
  %v191 = vpop.permute.xlu0 %190
  %192 = vset.pattern.permute.xlu0 2
  %193 = vperm.xlu0 %192, %v32
  %v194 = vpop.permute.xlu0 %193
  %vm195 = vcmp.eq.s32.totalorder %v74, %v173
  %vm196 = vcmp.eq.s32.totalorder %v74, %v176
  %vm197 = vcmp.eq.s32.totalorder %v74, %v179
  %vm198 = vcmp.eq.s32.totalorder %v74, %v182
  %vm199 = vcmp.eq.s32.totalorder %v74, %v185
  %vm200 = vcmp.eq.s32.totalorder %v74, %v188
  %vm201 = vcmp.eq.s32.totalorder %v74, %v191
  %vm202 = vcmp.eq.s32.totalorder %v74, %v194
  %v203 = vsel %vm195, 1, 0
  %v204 = vsel %vm196, 1, 0
  %v205 = vsel %vm197, 1, 0
  %v206 = vsel %vm198, 1, 0
  %v207 = vsel %vm199, 1, 0
  %v208 = vsel %vm200, 1, 0
  %v209 = vsel %vm201, 1, 0
  %v210 = vsel %vm202, 1, 0
  %v211 = vcvt.s32.f32 %v203
  %v212 = vcvt.s32.f32 %v204
  %v213 = vcvt.s32.f32 %v205
  %v214 = vcvt.s32.f32 %v206
  %v215 = vcvt.s32.f32 %v207
  %v216 = vcvt.s32.f32 %v208
  %v217 = vcvt.s32.f32 %v209
  %v218 = vcvt.s32.f32 %v210
  %v219 = vld [vmem:[%s1] sm:$0xff]
  %v220 = vld [vmem:[%s1 + $0x8] sm:$0xff]
  %221 = vset.pattern.permute.xlu0 0
  %222 = vperm.xlu0 %221, %v219
  %v223 = vpop.permute.xlu0 %222
  %224 = vset.pattern.permute.xlu0 0
  %225 = vperm.xlu0 %224, %v220
  %v226 = vpop.permute.xlu0 %225
  %vm227 = vcmp.eq.s32.totalorder %v74, %v223
  %vm228 = vcmp.eq.s32.totalorder %v74, %v226
  %v229 = vsel %vm227, 1, 0
  %v230 = vsel %vm228, 1, 0
  %v231 = vcvt.s32.f32 %v229
  %v232 = vcvt.s32.f32 %v230
  %v233 = vld [vmem:[%s4] sm:$0xff]
  %v234 = vld [vmem:[%s4 + $0x8] sm:$0xff]
  %vm235 = vcmask 130048
  %v237 = vsel %vm235, %v115, 0
  %v240 = vsel %vm235, %v116, 0
  %v243 = vsel %vm235, %v117, 0
  %v246 = vsel %vm235, %v118, 0
  %v249 = vsel %vm235, %v119, 0
  %v252 = vsel %vm235, %v120, 0
  %v255 = vsel %vm235, %v121, 0
  %v258 = vsel %vm235, %v122, 0
  %260 = vmatprep.subr.mxu0 0.0
  %261 = vmatpush1.msra.mxu0 %v233
  %262 = vmatprep.subr.mxu0 0.0
  %263 = vmatpush1.msra.mxu0 %v234
  %264 = vmatprep.subr.mxu0 0.0
  %265 = vmatpush1.msra.mxu0 0.0
  %266 = vmatprep.subr.mxu0 0.0
  %267 = vmatpush1.msra.mxu0 0.0
  %268 = vmatprep.subr.mxu0 0.0
  %269 = vmatpush1.msra.mxu0 0.0
  %270 = vmatprep.subr.mxu0 0.0
  %271 = vmatpush1.msra.mxu0 0.0
  %272 = vmatprep.subr.mxu0 0.0
  %273 = vmatpush1.msra.mxu0 0.0
  %274 = vmatprep.subr.mxu0 0.0
  %275 = vmatpush1.msra.mxu0 0.0
  %276 = vmatprep.subr.mxu0 0.0
  %277 = vmatpush1.msra.mxu0 0.0
  %278 = vmatprep.subr.mxu0 0.0
  %279 = vmatpush1.msra.mxu0 0.0
  %280 = vmatprep.subr.mxu0 0.0
  %281 = vmatpush1.msra.mxu0 0.0
  %282 = vmatprep.subr.mxu0 0.0
  %283 = vmatpush1.msra.mxu0 0.0
  %284 = vmatprep.subr.mxu0 0.0
  %285 = vmatpush1.msra.mxu0 0.0
  %286 = vmatprep.subr.mxu0 0.0
  %287 = vmatpush1.msra.mxu0 0.0
  %288 = vmatprep.subr.mxu0 0.0
  %289 = vmatpush1.msra.mxu0 0.0
  %290 = vmatprep.subr.mxu0 0.0
  %291 = vmatpush1.msra.mxu0 0.0
  %292 = vmatprep.subr.mxu0 0.0
  %293 = vmatpush1.msra.mxu0 0.0
  %294 = vmatprep.subr.mxu0 0.0
  %295 = vmatpush1.msra.mxu0 0.0
  %296 = vmatprep.subr.mxu0 0.0
  %297 = vmatpush1.msra.mxu0 0.0
  %298 = vmatprep.subr.mxu0 0.0
  %299 = vmatpush1.msra.mxu0 0.0
  %300 = vmatprep.subr.mxu0 0.0
  %301 = vmatpush1.msra.mxu0 0.0
  %302 = vmatprep.subr.mxu0 0.0
  %303 = vmatpush1.msra.mxu0 0.0
  %304 = vmatprep.subr.mxu0 0.0
  %305 = vmatpush1.msra.mxu0 0.0
  %306 = vmatprep.subr.mxu0 0.0
  %307 = vmatpush1.msra.mxu0 0.0
  %308 = vmatprep.subr.mxu0 0.0
  %309 = vmatpush1.msra.mxu0 0.0
  %310 = vmatprep.subr.mxu0 0.0
  %311 = vmatpush1.msra.mxu0 0.0
  %312 = vmatprep.subr.mxu0 0.0
  %313 = vmatpush1.msra.mxu0 0.0
  %314 = vmatprep.subr.mxu0 0.0
  %315 = vmatpush1.msra.mxu0 0.0
  %316 = vmatprep.subr.mxu0 0.0
  %317 = vmatpush1.msra.mxu0 0.0
  %318 = vmatprep.subr.mxu0 0.0
  %319 = vmatpush1.msra.mxu0 0.0
  %320 = vmatprep.subr.mxu0 0.0
  %321 = vmatpush1.msra.mxu0 0.0
  %322 = vmatprep.subr.mxu0 0.0
  %323 = vmatpush1.msra.mxu0 0.0
  %324 = vmatprep.mubr.f32.mxu0 0.0
  %325 = vmatmul.mubr.f32.gmra.mrb[0].mxu0 %v237
  %v326 = vpop.f32.mrb[0].mxu0
  %v327 = vadd.f32 0.0, %v326
  %v328 = vpop.f32.mrb[0].mxu0
  %329 = vmatprep.mubr.f32.mxu0 0.0
  %330 = vmatmul.mubr.f32.gmra.mrb[0].mxu0 %v240
  %v331 = vpop.f32.mrb[0].mxu0
  %v332 = vadd.f32 0.0, %v331
  %v333 = vpop.f32.mrb[0].mxu0
  %334 = vmatprep.mubr.f32.mxu0 0.0
  %335 = vmatmul.mubr.f32.gmra.mrb[0].mxu0 %v243
  %v336 = vpop.f32.mrb[0].mxu0
  %v337 = vadd.f32 0.0, %v336
  %v338 = vpop.f32.mrb[0].mxu0
  %339 = vmatprep.mubr.f32.mxu0 0.0
  %340 = vmatmul.mubr.f32.gmra.mrb[0].mxu0 %v246
  %v341 = vpop.f32.mrb[0].mxu0
  %v342 = vadd.f32 0.0, %v341
  %v343 = vpop.f32.mrb[0].mxu0
  %344 = vmatprep.mubr.f32.mxu0 0.0
  %345 = vmatmul.mubr.f32.gmra.mrb[0].mxu0 %v249
  %v346 = vpop.f32.mrb[0].mxu0
  %v347 = vadd.f32 0.0, %v346
  %v348 = vpop.f32.mrb[0].mxu0
  %349 = vmatprep.mubr.f32.mxu0 0.0
  %350 = vmatmul.mubr.f32.gmra.mrb[0].mxu0 %v252
  %v351 = vpop.f32.mrb[0].mxu0
  %v352 = vadd.f32 0.0, %v351
  %v353 = vpop.f32.mrb[0].mxu0
  %354 = vmatprep.mubr.f32.mxu0 0.0
  %355 = vmatmul.mubr.f32.gmra.mrb[0].mxu0 %v255
  %v356 = vpop.f32.mrb[0].mxu0
  %v357 = vadd.f32 0.0, %v356
  %v358 = vpop.f32.mrb[0].mxu0
  %359 = vmatprep.mubr.f32.mxu0 0.0
  %360 = vmatmul.mubr.f32.gmra.mrb[0].mxu0 %v258
  %v361 = vpop.f32.mrb[0].mxu0
  %v362 = vadd.f32 0.0, %v361
  %v363 = vpop.f32.mrb[0].mxu0
  %364 = vdwg.mxu0
  %vm365 = vcmask 72704
  %v367 = vsel %vm365, %v163, 0
  %v370 = vsel %vm365, %v164, 0
  %v373 = vsel %vm365, %v165, 0
  %v376 = vsel %vm365, %v166, 0
  %v379 = vsel %vm365, %v167, 0
  %v382 = vsel %vm365, %v168, 0
  %v385 = vsel %vm365, %v169, 0
  %v388 = vsel %vm365, %v170, 0
  %vm390 = vcmask 1040384
  %v392 = vsel %vm390, %v42, 0
  %394 = vmatprep.subr.mxu0 0.0
  %395 = vmatpush1.msra.mxu0 %v41
  %396 = vmatprep.subr.mxu0 0.0
  %397 = vmatpush1.msra.mxu0 %v392
  %398 = vmatprep.subr.mxu0 0.0
  %399 = vmatpush1.msra.mxu0 0.0
  %400 = vmatprep.subr.mxu0 0.0
  %401 = vmatpush1.msra.mxu0 0.0
  %402 = vmatprep.subr.mxu0 0.0
  %403 = vmatpush1.msra.mxu0 0.0
  %404 = vmatprep.subr.mxu0 0.0
  %405 = vmatpush1.msra.mxu0 0.0
  %406 = vmatprep.subr.mxu0 0.0
  %407 = vmatpush1.msra.mxu0 0.0
  %408 = vmatprep.subr.mxu0 0.0
  %409 = vmatpush1.msra.mxu0 0.0
  %410 = vmatprep.subr.mxu0 0.0
  %411 = vmatpush1.msra.mxu0 0.0
  %412 = vmatprep.subr.mxu0 0.0
  %413 = vmatpush1.msra.mxu0 0.0
  %414 = vmatprep.subr.mxu0 0.0
  %415 = vmatpush1.msra.mxu0 0.0
  %416 = vmatprep.subr.mxu0 0.0
  %417 = vmatpush1.msra.mxu0 0.0
  %418 = vmatprep.subr.mxu0 0.0
  %419 = vmatpush1.msra.mxu0 0.0
  %420 = vmatprep.subr.mxu0 0.0
  %421 = vmatpush1.msra.mxu0 0.0
  %422 = vmatprep.subr.mxu0 0.0
  %423 = vmatpush1.msra.mxu0 0.0
  %424 = vmatprep.subr.mxu0 0.0
  %425 = vmatpush1.msra.mxu0 0.0
  %426 = vmatprep.subr.mxu0 0.0
  %427 = vmatpush1.msra.mxu0 0.0
  %428 = vmatprep.subr.mxu0 0.0
  %429 = vmatpush1.msra.mxu0 0.0
  %430 = vmatprep.subr.mxu0 0.0
  %431 = vmatpush1.msra.mxu0 0.0
  %432 = vmatprep.subr.mxu0 0.0
  %433 = vmatpush1.msra.mxu0 0.0
  %434 = vmatprep.subr.mxu0 0.0
  %435 = vmatpush1.msra.mxu0 0.0
  %436 = vmatprep.subr.mxu0 0.0
  %437 = vmatpush1.msra.mxu0 0.0
  %438 = vmatprep.subr.mxu0 0.0
  %439 = vmatpush1.msra.mxu0 0.0
  %440 = vmatprep.subr.mxu0 0.0
  %441 = vmatpush1.msra.mxu0 0.0
  %442 = vmatprep.subr.mxu0 0.0
  %443 = vmatpush1.msra.mxu0 0.0
  %444 = vmatprep.subr.mxu0 0.0
  %445 = vmatpush1.msra.mxu0 0.0
  %446 = vmatprep.subr.mxu0 0.0
  %447 = vmatpush1.msra.mxu0 0.0
  %448 = vmatprep.subr.mxu0 0.0
  %449 = vmatpush1.msra.mxu0 0.0
  %450 = vmatprep.subr.mxu0 0.0
  %451 = vmatpush1.msra.mxu0 0.0
  %452 = vmatprep.subr.mxu0 0.0
  %453 = vmatpush1.msra.mxu0 0.0
  %454 = vmatprep.subr.mxu0 0.0
  %455 = vmatpush1.msra.mxu0 0.0
  %456 = vmatprep.subr.mxu0 0.0
  %457 = vmatpush1.msra.mxu0 0.0
  %458 = vmatprep.mubr.f32.mxu0 0.0
  %459 = vmatmul.mubr.f32.gmra.mrb[0].mxu0 %v367
  %v460 = vpop.f32.mrb[0].mxu0
  %v461 = vadd.f32 0.0, %v460
  %v462 = vpop.f32.mrb[0].mxu0
  %463 = vmatprep.mubr.f32.mxu0 0.0
  %464 = vmatmul.mubr.f32.gmra.mrb[0].mxu0 %v370
  %v465 = vpop.f32.mrb[0].mxu0
  %v466 = vadd.f32 0.0, %v465
  %v467 = vpop.f32.mrb[0].mxu0
  %468 = vmatprep.mubr.f32.mxu0 0.0
  %469 = vmatmul.mubr.f32.gmra.mrb[0].mxu0 %v373
  %v470 = vpop.f32.mrb[0].mxu0
  %v471 = vadd.f32 0.0, %v470
  %v472 = vpop.f32.mrb[0].mxu0
  %473 = vmatprep.mubr.f32.mxu0 0.0
  %474 = vmatmul.mubr.f32.gmra.mrb[0].mxu0 %v376
  %v475 = vpop.f32.mrb[0].mxu0
  %v476 = vadd.f32 0.0, %v475
  %v477 = vpop.f32.mrb[0].mxu0
  %478 = vmatprep.mubr.f32.mxu0 0.0
  %479 = vmatmul.mubr.f32.gmra.mrb[0].mxu0 %v379
  %v480 = vpop.f32.mrb[0].mxu0
  %v481 = vadd.f32 0.0, %v480
  %v482 = vpop.f32.mrb[0].mxu0
  %483 = vmatprep.mubr.f32.mxu0 0.0
  %484 = vmatmul.mubr.f32.gmra.mrb[0].mxu0 %v382
  %v485 = vpop.f32.mrb[0].mxu0
  %v486 = vadd.f32 0.0, %v485
  %v487 = vpop.f32.mrb[0].mxu0
  %488 = vmatprep.mubr.f32.mxu0 0.0
  %489 = vmatmul.mubr.f32.gmra.mrb[0].mxu0 %v385
  %v490 = vpop.f32.mrb[0].mxu0
  %v491 = vadd.f32 0.0, %v490
  %v492 = vpop.f32.mrb[0].mxu0
  %493 = vmatprep.mubr.f32.mxu0 0.0
  %494 = vmatmul.mubr.f32.gmra.mrb[0].mxu0 %v388
  %v495 = vpop.f32.mrb[0].mxu0
  %v496 = vadd.f32 0.0, %v495
  %v497 = vpop.f32.mrb[0].mxu0
  %498 = vdwg.mxu0
  %v500 = vsel %vm365, %v231, 0
  %v503 = vsel %vm365, %v232, 0
  %505 = vmatprep.subr.mxu0 0.0
  %506 = vmatpush1.msra.mxu0 %v41
  %507 = vmatprep.subr.mxu0 0.0
  %508 = vmatpush1.msra.mxu0 %v392
  %509 = vmatprep.subr.mxu0 0.0
  %510 = vmatpush1.msra.mxu0 0.0
  %511 = vmatprep.subr.mxu0 0.0
  %512 = vmatpush1.msra.mxu0 0.0
  %513 = vmatprep.subr.mxu0 0.0
  %514 = vmatpush1.msra.mxu0 0.0
  %515 = vmatprep.subr.mxu0 0.0
  %516 = vmatpush1.msra.mxu0 0.0
  %517 = vmatprep.subr.mxu0 0.0
  %518 = vmatpush1.msra.mxu0 0.0
  %519 = vmatprep.subr.mxu0 0.0
  %520 = vmatpush1.msra.mxu0 0.0
  %521 = vmatprep.subr.mxu0 0.0
  %522 = vmatpush1.msra.mxu0 0.0
  %523 = vmatprep.subr.mxu0 0.0
  %524 = vmatpush1.msra.mxu0 0.0
  %525 = vmatprep.subr.mxu0 0.0
  %526 = vmatpush1.msra.mxu0 0.0
  %527 = vmatprep.subr.mxu0 0.0
  %528 = vmatpush1.msra.mxu0 0.0
  %529 = vmatprep.subr.mxu0 0.0
  %530 = vmatpush1.msra.mxu0 0.0
  %531 = vmatprep.subr.mxu0 0.0
  %532 = vmatpush1.msra.mxu0 0.0
  %533 = vmatprep.subr.mxu0 0.0
  %534 = vmatpush1.msra.mxu0 0.0
  %535 = vmatprep.subr.mxu0 0.0
  %536 = vmatpush1.msra.mxu0 0.0
  %537 = vmatprep.subr.mxu0 0.0
  %538 = vmatpush1.msra.mxu0 0.0
  %539 = vmatprep.subr.mxu0 0.0
  %540 = vmatpush1.msra.mxu0 0.0
  %541 = vmatprep.subr.mxu0 0.0
  %542 = vmatpush1.msra.mxu0 0.0
  %543 = vmatprep.subr.mxu0 0.0
  %544 = vmatpush1.msra.mxu0 0.0
  %545 = vmatprep.subr.mxu0 0.0
  %546 = vmatpush1.msra.mxu0 0.0
  %547 = vmatprep.subr.mxu0 0.0
  %548 = vmatpush1.msra.mxu0 0.0
  %549 = vmatprep.subr.mxu0 0.0
  %550 = vmatpush1.msra.mxu0 0.0
  %551 = vmatprep.subr.mxu0 0.0
  %552 = vmatpush1.msra.mxu0 0.0
  %553 = vmatprep.subr.mxu0 0.0
  %554 = vmatpush1.msra.mxu0 0.0
  %555 = vmatprep.subr.mxu0 0.0
  %556 = vmatpush1.msra.mxu0 0.0
  %557 = vmatprep.subr.mxu0 0.0
  %558 = vmatpush1.msra.mxu0 0.0
  %559 = vmatprep.subr.mxu0 0.0
  %560 = vmatpush1.msra.mxu0 0.0
  %561 = vmatprep.subr.mxu0 0.0
  %562 = vmatpush1.msra.mxu0 0.0
  %563 = vmatprep.subr.mxu0 0.0
  %564 = vmatpush1.msra.mxu0 0.0
  %565 = vmatprep.subr.mxu0 0.0
  %566 = vmatpush1.msra.mxu0 0.0
  %567 = vmatprep.subr.mxu0 0.0
  %568 = vmatpush1.msra.mxu0 0.0
  %569 = vmatprep.mubr.f32.mxu0 0.0
  %570 = vmatmul.mubr.f32.gmra.mrb[0].mxu0 %v500
  %v571 = vpop.f32.mrb[0].mxu0
  %v572 = vadd.f32 0.0, %v571
  %v573 = vpop.f32.mrb[0].mxu0
  %574 = vmatprep.mubr.f32.mxu0 0.0
  %575 = vmatmul.mubr.f32.gmra.mrb[0].mxu0 %v503
  %v576 = vpop.f32.mrb[0].mxu0
  %v577 = vadd.f32 0.0, %v576
  %v578 = vpop.f32.mrb[0].mxu0
  %579 = vdwg.mxu0
  %v581 = vsel %vm235, %v211, 0
  %v584 = vsel %vm235, %v212, 0
  %v587 = vsel %vm235, %v213, 0
  %v590 = vsel %vm235, %v214, 0
  %v593 = vsel %vm235, %v215, 0
  %v596 = vsel %vm235, %v216, 0
  %v599 = vsel %vm235, %v217, 0
  %v602 = vsel %vm235, %v218, 0
  %604 = vmatprep.subr.mxu0 0.0
  %605 = vmatpush1.msra.mxu0 %v572
  %606 = vmatprep.subr.mxu0 0.0
  %607 = vmatpush1.msra.mxu0 %v577
  %608 = vmatprep.subr.mxu0 0.0
  %609 = vmatpush1.msra.mxu0 0.0
  %610 = vmatprep.subr.mxu0 0.0
  %611 = vmatpush1.msra.mxu0 0.0
  %612 = vmatprep.subr.mxu0 0.0
  %613 = vmatpush1.msra.mxu0 0.0
  %614 = vmatprep.subr.mxu0 0.0
  %615 = vmatpush1.msra.mxu0 0.0
  %616 = vmatprep.subr.mxu0 0.0
  %617 = vmatpush1.msra.mxu0 0.0
  %618 = vmatprep.subr.mxu0 0.0
  %619 = vmatpush1.msra.mxu0 0.0
  %620 = vmatprep.subr.mxu0 0.0
  %621 = vmatpush1.msra.mxu0 0.0
  %622 = vmatprep.subr.mxu0 0.0
  %623 = vmatpush1.msra.mxu0 0.0
  %624 = vmatprep.subr.mxu0 0.0
  %625 = vmatpush1.msra.mxu0 0.0
  %626 = vmatprep.subr.mxu0 0.0
  %627 = vmatpush1.msra.mxu0 0.0
  %628 = vmatprep.subr.mxu0 0.0
  %629 = vmatpush1.msra.mxu0 0.0
  %630 = vmatprep.subr.mxu0 0.0
  %631 = vmatpush1.msra.mxu0 0.0
  %632 = vmatprep.subr.mxu0 0.0
  %633 = vmatpush1.msra.mxu0 0.0
  %634 = vmatprep.subr.mxu0 0.0
  %635 = vmatpush1.msra.mxu0 0.0
  %636 = vmatprep.subr.mxu0 0.0
  %637 = vmatpush1.msra.mxu0 0.0
  %638 = vmatprep.subr.mxu0 0.0
  %639 = vmatpush1.msra.mxu0 0.0
  %640 = vmatprep.subr.mxu0 0.0
  %641 = vmatpush1.msra.mxu0 0.0
  %642 = vmatprep.subr.mxu0 0.0
  %643 = vmatpush1.msra.mxu0 0.0
  %644 = vmatprep.subr.mxu0 0.0
  %645 = vmatpush1.msra.mxu0 0.0
  %646 = vmatprep.subr.mxu0 0.0
  %647 = vmatpush1.msra.mxu0 0.0
  %648 = vmatprep.subr.mxu0 0.0
  %649 = vmatpush1.msra.mxu0 0.0
  %650 = vmatprep.subr.mxu0 0.0
  %651 = vmatpush1.msra.mxu0 0.0
  %652 = vmatprep.subr.mxu0 0.0
  %653 = vmatpush1.msra.mxu0 0.0
  %654 = vmatprep.subr.mxu0 0.0
  %655 = vmatpush1.msra.mxu0 0.0
  %656 = vmatprep.subr.mxu0 0.0
  %657 = vmatpush1.msra.mxu0 0.0
  %658 = vmatprep.subr.mxu0 0.0
  %659 = vmatpush1.msra.mxu0 0.0
  %660 = vmatprep.subr.mxu0 0.0
  %661 = vmatpush1.msra.mxu0 0.0
  %662 = vmatprep.subr.mxu0 0.0
  %663 = vmatpush1.msra.mxu0 0.0
  %664 = vmatprep.subr.mxu0 0.0
  %665 = vmatpush1.msra.mxu0 0.0
  %666 = vmatprep.subr.mxu0 0.0
  %667 = vmatpush1.msra.mxu0 0.0
  %668 = vmatprep.mubr.f32.mxu0 0.0
  %669 = vmatmul.mubr.f32.gmra.mrb[0].mxu0 %v581
  %v670 = vpop.f32.mrb[0].mxu0
  %v671 = vadd.f32 0.0, %v670
  %v672 = vpop.f32.mrb[0].mxu0
  %673 = vmatprep.mubr.f32.mxu0 0.0
  %674 = vmatmul.mubr.f32.gmra.mrb[0].mxu0 %v584
  %v675 = vpop.f32.mrb[0].mxu0
  %v676 = vadd.f32 0.0, %v675
  %v677 = vpop.f32.mrb[0].mxu0
  %678 = vmatprep.mubr.f32.mxu0 0.0
  %679 = vmatmul.mubr.f32.gmra.mrb[0].mxu0 %v587
  %v680 = vpop.f32.mrb[0].mxu0
  %v681 = vadd.f32 0.0, %v680
  %v682 = vpop.f32.mrb[0].mxu0
  %683 = vmatprep.mubr.f32.mxu0 0.0
  %684 = vmatmul.mubr.f32.gmra.mrb[0].mxu0 %v590
  %v685 = vpop.f32.mrb[0].mxu0
  %v686 = vadd.f32 0.0, %v685
  %v687 = vpop.f32.mrb[0].mxu0
  %688 = vmatprep.mubr.f32.mxu0 0.0
  %689 = vmatmul.mubr.f32.gmra.mrb[0].mxu0 %v593
  %v690 = vpop.f32.mrb[0].mxu0
  %v691 = vadd.f32 0.0, %v690
  %v692 = vpop.f32.mrb[0].mxu0
  %693 = vmatprep.mubr.f32.mxu0 0.0
  %694 = vmatmul.mubr.f32.gmra.mrb[0].mxu0 %v596
  %v695 = vpop.f32.mrb[0].mxu0
  %v696 = vadd.f32 0.0, %v695
  %v697 = vpop.f32.mrb[0].mxu0
  %698 = vmatprep.mubr.f32.mxu0 0.0
  %699 = vmatmul.mubr.f32.gmra.mrb[0].mxu0 %v599
  %v700 = vpop.f32.mrb[0].mxu0
  %v701 = vadd.f32 0.0, %v700
  %v702 = vpop.f32.mrb[0].mxu0
  %703 = vmatprep.mubr.f32.mxu0 0.0
  %704 = vmatmul.mubr.f32.gmra.mrb[0].mxu0 %v602
  %v705 = vpop.f32.mrb[0].mxu0
  %v706 = vadd.f32 0.0, %v705
  %v707 = vpop.f32.mrb[0].mxu0
  %708 = vdwg.mxu0
  %vm709 = vcmp.ge.f32.partialorder %v33, 0.0
  %vm710 = vcmp.ge.f32.partialorder %v34, 0.0
  %vm711 = vcmp.ge.f32.partialorder %v35, 0.0
  %vm712 = vcmp.ge.f32.partialorder %v36, 0.0
  %vm713 = vcmp.ge.f32.partialorder %v37, 0.0
  %vm714 = vcmp.ge.f32.partialorder %v38, 0.0
  %vm715 = vcmp.ge.f32.partialorder %v39, 0.0
  %vm716 = vcmp.ge.f32.partialorder %v40, 0.0
  %v717 = vstv %s24
  %v718 = vsel %vm709, %v33, %v717
  %v719 = vsel %vm710, %v34, %v717
  %v720 = vsel %vm711, %v35, %v717
  %v721 = vsel %vm712, %v36, %v717
  %v722 = vsel %vm713, %v37, %v717
  %v723 = vsel %vm714, %v38, %v717
  %v724 = vsel %vm715, %v39, %v717
  %v725 = vsel %vm716, %v40, %v717
  %v726 = vsub.f32 %v718, %v717
  %v727 = vsub.f32 %v719, %v717
  %v728 = vsub.f32 %v720, %v717
  %v729 = vsub.f32 %v721, %v717
  %v730 = vsub.f32 %v722, %v717
  %v731 = vsub.f32 %v723, %v717
  %v732 = vsub.f32 %v724, %v717
  %v733 = vsub.f32 %v725, %v717
  %v734 = vlaneseq
  %v735 = vshrl.u32 %v734, 7
  %v736 = vsub.s32 0, %v735
  %v737 = vrot.slane %v43, %v736
  %739 = vset.pattern.permute.xlu0 3
  %740 = vperm.xlu0 %739, %v726
  %v741 = vpop.permute.xlu0 %740
  %744 = vset.pattern.permute.xlu0 3
  %745 = vperm.xlu0 %744, %v727
  %v746 = vpop.permute.xlu0 %745
  %749 = vset.pattern.permute.xlu0 3
  %750 = vperm.xlu0 %749, %v728
  %v751 = vpop.permute.xlu0 %750
  %754 = vset.pattern.permute.xlu0 3
  %755 = vperm.xlu0 %754, %v729
  %v756 = vpop.permute.xlu0 %755
  %759 = vset.pattern.permute.xlu0 3
  %760 = vperm.xlu0 %759, %v730
  %v761 = vpop.permute.xlu0 %760
  %764 = vset.pattern.permute.xlu0 3
  %765 = vperm.xlu0 %764, %v731
  %v766 = vpop.permute.xlu0 %765
  %769 = vset.pattern.permute.xlu0 3
  %770 = vperm.xlu0 %769, %v732
  %v771 = vpop.permute.xlu0 %770
  %774 = vset.pattern.permute.xlu0 3
  %775 = vperm.xlu0 %774, %v733
  %v776 = vpop.permute.xlu0 %775
  %v778 = vmul.f32 %v737, %v741
  %v779 = vmul.f32 %v737, %v746
  %v780 = vmul.f32 %v737, %v751
  %v781 = vmul.f32 %v737, %v756
  %v782 = vmul.f32 %v737, %v761
  %v783 = vmul.f32 %v737, %v766
  %v784 = vmul.f32 %v737, %v771
  %v785 = vmul.f32 %v737, %v776
  %v786 = vlaneseq
  %v787 = vshrl.u32 %v786, 7
  %v788 = vsub.s32 1, %v787
  %v789 = vrot.slane %v43, %v788
  %v790 = vadd.f32 %v778, %v789
  %v791 = vadd.f32 %v779, %v789
  %v792 = vadd.f32 %v780, %v789
  %v793 = vadd.f32 %v781, %v789
  %v794 = vadd.f32 %v782, %v789
  %v795 = vadd.f32 %v783, %v789
  %v796 = vadd.f32 %v784, %v789
  %v797 = vadd.f32 %v785, %v789
  %v798 = vlaneseq
  %v799 = vshrl.u32 %v798, 7
  %v800 = vsub.s32 2, %v799
  %v801 = vrot.slane %v43, %v800
  %v802 = vmul.f32 %v801, %v741
  %v803 = vmul.f32 %v801, %v746
  %v804 = vmul.f32 %v801, %v751
  %v805 = vmul.f32 %v801, %v756
  %v806 = vmul.f32 %v801, %v761
  %v807 = vmul.f32 %v801, %v766
  %v808 = vmul.f32 %v801, %v771
  %v809 = vmul.f32 %v801, %v776
  %v810 = vlaneseq
  %v811 = vshrl.u32 %v810, 7
  %v812 = vsub.s32 3, %v811
  %v813 = vrot.slane %v43, %v812
  %v814 = vadd.f32 %v802, %v813
  %v815 = vadd.f32 %v803, %v813
  %v816 = vadd.f32 %v804, %v813
  %v817 = vadd.f32 %v805, %v813
  %v818 = vadd.f32 %v806, %v813
  %v819 = vadd.f32 %v807, %v813
  %v820 = vadd.f32 %v808, %v813
  %v821 = vadd.f32 %v809, %v813
  %v822 = vand.u32 2147483647, %v814
  %vm823 = vcmp.le.f32.partialorder %v822, 0.7853982
  %vm824 = vcmp.lt.s32.totalorder %v814, 0
  %v825 = vand.u32 %v814, 2139095040
  %v826 = vshrl.u32 %v825, 23
  %v827 = vsub.s32 %v826, 127
  %v828 = vand.u32 2147483647, %v814
  %v829 = vand.u32 %v828, 8388607
  %v830 = vor.u32 %v829, 8388608
  %v831 = vsub.s32 0, %v830
  %v832 = vadd.s32 %v827, 1
  %vm833 = vcmp.gt.s32.totalorder %v832, 0
  %v834 = vsel %vm833, %v832, 0
  %v835 = vshrl.u32 %v834, 5
  %v836 = vand.u32 %v834, 31
  %v837 = vsub.s32 32, %v836
  %v838 = vshrl.u32 683565275, %v837
  %v839 = vshll.u32 683565275, %v836
  %v840 = vshrl.u32 2475754826, %v837
  %v841 = vor.u32 %v839, %v840
  %v842 = vshll.u32 2475754826, %v836
  %v843 = vshrl.u32 2131351028, %v837
  %v844 = vor.u32 %v842, %v843
  %v845 = vshll.u32 2131351028, %v836
  %v846 = vshrl.u32 2102212464, %v837
  %v847 = vor.u32 %v845, %v846
  %v848 = vshll.u32 2102212464, %v836
  %v849 = vshrl.u32 920167782, %v837
  %v850 = vor.u32 %v848, %v849
  %v851 = vshll.u32 920167782, %v836
  %v852 = vshrl.u32 1326507024, %v837
  %v853 = vor.u32 %v851, %v852
  %vm854 = vcmp.lt.s32.totalorder %v835, 1
  %vm855 = vcmp.lt.s32.totalorder %v835, 2
  %vm856 = vcmp.lt.s32.totalorder %v835, 3
  %vm857 = vcmp.lt.s32.totalorder %v835, 4
  %v858 = vsel %vm854, %v838, %v841
  %v859 = vsel %vm857, %v847, 2102212464
  %v860 = vsel %vm856, %v844, %v859
  %v861 = vsel %vm855, %v858, %v860
  %v862 = vsel %vm854, %v841, %v844
  %v863 = vsel %vm857, %v850, 920167782
  %v864 = vsel %vm856, %v847, %v863
  %v865 = vsel %vm855, %v862, %v864
  %v866 = vsel %vm854, %v844, %v847
  %v867 = vsel %vm857, %v853, 1326507024
  %v868 = vsel %vm856, %v850, %v867
  %v869 = vsel %vm855, %v866, %v868
  %v870 = vshll.u32 %v830, 8
  %v871 = vmul.u32.u64.compose %v870, %v869
  %v872 = vextract.low.u32 %v871
  %v873 = vextract.high.u32 %v871
  %v874 = vmul.u32.u64.compose %v870, %v865
  %v875 = vextract.low.u32 %v874
  %v876 = vextract.high.u32 %v874
  %v877 = vmul.u32 %v870, %v861
  %v878 = vadd.s32 %v873, %v875
  %vm879 = vc.u32 %v873, %v875
  %v880 = vadd.s32 %v876, 1
  %v881 = vsel %vm879, %v880, %v876
  %v882 = vadd.s32 %v877, %v881
  %v883 = vadd.s32 %v882, 536870912
  %v884 = vshrl.u32 %v883, 30
  %v885 = vshll.u32 %v884, 30
  %v886 = vsub.s32 %v882, %v885
  %vm887 = vcmp.lt.s32.totalorder %v886, 0
  %v888 = vsub.s32 0, %v886
  %v889 = vsel %vm887, %v888, %v886
  %v890 = vclz %v889
  %v891 = vsub.s32 %v890, 2
  %vm892 = vcmp.gt.s32.totalorder 0, %v891
  %v893 = vsel %vm892, 0, %v891
  %v894 = vsub.s32 32, %v893
  %v895 = vshll.u32 %v886, %v893
  %v896 = vshrl.u32 %v878, %v894
  %v897 = vor.u32 %v895, %v896
  %v898 = vsub.s32 4294967266, %v893
  %v899 = vadd.s32 %v898, 127
  %v900 = vshll.u32 %v899, 23
  %v901 = vor.u32 4788187, %v900
  %v902 = vand.u32 2147483647, %v901
  %v904 = vcvt.s32.f32 %v897
  %v905 = vmul.f32 %v904, %v902
  %v906 = vxor.u32 %v905, 2147483648
  %v907 = vsel %vm824, %v906, %v905
  %v908 = vsub.s32 4, %v884
  %v909 = vsel %vm824, %v908, %v884
  %v910 = vsel %vm823, %v814, %v907
  %v911 = vsel %vm823, 0, %v909
  %v912 = vcosq.f32.pop %v910
  %v913 = vsinq.f32.pop %v910
  %vm914 = vweird.f32 %v814
  %v915 = vadd.s32 %v911, 3
  %v916 = vand.u32 %v915, 3
  %vm917 = vcmp.lt.s32.totalorder %v916, 2
  %vm918 = vcmp.eq.s32.totalorder %v916, 0
  %v919 = vxor.u32 %v913, 2147483648
  %v920 = vsel %vm918, %v912, %v919
  %vm921 = vcmp.eq.s32.totalorder %v916, 2
  %v922 = vxor.u32 %v912, 2147483648
  %v923 = vsel %vm921, %v922, %v913
  %v924 = vsel %vm917, %v920, %v923
  %v925 = vsel %vm914, nan, %v924
  %v926 = vand.u32 2147483647, %v815
  %vm927 = vcmp.le.f32.partialorder %v926, 0.7853982
  %vm928 = vcmp.lt.s32.totalorder %v815, 0
  %v929 = vand.u32 %v815, 2139095040
  %v930 = vshrl.u32 %v929, 23
  %v931 = vsub.s32 %v930, 127
  %v932 = vand.u32 2147483647, %v815
  %v933 = vand.u32 %v932, 8388607
  %v934 = vor.u32 %v933, 8388608
  %v935 = vsub.s32 0, %v934
  %v936 = vadd.s32 %v931, 1
  %vm937 = vcmp.gt.s32.totalorder %v936, 0
  %v938 = vsel %vm937, %v936, 0
  %v939 = vshrl.u32 %v938, 5
  %v940 = vand.u32 %v938, 31
  %v941 = vsub.s32 32, %v940
  %v942 = vshrl.u32 683565275, %v941
  %v943 = vshll.u32 683565275, %v940
  %v944 = vshrl.u32 2475754826, %v941
  %v945 = vor.u32 %v943, %v944
  %v946 = vshll.u32 2475754826, %v940
  %v947 = vshrl.u32 2131351028, %v941
  %v948 = vor.u32 %v946, %v947
  %v949 = vshll.u32 2131351028, %v940
  %v950 = vshrl.u32 2102212464, %v941
  %v951 = vor.u32 %v949, %v950
  %v952 = vshll.u32 2102212464, %v940
  %v953 = vshrl.u32 920167782, %v941
  %v954 = vor.u32 %v952, %v953
  %v955 = vshll.u32 920167782, %v940
  %v956 = vshrl.u32 1326507024, %v941
  %v957 = vor.u32 %v955, %v956
  %vm958 = vcmp.lt.s32.totalorder %v939, 1
  %vm959 = vcmp.lt.s32.totalorder %v939, 2
  %vm960 = vcmp.lt.s32.totalorder %v939, 3
  %vm961 = vcmp.lt.s32.totalorder %v939, 4
  %v962 = vsel %vm958, %v942, %v945
  %v963 = vsel %vm961, %v951, 2102212464
  %v964 = vsel %vm960, %v948, %v963
  %v965 = vsel %vm959, %v962, %v964
  %v966 = vsel %vm958, %v945, %v948
  %v967 = vsel %vm961, %v954, 920167782
  %v968 = vsel %vm960, %v951, %v967
  %v969 = vsel %vm959, %v966, %v968
  %v970 = vsel %vm958, %v948, %v951
  %v971 = vsel %vm961, %v957, 1326507024
  %v972 = vsel %vm960, %v954, %v971
  %v973 = vsel %vm959, %v970, %v972
  %v974 = vshll.u32 %v934, 8
  %v975 = vmul.u32.u64.compose %v974, %v973
  %v976 = vextract.low.u32 %v975
  %v977 = vextract.high.u32 %v975
  %v978 = vmul.u32.u64.compose %v974, %v969
  %v979 = vextract.low.u32 %v978
  %v980 = vextract.high.u32 %v978
  %v981 = vmul.u32 %v974, %v965
  %v982 = vadd.s32 %v977, %v979
  %vm983 = vc.u32 %v977, %v979
  %v984 = vadd.s32 %v980, 1
  %v985 = vsel %vm983, %v984, %v980
  %v986 = vadd.s32 %v981, %v985
  %v987 = vadd.s32 %v986, 536870912
  %v988 = vshrl.u32 %v987, 30
  %v989 = vshll.u32 %v988, 30
  %v990 = vsub.s32 %v986, %v989
  %vm991 = vcmp.lt.s32.totalorder %v990, 0
  %v992 = vsub.s32 0, %v990
  %v993 = vsel %vm991, %v992, %v990
  %v994 = vclz %v993
  %v995 = vsub.s32 %v994, 2
  %vm996 = vcmp.gt.s32.totalorder 0, %v995
  %v997 = vsel %vm996, 0, %v995
  %v998 = vsub.s32 32, %v997
  %v999 = vshll.u32 %v990, %v997
  %v1000 = vshrl.u32 %v982, %v998
  %v1001 = vor.u32 %v999, %v1000
  %v1002 = vsub.s32 4294967266, %v997
  %v1003 = vadd.s32 %v1002, 127
  %v1004 = vshll.u32 %v1003, 23
  %v1005 = vor.u32 4788187, %v1004
  %v1006 = vand.u32 2147483647, %v1005
  %v1008 = vcvt.s32.f32 %v1001
  %v1009 = vmul.f32 %v1008, %v1006
  %v1010 = vxor.u32 %v1009, 2147483648
  %v1011 = vsel %vm928, %v1010, %v1009
  %v1012 = vsub.s32 4, %v988
  %v1013 = vsel %vm928, %v1012, %v988
  %v1014 = vsel %vm927, %v815, %v1011
  %v1015 = vsel %vm927, 0, %v1013
  %v1016 = vcosq.f32.pop %v1014
  %v1017 = vsinq.f32.pop %v1014
  %vm1018 = vweird.f32 %v815
  %v1019 = vadd.s32 %v1015, 3
  %v1020 = vand.u32 %v1019, 3
  %vm1021 = vcmp.lt.s32.totalorder %v1020, 2
  %vm1022 = vcmp.eq.s32.totalorder %v1020, 0
  %v1023 = vxor.u32 %v1017, 2147483648
  %v1024 = vsel %vm1022, %v1016, %v1023
  %vm1025 = vcmp.eq.s32.totalorder %v1020, 2
  %v1026 = vxor.u32 %v1016, 2147483648
  %v1027 = vsel %vm1025, %v1026, %v1017
  %v1028 = vsel %vm1021, %v1024, %v1027
  %v1029 = vsel %vm1018, nan, %v1028
  %v1030 = vand.u32 2147483647, %v816
  %vm1031 = vcmp.le.f32.partialorder %v1030, 0.7853982
  %vm1032 = vcmp.lt.s32.totalorder %v816, 0
  %v1033 = vand.u32 %v816, 2139095040
  %v1034 = vshrl.u32 %v1033, 23
  %v1035 = vsub.s32 %v1034, 127
  %v1036 = vand.u32 2147483647, %v816
  %v1037 = vand.u32 %v1036, 8388607
  %v1038 = vor.u32 %v1037, 8388608
  %v1039 = vsub.s32 0, %v1038
  %v1040 = vadd.s32 %v1035, 1
  %vm1041 = vcmp.gt.s32.totalorder %v1040, 0
  %v1042 = vsel %vm1041, %v1040, 0
  %v1043 = vshrl.u32 %v1042, 5
  %v1044 = vand.u32 %v1042, 31
  %v1045 = vsub.s32 32, %v1044
  %v1046 = vshrl.u32 683565275, %v1045
  %v1047 = vshll.u32 683565275, %v1044
  %v1048 = vshrl.u32 2475754826, %v1045
  %v1049 = vor.u32 %v1047, %v1048
  %v1050 = vshll.u32 2475754826, %v1044
  %v1051 = vshrl.u32 2131351028, %v1045
  %v1052 = vor.u32 %v1050, %v1051
  %v1053 = vshll.u32 2131351028, %v1044
  %v1054 = vshrl.u32 2102212464, %v1045
  %v1055 = vor.u32 %v1053, %v1054
  %v1056 = vshll.u32 2102212464, %v1044
  %v1057 = vshrl.u32 920167782, %v1045
  %v1058 = vor.u32 %v1056, %v1057
  %v1059 = vshll.u32 920167782, %v1044
  %v1060 = vshrl.u32 1326507024, %v1045
  %v1061 = vor.u32 %v1059, %v1060
  %vm1062 = vcmp.lt.s32.totalorder %v1043, 1
  %vm1063 = vcmp.lt.s32.totalorder %v1043, 2
  %vm1064 = vcmp.lt.s32.totalorder %v1043, 3
  %vm1065 = vcmp.lt.s32.totalorder %v1043, 4
  %v1066 = vsel %vm1062, %v1046, %v1049
  %v1067 = vsel %vm1065, %v1055, 2102212464
  %v1068 = vsel %vm1064, %v1052, %v1067
  %v1069 = vsel %vm1063, %v1066, %v1068
  %v1070 = vsel %vm1062, %v1049, %v1052
  %v1071 = vsel %vm1065, %v1058, 920167782
  %v1072 = vsel %vm1064, %v1055, %v1071
  %v1073 = vsel %vm1063, %v1070, %v1072
  %v1074 = vsel %vm1062, %v1052, %v1055
  %v1075 = vsel %vm1065, %v1061, 1326507024
  %v1076 = vsel %vm1064, %v1058, %v1075
  %v1077 = vsel %vm1063, %v1074, %v1076
  %v1078 = vshll.u32 %v1038, 8
  %v1079 = vmul.u32.u64.compose %v1078, %v1077
  %v1080 = vextract.low.u32 %v1079
  %v1081 = vextract.high.u32 %v1079
  %v1082 = vmul.u32.u64.compose %v1078, %v1073
  %v1083 = vextract.low.u32 %v1082
  %v1084 = vextract.high.u32 %v1082
  %v1085 = vmul.u32 %v1078, %v1069
  %v1086 = vadd.s32 %v1081, %v1083
  %vm1087 = vc.u32 %v1081, %v1083
  %v1088 = vadd.s32 %v1084, 1
  %v1089 = vsel %vm1087, %v1088, %v1084
  %v1090 = vadd.s32 %v1085, %v1089
  %v1091 = vadd.s32 %v1090, 536870912
  %v1092 = vshrl.u32 %v1091, 30
  %v1093 = vshll.u32 %v1092, 30
  %v1094 = vsub.s32 %v1090, %v1093
  %vm1095 = vcmp.lt.s32.totalorder %v1094, 0
  %v1096 = vsub.s32 0, %v1094
  %v1097 = vsel %vm1095, %v1096, %v1094
  %v1098 = vclz %v1097
  %v1099 = vsub.s32 %v1098, 2
  %vm1100 = vcmp.gt.s32.totalorder 0, %v1099
  %v1101 = vsel %vm1100, 0, %v1099
  %v1102 = vsub.s32 32, %v1101
  %v1103 = vshll.u32 %v1094, %v1101
  %v1104 = vshrl.u32 %v1086, %v1102
  %v1105 = vor.u32 %v1103, %v1104
  %v1106 = vsub.s32 4294967266, %v1101
  %v1107 = vadd.s32 %v1106, 127
  %v1108 = vshll.u32 %v1107, 23
  %v1109 = vor.u32 4788187, %v1108
  %v1110 = vand.u32 2147483647, %v1109
  %v1112 = vcvt.s32.f32 %v1105
  %v1113 = vmul.f32 %v1112, %v1110
  %v1114 = vxor.u32 %v1113, 2147483648
  %v1115 = vsel %vm1032, %v1114, %v1113
  %v1116 = vsub.s32 4, %v1092
  %v1117 = vsel %vm1032, %v1116, %v1092
  %v1118 = vsel %vm1031, %v816, %v1115
  %v1119 = vsel %vm1031, 0, %v1117
  %v1120 = vcosq.f32.pop %v1118
  %v1121 = vsinq.f32.pop %v1118
  %vm1122 = vweird.f32 %v816
  %v1123 = vadd.s32 %v1119, 3
  %v1124 = vand.u32 %v1123, 3
  %vm1125 = vcmp.lt.s32.totalorder %v1124, 2
  %vm1126 = vcmp.eq.s32.totalorder %v1124, 0
  %v1127 = vxor.u32 %v1121, 2147483648
  %v1128 = vsel %vm1126, %v1120, %v1127
  %vm1129 = vcmp.eq.s32.totalorder %v1124, 2
  %v1130 = vxor.u32 %v1120, 2147483648
  %v1131 = vsel %vm1129, %v1130, %v1121
  %v1132 = vsel %vm1125, %v1128, %v1131
  %v1133 = vsel %vm1122, nan, %v1132
  %v1134 = vand.u32 2147483647, %v817
  %vm1135 = vcmp.le.f32.partialorder %v1134, 0.7853982
  %vm1136 = vcmp.lt.s32.totalorder %v817, 0
  %v1137 = vand.u32 %v817, 2139095040
  %v1138 = vshrl.u32 %v1137, 23
  %v1139 = vsub.s32 %v1138, 127
  %v1140 = vand.u32 2147483647, %v817
  %v1141 = vand.u32 %v1140, 8388607
  %v1142 = vor.u32 %v1141, 8388608
  %v1143 = vsub.s32 0, %v1142
  %v1144 = vadd.s32 %v1139, 1
  %vm1145 = vcmp.gt.s32.totalorder %v1144, 0
  %v1146 = vsel %vm1145, %v1144, 0
  %v1147 = vshrl.u32 %v1146, 5
  %v1148 = vand.u32 %v1146, 31
  %v1149 = vsub.s32 32, %v1148
  %v1150 = vshrl.u32 683565275, %v1149
  %v1151 = vshll.u32 683565275, %v1148
  %v1152 = vshrl.u32 2475754826, %v1149
  %v1153 = vor.u32 %v1151, %v1152
  %v1154 = vshll.u32 2475754826, %v1148
  %v1155 = vshrl.u32 2131351028, %v1149
  %v1156 = vor.u32 %v1154, %v1155
  %v1157 = vshll.u32 2131351028, %v1148
  %v1158 = vshrl.u32 2102212464, %v1149
  %v1159 = vor.u32 %v1157, %v1158
  %v1160 = vshll.u32 2102212464, %v1148
  %v1161 = vshrl.u32 920167782, %v1149
  %v1162 = vor.u32 %v1160, %v1161
  %v1163 = vshll.u32 920167782, %v1148
  %v1164 = vshrl.u32 1326507024, %v1149
  %v1165 = vor.u32 %v1163, %v1164
  %vm1166 = vcmp.lt.s32.totalorder %v1147, 1
  %vm1167 = vcmp.lt.s32.totalorder %v1147, 2
  %vm1168 = vcmp.lt.s32.totalorder %v1147, 3
  %vm1169 = vcmp.lt.s32.totalorder %v1147, 4
  %v1170 = vsel %vm1166, %v1150, %v1153
  %v1171 = vsel %vm1169, %v1159, 2102212464
  %v1172 = vsel %vm1168, %v1156, %v1171
  %v1173 = vsel %vm1167, %v1170, %v1172
  %v1174 = vsel %vm1166, %v1153, %v1156
  %v1175 = vsel %vm1169, %v1162, 920167782
  %v1176 = vsel %vm1168, %v1159, %v1175
  %v1177 = vsel %vm1167, %v1174, %v1176
  %v1178 = vsel %vm1166, %v1156, %v1159
  %v1179 = vsel %vm1169, %v1165, 1326507024
  %v1180 = vsel %vm1168, %v1162, %v1179
  %v1181 = vsel %vm1167, %v1178, %v1180
  %v1182 = vshll.u32 %v1142, 8
  %v1183 = vmul.u32.u64.compose %v1182, %v1181
  %v1184 = vextract.low.u32 %v1183
  %v1185 = vextract.high.u32 %v1183
  %v1186 = vmul.u32.u64.compose %v1182, %v1177
  %v1187 = vextract.low.u32 %v1186
  %v1188 = vextract.high.u32 %v1186
  %v1189 = vmul.u32 %v1182, %v1173
  %v1190 = vadd.s32 %v1185, %v1187
  %vm1191 = vc.u32 %v1185, %v1187
  %v1192 = vadd.s32 %v1188, 1
  %v1193 = vsel %vm1191, %v1192, %v1188
  %v1194 = vadd.s32 %v1189, %v1193
  %v1195 = vadd.s32 %v1194, 536870912
  %v1196 = vshrl.u32 %v1195, 30
  %v1197 = vshll.u32 %v1196, 30
  %v1198 = vsub.s32 %v1194, %v1197
  %vm1199 = vcmp.lt.s32.totalorder %v1198, 0
  %v1200 = vsub.s32 0, %v1198
  %v1201 = vsel %vm1199, %v1200, %v1198
  %v1202 = vclz %v1201
  %v1203 = vsub.s32 %v1202, 2
  %vm1204 = vcmp.gt.s32.totalorder 0, %v1203
  %v1205 = vsel %vm1204, 0, %v1203
  %v1206 = vsub.s32 32, %v1205
  %v1207 = vshll.u32 %v1198, %v1205
  %v1208 = vshrl.u32 %v1190, %v1206
  %v1209 = vor.u32 %v1207, %v1208
  %v1210 = vsub.s32 4294967266, %v1205
  %v1211 = vadd.s32 %v1210, 127
  %v1212 = vshll.u32 %v1211, 23
  %v1213 = vor.u32 4788187, %v1212
  %v1214 = vand.u32 2147483647, %v1213
  %v1216 = vcvt.s32.f32 %v1209
  %v1217 = vmul.f32 %v1216, %v1214
  %v1218 = vxor.u32 %v1217, 2147483648
  %v1219 = vsel %vm1136, %v1218, %v1217
  %v1220 = vsub.s32 4, %v1196
  %v1221 = vsel %vm1136, %v1220, %v1196
  %v1222 = vsel %vm1135, %v817, %v1219
  %v1223 = vsel %vm1135, 0, %v1221
  %v1224 = vcosq.f32.pop %v1222
  %v1225 = vsinq.f32.pop %v1222
  %vm1226 = vweird.f32 %v817
  %v1227 = vadd.s32 %v1223, 3
  %v1228 = vand.u32 %v1227, 3
  %vm1229 = vcmp.lt.s32.totalorder %v1228, 2
  %vm1230 = vcmp.eq.s32.totalorder %v1228, 0
  %v1231 = vxor.u32 %v1225, 2147483648
  %v1232 = vsel %vm1230, %v1224, %v1231
  %vm1233 = vcmp.eq.s32.totalorder %v1228, 2
  %v1234 = vxor.u32 %v1224, 2147483648
  %v1235 = vsel %vm1233, %v1234, %v1225
  %v1236 = vsel %vm1229, %v1232, %v1235
  %v1237 = vsel %vm1226, nan, %v1236
  %v1238 = vand.u32 2147483647, %v818
  %vm1239 = vcmp.le.f32.partialorder %v1238, 0.7853982
  %vm1240 = vcmp.lt.s32.totalorder %v818, 0
  %v1241 = vand.u32 %v818, 2139095040
  %v1242 = vshrl.u32 %v1241, 23
  %v1243 = vsub.s32 %v1242, 127
  %v1244 = vand.u32 2147483647, %v818
  %v1245 = vand.u32 %v1244, 8388607
  %v1246 = vor.u32 %v1245, 8388608
  %v1247 = vsub.s32 0, %v1246
  %v1248 = vadd.s32 %v1243, 1
  %vm1249 = vcmp.gt.s32.totalorder %v1248, 0
  %v1250 = vsel %vm1249, %v1248, 0
  %v1251 = vshrl.u32 %v1250, 5
  %v1252 = vand.u32 %v1250, 31
  %v1253 = vsub.s32 32, %v1252
  %v1254 = vshrl.u32 683565275, %v1253
  %v1255 = vshll.u32 683565275, %v1252
  %v1256 = vshrl.u32 2475754826, %v1253
  %v1257 = vor.u32 %v1255, %v1256
  %v1258 = vshll.u32 2475754826, %v1252
  %v1259 = vshrl.u32 2131351028, %v1253
  %v1260 = vor.u32 %v1258, %v1259
  %v1261 = vshll.u32 2131351028, %v1252
  %v1262 = vshrl.u32 2102212464, %v1253
  %v1263 = vor.u32 %v1261, %v1262
  %v1264 = vshll.u32 2102212464, %v1252
  %v1265 = vshrl.u32 920167782, %v1253
  %v1266 = vor.u32 %v1264, %v1265
  %v1267 = vshll.u32 920167782, %v1252
  %v1268 = vshrl.u32 1326507024, %v1253
  %v1269 = vor.u32 %v1267, %v1268
  %vm1270 = vcmp.lt.s32.totalorder %v1251, 1
  %vm1271 = vcmp.lt.s32.totalorder %v1251, 2
  %vm1272 = vcmp.lt.s32.totalorder %v1251, 3
  %vm1273 = vcmp.lt.s32.totalorder %v1251, 4
  %v1274 = vsel %vm1270, %v1254, %v1257
  %v1275 = vsel %vm1273, %v1263, 2102212464
  %v1276 = vsel %vm1272, %v1260, %v1275
  %v1277 = vsel %vm1271, %v1274, %v1276
  %v1278 = vsel %vm1270, %v1257, %v1260
  %v1279 = vsel %vm1273, %v1266, 920167782
  %v1280 = vsel %vm1272, %v1263, %v1279
  %v1281 = vsel %vm1271, %v1278, %v1280
  %v1282 = vsel %vm1270, %v1260, %v1263
  %v1283 = vsel %vm1273, %v1269, 1326507024
  %v1284 = vsel %vm1272, %v1266, %v1283
  %v1285 = vsel %vm1271, %v1282, %v1284
  %v1286 = vshll.u32 %v1246, 8
  %v1287 = vmul.u32.u64.compose %v1286, %v1285
  %v1288 = vextract.low.u32 %v1287
  %v1289 = vextract.high.u32 %v1287
  %v1290 = vmul.u32.u64.compose %v1286, %v1281
  %v1291 = vextract.low.u32 %v1290
  %v1292 = vextract.high.u32 %v1290
  %v1293 = vmul.u32 %v1286, %v1277
  %v1294 = vadd.s32 %v1289, %v1291
  %vm1295 = vc.u32 %v1289, %v1291
  %v1296 = vadd.s32 %v1292, 1
  %v1297 = vsel %vm1295, %v1296, %v1292
  %v1298 = vadd.s32 %v1293, %v1297
  %v1299 = vadd.s32 %v1298, 536870912
  %v1300 = vshrl.u32 %v1299, 30
  %v1301 = vshll.u32 %v1300, 30
  %v1302 = vsub.s32 %v1298, %v1301
  %vm1303 = vcmp.lt.s32.totalorder %v1302, 0
  %v1304 = vsub.s32 0, %v1302
  %v1305 = vsel %vm1303, %v1304, %v1302
  %v1306 = vclz %v1305
  %v1307 = vsub.s32 %v1306, 2
  %vm1308 = vcmp.gt.s32.totalorder 0, %v1307
  %v1309 = vsel %vm1308, 0, %v1307
  %v1310 = vsub.s32 32, %v1309
  %v1311 = vshll.u32 %v1302, %v1309
  %v1312 = vshrl.u32 %v1294, %v1310
  %v1313 = vor.u32 %v1311, %v1312
  %v1314 = vsub.s32 4294967266, %v1309
  %v1315 = vadd.s32 %v1314, 127
  %v1316 = vshll.u32 %v1315, 23
  %v1317 = vor.u32 4788187, %v1316
  %v1318 = vand.u32 2147483647, %v1317
  %v1320 = vcvt.s32.f32 %v1313
  %v1321 = vmul.f32 %v1320, %v1318
  %v1322 = vxor.u32 %v1321, 2147483648
  %v1323 = vsel %vm1240, %v1322, %v1321
  %v1324 = vsub.s32 4, %v1300
  %v1325 = vsel %vm1240, %v1324, %v1300
  %v1326 = vsel %vm1239, %v818, %v1323
  %v1327 = vsel %vm1239, 0, %v1325
  %v1328 = vcosq.f32.pop %v1326
  %v1329 = vsinq.f32.pop %v1326
  %vm1330 = vweird.f32 %v818
  %v1331 = vadd.s32 %v1327, 3
  %v1332 = vand.u32 %v1331, 3
  %vm1333 = vcmp.lt.s32.totalorder %v1332, 2
  %vm1334 = vcmp.eq.s32.totalorder %v1332, 0
  %v1335 = vxor.u32 %v1329, 2147483648
  %v1336 = vsel %vm1334, %v1328, %v1335
  %vm1337 = vcmp.eq.s32.totalorder %v1332, 2
  %v1338 = vxor.u32 %v1328, 2147483648
  %v1339 = vsel %vm1337, %v1338, %v1329
  %v1340 = vsel %vm1333, %v1336, %v1339
  %v1341 = vsel %vm1330, nan, %v1340
  %v1342 = vand.u32 2147483647, %v819
  %vm1343 = vcmp.le.f32.partialorder %v1342, 0.7853982
  %vm1344 = vcmp.lt.s32.totalorder %v819, 0
  %v1345 = vand.u32 %v819, 2139095040
  %v1346 = vshrl.u32 %v1345, 23
  %v1347 = vsub.s32 %v1346, 127
  %v1348 = vand.u32 2147483647, %v819
  %v1349 = vand.u32 %v1348, 8388607
  %v1350 = vor.u32 %v1349, 8388608
  %v1351 = vsub.s32 0, %v1350
  %v1352 = vadd.s32 %v1347, 1
  %vm1353 = vcmp.gt.s32.totalorder %v1352, 0
  %v1354 = vsel %vm1353, %v1352, 0
  %v1355 = vshrl.u32 %v1354, 5
  %v1356 = vand.u32 %v1354, 31
  %v1357 = vsub.s32 32, %v1356
  %v1358 = vshrl.u32 683565275, %v1357
  %v1359 = vshll.u32 683565275, %v1356
  %v1360 = vshrl.u32 2475754826, %v1357
  %v1361 = vor.u32 %v1359, %v1360
  %v1362 = vshll.u32 2475754826, %v1356
  %v1363 = vshrl.u32 2131351028, %v1357
  %v1364 = vor.u32 %v1362, %v1363
  %v1365 = vshll.u32 2131351028, %v1356
  %v1366 = vshrl.u32 2102212464, %v1357
  %v1367 = vor.u32 %v1365, %v1366
  %v1368 = vshll.u32 2102212464, %v1356
  %v1369 = vshrl.u32 920167782, %v1357
  %v1370 = vor.u32 %v1368, %v1369
  %v1371 = vshll.u32 920167782, %v1356
  %v1372 = vshrl.u32 1326507024, %v1357
  %v1373 = vor.u32 %v1371, %v1372
  %vm1374 = vcmp.lt.s32.totalorder %v1355, 1
  %vm1375 = vcmp.lt.s32.totalorder %v1355, 2
  %vm1376 = vcmp.lt.s32.totalorder %v1355, 3
  %vm1377 = vcmp.lt.s32.totalorder %v1355, 4
  %v1378 = vsel %vm1374, %v1358, %v1361
  %v1379 = vsel %vm1377, %v1367, 2102212464
  %v1380 = vsel %vm1376, %v1364, %v1379
  %v1381 = vsel %vm1375, %v1378, %v1380
  %v1382 = vsel %vm1374, %v1361, %v1364
  %v1383 = vsel %vm1377, %v1370, 920167782
  %v1384 = vsel %vm1376, %v1367, %v1383
  %v1385 = vsel %vm1375, %v1382, %v1384
  %v1386 = vsel %vm1374, %v1364, %v1367
  %v1387 = vsel %vm1377, %v1373, 1326507024
  %v1388 = vsel %vm1376, %v1370, %v1387
  %v1389 = vsel %vm1375, %v1386, %v1388
  %v1390 = vshll.u32 %v1350, 8
  %v1391 = vmul.u32.u64.compose %v1390, %v1389
  %v1392 = vextract.low.u32 %v1391
  %v1393 = vextract.high.u32 %v1391
  %v1394 = vmul.u32.u64.compose %v1390, %v1385
  %v1395 = vextract.low.u32 %v1394
  %v1396 = vextract.high.u32 %v1394
  %v1397 = vmul.u32 %v1390, %v1381
  %v1398 = vadd.s32 %v1393, %v1395
  %vm1399 = vc.u32 %v1393, %v1395
  %v1400 = vadd.s32 %v1396, 1
  %v1401 = vsel %vm1399, %v1400, %v1396
  %v1402 = vadd.s32 %v1397, %v1401
  %v1403 = vadd.s32 %v1402, 536870912
  %v1404 = vshrl.u32 %v1403, 30
  %v1405 = vshll.u32 %v1404, 30
  %v1406 = vsub.s32 %v1402, %v1405
  %vm1407 = vcmp.lt.s32.totalorder %v1406, 0
  %v1408 = vsub.s32 0, %v1406
  %v1409 = vsel %vm1407, %v1408, %v1406
  %v1410 = vclz %v1409
  %v1411 = vsub.s32 %v1410, 2
  %vm1412 = vcmp.gt.s32.totalorder 0, %v1411
  %v1413 = vsel %vm1412, 0, %v1411
  %v1414 = vsub.s32 32, %v1413
  %v1415 = vshll.u32 %v1406, %v1413
  %v1416 = vshrl.u32 %v1398, %v1414
  %v1417 = vor.u32 %v1415, %v1416
  %v1418 = vsub.s32 4294967266, %v1413
  %v1419 = vadd.s32 %v1418, 127
  %v1420 = vshll.u32 %v1419, 23
  %v1421 = vor.u32 4788187, %v1420
  %v1422 = vand.u32 2147483647, %v1421
  %v1424 = vcvt.s32.f32 %v1417
  %v1425 = vmul.f32 %v1424, %v1422
  %v1426 = vxor.u32 %v1425, 2147483648
  %v1427 = vsel %vm1344, %v1426, %v1425
  %v1428 = vsub.s32 4, %v1404
  %v1429 = vsel %vm1344, %v1428, %v1404
  %v1430 = vsel %vm1343, %v819, %v1427
  %v1431 = vsel %vm1343, 0, %v1429
  %v1432 = vcosq.f32.pop %v1430
  %v1433 = vsinq.f32.pop %v1430
  %vm1434 = vweird.f32 %v819
  %v1435 = vadd.s32 %v1431, 3
  %v1436 = vand.u32 %v1435, 3
  %vm1437 = vcmp.lt.s32.totalorder %v1436, 2
  %vm1438 = vcmp.eq.s32.totalorder %v1436, 0
  %v1439 = vxor.u32 %v1433, 2147483648
  %v1440 = vsel %vm1438, %v1432, %v1439
  %vm1441 = vcmp.eq.s32.totalorder %v1436, 2
  %v1442 = vxor.u32 %v1432, 2147483648
  %v1443 = vsel %vm1441, %v1442, %v1433
  %v1444 = vsel %vm1437, %v1440, %v1443
  %v1445 = vsel %vm1434, nan, %v1444
  %v1446 = vand.u32 2147483647, %v820
  %vm1447 = vcmp.le.f32.partialorder %v1446, 0.7853982
  %vm1448 = vcmp.lt.s32.totalorder %v820, 0
  %v1449 = vand.u32 %v820, 2139095040
  %v1450 = vshrl.u32 %v1449, 23
  %v1451 = vsub.s32 %v1450, 127
  %v1452 = vand.u32 2147483647, %v820
  %v1453 = vand.u32 %v1452, 8388607
  %v1454 = vor.u32 %v1453, 8388608
  %v1455 = vsub.s32 0, %v1454
  %v1456 = vadd.s32 %v1451, 1
  %vm1457 = vcmp.gt.s32.totalorder %v1456, 0
  %v1458 = vsel %vm1457, %v1456, 0
  %v1459 = vshrl.u32 %v1458, 5
  %v1460 = vand.u32 %v1458, 31
  %v1461 = vsub.s32 32, %v1460
  %v1462 = vshrl.u32 683565275, %v1461
  %v1463 = vshll.u32 683565275, %v1460
  %v1464 = vshrl.u32 2475754826, %v1461
  %v1465 = vor.u32 %v1463, %v1464
  %v1466 = vshll.u32 2475754826, %v1460
  %v1467 = vshrl.u32 2131351028, %v1461
  %v1468 = vor.u32 %v1466, %v1467
  %v1469 = vshll.u32 2131351028, %v1460
  %v1470 = vshrl.u32 2102212464, %v1461
  %v1471 = vor.u32 %v1469, %v1470
  %v1472 = vshll.u32 2102212464, %v1460
  %v1473 = vshrl.u32 920167782, %v1461
  %v1474 = vor.u32 %v1472, %v1473
  %v1475 = vshll.u32 920167782, %v1460
  %v1476 = vshrl.u32 1326507024, %v1461
  %v1477 = vor.u32 %v1475, %v1476
  %vm1478 = vcmp.lt.s32.totalorder %v1459, 1
  %vm1479 = vcmp.lt.s32.totalorder %v1459, 2
  %vm1480 = vcmp.lt.s32.totalorder %v1459, 3
  %vm1481 = vcmp.lt.s32.totalorder %v1459, 4
  %v1482 = vsel %vm1478, %v1462, %v1465
  %v1483 = vsel %vm1481, %v1471, 2102212464
  %v1484 = vsel %vm1480, %v1468, %v1483
  %v1485 = vsel %vm1479, %v1482, %v1484
  %v1486 = vsel %vm1478, %v1465, %v1468
  %v1487 = vsel %vm1481, %v1474, 920167782
  %v1488 = vsel %vm1480, %v1471, %v1487
  %v1489 = vsel %vm1479, %v1486, %v1488
  %v1490 = vsel %vm1478, %v1468, %v1471
  %v1491 = vsel %vm1481, %v1477, 1326507024
  %v1492 = vsel %vm1480, %v1474, %v1491
  %v1493 = vsel %vm1479, %v1490, %v1492
  %v1494 = vshll.u32 %v1454, 8
  %v1495 = vmul.u32.u64.compose %v1494, %v1493
  %v1496 = vextract.low.u32 %v1495
  %v1497 = vextract.high.u32 %v1495
  %v1498 = vmul.u32.u64.compose %v1494, %v1489
  %v1499 = vextract.low.u32 %v1498
  %v1500 = vextract.high.u32 %v1498
  %v1501 = vmul.u32 %v1494, %v1485
  %v1502 = vadd.s32 %v1497, %v1499
  %vm1503 = vc.u32 %v1497, %v1499
  %v1504 = vadd.s32 %v1500, 1
  %v1505 = vsel %vm1503, %v1504, %v1500
  %v1506 = vadd.s32 %v1501, %v1505
  %v1507 = vadd.s32 %v1506, 536870912
  %v1508 = vshrl.u32 %v1507, 30
  %v1509 = vshll.u32 %v1508, 30
  %v1510 = vsub.s32 %v1506, %v1509
  %vm1511 = vcmp.lt.s32.totalorder %v1510, 0
  %v1512 = vsub.s32 0, %v1510
  %v1513 = vsel %vm1511, %v1512, %v1510
  %v1514 = vclz %v1513
  %v1515 = vsub.s32 %v1514, 2
  %vm1516 = vcmp.gt.s32.totalorder 0, %v1515
  %v1517 = vsel %vm1516, 0, %v1515
  %v1518 = vsub.s32 32, %v1517
  %v1519 = vshll.u32 %v1510, %v1517
  %v1520 = vshrl.u32 %v1502, %v1518
  %v1521 = vor.u32 %v1519, %v1520
  %v1522 = vsub.s32 4294967266, %v1517
  %v1523 = vadd.s32 %v1522, 127
  %v1524 = vshll.u32 %v1523, 23
  %v1525 = vor.u32 4788187, %v1524
  %v1526 = vand.u32 2147483647, %v1525
  %v1528 = vcvt.s32.f32 %v1521
  %v1529 = vmul.f32 %v1528, %v1526
  %v1530 = vxor.u32 %v1529, 2147483648
  %v1531 = vsel %vm1448, %v1530, %v1529
  %v1532 = vsub.s32 4, %v1508
  %v1533 = vsel %vm1448, %v1532, %v1508
  %v1534 = vsel %vm1447, %v820, %v1531
  %v1535 = vsel %vm1447, 0, %v1533
  %v1536 = vcosq.f32.pop %v1534
  %v1537 = vsinq.f32.pop %v1534
  %vm1538 = vweird.f32 %v820
  %v1539 = vadd.s32 %v1535, 3
  %v1540 = vand.u32 %v1539, 3
  %vm1541 = vcmp.lt.s32.totalorder %v1540, 2
  %vm1542 = vcmp.eq.s32.totalorder %v1540, 0
  %v1543 = vxor.u32 %v1537, 2147483648
  %v1544 = vsel %vm1542, %v1536, %v1543
  %vm1545 = vcmp.eq.s32.totalorder %v1540, 2
  %v1546 = vxor.u32 %v1536, 2147483648
  %v1547 = vsel %vm1545, %v1546, %v1537
  %v1548 = vsel %vm1541, %v1544, %v1547
  %v1549 = vsel %vm1538, nan, %v1548
  %v1550 = vand.u32 2147483647, %v821
  %vm1551 = vcmp.le.f32.partialorder %v1550, 0.7853982
  %vm1552 = vcmp.lt.s32.totalorder %v821, 0
  %v1553 = vand.u32 %v821, 2139095040
  %v1554 = vshrl.u32 %v1553, 23
  %v1555 = vsub.s32 %v1554, 127
  %v1556 = vand.u32 2147483647, %v821
  %v1557 = vand.u32 %v1556, 8388607
  %v1558 = vor.u32 %v1557, 8388608
  %v1559 = vsub.s32 0, %v1558
  %v1560 = vadd.s32 %v1555, 1
  %vm1561 = vcmp.gt.s32.totalorder %v1560, 0
  %v1562 = vsel %vm1561, %v1560, 0
  %v1563 = vshrl.u32 %v1562, 5
  %v1564 = vand.u32 %v1562, 31
  %v1565 = vsub.s32 32, %v1564
  %v1566 = vshrl.u32 683565275, %v1565
  %v1567 = vshll.u32 683565275, %v1564
  %v1568 = vshrl.u32 2475754826, %v1565
  %v1569 = vor.u32 %v1567, %v1568
  %v1570 = vshll.u32 2475754826, %v1564
  %v1571 = vshrl.u32 2131351028, %v1565
  %v1572 = vor.u32 %v1570, %v1571
  %v1573 = vshll.u32 2131351028, %v1564
  %v1574 = vshrl.u32 2102212464, %v1565
  %v1575 = vor.u32 %v1573, %v1574
  %v1576 = vshll.u32 2102212464, %v1564
  %v1577 = vshrl.u32 920167782, %v1565
  %v1578 = vor.u32 %v1576, %v1577
  %v1579 = vshll.u32 920167782, %v1564
  %v1580 = vshrl.u32 1326507024, %v1565
  %v1581 = vor.u32 %v1579, %v1580
  %vm1582 = vcmp.lt.s32.totalorder %v1563, 1
  %vm1583 = vcmp.lt.s32.totalorder %v1563, 2
  %vm1584 = vcmp.lt.s32.totalorder %v1563, 3
  %vm1585 = vcmp.lt.s32.totalorder %v1563, 4
  %v1586 = vsel %vm1582, %v1566, %v1569
  %v1587 = vsel %vm1585, %v1575, 2102212464
  %v1588 = vsel %vm1584, %v1572, %v1587
  %v1589 = vsel %vm1583, %v1586, %v1588
  %v1590 = vsel %vm1582, %v1569, %v1572
  %v1591 = vsel %vm1585, %v1578, 920167782
  %v1592 = vsel %vm1584, %v1575, %v1591
  %v1593 = vsel %vm1583, %v1590, %v1592
  %v1594 = vsel %vm1582, %v1572, %v1575
  %v1595 = vsel %vm1585, %v1581, 1326507024
  %v1596 = vsel %vm1584, %v1578, %v1595
  %v1597 = vsel %vm1583, %v1594, %v1596
  %v1598 = vshll.u32 %v1558, 8
  %v1599 = vmul.u32.u64.compose %v1598, %v1597
  %v1600 = vextract.low.u32 %v1599
  %v1601 = vextract.high.u32 %v1599
  %v1602 = vmul.u32.u64.compose %v1598, %v1593
  %v1603 = vextract.low.u32 %v1602
  %v1604 = vextract.high.u32 %v1602
  %v1605 = vmul.u32 %v1598, %v1589
  %v1606 = vadd.s32 %v1601, %v1603
  %vm1607 = vc.u32 %v1601, %v1603
  %v1608 = vadd.s32 %v1604, 1
  %v1609 = vsel %vm1607, %v1608, %v1604
  %v1610 = vadd.s32 %v1605, %v1609
  %v1611 = vadd.s32 %v1610, 536870912
  %v1612 = vshrl.u32 %v1611, 30
  %v1613 = vshll.u32 %v1612, 30
  %v1614 = vsub.s32 %v1610, %v1613
  %vm1615 = vcmp.lt.s32.totalorder %v1614, 0
  %v1616 = vsub.s32 0, %v1614
  %v1617 = vsel %vm1615, %v1616, %v1614
  %v1618 = vclz %v1617
  %v1619 = vsub.s32 %v1618, 2
  %vm1620 = vcmp.gt.s32.totalorder 0, %v1619
  %v1621 = vsel %vm1620, 0, %v1619
  %v1622 = vsub.s32 32, %v1621
  %v1623 = vshll.u32 %v1614, %v1621
  %v1624 = vshrl.u32 %v1606, %v1622
  %v1625 = vor.u32 %v1623, %v1624
  %v1626 = vsub.s32 4294967266, %v1621
  %v1627 = vadd.s32 %v1626, 127
  %v1628 = vshll.u32 %v1627, 23
  %v1629 = vor.u32 4788187, %v1628
  %v1630 = vand.u32 2147483647, %v1629
  %v1632 = vcvt.s32.f32 %v1625
  %v1633 = vmul.f32 %v1632, %v1630
  %v1634 = vxor.u32 %v1633, 2147483648
  %v1635 = vsel %vm1552, %v1634, %v1633
  %v1636 = vsub.s32 4, %v1612
  %v1637 = vsel %vm1552, %v1636, %v1612
  %v1638 = vsel %vm1551, %v821, %v1635
  %v1639 = vsel %vm1551, 0, %v1637
  %v1640 = vcosq.f32.pop %v1638
  %v1641 = vsinq.f32.pop %v1638
  %vm1642 = vweird.f32 %v821
  %v1643 = vadd.s32 %v1639, 3
  %v1644 = vand.u32 %v1643, 3
  %vm1645 = vcmp.lt.s32.totalorder %v1644, 2
  %vm1646 = vcmp.eq.s32.totalorder %v1644, 0
  %v1647 = vxor.u32 %v1641, 2147483648
  %v1648 = vsel %vm1646, %v1640, %v1647
  %vm1649 = vcmp.eq.s32.totalorder %v1644, 2
  %v1650 = vxor.u32 %v1640, 2147483648
  %v1651 = vsel %vm1649, %v1650, %v1641
  %v1652 = vsel %vm1645, %v1648, %v1651
  %v1653 = vsel %vm1642, nan, %v1652
  %v1654 = vadd.f32 %v790, %v925
  %v1655 = vadd.f32 %v791, %v1029
  %v1656 = vadd.f32 %v792, %v1133
  %v1657 = vadd.f32 %v793, %v1237
  %v1658 = vadd.f32 %v794, %v1341
  %v1659 = vadd.f32 %v795, %v1445
  %v1660 = vadd.f32 %v796, %v1549
  %v1661 = vadd.f32 %v797, %v1653
  %v1662 = vadd.f32 %v327, %v461
  %v1663 = vadd.f32 %v332, %v466
  %v1664 = vadd.f32 %v337, %v471
  %v1665 = vadd.f32 %v342, %v476
  %v1666 = vadd.f32 %v347, %v481
  %v1667 = vadd.f32 %v352, %v486
  %v1668 = vadd.f32 %v357, %v491
  %v1669 = vadd.f32 %v362, %v496
  %v1670 = vadd.f32 %v1662, %v1654
  %v1671 = vadd.f32 %v1663, %v1655
  %v1672 = vadd.f32 %v1664, %v1656
  %v1673 = vadd.f32 %v1665, %v1657
  %v1674 = vadd.f32 %v1666, %v1658
  %v1675 = vadd.f32 %v1667, %v1659
  %v1676 = vadd.f32 %v1668, %v1660
  %v1677 = vadd.f32 %v1669, %v1661
  %vm1678 = vcmask 261120
  %v1680 = vsel %vm1678, %v461, 0
  %v1683 = vsel %vm1678, %v466, 0
  %v1686 = vsel %vm1678, %v471, 0
  %v1689 = vsel %vm1678, %v476, 0
  %v1692 = vsel %vm1678, %v481, 0
  %v1695 = vsel %vm1678, %v486, 0
  %v1698 = vsel %vm1678, %v491, 0
  %v1701 = vsel %vm1678, %v496, 0
  %1703 = vmatprep.subr.mxu0 0.0
  %1704 = vmatpush1.msra.mxu0 %v48
  %1705 = vmatprep.subr.mxu0 0.0
  %1706 = vmatpush1.msra.mxu0 %v49
  %1707 = vmatprep.subr.mxu0 0.0
  %1708 = vmatpush1.msra.mxu0 %v50
  %1709 = vmatprep.subr.mxu0 0.0
  %1710 = vmatpush1.msra.mxu0 %v51
  %1711 = vmatprep.subr.mxu0 0.0
  %1712 = vmatpush1.msra.mxu0 0.0
  %1713 = vmatprep.subr.mxu0 0.0
  %1714 = vmatpush1.msra.mxu0 0.0
  %1715 = vmatprep.subr.mxu0 0.0
  %1716 = vmatpush1.msra.mxu0 0.0
  %1717 = vmatprep.subr.mxu0 0.0
  %1718 = vmatpush1.msra.mxu0 0.0
  %1719 = vmatprep.subr.mxu0 0.0
  %1720 = vmatpush1.msra.mxu0 0.0
  %1721 = vmatprep.subr.mxu0 0.0
  %1722 = vmatpush1.msra.mxu0 0.0
  %1723 = vmatprep.subr.mxu0 0.0
  %1724 = vmatpush1.msra.mxu0 0.0
  %1725 = vmatprep.subr.mxu0 0.0
  %1726 = vmatpush1.msra.mxu0 0.0
  %1727 = vmatprep.subr.mxu0 0.0
  %1728 = vmatpush1.msra.mxu0 0.0
  %1729 = vmatprep.subr.mxu0 0.0
  %1730 = vmatpush1.msra.mxu0 0.0
  %1731 = vmatprep.subr.mxu0 0.0
  %1732 = vmatpush1.msra.mxu0 0.0
  %1733 = vmatprep.subr.mxu0 0.0
  %1734 = vmatpush1.msra.mxu0 0.0
  %1735 = vmatprep.subr.mxu0 0.0
  %1736 = vmatpush1.msra.mxu0 0.0
  %1737 = vmatprep.subr.mxu0 0.0
  %1738 = vmatpush1.msra.mxu0 0.0
  %1739 = vmatprep.subr.mxu0 0.0
  %1740 = vmatpush1.msra.mxu0 0.0
  %1741 = vmatprep.subr.mxu0 0.0
  %1742 = vmatpush1.msra.mxu0 0.0
  %1743 = vmatprep.subr.mxu0 0.0
  %1744 = vmatpush1.msra.mxu0 0.0
  %1745 = vmatprep.subr.mxu0 0.0
  %1746 = vmatpush1.msra.mxu0 0.0
  %1747 = vmatprep.subr.mxu0 0.0
  %1748 = vmatpush1.msra.mxu0 0.0
  %1749 = vmatprep.subr.mxu0 0.0
  %1750 = vmatpush1.msra.mxu0 0.0
  %1751 = vmatprep.subr.mxu0 0.0
  %1752 = vmatpush1.msra.mxu0 0.0
  %1753 = vmatprep.subr.mxu0 0.0
  %1754 = vmatpush1.msra.mxu0 0.0
  %1755 = vmatprep.subr.mxu0 0.0
  %1756 = vmatpush1.msra.mxu0 0.0
  %1757 = vmatprep.subr.mxu0 0.0
  %1758 = vmatpush1.msra.mxu0 0.0
  %1759 = vmatprep.subr.mxu0 0.0
  %1760 = vmatpush1.msra.mxu0 0.0
  %1761 = vmatprep.subr.mxu0 0.0
  %1762 = vmatpush1.msra.mxu0 0.0
  %1763 = vmatprep.subr.mxu0 0.0
  %1764 = vmatpush1.msra.mxu0 0.0
  %1765 = vmatprep.subr.mxu0 0.0
  %1766 = vmatpush1.msra.mxu0 0.0
  %1767 = vmatprep.mubr.f32.mxu0 0.0
  %1768 = vmatmul.mubr.f32.gmra.mrb[0].mxu0 %v1680
  %v1769 = vpop.f32.mrb[0].mxu0
  %v1770 = vadd.f32 0.0, %v1769
  %v1771 = vpop.f32.mrb[0].mxu0
  %1772 = vmatprep.mubr.f32.mxu0 0.0
  %1773 = vmatmul.mubr.f32.gmra.mrb[0].mxu0 %v1683
  %v1774 = vpop.f32.mrb[0].mxu0
  %v1775 = vadd.f32 0.0, %v1774
  %v1776 = vpop.f32.mrb[0].mxu0
  %1777 = vmatprep.mubr.f32.mxu0 0.0
  %1778 = vmatmul.mubr.f32.gmra.mrb[0].mxu0 %v1686
  %v1779 = vpop.f32.mrb[0].mxu0
  %v1780 = vadd.f32 0.0, %v1779
  %v1781 = vpop.f32.mrb[0].mxu0
  %1782 = vmatprep.mubr.f32.mxu0 0.0
  %1783 = vmatmul.mubr.f32.gmra.mrb[0].mxu0 %v1689
  %v1784 = vpop.f32.mrb[0].mxu0
  %v1785 = vadd.f32 0.0, %v1784
  %v1786 = vpop.f32.mrb[0].mxu0
  %1787 = vmatprep.mubr.f32.mxu0 0.0
  %1788 = vmatmul.mubr.f32.gmra.mrb[0].mxu0 %v1692
  %v1789 = vpop.f32.mrb[0].mxu0
  %v1790 = vadd.f32 0.0, %v1789
  %v1791 = vpop.f32.mrb[0].mxu0
  %1792 = vmatprep.mubr.f32.mxu0 0.0
  %1793 = vmatmul.mubr.f32.gmra.mrb[0].mxu0 %v1695
  %v1794 = vpop.f32.mrb[0].mxu0
  %v1795 = vadd.f32 0.0, %v1794
  %v1796 = vpop.f32.mrb[0].mxu0
  %1797 = vmatprep.mubr.f32.mxu0 0.0
  %1798 = vmatmul.mubr.f32.gmra.mrb[0].mxu0 %v1698
  %v1799 = vpop.f32.mrb[0].mxu0
  %v1800 = vadd.f32 0.0, %v1799
  %v1801 = vpop.f32.mrb[0].mxu0
  %1802 = vmatprep.mubr.f32.mxu0 0.0
  %1803 = vmatmul.mubr.f32.gmra.mrb[0].mxu0 %v1701
  %v1804 = vpop.f32.mrb[0].mxu0
  %v1805 = vadd.f32 0.0, %v1804
  %v1806 = vpop.f32.mrb[0].mxu0
  %1807 = vdwg.mxu0
  %v1809 = vsel %vm1678, %v327, 0
  %v1812 = vsel %vm1678, %v332, 0
  %v1815 = vsel %vm1678, %v337, 0
  %v1818 = vsel %vm1678, %v342, 0
  %v1821 = vsel %vm1678, %v347, 0
  %v1824 = vsel %vm1678, %v352, 0
  %v1827 = vsel %vm1678, %v357, 0
  %v1830 = vsel %vm1678, %v362, 0
  %1832 = vmatprep.subr.mxu0 0.0
  %1833 = vmatpush1.msra.mxu0 %v44
  %1834 = vmatprep.subr.mxu0 0.0
  %1835 = vmatpush1.msra.mxu0 %v45
  %1836 = vmatprep.subr.mxu0 0.0
  %1837 = vmatpush1.msra.mxu0 %v46
  %1838 = vmatprep.subr.mxu0 0.0
  %1839 = vmatpush1.msra.mxu0 %v47
  %1840 = vmatprep.subr.mxu0 0.0
  %1841 = vmatpush1.msra.mxu0 0.0
  %1842 = vmatprep.subr.mxu0 0.0
  %1843 = vmatpush1.msra.mxu0 0.0
  %1844 = vmatprep.subr.mxu0 0.0
  %1845 = vmatpush1.msra.mxu0 0.0
  %1846 = vmatprep.subr.mxu0 0.0
  %1847 = vmatpush1.msra.mxu0 0.0
  %1848 = vmatprep.subr.mxu0 0.0
  %1849 = vmatpush1.msra.mxu0 0.0
  %1850 = vmatprep.subr.mxu0 0.0
  %1851 = vmatpush1.msra.mxu0 0.0
  %1852 = vmatprep.subr.mxu0 0.0
  %1853 = vmatpush1.msra.mxu0 0.0
  %1854 = vmatprep.subr.mxu0 0.0
  %1855 = vmatpush1.msra.mxu0 0.0
  %1856 = vmatprep.subr.mxu0 0.0
  %1857 = vmatpush1.msra.mxu0 0.0
  %1858 = vmatprep.subr.mxu0 0.0
  %1859 = vmatpush1.msra.mxu0 0.0
  %1860 = vmatprep.subr.mxu0 0.0
  %1861 = vmatpush1.msra.mxu0 0.0
  %1862 = vmatprep.subr.mxu0 0.0
  %1863 = vmatpush1.msra.mxu0 0.0
  %1864 = vmatprep.subr.mxu0 0.0
  %1865 = vmatpush1.msra.mxu0 0.0
  %1866 = vmatprep.subr.mxu0 0.0
  %1867 = vmatpush1.msra.mxu0 0.0
  %1868 = vmatprep.subr.mxu0 0.0
  %1869 = vmatpush1.msra.mxu0 0.0
  %1870 = vmatprep.subr.mxu0 0.0
  %1871 = vmatpush1.msra.mxu0 0.0
  %1872 = vmatprep.subr.mxu0 0.0
  %1873 = vmatpush1.msra.mxu0 0.0
  %1874 = vmatprep.subr.mxu0 0.0
  %1875 = vmatpush1.msra.mxu0 0.0
  %1876 = vmatprep.subr.mxu0 0.0
  %1877 = vmatpush1.msra.mxu0 0.0
  %1878 = vmatprep.subr.mxu0 0.0
  %1879 = vmatpush1.msra.mxu0 0.0
  %1880 = vmatprep.subr.mxu0 0.0
  %1881 = vmatpush1.msra.mxu0 0.0
  %1882 = vmatprep.subr.mxu0 0.0
  %1883 = vmatpush1.msra.mxu0 0.0
  %1884 = vmatprep.subr.mxu0 0.0
  %1885 = vmatpush1.msra.mxu0 0.0
  %1886 = vmatprep.subr.mxu0 0.0
  %1887 = vmatpush1.msra.mxu0 0.0
  %1888 = vmatprep.subr.mxu0 0.0
  %1889 = vmatpush1.msra.mxu0 0.0
  %1890 = vmatprep.subr.mxu0 0.0
  %1891 = vmatpush1.msra.mxu0 0.0
  %1892 = vmatprep.subr.mxu0 0.0
  %1893 = vmatpush1.msra.mxu0 0.0
  %1894 = vmatprep.subr.mxu0 0.0
  %1895 = vmatpush1.msra.mxu0 0.0
  %1896 = vmatprep.mubr.f32.mxu0 0.0
  %1897 = vmatmul.mubr.f32.gmra.mrb[0].mxu0 %v1809
  %v1898 = vpop.f32.mrb[0].mxu0
  %v1899 = vadd.f32 %v1770, %v1898
  %v1900 = vpop.f32.mrb[0].mxu0
  %1901 = vmatprep.mubr.f32.mxu0 0.0
  %1902 = vmatmul.mubr.f32.gmra.mrb[0].mxu0 %v1812
  %v1903 = vpop.f32.mrb[0].mxu0
  %v1904 = vadd.f32 %v1775, %v1903
  %v1905 = vpop.f32.mrb[0].mxu0
  %1906 = vmatprep.mubr.f32.mxu0 0.0
  %1907 = vmatmul.mubr.f32.gmra.mrb[0].mxu0 %v1815
  %v1908 = vpop.f32.mrb[0].mxu0
  %v1909 = vadd.f32 %v1780, %v1908
  %v1910 = vpop.f32.mrb[0].mxu0
  %1911 = vmatprep.mubr.f32.mxu0 0.0
  %1912 = vmatmul.mubr.f32.gmra.mrb[0].mxu0 %v1818
  %v1913 = vpop.f32.mrb[0].mxu0
  %v1914 = vadd.f32 %v1785, %v1913
  %v1915 = vpop.f32.mrb[0].mxu0
  %1916 = vmatprep.mubr.f32.mxu0 0.0
  %1917 = vmatmul.mubr.f32.gmra.mrb[0].mxu0 %v1821
  %v1918 = vpop.f32.mrb[0].mxu0
  %v1919 = vadd.f32 %v1790, %v1918
  %v1920 = vpop.f32.mrb[0].mxu0
  %1921 = vmatprep.mubr.f32.mxu0 0.0
  %1922 = vmatmul.mubr.f32.gmra.mrb[0].mxu0 %v1824
  %v1923 = vpop.f32.mrb[0].mxu0
  %v1924 = vadd.f32 %v1795, %v1923
  %v1925 = vpop.f32.mrb[0].mxu0
  %1926 = vmatprep.mubr.f32.mxu0 0.0
  %1927 = vmatmul.mubr.f32.gmra.mrb[0].mxu0 %v1827
  %v1928 = vpop.f32.mrb[0].mxu0
  %v1929 = vadd.f32 %v1800, %v1928
  %v1930 = vpop.f32.mrb[0].mxu0
  %1931 = vmatprep.mubr.f32.mxu0 0.0
  %1932 = vmatmul.mubr.f32.gmra.mrb[0].mxu0 %v1830
  %v1933 = vpop.f32.mrb[0].mxu0
  %v1934 = vadd.f32 %v1805, %v1933
  %v1935 = vpop.f32.mrb[0].mxu0
  %1936 = vdwg.mxu0
  %v1938 = vsel %vm1678, %v671, 0
  %v1941 = vsel %vm1678, %v676, 0
  %v1944 = vsel %vm1678, %v681, 0
  %v1947 = vsel %vm1678, %v686, 0
  %v1950 = vsel %vm1678, %v691, 0
  %v1953 = vsel %vm1678, %v696, 0
  %v1956 = vsel %vm1678, %v701, 0
  %v1959 = vsel %vm1678, %v706, 0
  %1961 = vmatprep.subr.mxu0 0.0
  %1962 = vmatpush1.msra.mxu0 %v52
  %1963 = vmatprep.subr.mxu0 0.0
  %1964 = vmatpush1.msra.mxu0 %v53
  %1965 = vmatprep.subr.mxu0 0.0
  %1966 = vmatpush1.msra.mxu0 %v54
  %1967 = vmatprep.subr.mxu0 0.0
  %1968 = vmatpush1.msra.mxu0 %v55
  %1969 = vmatprep.subr.mxu0 0.0
  %1970 = vmatpush1.msra.mxu0 0.0
  %1971 = vmatprep.subr.mxu0 0.0
  %1972 = vmatpush1.msra.mxu0 0.0
  %1973 = vmatprep.subr.mxu0 0.0
  %1974 = vmatpush1.msra.mxu0 0.0
  %1975 = vmatprep.subr.mxu0 0.0
  %1976 = vmatpush1.msra.mxu0 0.0
  %1977 = vmatprep.subr.mxu0 0.0
  %1978 = vmatpush1.msra.mxu0 0.0
  %1979 = vmatprep.subr.mxu0 0.0
  %1980 = vmatpush1.msra.mxu0 0.0
  %1981 = vmatprep.subr.mxu0 0.0
  %1982 = vmatpush1.msra.mxu0 0.0
  %1983 = vmatprep.subr.mxu0 0.0
  %1984 = vmatpush1.msra.mxu0 0.0
  %1985 = vmatprep.subr.mxu0 0.0
  %1986 = vmatpush1.msra.mxu0 0.0
  %1987 = vmatprep.subr.mxu0 0.0
  %1988 = vmatpush1.msra.mxu0 0.0
  %1989 = vmatprep.subr.mxu0 0.0
  %1990 = vmatpush1.msra.mxu0 0.0
  %1991 = vmatprep.subr.mxu0 0.0
  %1992 = vmatpush1.msra.mxu0 0.0
  %1993 = vmatprep.subr.mxu0 0.0
  %1994 = vmatpush1.msra.mxu0 0.0
  %1995 = vmatprep.subr.mxu0 0.0
  %1996 = vmatpush1.msra.mxu0 0.0
  %1997 = vmatprep.subr.mxu0 0.0
  %1998 = vmatpush1.msra.mxu0 0.0
  %1999 = vmatprep.subr.mxu0 0.0
  %2000 = vmatpush1.msra.mxu0 0.0
  %2001 = vmatprep.subr.mxu0 0.0
  %2002 = vmatpush1.msra.mxu0 0.0
  %2003 = vmatprep.subr.mxu0 0.0
  %2004 = vmatpush1.msra.mxu0 0.0
  %2005 = vmatprep.subr.mxu0 0.0
  %2006 = vmatpush1.msra.mxu0 0.0
  %2007 = vmatprep.subr.mxu0 0.0
  %2008 = vmatpush1.msra.mxu0 0.0
  %2009 = vmatprep.subr.mxu0 0.0
  %2010 = vmatpush1.msra.mxu0 0.0
  %2011 = vmatprep.subr.mxu0 0.0
  %2012 = vmatpush1.msra.mxu0 0.0
  %2013 = vmatprep.subr.mxu0 0.0
  %2014 = vmatpush1.msra.mxu0 0.0
  %2015 = vmatprep.subr.mxu0 0.0
  %2016 = vmatpush1.msra.mxu0 0.0
  %2017 = vmatprep.subr.mxu0 0.0
  %2018 = vmatpush1.msra.mxu0 0.0
  %2019 = vmatprep.subr.mxu0 0.0
  %2020 = vmatpush1.msra.mxu0 0.0
  %2021 = vmatprep.subr.mxu0 0.0
  %2022 = vmatpush1.msra.mxu0 0.0
  %2023 = vmatprep.subr.mxu0 0.0
  %2024 = vmatpush1.msra.mxu0 0.0
  %2025 = vmatprep.mubr.f32.mxu0 0.0
  %2026 = vmatmul.mubr.f32.gmra.mrb[0].mxu0 %v1938
  %v2027 = vpop.f32.mrb[0].mxu0
  %v2028 = vadd.f32 0.0, %v2027
  %v2029 = vpop.f32.mrb[0].mxu0
  %2030 = vmatprep.mubr.f32.mxu0 0.0
  %2031 = vmatmul.mubr.f32.gmra.mrb[0].mxu0 %v1941
  %v2032 = vpop.f32.mrb[0].mxu0
  %v2033 = vadd.f32 0.0, %v2032
  %v2034 = vpop.f32.mrb[0].mxu0
  %2035 = vmatprep.mubr.f32.mxu0 0.0
  %2036 = vmatmul.mubr.f32.gmra.mrb[0].mxu0 %v1944
  %v2037 = vpop.f32.mrb[0].mxu0
  %v2038 = vadd.f32 0.0, %v2037
  %v2039 = vpop.f32.mrb[0].mxu0
  %2040 = vmatprep.mubr.f32.mxu0 0.0
  %2041 = vmatmul.mubr.f32.gmra.mrb[0].mxu0 %v1947
  %v2042 = vpop.f32.mrb[0].mxu0
  %v2043 = vadd.f32 0.0, %v2042
  %v2044 = vpop.f32.mrb[0].mxu0
  %2045 = vmatprep.mubr.f32.mxu0 0.0
  %2046 = vmatmul.mubr.f32.gmra.mrb[0].mxu0 %v1950
  %v2047 = vpop.f32.mrb[0].mxu0
  %v2048 = vadd.f32 0.0, %v2047
  %v2049 = vpop.f32.mrb[0].mxu0
  %2050 = vmatprep.mubr.f32.mxu0 0.0
  %2051 = vmatmul.mubr.f32.gmra.mrb[0].mxu0 %v1953
  %v2052 = vpop.f32.mrb[0].mxu0
  %v2053 = vadd.f32 0.0, %v2052
  %v2054 = vpop.f32.mrb[0].mxu0
  %2055 = vmatprep.mubr.f32.mxu0 0.0
  %2056 = vmatmul.mubr.f32.gmra.mrb[0].mxu0 %v1956
  %v2057 = vpop.f32.mrb[0].mxu0
  %v2058 = vadd.f32 0.0, %v2057
  %v2059 = vpop.f32.mrb[0].mxu0
  %2060 = vmatprep.mubr.f32.mxu0 0.0
  %2061 = vmatmul.mubr.f32.gmra.mrb[0].mxu0 %v1959
  %v2062 = vpop.f32.mrb[0].mxu0
  %v2063 = vadd.f32 0.0, %v2062
  %v2064 = vpop.f32.mrb[0].mxu0
  %2065 = vdwg.mxu0
  %v2066 = vadd.f32 %v1899, %v2028
  %v2067 = vadd.f32 %v1904, %v2033
  %v2068 = vadd.f32 %v1909, %v2038
  %v2069 = vadd.f32 %v1914, %v2043
  %v2070 = vadd.f32 %v1919, %v2048
  %v2071 = vadd.f32 %v1924, %v2053
  %v2072 = vadd.f32 %v1929, %v2058
  %v2073 = vadd.f32 %v1934, %v2063
  %v2075 = vsel %vm1678, %v1654, 0
  %v2078 = vsel %vm1678, %v1655, 0
  %v2081 = vsel %vm1678, %v1656, 0
  %v2084 = vsel %vm1678, %v1657, 0
  %v2087 = vsel %vm1678, %v1658, 0
  %v2090 = vsel %vm1678, %v1659, 0
  %v2093 = vsel %vm1678, %v1660, 0
  %v2096 = vsel %vm1678, %v1661, 0
  %2098 = vmatprep.subr.mxu0 0.0
  %2099 = vmatpush1.msra.mxu0 %v56
  %2100 = vmatprep.subr.mxu0 0.0
  %2101 = vmatpush1.msra.mxu0 %v57
  %2102 = vmatprep.subr.mxu0 0.0
  %2103 = vmatpush1.msra.mxu0 %v58
  %2104 = vmatprep.subr.mxu0 0.0
  %2105 = vmatpush1.msra.mxu0 %v59
  %2106 = vmatprep.subr.mxu0 0.0
  %2107 = vmatpush1.msra.mxu0 0.0
  %2108 = vmatprep.subr.mxu0 0.0
  %2109 = vmatpush1.msra.mxu0 0.0
  %2110 = vmatprep.subr.mxu0 0.0
  %2111 = vmatpush1.msra.mxu0 0.0
  %2112 = vmatprep.subr.mxu0 0.0
  %2113 = vmatpush1.msra.mxu0 0.0
  %2114 = vmatprep.subr.mxu0 0.0
  %2115 = vmatpush1.msra.mxu0 0.0
  %2116 = vmatprep.subr.mxu0 0.0
  %2117 = vmatpush1.msra.mxu0 0.0
  %2118 = vmatprep.subr.mxu0 0.0
  %2119 = vmatpush1.msra.mxu0 0.0
  %2120 = vmatprep.subr.mxu0 0.0
  %2121 = vmatpush1.msra.mxu0 0.0
  %2122 = vmatprep.subr.mxu0 0.0
  %2123 = vmatpush1.msra.mxu0 0.0
  %2124 = vmatprep.subr.mxu0 0.0
  %2125 = vmatpush1.msra.mxu0 0.0
  %2126 = vmatprep.subr.mxu0 0.0
  %2127 = vmatpush1.msra.mxu0 0.0
  %2128 = vmatprep.subr.mxu0 0.0
  %2129 = vmatpush1.msra.mxu0 0.0
  %2130 = vmatprep.subr.mxu0 0.0
  %2131 = vmatpush1.msra.mxu0 0.0
  %2132 = vmatprep.subr.mxu0 0.0
  %2133 = vmatpush1.msra.mxu0 0.0
  %2134 = vmatprep.subr.mxu0 0.0
  %2135 = vmatpush1.msra.mxu0 0.0
  %2136 = vmatprep.subr.mxu0 0.0
  %2137 = vmatpush1.msra.mxu0 0.0
  %2138 = vmatprep.subr.mxu0 0.0
  %2139 = vmatpush1.msra.mxu0 0.0
  %2140 = vmatprep.subr.mxu0 0.0
  %2141 = vmatpush1.msra.mxu0 0.0
  %2142 = vmatprep.subr.mxu0 0.0
  %2143 = vmatpush1.msra.mxu0 0.0
  %2144 = vmatprep.subr.mxu0 0.0
  %2145 = vmatpush1.msra.mxu0 0.0
  %2146 = vmatprep.subr.mxu0 0.0
  %2147 = vmatpush1.msra.mxu0 0.0
  %2148 = vmatprep.subr.mxu0 0.0
  %2149 = vmatpush1.msra.mxu0 0.0
  %2150 = vmatprep.subr.mxu0 0.0
  %2151 = vmatpush1.msra.mxu0 0.0
  %2152 = vmatprep.subr.mxu0 0.0
  %2153 = vmatpush1.msra.mxu0 0.0
  %2154 = vmatprep.subr.mxu0 0.0
  %2155 = vmatpush1.msra.mxu0 0.0
  %2156 = vmatprep.subr.mxu0 0.0
  %2157 = vmatpush1.msra.mxu0 0.0
  %2158 = vmatprep.subr.mxu0 0.0
  %2159 = vmatpush1.msra.mxu0 0.0
  %2160 = vmatprep.subr.mxu0 0.0
  %2161 = vmatpush1.msra.mxu0 0.0
  %2162 = vmatprep.mubr.f32.mxu0 0.0
  %2163 = vmatmul.mubr.f32.gmra.mrb[0].mxu0 %v2075
  %v2164 = vpop.f32.mrb[0].mxu0
  %v2165 = vadd.f32 0.0, %v2164
  %v2166 = vpop.f32.mrb[0].mxu0
  %2167 = vmatprep.mubr.f32.mxu0 0.0
  %2168 = vmatmul.mubr.f32.gmra.mrb[0].mxu0 %v2078
  %v2169 = vpop.f32.mrb[0].mxu0
  %v2170 = vadd.f32 0.0, %v2169
  %v2171 = vpop.f32.mrb[0].mxu0
  %2172 = vmatprep.mubr.f32.mxu0 0.0
  %2173 = vmatmul.mubr.f32.gmra.mrb[0].mxu0 %v2081
  %v2174 = vpop.f32.mrb[0].mxu0
  %v2175 = vadd.f32 0.0, %v2174
  %v2176 = vpop.f32.mrb[0].mxu0
  %2177 = vmatprep.mubr.f32.mxu0 0.0
  %2178 = vmatmul.mubr.f32.gmra.mrb[0].mxu0 %v2084
  %v2179 = vpop.f32.mrb[0].mxu0
  %v2180 = vadd.f32 0.0, %v2179
  %v2181 = vpop.f32.mrb[0].mxu0
  %2182 = vmatprep.mubr.f32.mxu0 0.0
  %2183 = vmatmul.mubr.f32.gmra.mrb[0].mxu0 %v2087
  %v2184 = vpop.f32.mrb[0].mxu0
  %v2185 = vadd.f32 0.0, %v2184
  %v2186 = vpop.f32.mrb[0].mxu0
  %2187 = vmatprep.mubr.f32.mxu0 0.0
  %2188 = vmatmul.mubr.f32.gmra.mrb[0].mxu0 %v2090
  %v2189 = vpop.f32.mrb[0].mxu0
  %v2190 = vadd.f32 0.0, %v2189
  %v2191 = vpop.f32.mrb[0].mxu0
  %2192 = vmatprep.mubr.f32.mxu0 0.0
  %2193 = vmatmul.mubr.f32.gmra.mrb[0].mxu0 %v2093
  %v2194 = vpop.f32.mrb[0].mxu0
  %v2195 = vadd.f32 0.0, %v2194
  %v2196 = vpop.f32.mrb[0].mxu0
  %2197 = vmatprep.mubr.f32.mxu0 0.0
  %2198 = vmatmul.mubr.f32.gmra.mrb[0].mxu0 %v2096
  %v2199 = vpop.f32.mrb[0].mxu0
  %v2200 = vadd.f32 0.0, %v2199
  %v2201 = vpop.f32.mrb[0].mxu0
  %2202 = vdwg.mxu0
  %v2203 = vadd.f32 %v2066, %v2165
  %v2204 = vadd.f32 %v2067, %v2170
  %v2205 = vadd.f32 %v2068, %v2175
  %v2206 = vadd.f32 %v2069, %v2180
  %v2207 = vadd.f32 %v2070, %v2185
  %v2208 = vadd.f32 %v2071, %v2190
  %v2209 = vadd.f32 %v2072, %v2195
  %v2210 = vadd.f32 %v2073, %v2200
  %v2211 = vadd.f32 %v2203, %v60
  %v2212 = vadd.f32 %v2204, %v60
  %v2213 = vadd.f32 %v2205, %v60
  %v2214 = vadd.f32 %v2206, %v60
  %v2215 = vadd.f32 %v2207, %v60
  %v2216 = vadd.f32 %v2208, %v60
  %v2217 = vadd.f32 %v2209, %v60
  %v2218 = vadd.f32 %v2210, %v60
  %v2219 = vmax.f32 %v2211, 0.0
  %v2220 = vmax.f32 %v2212, 0.0
  %v2221 = vmax.f32 %v2213, 0.0
  %v2222 = vmax.f32 %v2214, 0.0
  %v2223 = vmax.f32 %v2215, 0.0
  %v2224 = vmax.f32 %v2216, 0.0
  %v2225 = vmax.f32 %v2217, 0.0
  %v2226 = vmax.f32 %v2218, 0.0
  %v2227 = vmul.f32 %v2219, %v61
  %v2228 = vmul.f32 %v2220, %v61
  %v2229 = vmul.f32 %v2221, %v61
  %v2230 = vmul.f32 %v2222, %v61
  %v2231 = vmul.f32 %v2223, %v61
  %v2232 = vmul.f32 %v2224, %v61
  %v2233 = vmul.f32 %v2225, %v61
  %v2234 = vmul.f32 %v2226, %v61
  %v2235 = vsel %vm235, %v2227, 0.0
  %2236 = vadd.xlane.f32.xlu0 %v2235
  %v2237 = vpop.xlane.xlu0 %2236
  %v2238 = vsel %vm235, %v2228, 0.0
  %2239 = vadd.xlane.f32.xlu0 %v2238
  %v2240 = vpop.xlane.xlu0 %2239
  %v2241 = vsel %vm235, %v2229, 0.0
  %2242 = vadd.xlane.f32.xlu0 %v2241
  %v2243 = vpop.xlane.xlu0 %2242
  %v2244 = vsel %vm235, %v2230, 0.0
  %2245 = vadd.xlane.f32.xlu0 %v2244
  %v2246 = vpop.xlane.xlu0 %2245
  %v2247 = vsel %vm235, %v2231, 0.0
  %2248 = vadd.xlane.f32.xlu0 %v2247
  %v2249 = vpop.xlane.xlu0 %2248
  %v2250 = vsel %vm235, %v2232, 0.0
  %2251 = vadd.xlane.f32.xlu0 %v2250
  %v2252 = vpop.xlane.xlu0 %2251
  %v2253 = vsel %vm235, %v2233, 0.0
  %2254 = vadd.xlane.f32.xlu0 %v2253
  %v2255 = vpop.xlane.xlu0 %2254
  %v2256 = vsel %vm235, %v2234, 0.0
  %2257 = vadd.xlane.f32.xlu0 %v2256
  %v2258 = vpop.xlane.xlu0 %2257
  %v2259 = vadd.f32 %v2237, %v62
  %v2260 = vadd.f32 %v2240, %v62
  %v2261 = vadd.f32 %v2243, %v62
  %v2262 = vadd.f32 %v2246, %v62
  %v2263 = vadd.f32 %v2249, %v62
  %v2264 = vadd.f32 %v2252, %v62
  %v2265 = vadd.f32 %v2255, %v62
  %v2266 = vadd.f32 %v2258, %v62
  %v2267 = vxor.u32 %v2259, 2147483648
  %v2268 = vxor.u32 %v2260, 2147483648
  %v2269 = vxor.u32 %v2261, 2147483648
  %v2270 = vxor.u32 %v2262, 2147483648
  %v2271 = vxor.u32 %v2263, 2147483648
  %v2272 = vxor.u32 %v2264, 2147483648
  %v2273 = vxor.u32 %v2265, 2147483648
  %v2274 = vxor.u32 %v2266, 2147483648
  %v2275 = vmul.f32 %v2267, 1.442695
  %v2276 = vpow.pop %v2275
  %v2277 = vmul.f32 %v2268, 1.442695
  %v2278 = vpow.pop %v2277
  %v2279 = vmul.f32 %v2269, 1.442695
  %v2280 = vpow.pop %v2279
  %v2281 = vmul.f32 %v2270, 1.442695
  %v2282 = vpow.pop %v2281
  %v2283 = vmul.f32 %v2271, 1.442695
  %v2284 = vpow.pop %v2283
  %v2285 = vmul.f32 %v2272, 1.442695
  %v2286 = vpow.pop %v2285
  %v2287 = vmul.f32 %v2273, 1.442695
  %v2288 = vpow.pop %v2287
  %v2289 = vmul.f32 %v2274, 1.442695
  %v2290 = vpow.pop %v2289
  %v2291 = vadd.f32 %v2276, 1.0
  %v2292 = vadd.f32 %v2278, 1.0
  %v2293 = vadd.f32 %v2280, 1.0
  %v2294 = vadd.f32 %v2282, 1.0
  %v2295 = vadd.f32 %v2284, 1.0
  %v2296 = vadd.f32 %v2286, 1.0
  %v2297 = vadd.f32 %v2288, 1.0
  %v2298 = vadd.f32 %v2290, 1.0
  %v2299 = vrcp.pop %v2291
  %v2300 = vmul.f32 1.0, %v2299
  %v2301 = vrcp.pop %v2292
  %v2302 = vmul.f32 1.0, %v2301
  %v2303 = vrcp.pop %v2293
  %v2304 = vmul.f32 1.0, %v2303
  %v2305 = vrcp.pop %v2294
  %v2306 = vmul.f32 1.0, %v2305
  %v2307 = vrcp.pop %v2295
  %v2308 = vmul.f32 1.0, %v2307
  %v2309 = vrcp.pop %v2296
  %v2310 = vmul.f32 1.0, %v2309
  %v2311 = vrcp.pop %v2297
  %v2312 = vmul.f32 1.0, %v2311
  %v2313 = vrcp.pop %v2298
  %v2314 = vmul.f32 1.0, %v2313
  %2316 = vset.pattern.permute.xlu0 0
  %2317 = vperm.xlu0 %2316, %v2300
  %v2318 = vpop.permute.xlu0 %2317
  %2321 = vset.pattern.permute.xlu0 0
  %2322 = vperm.xlu0 %2321, %v2302
  %v2323 = vpop.permute.xlu0 %2322
  %2326 = vset.pattern.permute.xlu0 0
  %2327 = vperm.xlu0 %2326, %v2304
  %v2328 = vpop.permute.xlu0 %2327
  %2331 = vset.pattern.permute.xlu0 0
  %2332 = vperm.xlu0 %2331, %v2306
  %v2333 = vpop.permute.xlu0 %2332
  %2336 = vset.pattern.permute.xlu0 0
  %2337 = vperm.xlu0 %2336, %v2308
  %v2338 = vpop.permute.xlu0 %2337
  %2341 = vset.pattern.permute.xlu0 0
  %2342 = vperm.xlu0 %2341, %v2310
  %v2343 = vpop.permute.xlu0 %2342
  %2346 = vset.pattern.permute.xlu0 0
  %2347 = vperm.xlu0 %2346, %v2312
  %v2348 = vpop.permute.xlu0 %2347
  %2351 = vset.pattern.permute.xlu0 0
  %2352 = vperm.xlu0 %2351, %v2314
  %v2353 = vpop.permute.xlu0 %2352
  %v2355 = vmul.f32 %v2318, %v1670
  %v2356 = vmul.f32 %v2323, %v1671
  %v2357 = vmul.f32 %v2328, %v1672
  %v2358 = vmul.f32 %v2333, %v1673
  %v2359 = vmul.f32 %v2338, %v1674
  %v2360 = vmul.f32 %v2343, %v1675
  %v2361 = vmul.f32 %v2348, %v1676
  %v2362 = vmul.f32 %v2353, %v1677
  %v2363 = vsub.f32 1.0, %v2300
  %v2364 = vsub.f32 1.0, %v2302
  %v2365 = vsub.f32 1.0, %v2304
  %v2366 = vsub.f32 1.0, %v2306
  %v2367 = vsub.f32 1.0, %v2308
  %v2368 = vsub.f32 1.0, %v2310
  %v2369 = vsub.f32 1.0, %v2312
  %v2370 = vsub.f32 1.0, %v2314
  %2372 = vset.pattern.permute.xlu0 0
  %2373 = vperm.xlu0 %2372, %v2363
  %v2374 = vpop.permute.xlu0 %2373
  %2377 = vset.pattern.permute.xlu0 0
  %2378 = vperm.xlu0 %2377, %v2364
  %v2379 = vpop.permute.xlu0 %2378
  %2382 = vset.pattern.permute.xlu0 0
  %2383 = vperm.xlu0 %2382, %v2365
  %v2384 = vpop.permute.xlu0 %2383
  %2387 = vset.pattern.permute.xlu0 0
  %2388 = vperm.xlu0 %2387, %v2366
  %v2389 = vpop.permute.xlu0 %2388
  %2392 = vset.pattern.permute.xlu0 0
  %2393 = vperm.xlu0 %2392, %v2367
  %v2394 = vpop.permute.xlu0 %2393
  %2397 = vset.pattern.permute.xlu0 0
  %2398 = vperm.xlu0 %2397, %v2368
  %v2399 = vpop.permute.xlu0 %2398
  %2402 = vset.pattern.permute.xlu0 0
  %2403 = vperm.xlu0 %2402, %v2369
  %v2404 = vpop.permute.xlu0 %2403
  %2407 = vset.pattern.permute.xlu0 0
  %2408 = vperm.xlu0 %2407, %v2370
  %v2409 = vpop.permute.xlu0 %2408
  %v2411 = vmul.f32 %v2374, %v2355
  %v2412 = vmul.f32 %v2379, %v2356
  %v2413 = vmul.f32 %v2384, %v2357
  %v2414 = vmul.f32 %v2389, %v2358
  %v2415 = vmul.f32 %v2394, %v2359
  %v2416 = vmul.f32 %v2399, %v2360
  %v2417 = vmul.f32 %v2404, %v2361
  %v2418 = vmul.f32 %v2409, %v2362
  %v2419 = vld [vmem:[%s3] sm:$0x1]
  %v2420 = vlaneseq
  %v2421 = vshrl.u32 %v2420, 7
  %v2422 = vadd.s32 %v2421, 8
  %v2423 = vlaneseq
  %v2424 = vshrl.u32 %v2423, 7
  %v2425 = vsub.s32 0, %v2424
  %v2426 = vrot.slane %v2419, %v2425
  %vm2427 = vcmp.eq.s32.totalorder %v2421, %v2426
  %vm2428 = vcmp.eq.s32.totalorder %v2422, %v2426
  %v2429 = vsel %vm2427, 1, 0
  %v2430 = vsel %vm2428, 1, 0
  %v2431 = vcvt.s32.f32 %v2429
  %v2432 = vcvt.s32.f32 %v2430
  %vm2433 = vcmask 523264
  %v2435 = vsel %vm2433, %v2431, 0
  %v2438 = vsel %vm2433, %v2432, 0
  %2440 = vmatprep.subr.mxu0 0.0
  %2441 = vmatpush1.msra.mxu0 %v2355
  %2442 = vmatprep.subr.mxu0 0.0
  %2443 = vmatpush1.msra.mxu0 %v2356
  %2444 = vmatprep.subr.mxu0 0.0
  %2445 = vmatpush1.msra.mxu0 %v2357
  %2446 = vmatprep.subr.mxu0 0.0
  %2447 = vmatpush1.msra.mxu0 %v2358
  %2448 = vmatprep.subr.mxu0 0.0
  %2449 = vmatpush1.msra.mxu0 %v2359
  %2450 = vmatprep.subr.mxu0 0.0
  %2451 = vmatpush1.msra.mxu0 %v2360
  %2452 = vmatprep.subr.mxu0 0.0
  %2453 = vmatpush1.msra.mxu0 %v2361
  %2454 = vmatprep.subr.mxu0 0.0
  %2455 = vmatpush1.msra.mxu0 %v2362
  %2456 = vmatprep.subr.mxu0 0.0
  %2457 = vmatpush1.msra.mxu0 0.0
  %2458 = vmatprep.subr.mxu0 0.0
  %2459 = vmatpush1.msra.mxu0 0.0
  %2460 = vmatprep.subr.mxu0 0.0
  %2461 = vmatpush1.msra.mxu0 0.0
  %2462 = vmatprep.subr.mxu0 0.0
  %2463 = vmatpush1.msra.mxu0 0.0
  %2464 = vmatprep.subr.mxu0 0.0
  %2465 = vmatpush1.msra.mxu0 0.0
  %2466 = vmatprep.subr.mxu0 0.0
  %2467 = vmatpush1.msra.mxu0 0.0
  %2468 = vmatprep.subr.mxu0 0.0
  %2469 = vmatpush1.msra.mxu0 0.0
  %2470 = vmatprep.subr.mxu0 0.0
  %2471 = vmatpush1.msra.mxu0 0.0
  %2472 = vmatprep.subr.mxu0 0.0
  %2473 = vmatpush1.msra.mxu0 0.0
  %2474 = vmatprep.subr.mxu0 0.0
  %2475 = vmatpush1.msra.mxu0 0.0
  %2476 = vmatprep.subr.mxu0 0.0
  %2477 = vmatpush1.msra.mxu0 0.0
  %2478 = vmatprep.subr.mxu0 0.0
  %2479 = vmatpush1.msra.mxu0 0.0
  %2480 = vmatprep.subr.mxu0 0.0
  %2481 = vmatpush1.msra.mxu0 0.0
  %2482 = vmatprep.subr.mxu0 0.0
  %2483 = vmatpush1.msra.mxu0 0.0
  %2484 = vmatprep.subr.mxu0 0.0
  %2485 = vmatpush1.msra.mxu0 0.0
  %2486 = vmatprep.subr.mxu0 0.0
  %2487 = vmatpush1.msra.mxu0 0.0
  %2488 = vmatprep.subr.mxu0 0.0
  %2489 = vmatpush1.msra.mxu0 0.0
  %2490 = vmatprep.subr.mxu0 0.0
  %2491 = vmatpush1.msra.mxu0 0.0
  %2492 = vmatprep.subr.mxu0 0.0
  %2493 = vmatpush1.msra.mxu0 0.0
  %2494 = vmatprep.subr.mxu0 0.0
  %2495 = vmatpush1.msra.mxu0 0.0
  %2496 = vmatprep.subr.mxu0 0.0
  %2497 = vmatpush1.msra.mxu0 0.0
  %2498 = vmatprep.subr.mxu0 0.0
  %2499 = vmatpush1.msra.mxu0 0.0
  %2500 = vmatprep.subr.mxu0 0.0
  %2501 = vmatpush1.msra.mxu0 0.0
  %2502 = vmatprep.subr.mxu0 0.0
  %2503 = vmatpush1.msra.mxu0 0.0
  %2504 = vmatprep.mubr.f32.mxu0 0.0
  %2505 = vmatmul.mubr.f32.gmra.mrb[0].mxu0 %v2435
  %v2506 = vpop.f32.mrb[0].mxu0
  %v2507 = vadd.f32 0.0, %v2506
  %v2508 = vpop.f32.mrb[0].mxu0
  %2509 = vmatprep.mubr.f32.mxu0 0.0
  %2510 = vmatmul.mubr.f32.gmra.mrb[0].mxu0 %v2438
  %v2511 = vpop.f32.mrb[0].mxu0
  %v2512 = vadd.f32 0.0, %v2511
  %v2513 = vpop.f32.mrb[0].mxu0
  %2514 = vdwg.mxu0
  %2515 = vmatprep.subr.mxu0 0.0
  %2516 = vmatpush1.msra.mxu0 %v2411
  %2517 = vmatprep.subr.mxu0 0.0
  %2518 = vmatpush1.msra.mxu0 %v2412
  %2519 = vmatprep.subr.mxu0 0.0
  %2520 = vmatpush1.msra.mxu0 %v2413
  %2521 = vmatprep.subr.mxu0 0.0
  %2522 = vmatpush1.msra.mxu0 %v2414
  %2523 = vmatprep.subr.mxu0 0.0
  %2524 = vmatpush1.msra.mxu0 %v2415
  %2525 = vmatprep.subr.mxu0 0.0
  %2526 = vmatpush1.msra.mxu0 %v2416
  %2527 = vmatprep.subr.mxu0 0.0
  %2528 = vmatpush1.msra.mxu0 %v2417
  %2529 = vmatprep.subr.mxu0 0.0
  %2530 = vmatpush1.msra.mxu0 %v2418
  %2531 = vmatprep.subr.mxu0 0.0
  %2532 = vmatpush1.msra.mxu0 0.0
  %2533 = vmatprep.subr.mxu0 0.0
  %2534 = vmatpush1.msra.mxu0 0.0
  %2535 = vmatprep.subr.mxu0 0.0
  %2536 = vmatpush1.msra.mxu0 0.0
  %2537 = vmatprep.subr.mxu0 0.0
  %2538 = vmatpush1.msra.mxu0 0.0
  %2539 = vmatprep.subr.mxu0 0.0
  %2540 = vmatpush1.msra.mxu0 0.0
  %2541 = vmatprep.subr.mxu0 0.0
  %2542 = vmatpush1.msra.mxu0 0.0
  %2543 = vmatprep.subr.mxu0 0.0
  %2544 = vmatpush1.msra.mxu0 0.0
  %2545 = vmatprep.subr.mxu0 0.0
  %2546 = vmatpush1.msra.mxu0 0.0
  %2547 = vmatprep.subr.mxu0 0.0
  %2548 = vmatpush1.msra.mxu0 0.0
  %2549 = vmatprep.subr.mxu0 0.0
  %2550 = vmatpush1.msra.mxu0 0.0
  %2551 = vmatprep.subr.mxu0 0.0
  %2552 = vmatpush1.msra.mxu0 0.0
  %2553 = vmatprep.subr.mxu0 0.0
  %2554 = vmatpush1.msra.mxu0 0.0
  %2555 = vmatprep.subr.mxu0 0.0
  %2556 = vmatpush1.msra.mxu0 0.0
  %2557 = vmatprep.subr.mxu0 0.0
  %2558 = vmatpush1.msra.mxu0 0.0
  %2559 = vmatprep.subr.mxu0 0.0
  %2560 = vmatpush1.msra.mxu0 0.0
  %2561 = vmatprep.subr.mxu0 0.0
  %2562 = vmatpush1.msra.mxu0 0.0
  %2563 = vmatprep.subr.mxu0 0.0
  %2564 = vmatpush1.msra.mxu0 0.0
  %2565 = vmatprep.subr.mxu0 0.0
  %2566 = vmatpush1.msra.mxu0 0.0
  %2567 = vmatprep.subr.mxu0 0.0
  %2568 = vmatpush1.msra.mxu0 0.0
  %2569 = vmatprep.subr.mxu0 0.0
  %2570 = vmatpush1.msra.mxu0 0.0
  %2571 = vmatprep.subr.mxu0 0.0
  %2572 = vmatpush1.msra.mxu0 0.0
  %2573 = vmatprep.subr.mxu0 0.0
  %2574 = vmatpush1.msra.mxu0 0.0
  %2575 = vmatprep.subr.mxu0 0.0
  %2576 = vmatpush1.msra.mxu0 0.0
  %2577 = vmatprep.subr.mxu0 0.0
  %2578 = vmatpush1.msra.mxu0 0.0
  %2579 = vmatprep.mubr.f32.mxu0 0.0
  %2580 = vmatmul.mubr.f32.gmra.mrb[0].mxu0 %v2435
  %v2581 = vpop.f32.mrb[0].mxu0
  %v2582 = vadd.f32 0.0, %v2581
  %v2583 = vpop.f32.mrb[0].mxu0
  %2584 = vmatprep.mubr.f32.mxu0 0.0
  %2585 = vmatmul.mubr.f32.gmra.mrb[0].mxu0 %v2438
  %v2586 = vpop.f32.mrb[0].mxu0
  %v2587 = vadd.f32 0.0, %v2586
  %v2588 = vpop.f32.mrb[0].mxu0
  %2589 = vdwg.mxu0
  %v2591 = vsel %vm1678, %v2507, 0
  %v2594 = vsel %vm1678, %v2512, 0
  %2596 = vmatprep.subr.mxu0 0.0
  %2597 = vmatpush1.msra.mxu0 %v63
  %2598 = vmatprep.subr.mxu0 0.0
  %2599 = vmatpush1.msra.mxu0 %v64
  %2600 = vmatprep.subr.mxu0 0.0
  %2601 = vmatpush1.msra.mxu0 %v65
  %2602 = vmatprep.subr.mxu0 0.0
  %2603 = vmatpush1.msra.mxu0 %v66
  %2604 = vmatprep.subr.mxu0 0.0
  %2605 = vmatpush1.msra.mxu0 0.0
  %2606 = vmatprep.subr.mxu0 0.0
  %2607 = vmatpush1.msra.mxu0 0.0
  %2608 = vmatprep.subr.mxu0 0.0
  %2609 = vmatpush1.msra.mxu0 0.0
  %2610 = vmatprep.subr.mxu0 0.0
  %2611 = vmatpush1.msra.mxu0 0.0
  %2612 = vmatprep.subr.mxu0 0.0
  %2613 = vmatpush1.msra.mxu0 0.0
  %2614 = vmatprep.subr.mxu0 0.0
  %2615 = vmatpush1.msra.mxu0 0.0
  %2616 = vmatprep.subr.mxu0 0.0
  %2617 = vmatpush1.msra.mxu0 0.0
  %2618 = vmatprep.subr.mxu0 0.0
  %2619 = vmatpush1.msra.mxu0 0.0
  %2620 = vmatprep.subr.mxu0 0.0
  %2621 = vmatpush1.msra.mxu0 0.0
  %2622 = vmatprep.subr.mxu0 0.0
  %2623 = vmatpush1.msra.mxu0 0.0
  %2624 = vmatprep.subr.mxu0 0.0
  %2625 = vmatpush1.msra.mxu0 0.0
  %2626 = vmatprep.subr.mxu0 0.0
  %2627 = vmatpush1.msra.mxu0 0.0
  %2628 = vmatprep.subr.mxu0 0.0
  %2629 = vmatpush1.msra.mxu0 0.0
  %2630 = vmatprep.subr.mxu0 0.0
  %2631 = vmatpush1.msra.mxu0 0.0
  %2632 = vmatprep.subr.mxu0 0.0
  %2633 = vmatpush1.msra.mxu0 0.0
  %2634 = vmatprep.subr.mxu0 0.0
  %2635 = vmatpush1.msra.mxu0 0.0
  %2636 = vmatprep.subr.mxu0 0.0
  %2637 = vmatpush1.msra.mxu0 0.0
  %2638 = vmatprep.subr.mxu0 0.0
  %2639 = vmatpush1.msra.mxu0 0.0
  %2640 = vmatprep.subr.mxu0 0.0
  %2641 = vmatpush1.msra.mxu0 0.0
  %2642 = vmatprep.subr.mxu0 0.0
  %2643 = vmatpush1.msra.mxu0 0.0
  %2644 = vmatprep.subr.mxu0 0.0
  %2645 = vmatpush1.msra.mxu0 0.0
  %2646 = vmatprep.subr.mxu0 0.0
  %2647 = vmatpush1.msra.mxu0 0.0
  %2648 = vmatprep.subr.mxu0 0.0
  %2649 = vmatpush1.msra.mxu0 0.0
  %2650 = vmatprep.subr.mxu0 0.0
  %2651 = vmatpush1.msra.mxu0 0.0
  %2652 = vmatprep.subr.mxu0 0.0
  %2653 = vmatpush1.msra.mxu0 0.0
  %2654 = vmatprep.subr.mxu0 0.0
  %2655 = vmatpush1.msra.mxu0 0.0
  %2656 = vmatprep.subr.mxu0 0.0
  %2657 = vmatpush1.msra.mxu0 0.0
  %2658 = vmatprep.subr.mxu0 0.0
  %2659 = vmatpush1.msra.mxu0 0.0
  %2660 = vmatprep.mubr.f32.mxu0 0.0
  %2661 = vmatmul.mubr.f32.gmra.mrb[0].mxu0 %v2591
  %v2662 = vpop.f32.mrb[0].mxu0
  %v2663 = vadd.f32 0.0, %v2662
  %v2664 = vpop.f32.mrb[0].mxu0
  %2665 = vmatprep.mubr.f32.mxu0 0.0
  %2666 = vmatmul.mubr.f32.gmra.mrb[0].mxu0 %v2594
  %v2667 = vpop.f32.mrb[0].mxu0
  %v2668 = vadd.f32 0.0, %v2667
  %v2669 = vpop.f32.mrb[0].mxu0
  %2670 = vdwg.mxu0
  %v2671 = vmax.f32 %v2663, 0.0
  %v2672 = vmax.f32 %v2668, 0.0
  %v2674 = vsel %vm1678, %v2582, 0
  %v2677 = vsel %vm1678, %v2587, 0
  %2679 = vmatprep.subr.mxu0 0.0
  %2680 = vmatpush1.msra.mxu0 %v67
  %2681 = vmatprep.subr.mxu0 0.0
  %2682 = vmatpush1.msra.mxu0 %v68
  %2683 = vmatprep.subr.mxu0 0.0
  %2684 = vmatpush1.msra.mxu0 %v69
  %2685 = vmatprep.subr.mxu0 0.0
  %2686 = vmatpush1.msra.mxu0 %v70
  %2687 = vmatprep.subr.mxu0 0.0
  %2688 = vmatpush1.msra.mxu0 0.0
  %2689 = vmatprep.subr.mxu0 0.0
  %2690 = vmatpush1.msra.mxu0 0.0
  %2691 = vmatprep.subr.mxu0 0.0
  %2692 = vmatpush1.msra.mxu0 0.0
  %2693 = vmatprep.subr.mxu0 0.0
  %2694 = vmatpush1.msra.mxu0 0.0
  %2695 = vmatprep.subr.mxu0 0.0
  %2696 = vmatpush1.msra.mxu0 0.0
  %2697 = vmatprep.subr.mxu0 0.0
  %2698 = vmatpush1.msra.mxu0 0.0
  %2699 = vmatprep.subr.mxu0 0.0
  %2700 = vmatpush1.msra.mxu0 0.0
  %2701 = vmatprep.subr.mxu0 0.0
  %2702 = vmatpush1.msra.mxu0 0.0
  %2703 = vmatprep.subr.mxu0 0.0
  %2704 = vmatpush1.msra.mxu0 0.0
  %2705 = vmatprep.subr.mxu0 0.0
  %2706 = vmatpush1.msra.mxu0 0.0
  %2707 = vmatprep.subr.mxu0 0.0
  %2708 = vmatpush1.msra.mxu0 0.0
  %2709 = vmatprep.subr.mxu0 0.0
  %2710 = vmatpush1.msra.mxu0 0.0
  %2711 = vmatprep.subr.mxu0 0.0
  %2712 = vmatpush1.msra.mxu0 0.0
  %2713 = vmatprep.subr.mxu0 0.0
  %2714 = vmatpush1.msra.mxu0 0.0
  %2715 = vmatprep.subr.mxu0 0.0
  %2716 = vmatpush1.msra.mxu0 0.0
  %2717 = vmatprep.subr.mxu0 0.0
  %2718 = vmatpush1.msra.mxu0 0.0
  %2719 = vmatprep.subr.mxu0 0.0
  %2720 = vmatpush1.msra.mxu0 0.0
  %2721 = vmatprep.subr.mxu0 0.0
  %2722 = vmatpush1.msra.mxu0 0.0
  %2723 = vmatprep.subr.mxu0 0.0
  %2724 = vmatpush1.msra.mxu0 0.0
  %2725 = vmatprep.subr.mxu0 0.0
  %2726 = vmatpush1.msra.mxu0 0.0
  %2727 = vmatprep.subr.mxu0 0.0
  %2728 = vmatpush1.msra.mxu0 0.0
  %2729 = vmatprep.subr.mxu0 0.0
  %2730 = vmatpush1.msra.mxu0 0.0
  %2731 = vmatprep.subr.mxu0 0.0
  %2732 = vmatpush1.msra.mxu0 0.0
  %2733 = vmatprep.subr.mxu0 0.0
  %2734 = vmatpush1.msra.mxu0 0.0
  %2735 = vmatprep.subr.mxu0 0.0
  %2736 = vmatpush1.msra.mxu0 0.0
  %2737 = vmatprep.subr.mxu0 0.0
  %2738 = vmatpush1.msra.mxu0 0.0
  %2739 = vmatprep.subr.mxu0 0.0
  %2740 = vmatpush1.msra.mxu0 0.0
  %2741 = vmatprep.subr.mxu0 0.0
  %2742 = vmatpush1.msra.mxu0 0.0
  %2743 = vmatprep.mubr.f32.mxu0 0.0
  %2744 = vmatmul.mubr.f32.gmra.mrb[0].mxu0 %v2674
  %v2745 = vpop.f32.mrb[0].mxu0
  %v2746 = vadd.f32 0.0, %v2745
  %v2747 = vpop.f32.mrb[0].mxu0
  %2748 = vmatprep.mubr.f32.mxu0 0.0
  %2749 = vmatmul.mubr.f32.gmra.mrb[0].mxu0 %v2677
  %v2750 = vpop.f32.mrb[0].mxu0
  %v2751 = vadd.f32 0.0, %v2750
  %v2752 = vpop.f32.mrb[0].mxu0
  %2753 = vdwg.mxu0
  %v2754 = vmax.f32 %v2746, 0.0
  %v2755 = vmax.f32 %v2751, 0.0
  %v2756 = vld [vmem:[%s3 + $0x1] sm:$0x1]
  %v2757 = vlaneseq
  %v2758 = vshrl.u32 %v2757, 7
  %v2759 = vsub.s32 0, %v2758
  %v2760 = vrot.slane %v2756, %v2759
  %vm2761 = vcmp.eq.s32.totalorder %v2421, %v2760
  %vm2762 = vcmp.eq.s32.totalorder %v2422, %v2760
  %v2763 = vsel %vm2761, 1, 0
  %v2764 = vsel %vm2762, 1, 0
  %v2765 = vcvt.s32.f32 %v2763
  %v2766 = vcvt.s32.f32 %v2764
  %v2768 = vsel %vm235, %v2765, 0
  %v2771 = vsel %vm235, %v2766, 0
  %2773 = vmatprep.subr.mxu0 0.0
  %2774 = vmatpush1.msra.mxu0 %v233
  %2775 = vmatprep.subr.mxu0 0.0
  %2776 = vmatpush1.msra.mxu0 %v234
  %2777 = vmatprep.subr.mxu0 0.0
  %2778 = vmatpush1.msra.mxu0 0.0
  %2779 = vmatprep.subr.mxu0 0.0
  %2780 = vmatpush1.msra.mxu0 0.0
  %2781 = vmatprep.subr.mxu0 0.0
  %2782 = vmatpush1.msra.mxu0 0.0
  %2783 = vmatprep.subr.mxu0 0.0
  %2784 = vmatpush1.msra.mxu0 0.0
  %2785 = vmatprep.subr.mxu0 0.0
  %2786 = vmatpush1.msra.mxu0 0.0
  %2787 = vmatprep.subr.mxu0 0.0
  %2788 = vmatpush1.msra.mxu0 0.0
  %2789 = vmatprep.subr.mxu0 0.0
  %2790 = vmatpush1.msra.mxu0 0.0
  %2791 = vmatprep.subr.mxu0 0.0
  %2792 = vmatpush1.msra.mxu0 0.0
  %2793 = vmatprep.subr.mxu0 0.0
  %2794 = vmatpush1.msra.mxu0 0.0
  %2795 = vmatprep.subr.mxu0 0.0
  %2796 = vmatpush1.msra.mxu0 0.0
  %2797 = vmatprep.subr.mxu0 0.0
  %2798 = vmatpush1.msra.mxu0 0.0
  %2799 = vmatprep.subr.mxu0 0.0
  %2800 = vmatpush1.msra.mxu0 0.0
  %2801 = vmatprep.subr.mxu0 0.0
  %2802 = vmatpush1.msra.mxu0 0.0
  %2803 = vmatprep.subr.mxu0 0.0
  %2804 = vmatpush1.msra.mxu0 0.0
  %2805 = vmatprep.subr.mxu0 0.0
  %2806 = vmatpush1.msra.mxu0 0.0
  %2807 = vmatprep.subr.mxu0 0.0
  %2808 = vmatpush1.msra.mxu0 0.0
  %2809 = vmatprep.subr.mxu0 0.0
  %2810 = vmatpush1.msra.mxu0 0.0
  %2811 = vmatprep.subr.mxu0 0.0
  %2812 = vmatpush1.msra.mxu0 0.0
  %2813 = vmatprep.subr.mxu0 0.0
  %2814 = vmatpush1.msra.mxu0 0.0
  %2815 = vmatprep.subr.mxu0 0.0
  %2816 = vmatpush1.msra.mxu0 0.0
  %2817 = vmatprep.subr.mxu0 0.0
  %2818 = vmatpush1.msra.mxu0 0.0
  %2819 = vmatprep.subr.mxu0 0.0
  %2820 = vmatpush1.msra.mxu0 0.0
  %2821 = vmatprep.subr.mxu0 0.0
  %2822 = vmatpush1.msra.mxu0 0.0
  %2823 = vmatprep.subr.mxu0 0.0
  %2824 = vmatpush1.msra.mxu0 0.0
  %2825 = vmatprep.subr.mxu0 0.0
  %2826 = vmatpush1.msra.mxu0 0.0
  %2827 = vmatprep.subr.mxu0 0.0
  %2828 = vmatpush1.msra.mxu0 0.0
  %2829 = vmatprep.subr.mxu0 0.0
  %2830 = vmatpush1.msra.mxu0 0.0
  %2831 = vmatprep.subr.mxu0 0.0
  %2832 = vmatpush1.msra.mxu0 0.0
  %2833 = vmatprep.subr.mxu0 0.0
  %2834 = vmatpush1.msra.mxu0 0.0
  %2835 = vmatprep.subr.mxu0 0.0
  %2836 = vmatpush1.msra.mxu0 0.0
  %2837 = vmatprep.mubr.f32.mxu0 0.0
  %2838 = vmatmul.mubr.f32.gmra.mrb[0].mxu0 %v2768
  %v2839 = vpop.f32.mrb[0].mxu0
  %v2840 = vadd.f32 0.0, %v2839
  %v2841 = vpop.f32.mrb[0].mxu0
  %2842 = vmatprep.mubr.f32.mxu0 0.0
  %2843 = vmatmul.mubr.f32.gmra.mrb[0].mxu0 %v2771
  %v2844 = vpop.f32.mrb[0].mxu0
  %v2845 = vadd.f32 0.0, %v2844
  %v2846 = vpop.f32.mrb[0].mxu0
  %2847 = vdwg.mxu0
  %v2848 = vld [vmem:[%s5 + $0x1e0] sm:$0xff]
  %v2849 = vld [vmem:[%s5 + $0x1e8] sm:$0xff]
  %v2850 = vld [vmem:[%s5 + $0x1f0] sm:$0xff]
  %v2851 = vld [vmem:[%s5 + $0x1f8] sm:$0xff]
  %v2852 = vld [vmem:[%s5 + $0x200] sm:$0xff]
  %v2853 = vld [vmem:[%s5 + $0x208] sm:$0xff]
  %v2854 = vld [vmem:[%s5 + $0x210] sm:$0xff]
  %v2855 = vld [vmem:[%s5 + $0x218] sm:$0xff]
  %v2856 = vld [vmem:[%s5 + $0x220] sm:$0xff]
  %v2857 = vld [vmem:[%s5 + $0x228] sm:$0xff]
  %v2858 = vld [vmem:[%s5 + $0x230] sm:$0xff]
  %v2859 = vld [vmem:[%s5 + $0x238] sm:$0xff]
  %v2860 = vld [vmem:[%s5 + $0x240] sm:$0xff]
  %v2861 = vld [vmem:[%s5 + $0x248] sm:$0xff]
  %v2862 = vld [vmem:[%s5 + $0x250] sm:$0xff]
  %v2863 = vld [vmem:[%s5 + $0x258] sm:$0xff]
  %v2865 = vsel %vm1678, %v2754, 0
  %v2868 = vsel %vm1678, %v2755, 0
  %2870 = vmatprep.subr.mxu0 %v2857
  %2871 = vmatpush1.msra.mxu0 %v2856
  %2872 = vmatprep.subr.mxu0 %v2859
  %2873 = vmatpush1.msra.mxu0 %v2858
  %2874 = vmatprep.subr.mxu0 %v2861
  %2875 = vmatpush1.msra.mxu0 %v2860
  %2876 = vmatprep.subr.mxu0 %v2863
  %2877 = vmatpush1.msra.mxu0 %v2862
  %2878 = vmatprep.subr.mxu0 0.0
  %2879 = vmatpush1.msra.mxu0 0.0
  %2880 = vmatprep.subr.mxu0 0.0
  %2881 = vmatpush1.msra.mxu0 0.0
  %2882 = vmatprep.subr.mxu0 0.0
  %2883 = vmatpush1.msra.mxu0 0.0
  %2884 = vmatprep.subr.mxu0 0.0
  %2885 = vmatpush1.msra.mxu0 0.0
  %2886 = vmatprep.subr.mxu0 0.0
  %2887 = vmatpush1.msra.mxu0 0.0
  %2888 = vmatprep.subr.mxu0 0.0
  %2889 = vmatpush1.msra.mxu0 0.0
  %2890 = vmatprep.subr.mxu0 0.0
  %2891 = vmatpush1.msra.mxu0 0.0
  %2892 = vmatprep.subr.mxu0 0.0
  %2893 = vmatpush1.msra.mxu0 0.0
  %2894 = vmatprep.subr.mxu0 0.0
  %2895 = vmatpush1.msra.mxu0 0.0
  %2896 = vmatprep.subr.mxu0 0.0
  %2897 = vmatpush1.msra.mxu0 0.0
  %2898 = vmatprep.subr.mxu0 0.0
  %2899 = vmatpush1.msra.mxu0 0.0
  %2900 = vmatprep.subr.mxu0 0.0
  %2901 = vmatpush1.msra.mxu0 0.0
  %2902 = vmatprep.subr.mxu0 0.0
  %2903 = vmatpush1.msra.mxu0 0.0
  %2904 = vmatprep.subr.mxu0 0.0
  %2905 = vmatpush1.msra.mxu0 0.0
  %2906 = vmatprep.subr.mxu0 0.0
  %2907 = vmatpush1.msra.mxu0 0.0
  %2908 = vmatprep.subr.mxu0 0.0
  %2909 = vmatpush1.msra.mxu0 0.0
  %2910 = vmatprep.subr.mxu0 0.0
  %2911 = vmatpush1.msra.mxu0 0.0
  %2912 = vmatprep.subr.mxu0 0.0
  %2913 = vmatpush1.msra.mxu0 0.0
  %2914 = vmatprep.subr.mxu0 0.0
  %2915 = vmatpush1.msra.mxu0 0.0
  %2916 = vmatprep.subr.mxu0 0.0
  %2917 = vmatpush1.msra.mxu0 0.0
  %2918 = vmatprep.subr.mxu0 0.0
  %2919 = vmatpush1.msra.mxu0 0.0
  %2920 = vmatprep.subr.mxu0 0.0
  %2921 = vmatpush1.msra.mxu0 0.0
  %2922 = vmatprep.subr.mxu0 0.0
  %2923 = vmatpush1.msra.mxu0 0.0
  %2924 = vmatprep.subr.mxu0 0.0
  %2925 = vmatpush1.msra.mxu0 0.0
  %2926 = vmatprep.subr.mxu0 0.0
  %2927 = vmatpush1.msra.mxu0 0.0
  %2928 = vmatprep.subr.mxu0 0.0
  %2929 = vmatpush1.msra.mxu0 0.0
  %2930 = vmatprep.subr.mxu0 0.0
  %2931 = vmatpush1.msra.mxu0 0.0
  %2932 = vmatprep.subr.mxu0 0.0
  %2933 = vmatpush1.msra.mxu0 0.0
  %2934 = vmatprep.mubr.f32.mxu0 0.0
  %2935 = vmatmul.mubr.f32.gmra.mrb[0].mxu0 %v2865
  %v2936 = vpop.f32.mrb[0].mxu0
  %v2937 = vadd.f32 0.0, %v2936
  %v2938 = vpop.f32.mrb[0].mxu0
  %v2939 = vadd.f32 0.0, %v2938
  %2940 = vmatprep.mubr.f32.mxu0 0.0
  %2941 = vmatmul.mubr.f32.gmra.mrb[0].mxu0 %v2868
  %v2942 = vpop.f32.mrb[0].mxu0
  %v2943 = vadd.f32 0.0, %v2942
  %v2944 = vpop.f32.mrb[0].mxu0
  %v2945 = vadd.f32 0.0, %v2944
  %2946 = vdwg.mxu0
  %v2948 = vsel %vm1678, %v2671, 0
  %v2951 = vsel %vm1678, %v2672, 0
  %2953 = vmatprep.subr.mxu0 %v2849
  %2954 = vmatpush1.msra.mxu0 %v2848
  %2955 = vmatprep.subr.mxu0 %v2851
  %2956 = vmatpush1.msra.mxu0 %v2850
  %2957 = vmatprep.subr.mxu0 %v2853
  %2958 = vmatpush1.msra.mxu0 %v2852
  %2959 = vmatprep.subr.mxu0 %v2855
  %2960 = vmatpush1.msra.mxu0 %v2854
  %2961 = vmatprep.subr.mxu0 0.0
  %2962 = vmatpush1.msra.mxu0 0.0
  %2963 = vmatprep.subr.mxu0 0.0
  %2964 = vmatpush1.msra.mxu0 0.0
  %2965 = vmatprep.subr.mxu0 0.0
  %2966 = vmatpush1.msra.mxu0 0.0
  %2967 = vmatprep.subr.mxu0 0.0
  %2968 = vmatpush1.msra.mxu0 0.0
  %2969 = vmatprep.subr.mxu0 0.0
  %2970 = vmatpush1.msra.mxu0 0.0
  %2971 = vmatprep.subr.mxu0 0.0
  %2972 = vmatpush1.msra.mxu0 0.0
  %2973 = vmatprep.subr.mxu0 0.0
  %2974 = vmatpush1.msra.mxu0 0.0
  %2975 = vmatprep.subr.mxu0 0.0
  %2976 = vmatpush1.msra.mxu0 0.0
  %2977 = vmatprep.subr.mxu0 0.0
  %2978 = vmatpush1.msra.mxu0 0.0
  %2979 = vmatprep.subr.mxu0 0.0
  %2980 = vmatpush1.msra.mxu0 0.0
  %2981 = vmatprep.subr.mxu0 0.0
  %2982 = vmatpush1.msra.mxu0 0.0
  %2983 = vmatprep.subr.mxu0 0.0
  %2984 = vmatpush1.msra.mxu0 0.0
  %2985 = vmatprep.subr.mxu0 0.0
  %2986 = vmatpush1.msra.mxu0 0.0
  %2987 = vmatprep.subr.mxu0 0.0
  %2988 = vmatpush1.msra.mxu0 0.0
  %2989 = vmatprep.subr.mxu0 0.0
  %2990 = vmatpush1.msra.mxu0 0.0
  %2991 = vmatprep.subr.mxu0 0.0
  %2992 = vmatpush1.msra.mxu0 0.0
  %2993 = vmatprep.subr.mxu0 0.0
  %2994 = vmatpush1.msra.mxu0 0.0
  %2995 = vmatprep.subr.mxu0 0.0
  %2996 = vmatpush1.msra.mxu0 0.0
  %2997 = vmatprep.subr.mxu0 0.0
  %2998 = vmatpush1.msra.mxu0 0.0
  %2999 = vmatprep.subr.mxu0 0.0
  %3000 = vmatpush1.msra.mxu0 0.0
  %3001 = vmatprep.subr.mxu0 0.0
  %3002 = vmatpush1.msra.mxu0 0.0
  %3003 = vmatprep.subr.mxu0 0.0
  %3004 = vmatpush1.msra.mxu0 0.0
  %3005 = vmatprep.subr.mxu0 0.0
  %3006 = vmatpush1.msra.mxu0 0.0
  %3007 = vmatprep.subr.mxu0 0.0
  %3008 = vmatpush1.msra.mxu0 0.0
  %3009 = vmatprep.subr.mxu0 0.0
  %3010 = vmatpush1.msra.mxu0 0.0
  %3011 = vmatprep.subr.mxu0 0.0
  %3012 = vmatpush1.msra.mxu0 0.0
  %3013 = vmatprep.subr.mxu0 0.0
  %3014 = vmatpush1.msra.mxu0 0.0
  %3015 = vmatprep.subr.mxu0 0.0
  %3016 = vmatpush1.msra.mxu0 0.0
  %3017 = vmatprep.mubr.f32.mxu0 0.0
  %3018 = vmatmul.mubr.f32.gmra.mrb[0].mxu0 %v2948
  %v3019 = vpop.f32.mrb[0].mxu0
  %v3020 = vadd.f32 %v2937, %v3019
  %v3021 = vpop.f32.mrb[0].mxu0
  %v3022 = vadd.f32 %v2939, %v3021
  %3023 = vmatprep.mubr.f32.mxu0 0.0
  %3024 = vmatmul.mubr.f32.gmra.mrb[0].mxu0 %v2951
  %v3025 = vpop.f32.mrb[0].mxu0
  %v3026 = vadd.f32 %v2943, %v3025
  %v3027 = vpop.f32.mrb[0].mxu0
  %v3028 = vadd.f32 %v2945, %v3027
  %3029 = vdwg.mxu0
  %v3030 = vld [vmem:[%s5 + $0x260] sm:$0xff]
  %v3031 = vld [vmem:[%s5 + $0x268] sm:$0xff]
  %v3032 = vld [vmem:[%s5 + $0x270] sm:$0xff]
  %v3033 = vld [vmem:[%s5 + $0x278] sm:$0xff]
  %v3034 = vld [vmem:[%s5 + $0x280] sm:$0xff]
  %v3035 = vld [vmem:[%s5 + $0x288] sm:$0xff]
  %v3036 = vld [vmem:[%s5 + $0x290] sm:$0xff]
  %v3037 = vld [vmem:[%s5 + $0x298] sm:$0xff]
  %v3038 = vld [vmem:[%s5 + $0x2a0] sm:$0xff]
  %v3039 = vld [vmem:[%s5 + $0x2a8] sm:$0xff]
  %v3040 = vld [vmem:[%s5 + $0x2b0] sm:$0xff]
  %v3041 = vld [vmem:[%s5 + $0x2b8] sm:$0xff]
  %v3042 = vld [vmem:[%s5 + $0x2c0] sm:$0xff]
  %v3043 = vld [vmem:[%s5 + $0x2c8] sm:$0xff]
  %v3044 = vld [vmem:[%s5 + $0x2d0] sm:$0xff]
  %v3045 = vld [vmem:[%s5 + $0x2d8] sm:$0xff]
  %v3047 = vsel %vm2433, %v2840, 0
  %v3050 = vsel %vm2433, %v2845, 0
  %3052 = vmatprep.subr.mxu0 %v3031
  %3053 = vmatpush1.msra.mxu0 %v3030
  %3054 = vmatprep.subr.mxu0 %v3033
  %3055 = vmatpush1.msra.mxu0 %v3032
  %3056 = vmatprep.subr.mxu0 %v3035
  %3057 = vmatpush1.msra.mxu0 %v3034
  %3058 = vmatprep.subr.mxu0 %v3037
  %3059 = vmatpush1.msra.mxu0 %v3036
  %3060 = vmatprep.subr.mxu0 %v3039
  %3061 = vmatpush1.msra.mxu0 %v3038
  %3062 = vmatprep.subr.mxu0 %v3041
  %3063 = vmatpush1.msra.mxu0 %v3040
  %3064 = vmatprep.subr.mxu0 %v3043
  %3065 = vmatpush1.msra.mxu0 %v3042
  %3066 = vmatprep.subr.mxu0 %v3045
  %3067 = vmatpush1.msra.mxu0 %v3044
  %3068 = vmatprep.subr.mxu0 0.0
  %3069 = vmatpush1.msra.mxu0 0.0
  %3070 = vmatprep.subr.mxu0 0.0
  %3071 = vmatpush1.msra.mxu0 0.0
  %3072 = vmatprep.subr.mxu0 0.0
  %3073 = vmatpush1.msra.mxu0 0.0
  %3074 = vmatprep.subr.mxu0 0.0
  %3075 = vmatpush1.msra.mxu0 0.0
  %3076 = vmatprep.subr.mxu0 0.0
  %3077 = vmatpush1.msra.mxu0 0.0
  %3078 = vmatprep.subr.mxu0 0.0
  %3079 = vmatpush1.msra.mxu0 0.0
  %3080 = vmatprep.subr.mxu0 0.0
  %3081 = vmatpush1.msra.mxu0 0.0
  %3082 = vmatprep.subr.mxu0 0.0
  %3083 = vmatpush1.msra.mxu0 0.0
  %3084 = vmatprep.subr.mxu0 0.0
  %3085 = vmatpush1.msra.mxu0 0.0
  %3086 = vmatprep.subr.mxu0 0.0
  %3087 = vmatpush1.msra.mxu0 0.0
  %3088 = vmatprep.subr.mxu0 0.0
  %3089 = vmatpush1.msra.mxu0 0.0
  %3090 = vmatprep.subr.mxu0 0.0
  %3091 = vmatpush1.msra.mxu0 0.0
  %3092 = vmatprep.subr.mxu0 0.0
  %3093 = vmatpush1.msra.mxu0 0.0
  %3094 = vmatprep.subr.mxu0 0.0
  %3095 = vmatpush1.msra.mxu0 0.0
  %3096 = vmatprep.subr.mxu0 0.0
  %3097 = vmatpush1.msra.mxu0 0.0
  %3098 = vmatprep.subr.mxu0 0.0
  %3099 = vmatpush1.msra.mxu0 0.0
  %3100 = vmatprep.subr.mxu0 0.0
  %3101 = vmatpush1.msra.mxu0 0.0
  %3102 = vmatprep.subr.mxu0 0.0
  %3103 = vmatpush1.msra.mxu0 0.0
  %3104 = vmatprep.subr.mxu0 0.0
  %3105 = vmatpush1.msra.mxu0 0.0
  %3106 = vmatprep.subr.mxu0 0.0
  %3107 = vmatpush1.msra.mxu0 0.0
  %3108 = vmatprep.subr.mxu0 0.0
  %3109 = vmatpush1.msra.mxu0 0.0
  %3110 = vmatprep.subr.mxu0 0.0
  %3111 = vmatpush1.msra.mxu0 0.0
  %3112 = vmatprep.subr.mxu0 0.0
  %3113 = vmatpush1.msra.mxu0 0.0
  %3114 = vmatprep.subr.mxu0 0.0
  %3115 = vmatpush1.msra.mxu0 0.0
  %3116 = vmatprep.mubr.f32.mxu0 0.0
  %3117 = vmatmul.mubr.f32.gmra.mrb[0].mxu0 %v3047
  %v3118 = vpop.f32.mrb[0].mxu0
  %v3119 = vadd.f32 0.0, %v3118
  %v3120 = vpop.f32.mrb[0].mxu0
  %v3121 = vadd.f32 0.0, %v3120
  %3122 = vmatprep.mubr.f32.mxu0 0.0
  %3123 = vmatmul.mubr.f32.gmra.mrb[0].mxu0 %v3050
  %v3124 = vpop.f32.mrb[0].mxu0
  %v3125 = vadd.f32 0.0, %v3124
  %v3126 = vpop.f32.mrb[0].mxu0
  %v3127 = vadd.f32 0.0, %v3126
  %3128 = vdwg.mxu0
  %v3129 = vadd.f32 %v3020, %v3119
  %v3130 = vadd.f32 %v3022, %v3121
  %v3131 = vadd.f32 %v3026, %v3125
  %v3132 = vadd.f32 %v3028, %v3127
  %v3134 = vlaneseq
  %v3135 = vshrl.u32 %v3134, 7
  %v3136 = vsub.s32 0, %v3135
  %v3137 = vrot.slane %v72, %v3136
  %v3138 = vlaneseq
  %v3139 = vshrl.u32 %v3138, 7
  %v3140 = vsub.s32 1, %v3139
  %v3141 = vrot.slane %v72, %v3140
  %v3144 = vadd.f32 %v3129, %v3137
  %v3145 = vadd.f32 %v3130, %v3141
  %v3146 = vadd.f32 %v3131, %v3137
  %v3147 = vadd.f32 %v3132, %v3141
  %v3148 = vxor.u32 %v3144, 2147483648
  %v3149 = vxor.u32 %v3146, 2147483648
  %v3150 = vmul.f32 %v3148, 1.442695
  %v3151 = vpow.pop %v3150
  %v3152 = vmul.f32 %v3149, 1.442695
  %v3153 = vpow.pop %v3152
  %v3154 = vadd.f32 %v3151, 1.0
  %v3155 = vadd.f32 %v3153, 1.0
  %v3156 = vrcp.pop %v3154
  %v3157 = vmul.f32 1.0, %v3156
  %v3158 = vrcp.pop %v3155
  %v3159 = vmul.f32 1.0, %v3158
  %3162 = vrot.lane.b32.xlu0 %v3145, 64
  %v3163 = vpop.permute.xlu0 %3162
  %3164 = vrot.lane.b32.xlu0 %v3147, 64
  %v3165 = vpop.permute.xlu0 %3164
  %v3168 = vmul.f32 %v3157, %v3163
  %v3169 = vmul.f32 %v3159, %v3165
  %v3170 = vadd.f32 %v3145, %v3168
  %v3171 = vadd.f32 %v3147, %v3169
  %v3172 = vtanh.pop %v3170
  %v3173 = vtanh.pop %v3171
  %v3174 = vsub.f32 1.0, %v3157
  %v3175 = vsub.f32 1.0, %v3159
  %3178 = vrot.lane.b32.xlu0 %v3172, 64
  %v3179 = vpop.permute.xlu0 %3178
  %3180 = vrot.lane.b32.xlu0 %v3173, 64
  %v3181 = vpop.permute.xlu0 %3180
  %v3184 = vmul.f32 %v3174, %v3179
  %v3185 = vmul.f32 %v3175, %v3181
  %3186 = vrot.lane.b32.xlu0 %v2840, 64
  %v3187 = vpop.permute.xlu0 %3186
  %3188 = vrot.lane.b32.xlu0 %v2845, 64
  %v3189 = vpop.permute.xlu0 %3188
  %v3192 = vmul.f32 %v3157, %v3187
  %v3193 = vmul.f32 %v3159, %v3189
  %v3194 = vadd.f32 %v3184, %v3192
  %v3195 = vadd.f32 %v3185, %v3193
  %3198 = vrot.lane.b32.xlu0 %v3194, 64
  %v3199 = vpop.permute.xlu0 %3198
  %3200 = vrot.lane.b32.xlu0 %v3195, 64
  %v3201 = vpop.permute.xlu0 %3200
  %v3204 = vsel %vm2433, %v3199, 0.0
  %v3205 = vsel %vm2433, %v3201, 0.0
  %3206 = vst [vmem:[%s6] sm:$0xff] %v3204
  %3207 = vst [vmem:[%s6 + $0x8] sm:$0xff] %v3205
  // Predicated region
  $region26: #{forward.4} parent=0 // pred_check
    _
  $region27: #{forward.4} parent=0 // pred_check_branch
    %3209 = sbr.rel (0) target = $region29
  $region28: #{forward.4} parent=0 // pred_region
    _
  $region29: #{forward.4} parent=0 // pred_fallthru
    _
  // Predicated region
  $region30: #{forward.4} parent=0 // pred_check
    _
  $region31: #{forward.4} parent=0 // pred_check_branch
    %3211 = sbr.rel (0) target = $region33
  $region32: #{forward.4} parent=0 // pred_region
    _
  $region33: #{forward.4} parent=0 // pred_fallthru
    _

// kernel: forward.3
$region0: #{forward.3}
  #allocation0 [shape = 'u32[]', space=smem, size = 0x4, offset = 0x4, fixed_abs, tag = 'smem constant byte address 0x4 - core index']
  #allocation1 [shape = 'u32[144,128]{1,0:T(1,128)}', space=vmem, size = 0x12000, scoped, tag = 'internal scratch']
  #allocation2 [shape = 'f32[1]{0:T(128)S(6)}', space=smem, size = 0x200, scoped, tag = 'scoped memory for forward.3']
  %s0 = inlined_call_operand.<no memory space> [shape: f32[1], index: 0, kind: input, shape index: {}]
  %s1 = inlined_call_operand.vmem [shape: s32[16,1], index: 1, kind: input, shape index: {}]
  %s2 = inlined_call_operand.vmem [shape: s32[64,8], index: 2, kind: input, shape index: {}]
  %s3 = inlined_call_operand.vmem [shape: s32[8,64], index: 3, kind: input, shape index: {}]
  %s4 = inlined_call_operand.vmem [shape: f32[16,128], index: 4, kind: input, shape index: {}]
  %s5 = inlined_call_operand.hbm [shape: f32[376,256], index: 5, kind: input, shape index: {}]
  %s6 = inlined_call_operand.vmem [shape: f32[16,128], index: 6, kind: output, shape index: {}]
  %s7 = sld [smem:[#allocation0]]
  $region38: #{forward.3} parent=0
    _
  %s9 = ssub.s32 1, %s7
  %s10 = scalar_select 0, %s9, %s7
  %11 = sst [smem:[#allocation2]] %s0
  $region1: #{forward.3} parent=0
    #allocation3 [shape = 'u8[385024]{0}', space=vmem, size = 0x5e000, scoped, tag = 'input window, operand 5, single buffered']
    #allocation4 [shape = 's32[1]{0}', space=sflag, size = 0x4, scoped, tag = 'scoped memory for forward.3']
    %12 = vsyncpa [#allocation4], 0
    // Predicated region
    $region2: #{forward.3} parent=1 // pred_check
      _
    $region3: #{forward.3} parent=1 // pred_check_branch
      %14 = sbr.rel (0) target = $region5
    $region4: #{forward.3} parent=1 // pred_region
      _
    $region5: #{forward.3} parent=1 // pred_fallthru
      _
    // Predicated region
    $region6: #{forward.3} parent=1 // pred_check
      _
    $region7: #{forward.3} parent=1 // pred_check_branch
      %16 = sbr.rel (0) target = $region9
    $region8: #{forward.3} parent=1 // pred_region
      _
    $region9: #{forward.3} parent=1 // pred_fallthru
      _
    // Predicated region
    $region10: #{forward.3} parent=1 // pred_check
      _
    $region11: #{forward.3} parent=1 // pred_check_branch
      %18 = sbr.rel (0) target = $region13
    $region12: #{forward.3} parent=1 // pred_region
      _
    $region13: #{forward.3} parent=1 // pred_fallthru
      _
    // Predicated region
    $region14: #{forward.3} parent=1 // pred_check
      _
    $region15: #{forward.3} parent=1 // pred_check_branch
      %20 = sbr.rel (0) target = $region17
    $region16: #{forward.3} parent=1 // pred_region
      _
    $region17: #{forward.3} parent=1 // pred_fallthru
      _
    // Predicated region
    $region18: #{forward.3} parent=1 // pred_check
      _
    $region19: #{forward.3} parent=1 // pred_check_branch
      %22 = sbr.rel (0) target = $region21
    $region20: #{forward.3} parent=1 // pred_region
      _
    $region21: #{forward.3} parent=1 // pred_fallthru
      _
    // Predicated region
    $region22: #{forward.3} parent=1 // pred_check
      _
    $region23: #{forward.3} parent=1 // pred_check_branch
      %24 = sbr.rel (0) target = $region25
    $region24: #{forward.3} parent=1 // pred_region
      %s26 = ssub.s32 12032, 12032
      %27 = vsyncadd [#allocation4], %s26
      %s28 = sshll.u32 [#allocation3], 4
      %s29 = int_to_ptr.vmem [resolvable:$true] %s28
      %34 = dma.hbm_to_vmem [thread:$0]  %s5, 12032, %s29, [#allocation4], 256, 256, 16
    $region25: #{forward.3} parent=1 // pred_fallthru
      _
    // Predicated region
    $region26: #{forward.3} parent=1 // pred_check
      _
    $region27: #{forward.3} parent=1 // pred_check_branch
      %36 = sbr.rel (0) target = $region29
    $region28: #{forward.3} parent=1 // pred_region
      %37 = dma.done [#allocation4], 12032
    $region29: #{forward.3} parent=1 // pred_fallthru
      _
    %s38 = sld [smem:[#allocation2]]
    %v39 = vld [vmem:[%s2] sm:$0xff]
    %v40 = vld [vmem:[%s2 + $0x8] sm:$0xff]
    %v41 = vld [vmem:[%s2 + $0x10] sm:$0xff]
    %v42 = vld [vmem:[%s2 + $0x18] sm:$0xff]
    %v43 = vld [vmem:[%s2 + $0x20] sm:$0xff]
    %v44 = vld [vmem:[%s2 + $0x28] sm:$0xff]
    %v45 = vld [vmem:[%s2 + $0x30] sm:$0xff]
    %v46 = vld [vmem:[%s2 + $0x38] sm:$0xff]
    %v47 = vcvt.s32.f32 %v39
    %v48 = vcvt.s32.f32 %v40
    %v49 = vcvt.s32.f32 %v41
    %v50 = vcvt.s32.f32 %v42
    %v51 = vcvt.s32.f32 %v43
    %v52 = vcvt.s32.f32 %v44
    %v53 = vcvt.s32.f32 %v45
    %v54 = vcvt.s32.f32 %v46
    %v55 = vld [vmem:[#allocation3] sm:$0xff]
    %v56 = vld [vmem:[#allocation3 + $0x10] sm:$0x1]
    %v57 = vld [vmem:[#allocation3 + $0x20] sm:$0xf]
    %v58 = vld [vmem:[#allocation3 + $0x30] sm:$0xff]
    %v59 = vld [vmem:[#allocation3 + $0x40] sm:$0xff]
    %v60 = vld [vmem:[#allocation3 + $0x50] sm:$0xff]
    %v61 = vld [vmem:[#allocation3 + $0x60] sm:$0xff]
    %v62 = vld [vmem:[#allocation3 + $0x70] sm:$0xff]
    %v63 = vld [vmem:[#allocation3 + $0x80] sm:$0xff]
    %v64 = vld [vmem:[#allocation3 + $0x90] sm:$0xff]
    %v65 = vld [vmem:[#allocation3 + $0xa0] sm:$0xff]
    %v66 = vld [vmem:[#allocation3 + $0xb0] sm:$0xff]
    %v67 = vld [vmem:[#allocation3 + $0xc0] sm:$0xff]
    %v68 = vld [vmem:[#allocation3 + $0xd0] sm:$0xff]
    %v69 = vld [vmem:[#allocation3 + $0xe0] sm:$0xff]
    %v70 = vld [vmem:[#allocation3 + $0xf0] sm:$0xff]
    %v71 = vld [vmem:[#allocation3 + $0x100] sm:$0xff]
    %v72 = vld [vmem:[#allocation3 + $0x110] sm:$0xff]
    %v73 = vld [vmem:[#allocation3 + $0x120] sm:$0xff]
    %v74 = vld [vmem:[#allocation3 + $0x130] ss:$0 sm:$0xff]
    %v75 = vld [vmem:[#allocation3 + $0x140] ss:$0 sm:$0xff]
    %v76 = vld [vmem:[#allocation3 + $0x150] ss:$0 sm:$0xff]
    %v77 = vld [vmem:[#allocation3 + $0x160] sm:$0xff]
    %v78 = vld [vmem:[#allocation3 + $0x170] sm:$0xff]
    %v79 = vld [vmem:[#allocation3 + $0x180] sm:$0xff]
    %v80 = vld [vmem:[#allocation3 + $0x190] sm:$0xff]
    %v81 = vld [vmem:[#allocation3 + $0x1a0] sm:$0xff]
    %v82 = vld [vmem:[#allocation3 + $0x1b0] sm:$0xff]
    %v83 = vld [vmem:[#allocation3 + $0x1c0] sm:$0xff]
    %v84 = vld [vmem:[#allocation3 + $0x1d0] sm:$0xff]
    %s85 = scalar_lea.vmem [#allocation3], 736
    %v86 = vld [vmem:[%s85] ss:$8 sm:$0x3]
    %v87 = vlaneseq
    %v88 = vand.u32 %v87, 127
    %89 = vset.pattern.permute.xlu0 0
    %90 = vperm.xlu0 %89, %v39
    %v91 = vpop.permute.xlu0 %90
    %92 = vset.pattern.permute.xlu0 0
    %93 = vperm.xlu0 %92, %v40
    %v94 = vpop.permute.xlu0 %93
    %95 = vset.pattern.permute.xlu0 0
    %96 = vperm.xlu0 %95, %v41
    %v97 = vpop.permute.xlu0 %96
    %98 = vset.pattern.permute.xlu0 0
    %99 = vperm.xlu0 %98, %v42
    %v100 = vpop.permute.xlu0 %99
    %101 = vset.pattern.permute.xlu0 0
    %102 = vperm.xlu0 %101, %v43
    %v103 = vpop.permute.xlu0 %102
    %104 = vset.pattern.permute.xlu0 0
    %105 = vperm.xlu0 %104, %v44
    %v106 = vpop.permute.xlu0 %105
    %107 = vset.pattern.permute.xlu0 0
    %108 = vperm.xlu0 %107, %v45
    %v109 = vpop.permute.xlu0 %108
    %110 = vset.pattern.permute.xlu0 0
    %111 = vperm.xlu0 %110, %v46
    %v112 = vpop.permute.xlu0 %111
    %vm113 = vcmp.eq.s32.totalorder %v88, %v91
    %vm114 = vcmp.eq.s32.totalorder %v88, %v94
    %vm115 = vcmp.eq.s32.totalorder %v88, %v97
    %vm116 = vcmp.eq.s32.totalorder %v88, %v100
    %vm117 = vcmp.eq.s32.totalorder %v88, %v103
    %vm118 = vcmp.eq.s32.totalorder %v88, %v106
    %vm119 = vcmp.eq.s32.totalorder %v88, %v109
    %vm120 = vcmp.eq.s32.totalorder %v88, %v112
    %v121 = vsel %vm113, 1, 0
    %v122 = vsel %vm114, 1, 0
    %v123 = vsel %vm115, 1, 0
    %v124 = vsel %vm116, 1, 0
    %v125 = vsel %vm117, 1, 0
    %v126 = vsel %vm118, 1, 0
    %v127 = vsel %vm119, 1, 0
    %v128 = vsel %vm120, 1, 0
    %v129 = vcvt.s32.f32 %v121
    %v130 = vcvt.s32.f32 %v122
    %v131 = vcvt.s32.f32 %v123
    %v132 = vcvt.s32.f32 %v124
    %v133 = vcvt.s32.f32 %v125
    %v134 = vcvt.s32.f32 %v126
    %v135 = vcvt.s32.f32 %v127
    %v136 = vcvt.s32.f32 %v128
    %137 = vset.pattern.permute.xlu0 1
    %138 = vperm.xlu0 %137, %v39
    %v139 = vpop.permute.xlu0 %138
    %140 = vset.pattern.permute.xlu0 1
    %141 = vperm.xlu0 %140, %v40
    %v142 = vpop.permute.xlu0 %141
    %143 = vset.pattern.permute.xlu0 1
    %144 = vperm.xlu0 %143, %v41
    %v145 = vpop.permute.xlu0 %144
    %146 = vset.pattern.permute.xlu0 1
    %147 = vperm.xlu0 %146, %v42
    %v148 = vpop.permute.xlu0 %147
    %149 = vset.pattern.permute.xlu0 1
    %150 = vperm.xlu0 %149, %v43
    %v151 = vpop.permute.xlu0 %150
    %152 = vset.pattern.permute.xlu0 1
    %153 = vperm.xlu0 %152, %v44
    %v154 = vpop.permute.xlu0 %153
    %155 = vset.pattern.permute.xlu0 1
    %156 = vperm.xlu0 %155, %v45
    %v157 = vpop.permute.xlu0 %156
    %158 = vset.pattern.permute.xlu0 1
    %159 = vperm.xlu0 %158, %v46
    %v160 = vpop.permute.xlu0 %159
    %vm161 = vcmp.eq.s32.totalorder %v88, %v139
    %vm162 = vcmp.eq.s32.totalorder %v88, %v142
    %vm163 = vcmp.eq.s32.totalorder %v88, %v145
    %vm164 = vcmp.eq.s32.totalorder %v88, %v148
    %vm165 = vcmp.eq.s32.totalorder %v88, %v151
    %vm166 = vcmp.eq.s32.totalorder %v88, %v154
    %vm167 = vcmp.eq.s32.totalorder %v88, %v157
    %vm168 = vcmp.eq.s32.totalorder %v88, %v160
    %v169 = vsel %vm161, 1, 0
    %v170 = vsel %vm162, 1, 0
    %v171 = vsel %vm163, 1, 0
    %v172 = vsel %vm164, 1, 0
    %v173 = vsel %vm165, 1, 0
    %v174 = vsel %vm166, 1, 0
    %v175 = vsel %vm167, 1, 0
    %v176 = vsel %vm168, 1, 0
    %v177 = vcvt.s32.f32 %v169
    %v178 = vcvt.s32.f32 %v170
    %v179 = vcvt.s32.f32 %v171
    %v180 = vcvt.s32.f32 %v172
    %v181 = vcvt.s32.f32 %v173
    %v182 = vcvt.s32.f32 %v174
    %v183 = vcvt.s32.f32 %v175
    %v184 = vcvt.s32.f32 %v176
    %185 = vset.pattern.permute.xlu0 2
    %186 = vperm.xlu0 %185, %v39
    %v187 = vpop.permute.xlu0 %186
    %188 = vset.pattern.permute.xlu0 2
    %189 = vperm.xlu0 %188, %v40
    %v190 = vpop.permute.xlu0 %189
    %191 = vset.pattern.permute.xlu0 2
    %192 = vperm.xlu0 %191, %v41
    %v193 = vpop.permute.xlu0 %192
    %194 = vset.pattern.permute.xlu0 2
    %195 = vperm.xlu0 %194, %v42
    %v196 = vpop.permute.xlu0 %195
    %197 = vset.pattern.permute.xlu0 2
    %198 = vperm.xlu0 %197, %v43
    %v199 = vpop.permute.xlu0 %198
    %200 = vset.pattern.permute.xlu0 2
    %201 = vperm.xlu0 %200, %v44
    %v202 = vpop.permute.xlu0 %201
    %203 = vset.pattern.permute.xlu0 2
    %204 = vperm.xlu0 %203, %v45
    %v205 = vpop.permute.xlu0 %204
    %206 = vset.pattern.permute.xlu0 2
    %207 = vperm.xlu0 %206, %v46
    %v208 = vpop.permute.xlu0 %207
    %vm209 = vcmp.eq.s32.totalorder %v88, %v187
    %vm210 = vcmp.eq.s32.totalorder %v88, %v190
    %vm211 = vcmp.eq.s32.totalorder %v88, %v193
    %vm212 = vcmp.eq.s32.totalorder %v88, %v196
    %vm213 = vcmp.eq.s32.totalorder %v88, %v199
    %vm214 = vcmp.eq.s32.totalorder %v88, %v202
    %vm215 = vcmp.eq.s32.totalorder %v88, %v205
    %vm216 = vcmp.eq.s32.totalorder %v88, %v208
    %v217 = vsel %vm209, 1, 0
    %v218 = vsel %vm210, 1, 0
    %v219 = vsel %vm211, 1, 0
    %v220 = vsel %vm212, 1, 0
    %v221 = vsel %vm213, 1, 0
    %v222 = vsel %vm214, 1, 0
    %v223 = vsel %vm215, 1, 0
    %v224 = vsel %vm216, 1, 0
    %v225 = vcvt.s32.f32 %v217
    %v226 = vcvt.s32.f32 %v218
    %v227 = vcvt.s32.f32 %v219
    %v228 = vcvt.s32.f32 %v220
    %v229 = vcvt.s32.f32 %v221
    %v230 = vcvt.s32.f32 %v222
    %v231 = vcvt.s32.f32 %v223
    %v232 = vcvt.s32.f32 %v224
    %v233 = vld [vmem:[%s1] sm:$0xff]
    %v234 = vld [vmem:[%s1 + $0x8] sm:$0xff]
    %235 = vset.pattern.permute.xlu0 0
    %236 = vperm.xlu0 %235, %v233
    %v237 = vpop.permute.xlu0 %236
    %238 = vset.pattern.permute.xlu0 0
    %239 = vperm.xlu0 %238, %v234
    %v240 = vpop.permute.xlu0 %239
    %vm241 = vcmp.eq.s32.totalorder %v88, %v237
    %vm242 = vcmp.eq.s32.totalorder %v88, %v240
    %v243 = vsel %vm241, 1, 0
    %v244 = vsel %vm242, 1, 0
    %v245 = vcvt.s32.f32 %v243
    %v246 = vcvt.s32.f32 %v244
    %v247 = vld [vmem:[%s4] sm:$0xff]
    %v248 = vld [vmem:[%s4 + $0x8] sm:$0xff]
    %vm249 = vcmask 130048
    %v251 = vsel %vm249, %v129, 0
    %v254 = vsel %vm249, %v130, 0
    %v257 = vsel %vm249, %v131, 0
    %v260 = vsel %vm249, %v132, 0
    %v263 = vsel %vm249, %v133, 0
    %v266 = vsel %vm249, %v134, 0
    %v269 = vsel %vm249, %v135, 0
    %v272 = vsel %vm249, %v136, 0
    %274 = vmatprep.subr.mxu0 0.0
    %275 = vmatpush1.msra.mxu0 %v247
    %276 = vmatprep.subr.mxu0 0.0
    %277 = vmatpush1.msra.mxu0 %v248
    %278 = vmatprep.subr.mxu0 0.0
    %279 = vmatpush1.msra.mxu0 0.0
    %280 = vmatprep.subr.mxu0 0.0
    %281 = vmatpush1.msra.mxu0 0.0
    %282 = vmatprep.subr.mxu0 0.0
    %283 = vmatpush1.msra.mxu0 0.0
    %284 = vmatprep.subr.mxu0 0.0
    %285 = vmatpush1.msra.mxu0 0.0
    %286 = vmatprep.subr.mxu0 0.0
    %287 = vmatpush1.msra.mxu0 0.0
    %288 = vmatprep.subr.mxu0 0.0
    %289 = vmatpush1.msra.mxu0 0.0
    %290 = vmatprep.subr.mxu0 0.0
    %291 = vmatpush1.msra.mxu0 0.0
    %292 = vmatprep.subr.mxu0 0.0
    %293 = vmatpush1.msra.mxu0 0.0
    %294 = vmatprep.subr.mxu0 0.0
    %295 = vmatpush1.msra.mxu0 0.0
    %296 = vmatprep.subr.mxu0 0.0
    %297 = vmatpush1.msra.mxu0 0.0
    %298 = vmatprep.subr.mxu0 0.0
    %299 = vmatpush1.msra.mxu0 0.0
    %300 = vmatprep.subr.mxu0 0.0
    %301 = vmatpush1.msra.mxu0 0.0
    %302 = vmatprep.subr.mxu0 0.0
    %303 = vmatpush1.msra.mxu0 0.0
    %304 = vmatprep.subr.mxu0 0.0
    %305 = vmatpush1.msra.mxu0 0.0
    %306 = vmatprep.subr.mxu0 0.0
    %307 = vmatpush1.msra.mxu0 0.0
    %308 = vmatprep.subr.mxu0 0.0
    %309 = vmatpush1.msra.mxu0 0.0
    %310 = vmatprep.subr.mxu0 0.0
    %311 = vmatpush1.msra.mxu0 0.0
    %312 = vmatprep.subr.mxu0 0.0
    %313 = vmatpush1.msra.mxu0 0.0
    %314 = vmatprep.subr.mxu0 0.0
    %315 = vmatpush1.msra.mxu0 0.0
    %316 = vmatprep.subr.mxu0 0.0
    %317 = vmatpush1.msra.mxu0 0.0
    %318 = vmatprep.subr.mxu0 0.0
    %319 = vmatpush1.msra.mxu0 0.0
    %320 = vmatprep.subr.mxu0 0.0
    %321 = vmatpush1.msra.mxu0 0.0
    %322 = vmatprep.subr.mxu0 0.0
    %323 = vmatpush1.msra.mxu0 0.0
    %324 = vmatprep.subr.mxu0 0.0
    %325 = vmatpush1.msra.mxu0 0.0
    %326 = vmatprep.subr.mxu0 0.0
    %327 = vmatpush1.msra.mxu0 0.0
    %328 = vmatprep.subr.mxu0 0.0
    %329 = vmatpush1.msra.mxu0 0.0
    %330 = vmatprep.subr.mxu0 0.0
    %331 = vmatpush1.msra.mxu0 0.0
    %332 = vmatprep.subr.mxu0 0.0
    %333 = vmatpush1.msra.mxu0 0.0
    %334 = vmatprep.subr.mxu0 0.0
    %335 = vmatpush1.msra.mxu0 0.0
    %336 = vmatprep.subr.mxu0 0.0
    %337 = vmatpush1.msra.mxu0 0.0
    %338 = vmatprep.mubr.f32.mxu0 0.0
    %339 = vmatmul.mubr.f32.gmra.mrb[0].mxu0 %v251
    %v340 = vpop.f32.mrb[0].mxu0
    %v341 = vadd.f32 0.0, %v340
    %v342 = vpop.f32.mrb[0].mxu0
    %343 = vmatprep.mubr.f32.mxu0 0.0
    %344 = vmatmul.mubr.f32.gmra.mrb[0].mxu0 %v254
    %v345 = vpop.f32.mrb[0].mxu0
    %v346 = vadd.f32 0.0, %v345
    %v347 = vpop.f32.mrb[0].mxu0
    %348 = vmatprep.mubr.f32.mxu0 0.0
    %349 = vmatmul.mubr.f32.gmra.mrb[0].mxu0 %v257
    %v350 = vpop.f32.mrb[0].mxu0
    %v351 = vadd.f32 0.0, %v350
    %v352 = vpop.f32.mrb[0].mxu0
    %353 = vmatprep.mubr.f32.mxu0 0.0
    %354 = vmatmul.mubr.f32.gmra.mrb[0].mxu0 %v260
    %v355 = vpop.f32.mrb[0].mxu0
    %v356 = vadd.f32 0.0, %v355
    %v357 = vpop.f32.mrb[0].mxu0
    %358 = vmatprep.mubr.f32.mxu0 0.0
    %359 = vmatmul.mubr.f32.gmra.mrb[0].mxu0 %v263
    %v360 = vpop.f32.mrb[0].mxu0
    %v361 = vadd.f32 0.0, %v360
    %v362 = vpop.f32.mrb[0].mxu0
    %363 = vmatprep.mubr.f32.mxu0 0.0
    %364 = vmatmul.mubr.f32.gmra.mrb[0].mxu0 %v266
    %v365 = vpop.f32.mrb[0].mxu0
    %v366 = vadd.f32 0.0, %v365
    %v367 = vpop.f32.mrb[0].mxu0
    %368 = vmatprep.mubr.f32.mxu0 0.0
    %369 = vmatmul.mubr.f32.gmra.mrb[0].mxu0 %v269
    %v370 = vpop.f32.mrb[0].mxu0
    %v371 = vadd.f32 0.0, %v370
    %v372 = vpop.f32.mrb[0].mxu0
    %373 = vmatprep.mubr.f32.mxu0 0.0
    %374 = vmatmul.mubr.f32.gmra.mrb[0].mxu0 %v272
    %v375 = vpop.f32.mrb[0].mxu0
    %v376 = vadd.f32 0.0, %v375
    %v377 = vpop.f32.mrb[0].mxu0
    %378 = vdwg.mxu0
    %vm379 = vcmask 72704
    %v381 = vsel %vm379, %v177, 0
    %v384 = vsel %vm379, %v178, 0
    %v387 = vsel %vm379, %v179, 0
    %v390 = vsel %vm379, %v180, 0
    %v393 = vsel %vm379, %v181, 0
    %v396 = vsel %vm379, %v182, 0
    %v399 = vsel %vm379, %v183, 0
    %v402 = vsel %vm379, %v184, 0
    %vm404 = vcmask 1040384
    %v406 = vsel %vm404, %v56, 0
    %408 = vmatprep.subr.mxu0 0.0
    %409 = vmatpush1.msra.mxu0 %v55
    %410 = vmatprep.subr.mxu0 0.0
    %411 = vmatpush1.msra.mxu0 %v406
    %412 = vmatprep.subr.mxu0 0.0
    %413 = vmatpush1.msra.mxu0 0.0
    %414 = vmatprep.subr.mxu0 0.0
    %415 = vmatpush1.msra.mxu0 0.0
    %416 = vmatprep.subr.mxu0 0.0
    %417 = vmatpush1.msra.mxu0 0.0
    %418 = vmatprep.subr.mxu0 0.0
    %419 = vmatpush1.msra.mxu0 0.0
    %420 = vmatprep.subr.mxu0 0.0
    %421 = vmatpush1.msra.mxu0 0.0
    %422 = vmatprep.subr.mxu0 0.0
    %423 = vmatpush1.msra.mxu0 0.0
    %424 = vmatprep.subr.mxu0 0.0
    %425 = vmatpush1.msra.mxu0 0.0
    %426 = vmatprep.subr.mxu0 0.0
    %427 = vmatpush1.msra.mxu0 0.0
    %428 = vmatprep.subr.mxu0 0.0
    %429 = vmatpush1.msra.mxu0 0.0
    %430 = vmatprep.subr.mxu0 0.0
    %431 = vmatpush1.msra.mxu0 0.0
    %432 = vmatprep.subr.mxu0 0.0
    %433 = vmatpush1.msra.mxu0 0.0
    %434 = vmatprep.subr.mxu0 0.0
    %435 = vmatpush1.msra.mxu0 0.0
    %436 = vmatprep.subr.mxu0 0.0
    %437 = vmatpush1.msra.mxu0 0.0
    %438 = vmatprep.subr.mxu0 0.0
    %439 = vmatpush1.msra.mxu0 0.0
    %440 = vmatprep.subr.mxu0 0.0
    %441 = vmatpush1.msra.mxu0 0.0
    %442 = vmatprep.subr.mxu0 0.0
    %443 = vmatpush1.msra.mxu0 0.0
    %444 = vmatprep.subr.mxu0 0.0
    %445 = vmatpush1.msra.mxu0 0.0
    %446 = vmatprep.subr.mxu0 0.0
    %447 = vmatpush1.msra.mxu0 0.0
    %448 = vmatprep.subr.mxu0 0.0
    %449 = vmatpush1.msra.mxu0 0.0
    %450 = vmatprep.subr.mxu0 0.0
    %451 = vmatpush1.msra.mxu0 0.0
    %452 = vmatprep.subr.mxu0 0.0
    %453 = vmatpush1.msra.mxu0 0.0
    %454 = vmatprep.subr.mxu0 0.0
    %455 = vmatpush1.msra.mxu0 0.0
    %456 = vmatprep.subr.mxu0 0.0
    %457 = vmatpush1.msra.mxu0 0.0
    %458 = vmatprep.subr.mxu0 0.0
    %459 = vmatpush1.msra.mxu0 0.0
    %460 = vmatprep.subr.mxu0 0.0
    %461 = vmatpush1.msra.mxu0 0.0
    %462 = vmatprep.subr.mxu0 0.0
    %463 = vmatpush1.msra.mxu0 0.0
    %464 = vmatprep.subr.mxu0 0.0
    %465 = vmatpush1.msra.mxu0 0.0
    %466 = vmatprep.subr.mxu0 0.0
    %467 = vmatpush1.msra.mxu0 0.0
    %468 = vmatprep.subr.mxu0 0.0
    %469 = vmatpush1.msra.mxu0 0.0
    %470 = vmatprep.subr.mxu0 0.0
    %471 = vmatpush1.msra.mxu0 0.0
    %472 = vmatprep.mubr.f32.mxu0 0.0
    %473 = vmatmul.mubr.f32.gmra.mrb[0].mxu0 %v381
    %v474 = vpop.f32.mrb[0].mxu0
    %v475 = vadd.f32 0.0, %v474
    %v476 = vpop.f32.mrb[0].mxu0
    %477 = vmatprep.mubr.f32.mxu0 0.0
    %478 = vmatmul.mubr.f32.gmra.mrb[0].mxu0 %v384
    %v479 = vpop.f32.mrb[0].mxu0
    %v480 = vadd.f32 0.0, %v479
    %v481 = vpop.f32.mrb[0].mxu0
    %482 = vmatprep.mubr.f32.mxu0 0.0
    %483 = vmatmul.mubr.f32.gmra.mrb[0].mxu0 %v387
    %v484 = vpop.f32.mrb[0].mxu0
    %v485 = vadd.f32 0.0, %v484
    %v486 = vpop.f32.mrb[0].mxu0
    %487 = vmatprep.mubr.f32.mxu0 0.0
    %488 = vmatmul.mubr.f32.gmra.mrb[0].mxu0 %v390
    %v489 = vpop.f32.mrb[0].mxu0
    %v490 = vadd.f32 0.0, %v489
    %v491 = vpop.f32.mrb[0].mxu0
    %492 = vmatprep.mubr.f32.mxu0 0.0
    %493 = vmatmul.mubr.f32.gmra.mrb[0].mxu0 %v393
    %v494 = vpop.f32.mrb[0].mxu0
    %v495 = vadd.f32 0.0, %v494
    %v496 = vpop.f32.mrb[0].mxu0
    %497 = vmatprep.mubr.f32.mxu0 0.0
    %498 = vmatmul.mubr.f32.gmra.mrb[0].mxu0 %v396
    %v499 = vpop.f32.mrb[0].mxu0
    %v500 = vadd.f32 0.0, %v499
    %v501 = vpop.f32.mrb[0].mxu0
    %502 = vmatprep.mubr.f32.mxu0 0.0
    %503 = vmatmul.mubr.f32.gmra.mrb[0].mxu0 %v399
    %v504 = vpop.f32.mrb[0].mxu0
    %v505 = vadd.f32 0.0, %v504
    %v506 = vpop.f32.mrb[0].mxu0
    %507 = vmatprep.mubr.f32.mxu0 0.0
    %508 = vmatmul.mubr.f32.gmra.mrb[0].mxu0 %v402
    %v509 = vpop.f32.mrb[0].mxu0
    %v510 = vadd.f32 0.0, %v509
    %v511 = vpop.f32.mrb[0].mxu0
    %512 = vdwg.mxu0
    %v514 = vsel %vm379, %v245, 0
    %v517 = vsel %vm379, %v246, 0
    %519 = vmatprep.subr.mxu0 0.0
    %520 = vmatpush1.msra.mxu0 %v55
    %521 = vmatprep.subr.mxu0 0.0
    %522 = vmatpush1.msra.mxu0 %v406
    %523 = vmatprep.subr.mxu0 0.0
    %524 = vmatpush1.msra.mxu0 0.0
    %525 = vmatprep.subr.mxu0 0.0
    %526 = vmatpush1.msra.mxu0 0.0
    %527 = vmatprep.subr.mxu0 0.0
    %528 = vmatpush1.msra.mxu0 0.0
    %529 = vmatprep.subr.mxu0 0.0
    %530 = vmatpush1.msra.mxu0 0.0
    %531 = vmatprep.subr.mxu0 0.0
    %532 = vmatpush1.msra.mxu0 0.0
    %533 = vmatprep.subr.mxu0 0.0
    %534 = vmatpush1.msra.mxu0 0.0
    %535 = vmatprep.subr.mxu0 0.0
    %536 = vmatpush1.msra.mxu0 0.0
    %537 = vmatprep.subr.mxu0 0.0
    %538 = vmatpush1.msra.mxu0 0.0
    %539 = vmatprep.subr.mxu0 0.0
    %540 = vmatpush1.msra.mxu0 0.0
    %541 = vmatprep.subr.mxu0 0.0
    %542 = vmatpush1.msra.mxu0 0.0
    %543 = vmatprep.subr.mxu0 0.0
    %544 = vmatpush1.msra.mxu0 0.0
    %545 = vmatprep.subr.mxu0 0.0
    %546 = vmatpush1.msra.mxu0 0.0
    %547 = vmatprep.subr.mxu0 0.0
    %548 = vmatpush1.msra.mxu0 0.0
    %549 = vmatprep.subr.mxu0 0.0
    %550 = vmatpush1.msra.mxu0 0.0
    %551 = vmatprep.subr.mxu0 0.0
    %552 = vmatpush1.msra.mxu0 0.0
    %553 = vmatprep.subr.mxu0 0.0
    %554 = vmatpush1.msra.mxu0 0.0
    %555 = vmatprep.subr.mxu0 0.0
    %556 = vmatpush1.msra.mxu0 0.0
    %557 = vmatprep.subr.mxu0 0.0
    %558 = vmatpush1.msra.mxu0 0.0
    %559 = vmatprep.subr.mxu0 0.0
    %560 = vmatpush1.msra.mxu0 0.0
    %561 = vmatprep.subr.mxu0 0.0
    %562 = vmatpush1.msra.mxu0 0.0
    %563 = vmatprep.subr.mxu0 0.0
    %564 = vmatpush1.msra.mxu0 0.0
    %565 = vmatprep.subr.mxu0 0.0
    %566 = vmatpush1.msra.mxu0 0.0
    %567 = vmatprep.subr.mxu0 0.0
    %568 = vmatpush1.msra.mxu0 0.0
    %569 = vmatprep.subr.mxu0 0.0
    %570 = vmatpush1.msra.mxu0 0.0
    %571 = vmatprep.subr.mxu0 0.0
    %572 = vmatpush1.msra.mxu0 0.0
    %573 = vmatprep.subr.mxu0 0.0
    %574 = vmatpush1.msra.mxu0 0.0
    %575 = vmatprep.subr.mxu0 0.0
    %576 = vmatpush1.msra.mxu0 0.0
    %577 = vmatprep.subr.mxu0 0.0
    %578 = vmatpush1.msra.mxu0 0.0
    %579 = vmatprep.subr.mxu0 0.0
    %580 = vmatpush1.msra.mxu0 0.0
    %581 = vmatprep.subr.mxu0 0.0
    %582 = vmatpush1.msra.mxu0 0.0
    %583 = vmatprep.mubr.f32.mxu0 0.0
    %584 = vmatmul.mubr.f32.gmra.mrb[0].mxu0 %v514
    %v585 = vpop.f32.mrb[0].mxu0
    %v586 = vadd.f32 0.0, %v585
    %v587 = vpop.f32.mrb[0].mxu0
    %588 = vmatprep.mubr.f32.mxu0 0.0
    %589 = vmatmul.mubr.f32.gmra.mrb[0].mxu0 %v517
    %v590 = vpop.f32.mrb[0].mxu0
    %v591 = vadd.f32 0.0, %v590
    %v592 = vpop.f32.mrb[0].mxu0
    %593 = vdwg.mxu0
    %v595 = vsel %vm249, %v225, 0
    %v598 = vsel %vm249, %v226, 0
    %v601 = vsel %vm249, %v227, 0
    %v604 = vsel %vm249, %v228, 0
    %v607 = vsel %vm249, %v229, 0
    %v610 = vsel %vm249, %v230, 0
    %v613 = vsel %vm249, %v231, 0
    %v616 = vsel %vm249, %v232, 0
    %618 = vmatprep.subr.mxu0 0.0
    %619 = vmatpush1.msra.mxu0 %v586
    %620 = vmatprep.subr.mxu0 0.0
    %621 = vmatpush1.msra.mxu0 %v591
    %622 = vmatprep.subr.mxu0 0.0
    %623 = vmatpush1.msra.mxu0 0.0
    %624 = vmatprep.subr.mxu0 0.0
    %625 = vmatpush1.msra.mxu0 0.0
    %626 = vmatprep.subr.mxu0 0.0
    %627 = vmatpush1.msra.mxu0 0.0
    %628 = vmatprep.subr.mxu0 0.0
    %629 = vmatpush1.msra.mxu0 0.0
    %630 = vmatprep.subr.mxu0 0.0
    %631 = vmatpush1.msra.mxu0 0.0
    %632 = vmatprep.subr.mxu0 0.0
    %633 = vmatpush1.msra.mxu0 0.0
    %634 = vmatprep.subr.mxu0 0.0
    %635 = vmatpush1.msra.mxu0 0.0
    %636 = vmatprep.subr.mxu0 0.0
    %637 = vmatpush1.msra.mxu0 0.0
    %638 = vmatprep.subr.mxu0 0.0
    %639 = vmatpush1.msra.mxu0 0.0
    %640 = vmatprep.subr.mxu0 0.0
    %641 = vmatpush1.msra.mxu0 0.0
    %642 = vmatprep.subr.mxu0 0.0
    %643 = vmatpush1.msra.mxu0 0.0
    %644 = vmatprep.subr.mxu0 0.0
    %645 = vmatpush1.msra.mxu0 0.0
    %646 = vmatprep.subr.mxu0 0.0
    %647 = vmatpush1.msra.mxu0 0.0
    %648 = vmatprep.subr.mxu0 0.0
    %649 = vmatpush1.msra.mxu0 0.0
    %650 = vmatprep.subr.mxu0 0.0
    %651 = vmatpush1.msra.mxu0 0.0
    %652 = vmatprep.subr.mxu0 0.0
    %653 = vmatpush1.msra.mxu0 0.0
    %654 = vmatprep.subr.mxu0 0.0
    %655 = vmatpush1.msra.mxu0 0.0
    %656 = vmatprep.subr.mxu0 0.0
    %657 = vmatpush1.msra.mxu0 0.0
    %658 = vmatprep.subr.mxu0 0.0
    %659 = vmatpush1.msra.mxu0 0.0
    %660 = vmatprep.subr.mxu0 0.0
    %661 = vmatpush1.msra.mxu0 0.0
    %662 = vmatprep.subr.mxu0 0.0
    %663 = vmatpush1.msra.mxu0 0.0
    %664 = vmatprep.subr.mxu0 0.0
    %665 = vmatpush1.msra.mxu0 0.0
    %666 = vmatprep.subr.mxu0 0.0
    %667 = vmatpush1.msra.mxu0 0.0
    %668 = vmatprep.subr.mxu0 0.0
    %669 = vmatpush1.msra.mxu0 0.0
    %670 = vmatprep.subr.mxu0 0.0
    %671 = vmatpush1.msra.mxu0 0.0
    %672 = vmatprep.subr.mxu0 0.0
    %673 = vmatpush1.msra.mxu0 0.0
    %674 = vmatprep.subr.mxu0 0.0
    %675 = vmatpush1.msra.mxu0 0.0
    %676 = vmatprep.subr.mxu0 0.0
    %677 = vmatpush1.msra.mxu0 0.0
    %678 = vmatprep.subr.mxu0 0.0
    %679 = vmatpush1.msra.mxu0 0.0
    %680 = vmatprep.subr.mxu0 0.0
    %681 = vmatpush1.msra.mxu0 0.0
    %682 = vmatprep.mubr.f32.mxu0 0.0
    %683 = vmatmul.mubr.f32.gmra.mrb[0].mxu0 %v595
    %v684 = vpop.f32.mrb[0].mxu0
    %v685 = vadd.f32 0.0, %v684
    %v686 = vpop.f32.mrb[0].mxu0
    %687 = vmatprep.mubr.f32.mxu0 0.0
    %688 = vmatmul.mubr.f32.gmra.mrb[0].mxu0 %v598
    %v689 = vpop.f32.mrb[0].mxu0
    %v690 = vadd.f32 0.0, %v689
    %v691 = vpop.f32.mrb[0].mxu0
    %692 = vmatprep.mubr.f32.mxu0 0.0
    %693 = vmatmul.mubr.f32.gmra.mrb[0].mxu0 %v601
    %v694 = vpop.f32.mrb[0].mxu0
    %v695 = vadd.f32 0.0, %v694
    %v696 = vpop.f32.mrb[0].mxu0
    %697 = vmatprep.mubr.f32.mxu0 0.0
    %698 = vmatmul.mubr.f32.gmra.mrb[0].mxu0 %v604
    %v699 = vpop.f32.mrb[0].mxu0
    %v700 = vadd.f32 0.0, %v699
    %v701 = vpop.f32.mrb[0].mxu0
    %702 = vmatprep.mubr.f32.mxu0 0.0
    %703 = vmatmul.mubr.f32.gmra.mrb[0].mxu0 %v607
    %v704 = vpop.f32.mrb[0].mxu0
    %v705 = vadd.f32 0.0, %v704
    %v706 = vpop.f32.mrb[0].mxu0
    %707 = vmatprep.mubr.f32.mxu0 0.0
    %708 = vmatmul.mubr.f32.gmra.mrb[0].mxu0 %v610
    %v709 = vpop.f32.mrb[0].mxu0
    %v710 = vadd.f32 0.0, %v709
    %v711 = vpop.f32.mrb[0].mxu0
    %712 = vmatprep.mubr.f32.mxu0 0.0
    %713 = vmatmul.mubr.f32.gmra.mrb[0].mxu0 %v613
    %v714 = vpop.f32.mrb[0].mxu0
    %v715 = vadd.f32 0.0, %v714
    %v716 = vpop.f32.mrb[0].mxu0
    %717 = vmatprep.mubr.f32.mxu0 0.0
    %718 = vmatmul.mubr.f32.gmra.mrb[0].mxu0 %v616
    %v719 = vpop.f32.mrb[0].mxu0
    %v720 = vadd.f32 0.0, %v719
    %v721 = vpop.f32.mrb[0].mxu0
    %722 = vdwg.mxu0
    %vm723 = vcmp.ge.f32.partialorder %v47, 0.0
    %vm724 = vcmp.ge.f32.partialorder %v48, 0.0
    %vm725 = vcmp.ge.f32.partialorder %v49, 0.0
    %vm726 = vcmp.ge.f32.partialorder %v50, 0.0
    %vm727 = vcmp.ge.f32.partialorder %v51, 0.0
    %vm728 = vcmp.ge.f32.partialorder %v52, 0.0
    %vm729 = vcmp.ge.f32.partialorder %v53, 0.0
    %vm730 = vcmp.ge.f32.partialorder %v54, 0.0
    %v731 = vstv %s38
    %v732 = vsel %vm723, %v47, %v731
    %v733 = vsel %vm724, %v48, %v731
    %v734 = vsel %vm725, %v49, %v731
    %v735 = vsel %vm726, %v50, %v731
    %v736 = vsel %vm727, %v51, %v731
    %v737 = vsel %vm728, %v52, %v731
    %v738 = vsel %vm729, %v53, %v731
    %v739 = vsel %vm730, %v54, %v731
    %v740 = vsub.f32 %v732, %v731
    %v741 = vsub.f32 %v733, %v731
    %v742 = vsub.f32 %v734, %v731
    %v743 = vsub.f32 %v735, %v731
    %v744 = vsub.f32 %v736, %v731
    %v745 = vsub.f32 %v737, %v731
    %v746 = vsub.f32 %v738, %v731
    %v747 = vsub.f32 %v739, %v731
    %v748 = vlaneseq
    %v749 = vshrl.u32 %v748, 7
    %v750 = vsub.s32 0, %v749
    %v751 = vrot.slane %v57, %v750
    %753 = vset.pattern.permute.xlu0 3
    %754 = vperm.xlu0 %753, %v740
    %v755 = vpop.permute.xlu0 %754
    %758 = vset.pattern.permute.xlu0 3
    %759 = vperm.xlu0 %758, %v741
    %v760 = vpop.permute.xlu0 %759
    %763 = vset.pattern.permute.xlu0 3
    %764 = vperm.xlu0 %763, %v742
    %v765 = vpop.permute.xlu0 %764
    %768 = vset.pattern.permute.xlu0 3
    %769 = vperm.xlu0 %768, %v743
    %v770 = vpop.permute.xlu0 %769
    %773 = vset.pattern.permute.xlu0 3
    %774 = vperm.xlu0 %773, %v744
    %v775 = vpop.permute.xlu0 %774
    %778 = vset.pattern.permute.xlu0 3
    %779 = vperm.xlu0 %778, %v745
    %v780 = vpop.permute.xlu0 %779
    %783 = vset.pattern.permute.xlu0 3
    %784 = vperm.xlu0 %783, %v746
    %v785 = vpop.permute.xlu0 %784
    %788 = vset.pattern.permute.xlu0 3
    %789 = vperm.xlu0 %788, %v747
    %v790 = vpop.permute.xlu0 %789
    %v792 = vmul.f32 %v751, %v755
    %v793 = vmul.f32 %v751, %v760
    %v794 = vmul.f32 %v751, %v765
    %v795 = vmul.f32 %v751, %v770
    %v796 = vmul.f32 %v751, %v775
    %v797 = vmul.f32 %v751, %v780
    %v798 = vmul.f32 %v751, %v785
    %v799 = vmul.f32 %v751, %v790
    %v800 = vlaneseq
    %v801 = vshrl.u32 %v800, 7
    %v802 = vsub.s32 1, %v801
    %v803 = vrot.slane %v57, %v802
    %v804 = vadd.f32 %v792, %v803
    %v805 = vadd.f32 %v793, %v803
    %v806 = vadd.f32 %v794, %v803
    %v807 = vadd.f32 %v795, %v803
    %v808 = vadd.f32 %v796, %v803
    %v809 = vadd.f32 %v797, %v803
    %v810 = vadd.f32 %v798, %v803
    %v811 = vadd.f32 %v799, %v803
    %v812 = vlaneseq
    %v813 = vshrl.u32 %v812, 7
    %v814 = vsub.s32 2, %v813
    %v815 = vrot.slane %v57, %v814
    %v816 = vmul.f32 %v815, %v755
    %v817 = vmul.f32 %v815, %v760
    %v818 = vmul.f32 %v815, %v765
    %v819 = vmul.f32 %v815, %v770
    %v820 = vmul.f32 %v815, %v775
    %v821 = vmul.f32 %v815, %v780
    %v822 = vmul.f32 %v815, %v785
    %v823 = vmul.f32 %v815, %v790
    %v824 = vlaneseq
    %v825 = vshrl.u32 %v824, 7
    %v826 = vsub.s32 3, %v825
    %v827 = vrot.slane %v57, %v826
    %v828 = vadd.f32 %v816, %v827
    %v829 = vadd.f32 %v817, %v827
    %v830 = vadd.f32 %v818, %v827
    %v831 = vadd.f32 %v819, %v827
    %v832 = vadd.f32 %v820, %v827
    %v833 = vadd.f32 %v821, %v827
    %v834 = vadd.f32 %v822, %v827
    %v835 = vadd.f32 %v823, %v827
    %v836 = vand.u32 2147483647, %v828
    %vm837 = vcmp.le.f32.partialorder %v836, 0.7853982
    %vm838 = vcmp.lt.s32.totalorder %v828, 0
    %v839 = vand.u32 %v828, 2139095040
    %v840 = vshrl.u32 %v839, 23
    %v841 = vsub.s32 %v840, 127
    %v842 = vand.u32 2147483647, %v828
    %v843 = vand.u32 %v842, 8388607
    %v844 = vor.u32 %v843, 8388608
    %v845 = vsub.s32 0, %v844
    %v846 = vadd.s32 %v841, 1
    %vm847 = vcmp.gt.s32.totalorder %v846, 0
    %v848 = vsel %vm847, %v846, 0
    %v849 = vshrl.u32 %v848, 5
    %v850 = vand.u32 %v848, 31
    %v851 = vsub.s32 32, %v850
    %v852 = vshrl.u32 683565275, %v851
    %v853 = vshll.u32 683565275, %v850
    %v854 = vshrl.u32 2475754826, %v851
    %v855 = vor.u32 %v853, %v854
    %v856 = vshll.u32 2475754826, %v850
    %v857 = vshrl.u32 2131351028, %v851
    %v858 = vor.u32 %v856, %v857
    %v859 = vshll.u32 2131351028, %v850
    %v860 = vshrl.u32 2102212464, %v851
    %v861 = vor.u32 %v859, %v860
    %v862 = vshll.u32 2102212464, %v850
    %v863 = vshrl.u32 920167782, %v851
    %v864 = vor.u32 %v862, %v863
    %v865 = vshll.u32 920167782, %v850
    %v866 = vshrl.u32 1326507024, %v851
    %v867 = vor.u32 %v865, %v866
    %vm868 = vcmp.lt.s32.totalorder %v849, 1
    %vm869 = vcmp.lt.s32.totalorder %v849, 2
    %vm870 = vcmp.lt.s32.totalorder %v849, 3
    %vm871 = vcmp.lt.s32.totalorder %v849, 4
    %v872 = vsel %vm868, %v852, %v855
    %v873 = vsel %vm871, %v861, 2102212464
    %v874 = vsel %vm870, %v858, %v873
    %v875 = vsel %vm869, %v872, %v874
    %v876 = vsel %vm868, %v855, %v858
    %v877 = vsel %vm871, %v864, 920167782
    %v878 = vsel %vm870, %v861, %v877
    %v879 = vsel %vm869, %v876, %v878
    %v880 = vsel %vm868, %v858, %v861
    %v881 = vsel %vm871, %v867, 1326507024
    %v882 = vsel %vm870, %v864, %v881
    %v883 = vsel %vm869, %v880, %v882
    %v884 = vshll.u32 %v844, 8
    %v885 = vmul.u32.u64.compose %v884, %v883
    %v886 = vextract.low.u32 %v885
    %v887 = vextract.high.u32 %v885
    %v888 = vmul.u32.u64.compose %v884, %v879
    %v889 = vextract.low.u32 %v888
    %v890 = vextract.high.u32 %v888
    %v891 = vmul.u32 %v884, %v875
    %v892 = vadd.s32 %v887, %v889
    %vm893 = vc.u32 %v887, %v889
    %v894 = vadd.s32 %v890, 1
    %v895 = vsel %vm893, %v894, %v890
    %v896 = vadd.s32 %v891, %v895
    %v897 = vadd.s32 %v896, 536870912
    %v898 = vshrl.u32 %v897, 30
    %v899 = vshll.u32 %v898, 30
    %v900 = vsub.s32 %v896, %v899
    %vm901 = vcmp.lt.s32.totalorder %v900, 0
    %v902 = vsub.s32 0, %v900
    %v903 = vsel %vm901, %v902, %v900
    %v904 = vclz %v903
    %v905 = vsub.s32 %v904, 2
    %vm906 = vcmp.gt.s32.totalorder 0, %v905
    %v907 = vsel %vm906, 0, %v905
    %v908 = vsub.s32 32, %v907
    %v909 = vshll.u32 %v900, %v907
    %v910 = vshrl.u32 %v892, %v908
    %v911 = vor.u32 %v909, %v910
    %v912 = vsub.s32 4294967266, %v907
    %v913 = vadd.s32 %v912, 127
    %v914 = vshll.u32 %v913, 23
    %v915 = vor.u32 4788187, %v914
    %v916 = vand.u32 2147483647, %v915
    %v918 = vcvt.s32.f32 %v911
    %v919 = vmul.f32 %v918, %v916
    %v920 = vxor.u32 %v919, 2147483648
    %v921 = vsel %vm838, %v920, %v919
    %v922 = vsub.s32 4, %v898
    %v923 = vsel %vm838, %v922, %v898
    %v924 = vsel %vm837, %v828, %v921
    %v925 = vsel %vm837, 0, %v923
    %v926 = vcosq.f32.pop %v924
    %v927 = vsinq.f32.pop %v924
    %vm928 = vweird.f32 %v828
    %v929 = vadd.s32 %v925, 3
    %v930 = vand.u32 %v929, 3
    %vm931 = vcmp.lt.s32.totalorder %v930, 2
    %vm932 = vcmp.eq.s32.totalorder %v930, 0
    %v933 = vxor.u32 %v927, 2147483648
    %v934 = vsel %vm932, %v926, %v933
    %vm935 = vcmp.eq.s32.totalorder %v930, 2
    %v936 = vxor.u32 %v926, 2147483648
    %v937 = vsel %vm935, %v936, %v927
    %v938 = vsel %vm931, %v934, %v937
    %v939 = vsel %vm928, nan, %v938
    %v940 = vand.u32 2147483647, %v829
    %vm941 = vcmp.le.f32.partialorder %v940, 0.7853982
    %vm942 = vcmp.lt.s32.totalorder %v829, 0
    %v943 = vand.u32 %v829, 2139095040
    %v944 = vshrl.u32 %v943, 23
    %v945 = vsub.s32 %v944, 127
    %v946 = vand.u32 2147483647, %v829
    %v947 = vand.u32 %v946, 8388607
    %v948 = vor.u32 %v947, 8388608
    %v949 = vsub.s32 0, %v948
    %v950 = vadd.s32 %v945, 1
    %vm951 = vcmp.gt.s32.totalorder %v950, 0
    %v952 = vsel %vm951, %v950, 0
    %v953 = vshrl.u32 %v952, 5
    %v954 = vand.u32 %v952, 31
    %v955 = vsub.s32 32, %v954
    %v956 = vshrl.u32 683565275, %v955
    %v957 = vshll.u32 683565275, %v954
    %v958 = vshrl.u32 2475754826, %v955
    %v959 = vor.u32 %v957, %v958
    %v960 = vshll.u32 2475754826, %v954
    %v961 = vshrl.u32 2131351028, %v955
    %v962 = vor.u32 %v960, %v961
    %v963 = vshll.u32 2131351028, %v954
    %v964 = vshrl.u32 2102212464, %v955
    %v965 = vor.u32 %v963, %v964
    %v966 = vshll.u32 2102212464, %v954
    %v967 = vshrl.u32 920167782, %v955
    %v968 = vor.u32 %v966, %v967
    %v969 = vshll.u32 920167782, %v954
    %v970 = vshrl.u32 1326507024, %v955
    %v971 = vor.u32 %v969, %v970
    %vm972 = vcmp.lt.s32.totalorder %v953, 1
    %vm973 = vcmp.lt.s32.totalorder %v953, 2
    %vm974 = vcmp.lt.s32.totalorder %v953, 3
    %vm975 = vcmp.lt.s32.totalorder %v953, 4
    %v976 = vsel %vm972, %v956, %v959
    %v977 = vsel %vm975, %v965, 2102212464
    %v978 = vsel %vm974, %v962, %v977
    %v979 = vsel %vm973, %v976, %v978
    %v980 = vsel %vm972, %v959, %v962
    %v981 = vsel %vm975, %v968, 920167782
    %v982 = vsel %vm974, %v965, %v981
    %v983 = vsel %vm973, %v980, %v982
    %v984 = vsel %vm972, %v962, %v965
    %v985 = vsel %vm975, %v971, 1326507024
    %v986 = vsel %vm974, %v968, %v985
    %v987 = vsel %vm973, %v984, %v986
    %v988 = vshll.u32 %v948, 8
    %v989 = vmul.u32.u64.compose %v988, %v987
    %v990 = vextract.low.u32 %v989
    %v991 = vextract.high.u32 %v989
    %v992 = vmul.u32.u64.compose %v988, %v983
    %v993 = vextract.low.u32 %v992
    %v994 = vextract.high.u32 %v992
    %v995 = vmul.u32 %v988, %v979
    %v996 = vadd.s32 %v991, %v993
    %vm997 = vc.u32 %v991, %v993
    %v998 = vadd.s32 %v994, 1
    %v999 = vsel %vm997, %v998, %v994
    %v1000 = vadd.s32 %v995, %v999
    %v1001 = vadd.s32 %v1000, 536870912
    %v1002 = vshrl.u32 %v1001, 30
    %v1003 = vshll.u32 %v1002, 30
    %v1004 = vsub.s32 %v1000, %v1003
    %vm1005 = vcmp.lt.s32.totalorder %v1004, 0
    %v1006 = vsub.s32 0, %v1004
    %v1007 = vsel %vm1005, %v1006, %v1004
    %v1008 = vclz %v1007
    %v1009 = vsub.s32 %v1008, 2
    %vm1010 = vcmp.gt.s32.totalorder 0, %v1009
    %v1011 = vsel %vm1010, 0, %v1009
    %v1012 = vsub.s32 32, %v1011
    %v1013 = vshll.u32 %v1004, %v1011
    %v1014 = vshrl.u32 %v996, %v1012
    %v1015 = vor.u32 %v1013, %v1014
    %v1016 = vsub.s32 4294967266, %v1011
    %v1017 = vadd.s32 %v1016, 127
    %v1018 = vshll.u32 %v1017, 23
    %v1019 = vor.u32 4788187, %v1018
    %v1020 = vand.u32 2147483647, %v1019
    %v1022 = vcvt.s32.f32 %v1015
    %v1023 = vmul.f32 %v1022, %v1020
    %v1024 = vxor.u32 %v1023, 2147483648
    %v1025 = vsel %vm942, %v1024, %v1023
    %v1026 = vsub.s32 4, %v1002
    %v1027 = vsel %vm942, %v1026, %v1002
    %v1028 = vsel %vm941, %v829, %v1025
    %v1029 = vsel %vm941, 0, %v1027
    %v1030 = vcosq.f32.pop %v1028
    %v1031 = vsinq.f32.pop %v1028
    %vm1032 = vweird.f32 %v829
    %v1033 = vadd.s32 %v1029, 3
    %v1034 = vand.u32 %v1033, 3
    %vm1035 = vcmp.lt.s32.totalorder %v1034, 2
    %vm1036 = vcmp.eq.s32.totalorder %v1034, 0
    %v1037 = vxor.u32 %v1031, 2147483648
    %v1038 = vsel %vm1036, %v1030, %v1037
    %vm1039 = vcmp.eq.s32.totalorder %v1034, 2
    %v1040 = vxor.u32 %v1030, 2147483648
    %v1041 = vsel %vm1039, %v1040, %v1031
    %v1042 = vsel %vm1035, %v1038, %v1041
    %v1043 = vsel %vm1032, nan, %v1042
    %v1044 = vand.u32 2147483647, %v830
    %vm1045 = vcmp.le.f32.partialorder %v1044, 0.7853982
    %vm1046 = vcmp.lt.s32.totalorder %v830, 0
    %v1047 = vand.u32 %v830, 2139095040
    %v1048 = vshrl.u32 %v1047, 23
    %v1049 = vsub.s32 %v1048, 127
    %v1050 = vand.u32 2147483647, %v830
    %v1051 = vand.u32 %v1050, 8388607
    %v1052 = vor.u32 %v1051, 8388608
    %v1053 = vsub.s32 0, %v1052
    %v1054 = vadd.s32 %v1049, 1
    %vm1055 = vcmp.gt.s32.totalorder %v1054, 0
    %v1056 = vsel %vm1055, %v1054, 0
    %v1057 = vshrl.u32 %v1056, 5
    %v1058 = vand.u32 %v1056, 31
    %v1059 = vsub.s32 32, %v1058
    %v1060 = vshrl.u32 683565275, %v1059
    %v1061 = vshll.u32 683565275, %v1058
    %v1062 = vshrl.u32 2475754826, %v1059
    %v1063 = vor.u32 %v1061, %v1062
    %v1064 = vshll.u32 2475754826, %v1058
    %v1065 = vshrl.u32 2131351028, %v1059
    %v1066 = vor.u32 %v1064, %v1065
    %v1067 = vshll.u32 2131351028, %v1058
    %v1068 = vshrl.u32 2102212464, %v1059
    %v1069 = vor.u32 %v1067, %v1068
    %v1070 = vshll.u32 2102212464, %v1058
    %v1071 = vshrl.u32 920167782, %v1059
    %v1072 = vor.u32 %v1070, %v1071
    %v1073 = vshll.u32 920167782, %v1058
    %v1074 = vshrl.u32 1326507024, %v1059
    %v1075 = vor.u32 %v1073, %v1074
    %vm1076 = vcmp.lt.s32.totalorder %v1057, 1
    %vm1077 = vcmp.lt.s32.totalorder %v1057, 2
    %vm1078 = vcmp.lt.s32.totalorder %v1057, 3
    %vm1079 = vcmp.lt.s32.totalorder %v1057, 4
    %v1080 = vsel %vm1076, %v1060, %v1063
    %v1081 = vsel %vm1079, %v1069, 2102212464
    %v1082 = vsel %vm1078, %v1066, %v1081
    %v1083 = vsel %vm1077, %v1080, %v1082
    %v1084 = vsel %vm1076, %v1063, %v1066
    %v1085 = vsel %vm1079, %v1072, 920167782
    %v1086 = vsel %vm1078, %v1069, %v1085
    %v1087 = vsel %vm1077, %v1084, %v1086
    %v1088 = vsel %vm1076, %v1066, %v1069
    %v1089 = vsel %vm1079, %v1075, 1326507024
    %v1090 = vsel %vm1078, %v1072, %v1089
    %v1091 = vsel %vm1077, %v1088, %v1090
    %v1092 = vshll.u32 %v1052, 8
    %v1093 = vmul.u32.u64.compose %v1092, %v1091
    %v1094 = vextract.low.u32 %v1093
    %v1095 = vextract.high.u32 %v1093
    %v1096 = vmul.u32.u64.compose %v1092, %v1087
    %v1097 = vextract.low.u32 %v1096
    %v1098 = vextract.high.u32 %v1096
    %v1099 = vmul.u32 %v1092, %v1083
    %v1100 = vadd.s32 %v1095, %v1097
    %vm1101 = vc.u32 %v1095, %v1097
    %v1102 = vadd.s32 %v1098, 1
    %v1103 = vsel %vm1101, %v1102, %v1098
    %v1104 = vadd.s32 %v1099, %v1103
    %v1105 = vadd.s32 %v1104, 536870912
    %v1106 = vshrl.u32 %v1105, 30
    %v1107 = vshll.u32 %v1106, 30
    %v1108 = vsub.s32 %v1104, %v1107
    %vm1109 = vcmp.lt.s32.totalorder %v1108, 0
    %v1110 = vsub.s32 0, %v1108
    %v1111 = vsel %vm1109, %v1110, %v1108
    %v1112 = vclz %v1111
    %v1113 = vsub.s32 %v1112, 2
    %vm1114 = vcmp.gt.s32.totalorder 0, %v1113
    %v1115 = vsel %vm1114, 0, %v1113
    %v1116 = vsub.s32 32, %v1115
    %v1117 = vshll.u32 %v1108, %v1115
    %v1118 = vshrl.u32 %v1100, %v1116
    %v1119 = vor.u32 %v1117, %v1118
    %v1120 = vsub.s32 4294967266, %v1115
    %v1121 = vadd.s32 %v1120, 127
    %v1122 = vshll.u32 %v1121, 23
    %v1123 = vor.u32 4788187, %v1122
    %v1124 = vand.u32 2147483647, %v1123
    %v1126 = vcvt.s32.f32 %v1119
    %v1127 = vmul.f32 %v1126, %v1124
    %v1128 = vxor.u32 %v1127, 2147483648
    %v1129 = vsel %vm1046, %v1128, %v1127
    %v1130 = vsub.s32 4, %v1106
    %v1131 = vsel %vm1046, %v1130, %v1106
    %v1132 = vsel %vm1045, %v830, %v1129
    %v1133 = vsel %vm1045, 0, %v1131
    %v1134 = vcosq.f32.pop %v1132
    %v1135 = vsinq.f32.pop %v1132
    %vm1136 = vweird.f32 %v830
    %v1137 = vadd.s32 %v1133, 3
    %v1138 = vand.u32 %v1137, 3
    %vm1139 = vcmp.lt.s32.totalorder %v1138, 2
    %vm1140 = vcmp.eq.s32.totalorder %v1138, 0
    %v1141 = vxor.u32 %v1135, 2147483648
    %v1142 = vsel %vm1140, %v1134, %v1141
    %vm1143 = vcmp.eq.s32.totalorder %v1138, 2
    %v1144 = vxor.u32 %v1134, 2147483648
    %v1145 = vsel %vm1143, %v1144, %v1135
    %v1146 = vsel %vm1139, %v1142, %v1145
    %v1147 = vsel %vm1136, nan, %v1146
    %v1148 = vand.u32 2147483647, %v831
    %vm1149 = vcmp.le.f32.partialorder %v1148, 0.7853982
    %vm1150 = vcmp.lt.s32.totalorder %v831, 0
    %v1151 = vand.u32 %v831, 2139095040
    %v1152 = vshrl.u32 %v1151, 23
    %v1153 = vsub.s32 %v1152, 127
    %v1154 = vand.u32 2147483647, %v831
    %v1155 = vand.u32 %v1154, 8388607
    %v1156 = vor.u32 %v1155, 8388608
    %v1157 = vsub.s32 0, %v1156
    %v1158 = vadd.s32 %v1153, 1
    %vm1159 = vcmp.gt.s32.totalorder %v1158, 0
    %v1160 = vsel %vm1159, %v1158, 0
    %v1161 = vshrl.u32 %v1160, 5
    %v1162 = vand.u32 %v1160, 31
    %v1163 = vsub.s32 32, %v1162
    %v1164 = vshrl.u32 683565275, %v1163
    %v1165 = vshll.u32 683565275, %v1162
    %v1166 = vshrl.u32 2475754826, %v1163
    %v1167 = vor.u32 %v1165, %v1166
    %v1168 = vshll.u32 2475754826, %v1162
    %v1169 = vshrl.u32 2131351028, %v1163
    %v1170 = vor.u32 %v1168, %v1169
    %v1171 = vshll.u32 2131351028, %v1162
    %v1172 = vshrl.u32 2102212464, %v1163
    %v1173 = vor.u32 %v1171, %v1172
    %v1174 = vshll.u32 2102212464, %v1162
    %v1175 = vshrl.u32 920167782, %v1163
    %v1176 = vor.u32 %v1174, %v1175
    %v1177 = vshll.u32 920167782, %v1162
    %v1178 = vshrl.u32 1326507024, %v1163
    %v1179 = vor.u32 %v1177, %v1178
    %vm1180 = vcmp.lt.s32.totalorder %v1161, 1
    %vm1181 = vcmp.lt.s32.totalorder %v1161, 2
    %vm1182 = vcmp.lt.s32.totalorder %v1161, 3
    %vm1183 = vcmp.lt.s32.totalorder %v1161, 4
    %v1184 = vsel %vm1180, %v1164, %v1167
    %v1185 = vsel %vm1183, %v1173, 2102212464
    %v1186 = vsel %vm1182, %v1170, %v1185
    %v1187 = vsel %vm1181, %v1184, %v1186
    %v1188 = vsel %vm1180, %v1167, %v1170
    %v1189 = vsel %vm1183, %v1176, 920167782
    %v1190 = vsel %vm1182, %v1173, %v1189
    %v1191 = vsel %vm1181, %v1188, %v1190
    %v1192 = vsel %vm1180, %v1170, %v1173
    %v1193 = vsel %vm1183, %v1179, 1326507024
    %v1194 = vsel %vm1182, %v1176, %v1193
    %v1195 = vsel %vm1181, %v1192, %v1194
    %v1196 = vshll.u32 %v1156, 8
    %v1197 = vmul.u32.u64.compose %v1196, %v1195
    %v1198 = vextract.low.u32 %v1197
    %v1199 = vextract.high.u32 %v1197
    %v1200 = vmul.u32.u64.compose %v1196, %v1191
    %v1201 = vextract.low.u32 %v1200
    %v1202 = vextract.high.u32 %v1200
    %v1203 = vmul.u32 %v1196, %v1187
    %v1204 = vadd.s32 %v1199, %v1201
    %vm1205 = vc.u32 %v1199, %v1201
    %v1206 = vadd.s32 %v1202, 1
    %v1207 = vsel %vm1205, %v1206, %v1202
    %v1208 = vadd.s32 %v1203, %v1207
    %v1209 = vadd.s32 %v1208, 536870912
    %v1210 = vshrl.u32 %v1209, 30
    %v1211 = vshll.u32 %v1210, 30
    %v1212 = vsub.s32 %v1208, %v1211
    %vm1213 = vcmp.lt.s32.totalorder %v1212, 0
    %v1214 = vsub.s32 0, %v1212
    %v1215 = vsel %vm1213, %v1214, %v1212
    %v1216 = vclz %v1215
    %v1217 = vsub.s32 %v1216, 2
    %vm1218 = vcmp.gt.s32.totalorder 0, %v1217
    %v1219 = vsel %vm1218, 0, %v1217
    %v1220 = vsub.s32 32, %v1219
    %v1221 = vshll.u32 %v1212, %v1219
    %v1222 = vshrl.u32 %v1204, %v1220
    %v1223 = vor.u32 %v1221, %v1222
    %v1224 = vsub.s32 4294967266, %v1219
    %v1225 = vadd.s32 %v1224, 127
    %v1226 = vshll.u32 %v1225, 23
    %v1227 = vor.u32 4788187, %v1226
    %v1228 = vand.u32 2147483647, %v1227
    %v1230 = vcvt.s32.f32 %v1223
    %v1231 = vmul.f32 %v1230, %v1228
    %v1232 = vxor.u32 %v1231, 2147483648
    %v1233 = vsel %vm1150, %v1232, %v1231
    %v1234 = vsub.s32 4, %v1210
    %v1235 = vsel %vm1150, %v1234, %v1210
    %v1236 = vsel %vm1149, %v831, %v1233
    %v1237 = vsel %vm1149, 0, %v1235
    %v1238 = vcosq.f32.pop %v1236
    %v1239 = vsinq.f32.pop %v1236
    %vm1240 = vweird.f32 %v831
    %v1241 = vadd.s32 %v1237, 3
    %v1242 = vand.u32 %v1241, 3
    %vm1243 = vcmp.lt.s32.totalorder %v1242, 2
    %vm1244 = vcmp.eq.s32.totalorder %v1242, 0
    %v1245 = vxor.u32 %v1239, 2147483648
    %v1246 = vsel %vm1244, %v1238, %v1245
    %vm1247 = vcmp.eq.s32.totalorder %v1242, 2
    %v1248 = vxor.u32 %v1238, 2147483648
    %v1249 = vsel %vm1247, %v1248, %v1239
    %v1250 = vsel %vm1243, %v1246, %v1249
    %v1251 = vsel %vm1240, nan, %v1250
    %v1252 = vand.u32 2147483647, %v832
    %vm1253 = vcmp.le.f32.partialorder %v1252, 0.7853982
    %vm1254 = vcmp.lt.s32.totalorder %v832, 0
    %v1255 = vand.u32 %v832, 2139095040
    %v1256 = vshrl.u32 %v1255, 23
    %v1257 = vsub.s32 %v1256, 127
    %v1258 = vand.u32 2147483647, %v832
    %v1259 = vand.u32 %v1258, 8388607
    %v1260 = vor.u32 %v1259, 8388608
    %v1261 = vsub.s32 0, %v1260
    %v1262 = vadd.s32 %v1257, 1
    %vm1263 = vcmp.gt.s32.totalorder %v1262, 0
    %v1264 = vsel %vm1263, %v1262, 0
    %v1265 = vshrl.u32 %v1264, 5
    %v1266 = vand.u32 %v1264, 31
    %v1267 = vsub.s32 32, %v1266
    %v1268 = vshrl.u32 683565275, %v1267
    %v1269 = vshll.u32 683565275, %v1266
    %v1270 = vshrl.u32 2475754826, %v1267
    %v1271 = vor.u32 %v1269, %v1270
    %v1272 = vshll.u32 2475754826, %v1266
    %v1273 = vshrl.u32 2131351028, %v1267
    %v1274 = vor.u32 %v1272, %v1273
    %v1275 = vshll.u32 2131351028, %v1266
    %v1276 = vshrl.u32 2102212464, %v1267
    %v1277 = vor.u32 %v1275, %v1276
    %v1278 = vshll.u32 2102212464, %v1266
    %v1279 = vshrl.u32 920167782, %v1267
    %v1280 = vor.u32 %v1278, %v1279
    %v1281 = vshll.u32 920167782, %v1266
    %v1282 = vshrl.u32 1326507024, %v1267
    %v1283 = vor.u32 %v1281, %v1282
    %vm1284 = vcmp.lt.s32.totalorder %v1265, 1
    %vm1285 = vcmp.lt.s32.totalorder %v1265, 2
    %vm1286 = vcmp.lt.s32.totalorder %v1265, 3
    %vm1287 = vcmp.lt.s32.totalorder %v1265, 4
    %v1288 = vsel %vm1284, %v1268, %v1271
    %v1289 = vsel %vm1287, %v1277, 2102212464
    %v1290 = vsel %vm1286, %v1274, %v1289
    %v1291 = vsel %vm1285, %v1288, %v1290
    %v1292 = vsel %vm1284, %v1271, %v1274
    %v1293 = vsel %vm1287, %v1280, 920167782
    %v1294 = vsel %vm1286, %v1277, %v1293
    %v1295 = vsel %vm1285, %v1292, %v1294
    %v1296 = vsel %vm1284, %v1274, %v1277
    %v1297 = vsel %vm1287, %v1283, 1326507024
    %v1298 = vsel %vm1286, %v1280, %v1297
    %v1299 = vsel %vm1285, %v1296, %v1298
    %v1300 = vshll.u32 %v1260, 8
    %v1301 = vmul.u32.u64.compose %v1300, %v1299
    %v1302 = vextract.low.u32 %v1301
    %v1303 = vextract.high.u32 %v1301
    %v1304 = vmul.u32.u64.compose %v1300, %v1295
    %v1305 = vextract.low.u32 %v1304
    %v1306 = vextract.high.u32 %v1304
    %v1307 = vmul.u32 %v1300, %v1291
    %v1308 = vadd.s32 %v1303, %v1305
    %vm1309 = vc.u32 %v1303, %v1305
    %v1310 = vadd.s32 %v1306, 1
    %v1311 = vsel %vm1309, %v1310, %v1306
    %v1312 = vadd.s32 %v1307, %v1311
    %v1313 = vadd.s32 %v1312, 536870912
    %v1314 = vshrl.u32 %v1313, 30
    %v1315 = vshll.u32 %v1314, 30
    %v1316 = vsub.s32 %v1312, %v1315
    %vm1317 = vcmp.lt.s32.totalorder %v1316, 0
    %v1318 = vsub.s32 0, %v1316
    %v1319 = vsel %vm1317, %v1318, %v1316
    %v1320 = vclz %v1319
    %v1321 = vsub.s32 %v1320, 2
    %vm1322 = vcmp.gt.s32.totalorder 0, %v1321
    %v1323 = vsel %vm1322, 0, %v1321
    %v1324 = vsub.s32 32, %v1323
    %v1325 = vshll.u32 %v1316, %v1323
    %v1326 = vshrl.u32 %v1308, %v1324
    %v1327 = vor.u32 %v1325, %v1326
    %v1328 = vsub.s32 4294967266, %v1323
    %v1329 = vadd.s32 %v1328, 127
    %v1330 = vshll.u32 %v1329, 23
    %v1331 = vor.u32 4788187, %v1330
    %v1332 = vand.u32 2147483647, %v1331
    %v1334 = vcvt.s32.f32 %v1327
    %v1335 = vmul.f32 %v1334, %v1332
    %v1336 = vxor.u32 %v1335, 2147483648
    %v1337 = vsel %vm1254, %v1336, %v1335
    %v1338 = vsub.s32 4, %v1314
    %v1339 = vsel %vm1254, %v1338, %v1314
    %v1340 = vsel %vm1253, %v832, %v1337
    %v1341 = vsel %vm1253, 0, %v1339
    %v1342 = vcosq.f32.pop %v1340
    %v1343 = vsinq.f32.pop %v1340
    %vm1344 = vweird.f32 %v832
    %v1345 = vadd.s32 %v1341, 3
    %v1346 = vand.u32 %v1345, 3
    %vm1347 = vcmp.lt.s32.totalorder %v1346, 2
    %vm1348 = vcmp.eq.s32.totalorder %v1346, 0
    %v1349 = vxor.u32 %v1343, 2147483648
    %v1350 = vsel %vm1348, %v1342, %v1349
    %vm1351 = vcmp.eq.s32.totalorder %v1346, 2
    %v1352 = vxor.u32 %v1342, 2147483648
    %v1353 = vsel %vm1351, %v1352, %v1343
    %v1354 = vsel %vm1347, %v1350, %v1353
    %v1355 = vsel %vm1344, nan, %v1354
    %v1356 = vand.u32 2147483647, %v833
    %vm1357 = vcmp.le.f32.partialorder %v1356, 0.7853982
    %vm1358 = vcmp.lt.s32.totalorder %v833, 0
    %v1359 = vand.u32 %v833, 2139095040
    %v1360 = vshrl.u32 %v1359, 23
    %v1361 = vsub.s32 %v1360, 127
    %v1362 = vand.u32 2147483647, %v833
    %v1363 = vand.u32 %v1362, 8388607
    %v1364 = vor.u32 %v1363, 8388608
    %v1365 = vsub.s32 0, %v1364
    %v1366 = vadd.s32 %v1361, 1
    %vm1367 = vcmp.gt.s32.totalorder %v1366, 0
    %v1368 = vsel %vm1367, %v1366, 0
    %v1369 = vshrl.u32 %v1368, 5
    %v1370 = vand.u32 %v1368, 31
    %v1371 = vsub.s32 32, %v1370
    %v1372 = vshrl.u32 683565275, %v1371
    %v1373 = vshll.u32 683565275, %v1370
    %v1374 = vshrl.u32 2475754826, %v1371
    %v1375 = vor.u32 %v1373, %v1374
    %v1376 = vshll.u32 2475754826, %v1370
    %v1377 = vshrl.u32 2131351028, %v1371
    %v1378 = vor.u32 %v1376, %v1377
    %v1379 = vshll.u32 2131351028, %v1370
    %v1380 = vshrl.u32 2102212464, %v1371
    %v1381 = vor.u32 %v1379, %v1380
    %v1382 = vshll.u32 2102212464, %v1370
    %v1383 = vshrl.u32 920167782, %v1371
    %v1384 = vor.u32 %v1382, %v1383
    %v1385 = vshll.u32 920167782, %v1370
    %v1386 = vshrl.u32 1326507024, %v1371
    %v1387 = vor.u32 %v1385, %v1386
    %vm1388 = vcmp.lt.s32.totalorder %v1369, 1
    %vm1389 = vcmp.lt.s32.totalorder %v1369, 2
    %vm1390 = vcmp.lt.s32.totalorder %v1369, 3
    %vm1391 = vcmp.lt.s32.totalorder %v1369, 4
    %v1392 = vsel %vm1388, %v1372, %v1375
    %v1393 = vsel %vm1391, %v1381, 2102212464
    %v1394 = vsel %vm1390, %v1378, %v1393
    %v1395 = vsel %vm1389, %v1392, %v1394
    %v1396 = vsel %vm1388, %v1375, %v1378
    %v1397 = vsel %vm1391, %v1384, 920167782
    %v1398 = vsel %vm1390, %v1381, %v1397
    %v1399 = vsel %vm1389, %v1396, %v1398
    %v1400 = vsel %vm1388, %v1378, %v1381
    %v1401 = vsel %vm1391, %v1387, 1326507024
    %v1402 = vsel %vm1390, %v1384, %v1401
    %v1403 = vsel %vm1389, %v1400, %v1402
    %v1404 = vshll.u32 %v1364, 8
    %v1405 = vmul.u32.u64.compose %v1404, %v1403
    %v1406 = vextract.low.u32 %v1405
    %v1407 = vextract.high.u32 %v1405
    %v1408 = vmul.u32.u64.compose %v1404, %v1399
    %v1409 = vextract.low.u32 %v1408
    %v1410 = vextract.high.u32 %v1408
    %v1411 = vmul.u32 %v1404, %v1395
    %v1412 = vadd.s32 %v1407, %v1409
    %vm1413 = vc.u32 %v1407, %v1409
    %v1414 = vadd.s32 %v1410, 1
    %v1415 = vsel %vm1413, %v1414, %v1410
    %v1416 = vadd.s32 %v1411, %v1415
    %v1417 = vadd.s32 %v1416, 536870912
    %v1418 = vshrl.u32 %v1417, 30
    %v1419 = vshll.u32 %v1418, 30
    %v1420 = vsub.s32 %v1416, %v1419
    %vm1421 = vcmp.lt.s32.totalorder %v1420, 0
    %v1422 = vsub.s32 0, %v1420
    %v1423 = vsel %vm1421, %v1422, %v1420
    %v1424 = vclz %v1423
    %v1425 = vsub.s32 %v1424, 2
    %vm1426 = vcmp.gt.s32.totalorder 0, %v1425
    %v1427 = vsel %vm1426, 0, %v1425
    %v1428 = vsub.s32 32, %v1427
    %v1429 = vshll.u32 %v1420, %v1427
    %v1430 = vshrl.u32 %v1412, %v1428
    %v1431 = vor.u32 %v1429, %v1430
    %v1432 = vsub.s32 4294967266, %v1427
    %v1433 = vadd.s32 %v1432, 127
    %v1434 = vshll.u32 %v1433, 23
    %v1435 = vor.u32 4788187, %v1434
    %v1436 = vand.u32 2147483647, %v1435
    %v1438 = vcvt.s32.f32 %v1431
    %v1439 = vmul.f32 %v1438, %v1436
    %v1440 = vxor.u32 %v1439, 2147483648
    %v1441 = vsel %vm1358, %v1440, %v1439
    %v1442 = vsub.s32 4, %v1418
    %v1443 = vsel %vm1358, %v1442, %v1418
    %v1444 = vsel %vm1357, %v833, %v1441
    %v1445 = vsel %vm1357, 0, %v1443
    %v1446 = vcosq.f32.pop %v1444
    %v1447 = vsinq.f32.pop %v1444
    %vm1448 = vweird.f32 %v833
    %v1449 = vadd.s32 %v1445, 3
    %v1450 = vand.u32 %v1449, 3
    %vm1451 = vcmp.lt.s32.totalorder %v1450, 2
    %vm1452 = vcmp.eq.s32.totalorder %v1450, 0
    %v1453 = vxor.u32 %v1447, 2147483648
    %v1454 = vsel %vm1452, %v1446, %v1453
    %vm1455 = vcmp.eq.s32.totalorder %v1450, 2
    %v1456 = vxor.u32 %v1446, 2147483648
    %v1457 = vsel %vm1455, %v1456, %v1447
    %v1458 = vsel %vm1451, %v1454, %v1457
    %v1459 = vsel %vm1448, nan, %v1458
    %v1460 = vand.u32 2147483647, %v834
    %vm1461 = vcmp.le.f32.partialorder %v1460, 0.7853982
    %vm1462 = vcmp.lt.s32.totalorder %v834, 0
    %v1463 = vand.u32 %v834, 2139095040
    %v1464 = vshrl.u32 %v1463, 23
    %v1465 = vsub.s32 %v1464, 127
    %v1466 = vand.u32 2147483647, %v834
    %v1467 = vand.u32 %v1466, 8388607
    %v1468 = vor.u32 %v1467, 8388608
    %v1469 = vsub.s32 0, %v1468
    %v1470 = vadd.s32 %v1465, 1
    %vm1471 = vcmp.gt.s32.totalorder %v1470, 0
    %v1472 = vsel %vm1471, %v1470, 0
    %v1473 = vshrl.u32 %v1472, 5
    %v1474 = vand.u32 %v1472, 31
    %v1475 = vsub.s32 32, %v1474
    %v1476 = vshrl.u32 683565275, %v1475
    %v1477 = vshll.u32 683565275, %v1474
    %v1478 = vshrl.u32 2475754826, %v1475
    %v1479 = vor.u32 %v1477, %v1478
    %v1480 = vshll.u32 2475754826, %v1474
    %v1481 = vshrl.u32 2131351028, %v1475
    %v1482 = vor.u32 %v1480, %v1481
    %v1483 = vshll.u32 2131351028, %v1474
    %v1484 = vshrl.u32 2102212464, %v1475
    %v1485 = vor.u32 %v1483, %v1484
    %v1486 = vshll.u32 2102212464, %v1474
    %v1487 = vshrl.u32 920167782, %v1475
    %v1488 = vor.u32 %v1486, %v1487
    %v1489 = vshll.u32 920167782, %v1474
    %v1490 = vshrl.u32 1326507024, %v1475
    %v1491 = vor.u32 %v1489, %v1490
    %vm1492 = vcmp.lt.s32.totalorder %v1473, 1
    %vm1493 = vcmp.lt.s32.totalorder %v1473, 2
    %vm1494 = vcmp.lt.s32.totalorder %v1473, 3
    %vm1495 = vcmp.lt.s32.totalorder %v1473, 4
    %v1496 = vsel %vm1492, %v1476, %v1479
    %v1497 = vsel %vm1495, %v1485, 2102212464
    %v1498 = vsel %vm1494, %v1482, %v1497
    %v1499 = vsel %vm1493, %v1496, %v1498
    %v1500 = vsel %vm1492, %v1479, %v1482
    %v1501 = vsel %vm1495, %v1488, 920167782
    %v1502 = vsel %vm1494, %v1485, %v1501
    %v1503 = vsel %vm1493, %v1500, %v1502
    %v1504 = vsel %vm1492, %v1482, %v1485
    %v1505 = vsel %vm1495, %v1491, 1326507024
    %v1506 = vsel %vm1494, %v1488, %v1505
    %v1507 = vsel %vm1493, %v1504, %v1506
    %v1508 = vshll.u32 %v1468, 8
    %v1509 = vmul.u32.u64.compose %v1508, %v1507
    %v1510 = vextract.low.u32 %v1509
    %v1511 = vextract.high.u32 %v1509
    %v1512 = vmul.u32.u64.compose %v1508, %v1503
    %v1513 = vextract.low.u32 %v1512
    %v1514 = vextract.high.u32 %v1512
    %v1515 = vmul.u32 %v1508, %v1499
    %v1516 = vadd.s32 %v1511, %v1513
    %vm1517 = vc.u32 %v1511, %v1513
    %v1518 = vadd.s32 %v1514, 1
    %v1519 = vsel %vm1517, %v1518, %v1514
    %v1520 = vadd.s32 %v1515, %v1519
    %v1521 = vadd.s32 %v1520, 536870912
    %v1522 = vshrl.u32 %v1521, 30
    %v1523 = vshll.u32 %v1522, 30
    %v1524 = vsub.s32 %v1520, %v1523
    %vm1525 = vcmp.lt.s32.totalorder %v1524, 0
    %v1526 = vsub.s32 0, %v1524
    %v1527 = vsel %vm1525, %v1526, %v1524
    %v1528 = vclz %v1527
    %v1529 = vsub.s32 %v1528, 2
    %vm1530 = vcmp.gt.s32.totalorder 0, %v1529
    %v1531 = vsel %vm1530, 0, %v1529
    %v1532 = vsub.s32 32, %v1531
    %v1533 = vshll.u32 %v1524, %v1531
    %v1534 = vshrl.u32 %v1516, %v1532
    %v1535 = vor.u32 %v1533, %v1534
    %v1536 = vsub.s32 4294967266, %v1531
    %v1537 = vadd.s32 %v1536, 127
    %v1538 = vshll.u32 %v1537, 23
    %v1539 = vor.u32 4788187, %v1538
    %v1540 = vand.u32 2147483647, %v1539
    %v1542 = vcvt.s32.f32 %v1535
    %v1543 = vmul.f32 %v1542, %v1540
    %v1544 = vxor.u32 %v1543, 2147483648
    %v1545 = vsel %vm1462, %v1544, %v1543
    %v1546 = vsub.s32 4, %v1522
    %v1547 = vsel %vm1462, %v1546, %v1522
    %v1548 = vsel %vm1461, %v834, %v1545
    %v1549 = vsel %vm1461, 0, %v1547
    %v1550 = vcosq.f32.pop %v1548
    %v1551 = vsinq.f32.pop %v1548
    %vm1552 = vweird.f32 %v834
    %v1553 = vadd.s32 %v1549, 3
    %v1554 = vand.u32 %v1553, 3
    %vm1555 = vcmp.lt.s32.totalorder %v1554, 2
    %vm1556 = vcmp.eq.s32.totalorder %v1554, 0
    %v1557 = vxor.u32 %v1551, 2147483648
    %v1558 = vsel %vm1556, %v1550, %v1557
    %vm1559 = vcmp.eq.s32.totalorder %v1554, 2
    %v1560 = vxor.u32 %v1550, 2147483648
    %v1561 = vsel %vm1559, %v1560, %v1551
    %v1562 = vsel %vm1555, %v1558, %v1561
    %v1563 = vsel %vm1552, nan, %v1562
    %v1564 = vand.u32 2147483647, %v835
    %vm1565 = vcmp.le.f32.partialorder %v1564, 0.7853982
    %vm1566 = vcmp.lt.s32.totalorder %v835, 0
    %v1567 = vand.u32 %v835, 2139095040
    %v1568 = vshrl.u32 %v1567, 23
    %v1569 = vsub.s32 %v1568, 127
    %v1570 = vand.u32 2147483647, %v835
    %v1571 = vand.u32 %v1570, 8388607
    %v1572 = vor.u32 %v1571, 8388608
    %v1573 = vsub.s32 0, %v1572
    %v1574 = vadd.s32 %v1569, 1
    %vm1575 = vcmp.gt.s32.totalorder %v1574, 0
    %v1576 = vsel %vm1575, %v1574, 0
    %v1577 = vshrl.u32 %v1576, 5
    %v1578 = vand.u32 %v1576, 31
    %v1579 = vsub.s32 32, %v1578
    %v1580 = vshrl.u32 683565275, %v1579
    %v1581 = vshll.u32 683565275, %v1578
    %v1582 = vshrl.u32 2475754826, %v1579
    %v1583 = vor.u32 %v1581, %v1582
    %v1584 = vshll.u32 2475754826, %v1578
    %v1585 = vshrl.u32 2131351028, %v1579
    %v1586 = vor.u32 %v1584, %v1585
    %v1587 = vshll.u32 2131351028, %v1578
    %v1588 = vshrl.u32 2102212464, %v1579
    %v1589 = vor.u32 %v1587, %v1588
    %v1590 = vshll.u32 2102212464, %v1578
    %v1591 = vshrl.u32 920167782, %v1579
    %v1592 = vor.u32 %v1590, %v1591
    %v1593 = vshll.u32 920167782, %v1578
    %v1594 = vshrl.u32 1326507024, %v1579
    %v1595 = vor.u32 %v1593, %v1594
    %vm1596 = vcmp.lt.s32.totalorder %v1577, 1
    %vm1597 = vcmp.lt.s32.totalorder %v1577, 2
    %vm1598 = vcmp.lt.s32.totalorder %v1577, 3
    %vm1599 = vcmp.lt.s32.totalorder %v1577, 4
    %v1600 = vsel %vm1596, %v1580, %v1583
    %v1601 = vsel %vm1599, %v1589, 2102212464
    %v1602 = vsel %vm1598, %v1586, %v1601
    %v1603 = vsel %vm1597, %v1600, %v1602
    %v1604 = vsel %vm1596, %v1583, %v1586
    %v1605 = vsel %vm1599, %v1592, 920167782
    %v1606 = vsel %vm1598, %v1589, %v1605
    %v1607 = vsel %vm1597, %v1604, %v1606
    %v1608 = vsel %vm1596, %v1586, %v1589
    %v1609 = vsel %vm1599, %v1595, 1326507024
    %v1610 = vsel %vm1598, %v1592, %v1609
    %v1611 = vsel %vm1597, %v1608, %v1610
    %v1612 = vshll.u32 %v1572, 8
    %v1613 = vmul.u32.u64.compose %v1612, %v1611
    %v1614 = vextract.low.u32 %v1613
    %v1615 = vextract.high.u32 %v1613
    %v1616 = vmul.u32.u64.compose %v1612, %v1607
    %v1617 = vextract.low.u32 %v1616
    %v1618 = vextract.high.u32 %v1616
    %v1619 = vmul.u32 %v1612, %v1603
    %v1620 = vadd.s32 %v1615, %v1617
    %vm1621 = vc.u32 %v1615, %v1617
    %v1622 = vadd.s32 %v1618, 1
    %v1623 = vsel %vm1621, %v1622, %v1618
    %v1624 = vadd.s32 %v1619, %v1623
    %v1625 = vadd.s32 %v1624, 536870912
    %v1626 = vshrl.u32 %v1625, 30
    %v1627 = vshll.u32 %v1626, 30
    %v1628 = vsub.s32 %v1624, %v1627
    %vm1629 = vcmp.lt.s32.totalorder %v1628, 0
    %v1630 = vsub.s32 0, %v1628
    %v1631 = vsel %vm1629, %v1630, %v1628
    %v1632 = vclz %v1631
    %v1633 = vsub.s32 %v1632, 2
    %vm1634 = vcmp.gt.s32.totalorder 0, %v1633
    %v1635 = vsel %vm1634, 0, %v1633
    %v1636 = vsub.s32 32, %v1635
    %v1637 = vshll.u32 %v1628, %v1635
    %v1638 = vshrl.u32 %v1620, %v1636
    %v1639 = vor.u32 %v1637, %v1638
    %v1640 = vsub.s32 4294967266, %v1635
    %v1641 = vadd.s32 %v1640, 127
    %v1642 = vshll.u32 %v1641, 23
    %v1643 = vor.u32 4788187, %v1642
    %v1644 = vand.u32 2147483647, %v1643
    %v1646 = vcvt.s32.f32 %v1639
    %v1647 = vmul.f32 %v1646, %v1644
    %v1648 = vxor.u32 %v1647, 2147483648
    %v1649 = vsel %vm1566, %v1648, %v1647
    %v1650 = vsub.s32 4, %v1626
    %v1651 = vsel %vm1566, %v1650, %v1626
    %v1652 = vsel %vm1565, %v835, %v1649
    %v1653 = vsel %vm1565, 0, %v1651
    %v1654 = vcosq.f32.pop %v1652
    %v1655 = vsinq.f32.pop %v1652
    %vm1656 = vweird.f32 %v835
    %v1657 = vadd.s32 %v1653, 3
    %v1658 = vand.u32 %v1657, 3
    %vm1659 = vcmp.lt.s32.totalorder %v1658, 2
    %vm1660 = vcmp.eq.s32.totalorder %v1658, 0
    %v1661 = vxor.u32 %v1655, 2147483648
    %v1662 = vsel %vm1660, %v1654, %v1661
    %vm1663 = vcmp.eq.s32.totalorder %v1658, 2
    %v1664 = vxor.u32 %v1654, 2147483648
    %v1665 = vsel %vm1663, %v1664, %v1655
    %v1666 = vsel %vm1659, %v1662, %v1665
    %v1667 = vsel %vm1656, nan, %v1666
    %v1668 = vadd.f32 %v804, %v939
    %v1669 = vadd.f32 %v805, %v1043
    %v1670 = vadd.f32 %v806, %v1147
    %v1671 = vadd.f32 %v807, %v1251
    %v1672 = vadd.f32 %v808, %v1355
    %v1673 = vadd.f32 %v809, %v1459
    %v1674 = vadd.f32 %v810, %v1563
    %v1675 = vadd.f32 %v811, %v1667
    %v1676 = vadd.f32 %v341, %v475
    %v1677 = vadd.f32 %v346, %v480
    %v1678 = vadd.f32 %v351, %v485
    %v1679 = vadd.f32 %v356, %v490
    %v1680 = vadd.f32 %v361, %v495
    %v1681 = vadd.f32 %v366, %v500
    %v1682 = vadd.f32 %v371, %v505
    %v1683 = vadd.f32 %v376, %v510
    %v1684 = vadd.f32 %v1676, %v1668
    %v1685 = vadd.f32 %v1677, %v1669
    %v1686 = vadd.f32 %v1678, %v1670
    %v1687 = vadd.f32 %v1679, %v1671
    %v1688 = vadd.f32 %v1680, %v1672
    %v1689 = vadd.f32 %v1681, %v1673
    %v1690 = vadd.f32 %v1682, %v1674
    %v1691 = vadd.f32 %v1683, %v1675
    %vm1692 = vcmask 261120
    %v1694 = vsel %vm1692, %v475, 0
    %v1697 = vsel %vm1692, %v480, 0
    %v1700 = vsel %vm1692, %v485, 0
    %v1703 = vsel %vm1692, %v490, 0
    %v1706 = vsel %vm1692, %v495, 0
    %v1709 = vsel %vm1692, %v500, 0
    %v1712 = vsel %vm1692, %v505, 0
    %v1715 = vsel %vm1692, %v510, 0
    %1717 = vmatprep.subr.mxu0 0.0
    %1718 = vmatpush1.msra.mxu0 %v62
    %1719 = vmatprep.subr.mxu0 0.0
    %1720 = vmatpush1.msra.mxu0 %v63
    %1721 = vmatprep.subr.mxu0 0.0
    %1722 = vmatpush1.msra.mxu0 %v64
    %1723 = vmatprep.subr.mxu0 0.0
    %1724 = vmatpush1.msra.mxu0 %v65
    %1725 = vmatprep.subr.mxu0 0.0
    %1726 = vmatpush1.msra.mxu0 0.0
    %1727 = vmatprep.subr.mxu0 0.0
    %1728 = vmatpush1.msra.mxu0 0.0
    %1729 = vmatprep.subr.mxu0 0.0
    %1730 = vmatpush1.msra.mxu0 0.0
    %1731 = vmatprep.subr.mxu0 0.0
    %1732 = vmatpush1.msra.mxu0 0.0
    %1733 = vmatprep.subr.mxu0 0.0
    %1734 = vmatpush1.msra.mxu0 0.0
    %1735 = vmatprep.subr.mxu0 0.0
    %1736 = vmatpush1.msra.mxu0 0.0
    %1737 = vmatprep.subr.mxu0 0.0
    %1738 = vmatpush1.msra.mxu0 0.0
    %1739 = vmatprep.subr.mxu0 0.0
    %1740 = vmatpush1.msra.mxu0 0.0
    %1741 = vmatprep.subr.mxu0 0.0
    %1742 = vmatpush1.msra.mxu0 0.0
    %1743 = vmatprep.subr.mxu0 0.0
    %1744 = vmatpush1.msra.mxu0 0.0
    %1745 = vmatprep.subr.mxu0 0.0
    %1746 = vmatpush1.msra.mxu0 0.0
    %1747 = vmatprep.subr.mxu0 0.0
    %1748 = vmatpush1.msra.mxu0 0.0
    %1749 = vmatprep.subr.mxu0 0.0
    %1750 = vmatpush1.msra.mxu0 0.0
    %1751 = vmatprep.subr.mxu0 0.0
    %1752 = vmatpush1.msra.mxu0 0.0
    %1753 = vmatprep.subr.mxu0 0.0
    %1754 = vmatpush1.msra.mxu0 0.0
    %1755 = vmatprep.subr.mxu0 0.0
    %1756 = vmatpush1.msra.mxu0 0.0
    %1757 = vmatprep.subr.mxu0 0.0
    %1758 = vmatpush1.msra.mxu0 0.0
    %1759 = vmatprep.subr.mxu0 0.0
    %1760 = vmatpush1.msra.mxu0 0.0
    %1761 = vmatprep.subr.mxu0 0.0
    %1762 = vmatpush1.msra.mxu0 0.0
    %1763 = vmatprep.subr.mxu0 0.0
    %1764 = vmatpush1.msra.mxu0 0.0
    %1765 = vmatprep.subr.mxu0 0.0
    %1766 = vmatpush1.msra.mxu0 0.0
    %1767 = vmatprep.subr.mxu0 0.0
    %1768 = vmatpush1.msra.mxu0 0.0
    %1769 = vmatprep.subr.mxu0 0.0
    %1770 = vmatpush1.msra.mxu0 0.0
    %1771 = vmatprep.subr.mxu0 0.0
    %1772 = vmatpush1.msra.mxu0 0.0
    %1773 = vmatprep.subr.mxu0 0.0
    %1774 = vmatpush1.msra.mxu0 0.0
    %1775 = vmatprep.subr.mxu0 0.0
    %1776 = vmatpush1.msra.mxu0 0.0
    %1777 = vmatprep.subr.mxu0 0.0
    %1778 = vmatpush1.msra.mxu0 0.0
    %1779 = vmatprep.subr.mxu0 0.0
    %1780 = vmatpush1.msra.mxu0 0.0
    %1781 = vmatprep.mubr.f32.mxu0 0.0
    %1782 = vmatmul.mubr.f32.gmra.mrb[0].mxu0 %v1694
    %v1783 = vpop.f32.mrb[0].mxu0
    %v1784 = vadd.f32 0.0, %v1783
    %v1785 = vpop.f32.mrb[0].mxu0
    %1786 = vmatprep.mubr.f32.mxu0 0.0
    %1787 = vmatmul.mubr.f32.gmra.mrb[0].mxu0 %v1697
    %v1788 = vpop.f32.mrb[0].mxu0
    %v1789 = vadd.f32 0.0, %v1788
    %v1790 = vpop.f32.mrb[0].mxu0
    %1791 = vmatprep.mubr.f32.mxu0 0.0
    %1792 = vmatmul.mubr.f32.gmra.mrb[0].mxu0 %v1700
    %v1793 = vpop.f32.mrb[0].mxu0
    %v1794 = vadd.f32 0.0, %v1793
    %v1795 = vpop.f32.mrb[0].mxu0
    %1796 = vmatprep.mubr.f32.mxu0 0.0
    %1797 = vmatmul.mubr.f32.gmra.mrb[0].mxu0 %v1703
    %v1798 = vpop.f32.mrb[0].mxu0
    %v1799 = vadd.f32 0.0, %v1798
    %v1800 = vpop.f32.mrb[0].mxu0
    %1801 = vmatprep.mubr.f32.mxu0 0.0
    %1802 = vmatmul.mubr.f32.gmra.mrb[0].mxu0 %v1706
    %v1803 = vpop.f32.mrb[0].mxu0
    %v1804 = vadd.f32 0.0, %v1803
    %v1805 = vpop.f32.mrb[0].mxu0
    %1806 = vmatprep.mubr.f32.mxu0 0.0
    %1807 = vmatmul.mubr.f32.gmra.mrb[0].mxu0 %v1709
    %v1808 = vpop.f32.mrb[0].mxu0
    %v1809 = vadd.f32 0.0, %v1808
    %v1810 = vpop.f32.mrb[0].mxu0
    %1811 = vmatprep.mubr.f32.mxu0 0.0
    %1812 = vmatmul.mubr.f32.gmra.mrb[0].mxu0 %v1712
    %v1813 = vpop.f32.mrb[0].mxu0
    %v1814 = vadd.f32 0.0, %v1813
    %v1815 = vpop.f32.mrb[0].mxu0
    %1816 = vmatprep.mubr.f32.mxu0 0.0
    %1817 = vmatmul.mubr.f32.gmra.mrb[0].mxu0 %v1715
    %v1818 = vpop.f32.mrb[0].mxu0
    %v1819 = vadd.f32 0.0, %v1818
    %v1820 = vpop.f32.mrb[0].mxu0
    %1821 = vdwg.mxu0
    %v1823 = vsel %vm1692, %v341, 0
    %v1826 = vsel %vm1692, %v346, 0
    %v1829 = vsel %vm1692, %v351, 0
    %v1832 = vsel %vm1692, %v356, 0
    %v1835 = vsel %vm1692, %v361, 0
    %v1838 = vsel %vm1692, %v366, 0
    %v1841 = vsel %vm1692, %v371, 0
    %v1844 = vsel %vm1692, %v376, 0
    %1846 = vmatprep.subr.mxu0 0.0
    %1847 = vmatpush1.msra.mxu0 %v58
    %1848 = vmatprep.subr.mxu0 0.0
    %1849 = vmatpush1.msra.mxu0 %v59
    %1850 = vmatprep.subr.mxu0 0.0
    %1851 = vmatpush1.msra.mxu0 %v60
    %1852 = vmatprep.subr.mxu0 0.0
    %1853 = vmatpush1.msra.mxu0 %v61
    %1854 = vmatprep.subr.mxu0 0.0
    %1855 = vmatpush1.msra.mxu0 0.0
    %1856 = vmatprep.subr.mxu0 0.0
    %1857 = vmatpush1.msra.mxu0 0.0
    %1858 = vmatprep.subr.mxu0 0.0
    %1859 = vmatpush1.msra.mxu0 0.0
    %1860 = vmatprep.subr.mxu0 0.0
    %1861 = vmatpush1.msra.mxu0 0.0
    %1862 = vmatprep.subr.mxu0 0.0
    %1863 = vmatpush1.msra.mxu0 0.0
    %1864 = vmatprep.subr.mxu0 0.0
    %1865 = vmatpush1.msra.mxu0 0.0
    %1866 = vmatprep.subr.mxu0 0.0
    %1867 = vmatpush1.msra.mxu0 0.0
    %1868 = vmatprep.subr.mxu0 0.0
    %1869 = vmatpush1.msra.mxu0 0.0
    %1870 = vmatprep.subr.mxu0 0.0
    %1871 = vmatpush1.msra.mxu0 0.0
    %1872 = vmatprep.subr.mxu0 0.0
    %1873 = vmatpush1.msra.mxu0 0.0
    %1874 = vmatprep.subr.mxu0 0.0
    %1875 = vmatpush1.msra.mxu0 0.0
    %1876 = vmatprep.subr.mxu0 0.0
    %1877 = vmatpush1.msra.mxu0 0.0
    %1878 = vmatprep.subr.mxu0 0.0
    %1879 = vmatpush1.msra.mxu0 0.0
    %1880 = vmatprep.subr.mxu0 0.0
    %1881 = vmatpush1.msra.mxu0 0.0
    %1882 = vmatprep.subr.mxu0 0.0
    %1883 = vmatpush1.msra.mxu0 0.0
    %1884 = vmatprep.subr.mxu0 0.0
    %1885 = vmatpush1.msra.mxu0 0.0
    %1886 = vmatprep.subr.mxu0 0.0
    %1887 = vmatpush1.msra.mxu0 0.0
    %1888 = vmatprep.subr.mxu0 0.0
    %1889 = vmatpush1.msra.mxu0 0.0
    %1890 = vmatprep.subr.mxu0 0.0
    %1891 = vmatpush1.msra.mxu0 0.0
    %1892 = vmatprep.subr.mxu0 0.0
    %1893 = vmatpush1.msra.mxu0 0.0
    %1894 = vmatprep.subr.mxu0 0.0
    %1895 = vmatpush1.msra.mxu0 0.0
    %1896 = vmatprep.subr.mxu0 0.0
    %1897 = vmatpush1.msra.mxu0 0.0
    %1898 = vmatprep.subr.mxu0 0.0
    %1899 = vmatpush1.msra.mxu0 0.0
    %1900 = vmatprep.subr.mxu0 0.0
    %1901 = vmatpush1.msra.mxu0 0.0
    %1902 = vmatprep.subr.mxu0 0.0
    %1903 = vmatpush1.msra.mxu0 0.0
    %1904 = vmatprep.subr.mxu0 0.0
    %1905 = vmatpush1.msra.mxu0 0.0
    %1906 = vmatprep.subr.mxu0 0.0
    %1907 = vmatpush1.msra.mxu0 0.0
    %1908 = vmatprep.subr.mxu0 0.0
    %1909 = vmatpush1.msra.mxu0 0.0
    %1910 = vmatprep.mubr.f32.mxu0 0.0
    %1911 = vmatmul.mubr.f32.gmra.mrb[0].mxu0 %v1823
    %v1912 = vpop.f32.mrb[0].mxu0
    %v1913 = vadd.f32 %v1784, %v1912
    %v1914 = vpop.f32.mrb[0].mxu0
    %1915 = vmatprep.mubr.f32.mxu0 0.0
    %1916 = vmatmul.mubr.f32.gmra.mrb[0].mxu0 %v1826
    %v1917 = vpop.f32.mrb[0].mxu0
    %v1918 = vadd.f32 %v1789, %v1917
    %v1919 = vpop.f32.mrb[0].mxu0
    %1920 = vmatprep.mubr.f32.mxu0 0.0
    %1921 = vmatmul.mubr.f32.gmra.mrb[0].mxu0 %v1829
    %v1922 = vpop.f32.mrb[0].mxu0
    %v1923 = vadd.f32 %v1794, %v1922
    %v1924 = vpop.f32.mrb[0].mxu0
    %1925 = vmatprep.mubr.f32.mxu0 0.0
    %1926 = vmatmul.mubr.f32.gmra.mrb[0].mxu0 %v1832
    %v1927 = vpop.f32.mrb[0].mxu0
    %v1928 = vadd.f32 %v1799, %v1927
    %v1929 = vpop.f32.mrb[0].mxu0
    %1930 = vmatprep.mubr.f32.mxu0 0.0
    %1931 = vmatmul.mubr.f32.gmra.mrb[0].mxu0 %v1835
    %v1932 = vpop.f32.mrb[0].mxu0
    %v1933 = vadd.f32 %v1804, %v1932
    %v1934 = vpop.f32.mrb[0].mxu0
    %1935 = vmatprep.mubr.f32.mxu0 0.0
    %1936 = vmatmul.mubr.f32.gmra.mrb[0].mxu0 %v1838
    %v1937 = vpop.f32.mrb[0].mxu0
    %v1938 = vadd.f32 %v1809, %v1937
    %v1939 = vpop.f32.mrb[0].mxu0
    %1940 = vmatprep.mubr.f32.mxu0 0.0
    %1941 = vmatmul.mubr.f32.gmra.mrb[0].mxu0 %v1841
    %v1942 = vpop.f32.mrb[0].mxu0
    %v1943 = vadd.f32 %v1814, %v1942
    %v1944 = vpop.f32.mrb[0].mxu0
    %1945 = vmatprep.mubr.f32.mxu0 0.0
    %1946 = vmatmul.mubr.f32.gmra.mrb[0].mxu0 %v1844
    %v1947 = vpop.f32.mrb[0].mxu0
    %v1948 = vadd.f32 %v1819, %v1947
    %v1949 = vpop.f32.mrb[0].mxu0
    %1950 = vdwg.mxu0
    %v1952 = vsel %vm1692, %v685, 0
    %v1955 = vsel %vm1692, %v690, 0
    %v1958 = vsel %vm1692, %v695, 0
    %v1961 = vsel %vm1692, %v700, 0
    %v1964 = vsel %vm1692, %v705, 0
    %v1967 = vsel %vm1692, %v710, 0
    %v1970 = vsel %vm1692, %v715, 0
    %v1973 = vsel %vm1692, %v720, 0
    %1975 = vmatprep.subr.mxu0 0.0
    %1976 = vmatpush1.msra.mxu0 %v66
    %1977 = vmatprep.subr.mxu0 0.0
    %1978 = vmatpush1.msra.mxu0 %v67
    %1979 = vmatprep.subr.mxu0 0.0
    %1980 = vmatpush1.msra.mxu0 %v68
    %1981 = vmatprep.subr.mxu0 0.0
    %1982 = vmatpush1.msra.mxu0 %v69
    %1983 = vmatprep.subr.mxu0 0.0
    %1984 = vmatpush1.msra.mxu0 0.0
    %1985 = vmatprep.subr.mxu0 0.0
    %1986 = vmatpush1.msra.mxu0 0.0
    %1987 = vmatprep.subr.mxu0 0.0
    %1988 = vmatpush1.msra.mxu0 0.0
    %1989 = vmatprep.subr.mxu0 0.0
    %1990 = vmatpush1.msra.mxu0 0.0
    %1991 = vmatprep.subr.mxu0 0.0
    %1992 = vmatpush1.msra.mxu0 0.0
    %1993 = vmatprep.subr.mxu0 0.0
    %1994 = vmatpush1.msra.mxu0 0.0
    %1995 = vmatprep.subr.mxu0 0.0
    %1996 = vmatpush1.msra.mxu0 0.0
    %1997 = vmatprep.subr.mxu0 0.0
    %1998 = vmatpush1.msra.mxu0 0.0
    %1999 = vmatprep.subr.mxu0 0.0
    %2000 = vmatpush1.msra.mxu0 0.0
    %2001 = vmatprep.subr.mxu0 0.0
    %2002 = vmatpush1.msra.mxu0 0.0
    %2003 = vmatprep.subr.mxu0 0.0
    %2004 = vmatpush1.msra.mxu0 0.0
    %2005 = vmatprep.subr.mxu0 0.0
    %2006 = vmatpush1.msra.mxu0 0.0
    %2007 = vmatprep.subr.mxu0 0.0
    %2008 = vmatpush1.msra.mxu0 0.0
    %2009 = vmatprep.subr.mxu0 0.0
    %2010 = vmatpush1.msra.mxu0 0.0
    %2011 = vmatprep.subr.mxu0 0.0
    %2012 = vmatpush1.msra.mxu0 0.0
    %2013 = vmatprep.subr.mxu0 0.0
    %2014 = vmatpush1.msra.mxu0 0.0
    %2015 = vmatprep.subr.mxu0 0.0
    %2016 = vmatpush1.msra.mxu0 0.0
    %2017 = vmatprep.subr.mxu0 0.0
    %2018 = vmatpush1.msra.mxu0 0.0
    %2019 = vmatprep.subr.mxu0 0.0
    %2020 = vmatpush1.msra.mxu0 0.0
    %2021 = vmatprep.subr.mxu0 0.0
    %2022 = vmatpush1.msra.mxu0 0.0
    %2023 = vmatprep.subr.mxu0 0.0
    %2024 = vmatpush1.msra.mxu0 0.0
    %2025 = vmatprep.subr.mxu0 0.0
    %2026 = vmatpush1.msra.mxu0 0.0
    %2027 = vmatprep.subr.mxu0 0.0
    %2028 = vmatpush1.msra.mxu0 0.0
    %2029 = vmatprep.subr.mxu0 0.0
    %2030 = vmatpush1.msra.mxu0 0.0
    %2031 = vmatprep.subr.mxu0 0.0
    %2032 = vmatpush1.msra.mxu0 0.0
    %2033 = vmatprep.subr.mxu0 0.0
    %2034 = vmatpush1.msra.mxu0 0.0
    %2035 = vmatprep.subr.mxu0 0.0
    %2036 = vmatpush1.msra.mxu0 0.0
    %2037 = vmatprep.subr.mxu0 0.0
    %2038 = vmatpush1.msra.mxu0 0.0
    %2039 = vmatprep.mubr.f32.mxu0 0.0
    %2040 = vmatmul.mubr.f32.gmra.mrb[0].mxu0 %v1952
    %v2041 = vpop.f32.mrb[0].mxu0
    %v2042 = vadd.f32 0.0, %v2041
    %v2043 = vpop.f32.mrb[0].mxu0
    %2044 = vmatprep.mubr.f32.mxu0 0.0
    %2045 = vmatmul.mubr.f32.gmra.mrb[0].mxu0 %v1955
    %v2046 = vpop.f32.mrb[0].mxu0
    %v2047 = vadd.f32 0.0, %v2046
    %v2048 = vpop.f32.mrb[0].mxu0
    %2049 = vmatprep.mubr.f32.mxu0 0.0
    %2050 = vmatmul.mubr.f32.gmra.mrb[0].mxu0 %v1958
    %v2051 = vpop.f32.mrb[0].mxu0
    %v2052 = vadd.f32 0.0, %v2051
    %v2053 = vpop.f32.mrb[0].mxu0
    %2054 = vmatprep.mubr.f32.mxu0 0.0
    %2055 = vmatmul.mubr.f32.gmra.mrb[0].mxu0 %v1961
    %v2056 = vpop.f32.mrb[0].mxu0
    %v2057 = vadd.f32 0.0, %v2056
    %v2058 = vpop.f32.mrb[0].mxu0
    %2059 = vmatprep.mubr.f32.mxu0 0.0
    %2060 = vmatmul.mubr.f32.gmra.mrb[0].mxu0 %v1964
    %v2061 = vpop.f32.mrb[0].mxu0
    %v2062 = vadd.f32 0.0, %v2061
    %v2063 = vpop.f32.mrb[0].mxu0
    %2064 = vmatprep.mubr.f32.mxu0 0.0
    %2065 = vmatmul.mubr.f32.gmra.mrb[0].mxu0 %v1967
    %v2066 = vpop.f32.mrb[0].mxu0
    %v2067 = vadd.f32 0.0, %v2066
    %v2068 = vpop.f32.mrb[0].mxu0
    %2069 = vmatprep.mubr.f32.mxu0 0.0
    %2070 = vmatmul.mubr.f32.gmra.mrb[0].mxu0 %v1970
    %v2071 = vpop.f32.mrb[0].mxu0
    %v2072 = vadd.f32 0.0, %v2071
    %v2073 = vpop.f32.mrb[0].mxu0
    %2074 = vmatprep.mubr.f32.mxu0 0.0
    %2075 = vmatmul.mubr.f32.gmra.mrb[0].mxu0 %v1973
    %v2076 = vpop.f32.mrb[0].mxu0
    %v2077 = vadd.f32 0.0, %v2076
    %v2078 = vpop.f32.mrb[0].mxu0
    %2079 = vdwg.mxu0
    %v2080 = vadd.f32 %v1913, %v2042
    %v2081 = vadd.f32 %v1918, %v2047
    %v2082 = vadd.f32 %v1923, %v2052
    %v2083 = vadd.f32 %v1928, %v2057
    %v2084 = vadd.f32 %v1933, %v2062
    %v2085 = vadd.f32 %v1938, %v2067
    %v2086 = vadd.f32 %v1943, %v2072
    %v2087 = vadd.f32 %v1948, %v2077
    %v2089 = vsel %vm1692, %v1668, 0
    %v2092 = vsel %vm1692, %v1669, 0
    %v2095 = vsel %vm1692, %v1670, 0
    %v2098 = vsel %vm1692, %v1671, 0
    %v2101 = vsel %vm1692, %v1672, 0
    %v2104 = vsel %vm1692, %v1673, 0
    %v2107 = vsel %vm1692, %v1674, 0
    %v2110 = vsel %vm1692, %v1675, 0
    %2112 = vmatprep.subr.mxu0 0.0
    %2113 = vmatpush1.msra.mxu0 %v70
    %2114 = vmatprep.subr.mxu0 0.0
    %2115 = vmatpush1.msra.mxu0 %v71
    %2116 = vmatprep.subr.mxu0 0.0
    %2117 = vmatpush1.msra.mxu0 %v72
    %2118 = vmatprep.subr.mxu0 0.0
    %2119 = vmatpush1.msra.mxu0 %v73
    %2120 = vmatprep.subr.mxu0 0.0
    %2121 = vmatpush1.msra.mxu0 0.0
    %2122 = vmatprep.subr.mxu0 0.0
    %2123 = vmatpush1.msra.mxu0 0.0
    %2124 = vmatprep.subr.mxu0 0.0
    %2125 = vmatpush1.msra.mxu0 0.0
    %2126 = vmatprep.subr.mxu0 0.0
    %2127 = vmatpush1.msra.mxu0 0.0
    %2128 = vmatprep.subr.mxu0 0.0
    %2129 = vmatpush1.msra.mxu0 0.0
    %2130 = vmatprep.subr.mxu0 0.0
    %2131 = vmatpush1.msra.mxu0 0.0
    %2132 = vmatprep.subr.mxu0 0.0
    %2133 = vmatpush1.msra.mxu0 0.0
    %2134 = vmatprep.subr.mxu0 0.0
    %2135 = vmatpush1.msra.mxu0 0.0
    %2136 = vmatprep.subr.mxu0 0.0
    %2137 = vmatpush1.msra.mxu0 0.0
    %2138 = vmatprep.subr.mxu0 0.0
    %2139 = vmatpush1.msra.mxu0 0.0
    %2140 = vmatprep.subr.mxu0 0.0
    %2141 = vmatpush1.msra.mxu0 0.0
    %2142 = vmatprep.subr.mxu0 0.0
    %2143 = vmatpush1.msra.mxu0 0.0
    %2144 = vmatprep.subr.mxu0 0.0
    %2145 = vmatpush1.msra.mxu0 0.0
    %2146 = vmatprep.subr.mxu0 0.0
    %2147 = vmatpush1.msra.mxu0 0.0
    %2148 = vmatprep.subr.mxu0 0.0
    %2149 = vmatpush1.msra.mxu0 0.0
    %2150 = vmatprep.subr.mxu0 0.0
    %2151 = vmatpush1.msra.mxu0 0.0
    %2152 = vmatprep.subr.mxu0 0.0
    %2153 = vmatpush1.msra.mxu0 0.0
    %2154 = vmatprep.subr.mxu0 0.0
    %2155 = vmatpush1.msra.mxu0 0.0
    %2156 = vmatprep.subr.mxu0 0.0
    %2157 = vmatpush1.msra.mxu0 0.0
    %2158 = vmatprep.subr.mxu0 0.0
    %2159 = vmatpush1.msra.mxu0 0.0
    %2160 = vmatprep.subr.mxu0 0.0
    %2161 = vmatpush1.msra.mxu0 0.0
    %2162 = vmatprep.subr.mxu0 0.0
    %2163 = vmatpush1.msra.mxu0 0.0
    %2164 = vmatprep.subr.mxu0 0.0
    %2165 = vmatpush1.msra.mxu0 0.0
    %2166 = vmatprep.subr.mxu0 0.0
    %2167 = vmatpush1.msra.mxu0 0.0
    %2168 = vmatprep.subr.mxu0 0.0
    %2169 = vmatpush1.msra.mxu0 0.0
    %2170 = vmatprep.subr.mxu0 0.0
    %2171 = vmatpush1.msra.mxu0 0.0
    %2172 = vmatprep.subr.mxu0 0.0
    %2173 = vmatpush1.msra.mxu0 0.0
    %2174 = vmatprep.subr.mxu0 0.0
    %2175 = vmatpush1.msra.mxu0 0.0
    %2176 = vmatprep.mubr.f32.mxu0 0.0
    %2177 = vmatmul.mubr.f32.gmra.mrb[0].mxu0 %v2089
    %v2178 = vpop.f32.mrb[0].mxu0
    %v2179 = vadd.f32 0.0, %v2178
    %v2180 = vpop.f32.mrb[0].mxu0
    %2181 = vmatprep.mubr.f32.mxu0 0.0
    %2182 = vmatmul.mubr.f32.gmra.mrb[0].mxu0 %v2092
    %v2183 = vpop.f32.mrb[0].mxu0
    %v2184 = vadd.f32 0.0, %v2183
    %v2185 = vpop.f32.mrb[0].mxu0
    %2186 = vmatprep.mubr.f32.mxu0 0.0
    %2187 = vmatmul.mubr.f32.gmra.mrb[0].mxu0 %v2095
    %v2188 = vpop.f32.mrb[0].mxu0
    %v2189 = vadd.f32 0.0, %v2188
    %v2190 = vpop.f32.mrb[0].mxu0
    %2191 = vmatprep.mubr.f32.mxu0 0.0
    %2192 = vmatmul.mubr.f32.gmra.mrb[0].mxu0 %v2098
    %v2193 = vpop.f32.mrb[0].mxu0
    %v2194 = vadd.f32 0.0, %v2193
    %v2195 = vpop.f32.mrb[0].mxu0
    %2196 = vmatprep.mubr.f32.mxu0 0.0
    %2197 = vmatmul.mubr.f32.gmra.mrb[0].mxu0 %v2101
    %v2198 = vpop.f32.mrb[0].mxu0
    %v2199 = vadd.f32 0.0, %v2198
    %v2200 = vpop.f32.mrb[0].mxu0
    %2201 = vmatprep.mubr.f32.mxu0 0.0
    %2202 = vmatmul.mubr.f32.gmra.mrb[0].mxu0 %v2104
    %v2203 = vpop.f32.mrb[0].mxu0
    %v2204 = vadd.f32 0.0, %v2203
    %v2205 = vpop.f32.mrb[0].mxu0
    %2206 = vmatprep.mubr.f32.mxu0 0.0
    %2207 = vmatmul.mubr.f32.gmra.mrb[0].mxu0 %v2107
    %v2208 = vpop.f32.mrb[0].mxu0
    %v2209 = vadd.f32 0.0, %v2208
    %v2210 = vpop.f32.mrb[0].mxu0
    %2211 = vmatprep.mubr.f32.mxu0 0.0
    %2212 = vmatmul.mubr.f32.gmra.mrb[0].mxu0 %v2110
    %v2213 = vpop.f32.mrb[0].mxu0
    %v2214 = vadd.f32 0.0, %v2213
    %v2215 = vpop.f32.mrb[0].mxu0
    %2216 = vdwg.mxu0
    %v2217 = vadd.f32 %v2080, %v2179
    %v2218 = vadd.f32 %v2081, %v2184
    %v2219 = vadd.f32 %v2082, %v2189
    %v2220 = vadd.f32 %v2083, %v2194
    %v2221 = vadd.f32 %v2084, %v2199
    %v2222 = vadd.f32 %v2085, %v2204
    %v2223 = vadd.f32 %v2086, %v2209
    %v2224 = vadd.f32 %v2087, %v2214
    %v2225 = vadd.f32 %v2217, %v74
    %v2226 = vadd.f32 %v2218, %v74
    %v2227 = vadd.f32 %v2219, %v74
    %v2228 = vadd.f32 %v2220, %v74
    %v2229 = vadd.f32 %v2221, %v74
    %v2230 = vadd.f32 %v2222, %v74
    %v2231 = vadd.f32 %v2223, %v74
    %v2232 = vadd.f32 %v2224, %v74
    %v2233 = vmax.f32 %v2225, 0.0
    %v2234 = vmax.f32 %v2226, 0.0
    %v2235 = vmax.f32 %v2227, 0.0
    %v2236 = vmax.f32 %v2228, 0.0
    %v2237 = vmax.f32 %v2229, 0.0
    %v2238 = vmax.f32 %v2230, 0.0
    %v2239 = vmax.f32 %v2231, 0.0
    %v2240 = vmax.f32 %v2232, 0.0
    %v2241 = vmul.f32 %v2233, %v75
    %v2242 = vmul.f32 %v2234, %v75
    %v2243 = vmul.f32 %v2235, %v75
    %v2244 = vmul.f32 %v2236, %v75
    %v2245 = vmul.f32 %v2237, %v75
    %v2246 = vmul.f32 %v2238, %v75
    %v2247 = vmul.f32 %v2239, %v75
    %v2248 = vmul.f32 %v2240, %v75
    %v2249 = vsel %vm249, %v2241, 0.0
    %2250 = vadd.xlane.f32.xlu0 %v2249
    %v2251 = vpop.xlane.xlu0 %2250
    %v2252 = vsel %vm249, %v2242, 0.0
    %2253 = vadd.xlane.f32.xlu0 %v2252
    %v2254 = vpop.xlane.xlu0 %2253
    %v2255 = vsel %vm249, %v2243, 0.0
    %2256 = vadd.xlane.f32.xlu0 %v2255
    %v2257 = vpop.xlane.xlu0 %2256
    %v2258 = vsel %vm249, %v2244, 0.0
    %2259 = vadd.xlane.f32.xlu0 %v2258
    %v2260 = vpop.xlane.xlu0 %2259
    %v2261 = vsel %vm249, %v2245, 0.0
    %2262 = vadd.xlane.f32.xlu0 %v2261
    %v2263 = vpop.xlane.xlu0 %2262
    %v2264 = vsel %vm249, %v2246, 0.0
    %2265 = vadd.xlane.f32.xlu0 %v2264
    %v2266 = vpop.xlane.xlu0 %2265
    %v2267 = vsel %vm249, %v2247, 0.0
    %2268 = vadd.xlane.f32.xlu0 %v2267
    %v2269 = vpop.xlane.xlu0 %2268
    %v2270 = vsel %vm249, %v2248, 0.0
    %2271 = vadd.xlane.f32.xlu0 %v2270
    %v2272 = vpop.xlane.xlu0 %2271
    %v2273 = vadd.f32 %v2251, %v76
    %v2274 = vadd.f32 %v2254, %v76
    %v2275 = vadd.f32 %v2257, %v76
    %v2276 = vadd.f32 %v2260, %v76
    %v2277 = vadd.f32 %v2263, %v76
    %v2278 = vadd.f32 %v2266, %v76
    %v2279 = vadd.f32 %v2269, %v76
    %v2280 = vadd.f32 %v2272, %v76
    %v2281 = vxor.u32 %v2273, 2147483648
    %v2282 = vxor.u32 %v2274, 2147483648
    %v2283 = vxor.u32 %v2275, 2147483648
    %v2284 = vxor.u32 %v2276, 2147483648
    %v2285 = vxor.u32 %v2277, 2147483648
    %v2286 = vxor.u32 %v2278, 2147483648
    %v2287 = vxor.u32 %v2279, 2147483648
    %v2288 = vxor.u32 %v2280, 2147483648
    %v2289 = vmul.f32 %v2281, 1.442695
    %v2290 = vpow.pop %v2289
    %v2291 = vmul.f32 %v2282, 1.442695
    %v2292 = vpow.pop %v2291
    %v2293 = vmul.f32 %v2283, 1.442695
    %v2294 = vpow.pop %v2293
    %v2295 = vmul.f32 %v2284, 1.442695
    %v2296 = vpow.pop %v2295
    %v2297 = vmul.f32 %v2285, 1.442695
    %v2298 = vpow.pop %v2297
    %v2299 = vmul.f32 %v2286, 1.442695
    %v2300 = vpow.pop %v2299
    %v2301 = vmul.f32 %v2287, 1.442695
    %v2302 = vpow.pop %v2301
    %v2303 = vmul.f32 %v2288, 1.442695
    %v2304 = vpow.pop %v2303
    %v2305 = vadd.f32 %v2290, 1.0
    %v2306 = vadd.f32 %v2292, 1.0
    %v2307 = vadd.f32 %v2294, 1.0
    %v2308 = vadd.f32 %v2296, 1.0
    %v2309 = vadd.f32 %v2298, 1.0
    %v2310 = vadd.f32 %v2300, 1.0
    %v2311 = vadd.f32 %v2302, 1.0
    %v2312 = vadd.f32 %v2304, 1.0
    %v2313 = vrcp.pop %v2305
    %v2314 = vmul.f32 1.0, %v2313
    %v2315 = vrcp.pop %v2306
    %v2316 = vmul.f32 1.0, %v2315
    %v2317 = vrcp.pop %v2307
    %v2318 = vmul.f32 1.0, %v2317
    %v2319 = vrcp.pop %v2308
    %v2320 = vmul.f32 1.0, %v2319
    %v2321 = vrcp.pop %v2309
    %v2322 = vmul.f32 1.0, %v2321
    %v2323 = vrcp.pop %v2310
    %v2324 = vmul.f32 1.0, %v2323
    %v2325 = vrcp.pop %v2311
    %v2326 = vmul.f32 1.0, %v2325
    %v2327 = vrcp.pop %v2312
    %v2328 = vmul.f32 1.0, %v2327
    %2330 = vset.pattern.permute.xlu0 0
    %2331 = vperm.xlu0 %2330, %v2314
    %v2332 = vpop.permute.xlu0 %2331
    %2335 = vset.pattern.permute.xlu0 0
    %2336 = vperm.xlu0 %2335, %v2316
    %v2337 = vpop.permute.xlu0 %2336
    %2340 = vset.pattern.permute.xlu0 0
    %2341 = vperm.xlu0 %2340, %v2318
    %v2342 = vpop.permute.xlu0 %2341
    %2345 = vset.pattern.permute.xlu0 0
    %2346 = vperm.xlu0 %2345, %v2320
    %v2347 = vpop.permute.xlu0 %2346
    %2350 = vset.pattern.permute.xlu0 0
    %2351 = vperm.xlu0 %2350, %v2322
    %v2352 = vpop.permute.xlu0 %2351
    %2355 = vset.pattern.permute.xlu0 0
    %2356 = vperm.xlu0 %2355, %v2324
    %v2357 = vpop.permute.xlu0 %2356
    %2360 = vset.pattern.permute.xlu0 0
    %2361 = vperm.xlu0 %2360, %v2326
    %v2362 = vpop.permute.xlu0 %2361
    %2365 = vset.pattern.permute.xlu0 0
    %2366 = vperm.xlu0 %2365, %v2328
    %v2367 = vpop.permute.xlu0 %2366
    %v2369 = vmul.f32 %v2332, %v1684
    %v2370 = vmul.f32 %v2337, %v1685
    %v2371 = vmul.f32 %v2342, %v1686
    %v2372 = vmul.f32 %v2347, %v1687
    %v2373 = vmul.f32 %v2352, %v1688
    %v2374 = vmul.f32 %v2357, %v1689
    %v2375 = vmul.f32 %v2362, %v1690
    %v2376 = vmul.f32 %v2367, %v1691
    %v2377 = vsub.f32 1.0, %v2314
    %v2378 = vsub.f32 1.0, %v2316
    %v2379 = vsub.f32 1.0, %v2318
    %v2380 = vsub.f32 1.0, %v2320
    %v2381 = vsub.f32 1.0, %v2322
    %v2382 = vsub.f32 1.0, %v2324
    %v2383 = vsub.f32 1.0, %v2326
    %v2384 = vsub.f32 1.0, %v2328
    %2386 = vset.pattern.permute.xlu0 0
    %2387 = vperm.xlu0 %2386, %v2377
    %v2388 = vpop.permute.xlu0 %2387
    %2391 = vset.pattern.permute.xlu0 0
    %2392 = vperm.xlu0 %2391, %v2378
    %v2393 = vpop.permute.xlu0 %2392
    %2396 = vset.pattern.permute.xlu0 0
    %2397 = vperm.xlu0 %2396, %v2379
    %v2398 = vpop.permute.xlu0 %2397
    %2401 = vset.pattern.permute.xlu0 0
    %2402 = vperm.xlu0 %2401, %v2380
    %v2403 = vpop.permute.xlu0 %2402
    %2406 = vset.pattern.permute.xlu0 0
    %2407 = vperm.xlu0 %2406, %v2381
    %v2408 = vpop.permute.xlu0 %2407
    %2411 = vset.pattern.permute.xlu0 0
    %2412 = vperm.xlu0 %2411, %v2382
    %v2413 = vpop.permute.xlu0 %2412
    %2416 = vset.pattern.permute.xlu0 0
    %2417 = vperm.xlu0 %2416, %v2383
    %v2418 = vpop.permute.xlu0 %2417
    %2421 = vset.pattern.permute.xlu0 0
    %2422 = vperm.xlu0 %2421, %v2384
    %v2423 = vpop.permute.xlu0 %2422
    %v2425 = vmul.f32 %v2388, %v2369
    %v2426 = vmul.f32 %v2393, %v2370
    %v2427 = vmul.f32 %v2398, %v2371
    %v2428 = vmul.f32 %v2403, %v2372
    %v2429 = vmul.f32 %v2408, %v2373
    %v2430 = vmul.f32 %v2413, %v2374
    %v2431 = vmul.f32 %v2418, %v2375
    %v2432 = vmul.f32 %v2423, %v2376
    %v2433 = vld [vmem:[%s3] sm:$0x1]
    %v2434 = vlaneseq
    %v2435 = vshrl.u32 %v2434, 7
    %v2436 = vadd.s32 %v2435, 8
    %v2437 = vlaneseq
    %v2438 = vshrl.u32 %v2437, 7
    %v2439 = vsub.s32 0, %v2438
    %v2440 = vrot.slane %v2433, %v2439
    %vm2441 = vcmp.eq.s32.totalorder %v2435, %v2440
    %vm2442 = vcmp.eq.s32.totalorder %v2436, %v2440
    %v2443 = vsel %vm2441, 1, 0
    %v2444 = vsel %vm2442, 1, 0
    %v2445 = vcvt.s32.f32 %v2443
    %v2446 = vcvt.s32.f32 %v2444
    %vm2447 = vcmask 523264
    %v2449 = vsel %vm2447, %v2445, 0
    %v2452 = vsel %vm2447, %v2446, 0
    %2454 = vmatprep.subr.mxu0 0.0
    %2455 = vmatpush1.msra.mxu0 %v2369
    %2456 = vmatprep.subr.mxu0 0.0
    %2457 = vmatpush1.msra.mxu0 %v2370
    %2458 = vmatprep.subr.mxu0 0.0
    %2459 = vmatpush1.msra.mxu0 %v2371
    %2460 = vmatprep.subr.mxu0 0.0
    %2461 = vmatpush1.msra.mxu0 %v2372
    %2462 = vmatprep.subr.mxu0 0.0
    %2463 = vmatpush1.msra.mxu0 %v2373
    %2464 = vmatprep.subr.mxu0 0.0
    %2465 = vmatpush1.msra.mxu0 %v2374
    %2466 = vmatprep.subr.mxu0 0.0
    %2467 = vmatpush1.msra.mxu0 %v2375
    %2468 = vmatprep.subr.mxu0 0.0
    %2469 = vmatpush1.msra.mxu0 %v2376
    %2470 = vmatprep.subr.mxu0 0.0
    %2471 = vmatpush1.msra.mxu0 0.0
    %2472 = vmatprep.subr.mxu0 0.0
    %2473 = vmatpush1.msra.mxu0 0.0
    %2474 = vmatprep.subr.mxu0 0.0
    %2475 = vmatpush1.msra.mxu0 0.0
    %2476 = vmatprep.subr.mxu0 0.0
    %2477 = vmatpush1.msra.mxu0 0.0
    %2478 = vmatprep.subr.mxu0 0.0
    %2479 = vmatpush1.msra.mxu0 0.0
    %2480 = vmatprep.subr.mxu0 0.0
    %2481 = vmatpush1.msra.mxu0 0.0
    %2482 = vmatprep.subr.mxu0 0.0
    %2483 = vmatpush1.msra.mxu0 0.0
    %2484 = vmatprep.subr.mxu0 0.0
    %2485 = vmatpush1.msra.mxu0 0.0
    %2486 = vmatprep.subr.mxu0 0.0
    %2487 = vmatpush1.msra.mxu0 0.0
    %2488 = vmatprep.subr.mxu0 0.0
    %2489 = vmatpush1.msra.mxu0 0.0
    %2490 = vmatprep.subr.mxu0 0.0
    %2491 = vmatpush1.msra.mxu0 0.0
    %2492 = vmatprep.subr.mxu0 0.0
    %2493 = vmatpush1.msra.mxu0 0.0
    %2494 = vmatprep.subr.mxu0 0.0
    %2495 = vmatpush1.msra.mxu0 0.0
    %2496 = vmatprep.subr.mxu0 0.0
    %2497 = vmatpush1.msra.mxu0 0.0
    %2498 = vmatprep.subr.mxu0 0.0
    %2499 = vmatpush1.msra.mxu0 0.0
    %2500 = vmatprep.subr.mxu0 0.0
    %2501 = vmatpush1.msra.mxu0 0.0
    %2502 = vmatprep.subr.mxu0 0.0
    %2503 = vmatpush1.msra.mxu0 0.0
    %2504 = vmatprep.subr.mxu0 0.0
    %2505 = vmatpush1.msra.mxu0 0.0
    %2506 = vmatprep.subr.mxu0 0.0
    %2507 = vmatpush1.msra.mxu0 0.0
    %2508 = vmatprep.subr.mxu0 0.0
    %2509 = vmatpush1.msra.mxu0 0.0
    %2510 = vmatprep.subr.mxu0 0.0
    %2511 = vmatpush1.msra.mxu0 0.0
    %2512 = vmatprep.subr.mxu0 0.0
    %2513 = vmatpush1.msra.mxu0 0.0
    %2514 = vmatprep.subr.mxu0 0.0
    %2515 = vmatpush1.msra.mxu0 0.0
    %2516 = vmatprep.subr.mxu0 0.0
    %2517 = vmatpush1.msra.mxu0 0.0
    %2518 = vmatprep.mubr.f32.mxu0 0.0
    %2519 = vmatmul.mubr.f32.gmra.mrb[0].mxu0 %v2449
    %v2520 = vpop.f32.mrb[0].mxu0
    %v2521 = vadd.f32 0.0, %v2520
    %v2522 = vpop.f32.mrb[0].mxu0
    %2523 = vmatprep.mubr.f32.mxu0 0.0
    %2524 = vmatmul.mubr.f32.gmra.mrb[0].mxu0 %v2452
    %v2525 = vpop.f32.mrb[0].mxu0
    %v2526 = vadd.f32 0.0, %v2525
    %v2527 = vpop.f32.mrb[0].mxu0
    %2528 = vdwg.mxu0
    %2529 = vmatprep.subr.mxu0 0.0
    %2530 = vmatpush1.msra.mxu0 %v2425
    %2531 = vmatprep.subr.mxu0 0.0
    %2532 = vmatpush1.msra.mxu0 %v2426
    %2533 = vmatprep.subr.mxu0 0.0
    %2534 = vmatpush1.msra.mxu0 %v2427
    %2535 = vmatprep.subr.mxu0 0.0
    %2536 = vmatpush1.msra.mxu0 %v2428
    %2537 = vmatprep.subr.mxu0 0.0
    %2538 = vmatpush1.msra.mxu0 %v2429
    %2539 = vmatprep.subr.mxu0 0.0
    %2540 = vmatpush1.msra.mxu0 %v2430
    %2541 = vmatprep.subr.mxu0 0.0
    %2542 = vmatpush1.msra.mxu0 %v2431
    %2543 = vmatprep.subr.mxu0 0.0
    %2544 = vmatpush1.msra.mxu0 %v2432
    %2545 = vmatprep.subr.mxu0 0.0
    %2546 = vmatpush1.msra.mxu0 0.0
    %2547 = vmatprep.subr.mxu0 0.0
    %2548 = vmatpush1.msra.mxu0 0.0
    %2549 = vmatprep.subr.mxu0 0.0
    %2550 = vmatpush1.msra.mxu0 0.0
    %2551 = vmatprep.subr.mxu0 0.0
    %2552 = vmatpush1.msra.mxu0 0.0
    %2553 = vmatprep.subr.mxu0 0.0
    %2554 = vmatpush1.msra.mxu0 0.0
    %2555 = vmatprep.subr.mxu0 0.0
    %2556 = vmatpush1.msra.mxu0 0.0
    %2557 = vmatprep.subr.mxu0 0.0
    %2558 = vmatpush1.msra.mxu0 0.0
    %2559 = vmatprep.subr.mxu0 0.0
    %2560 = vmatpush1.msra.mxu0 0.0
    %2561 = vmatprep.subr.mxu0 0.0
    %2562 = vmatpush1.msra.mxu0 0.0
    %2563 = vmatprep.subr.mxu0 0.0
    %2564 = vmatpush1.msra.mxu0 0.0
    %2565 = vmatprep.subr.mxu0 0.0
    %2566 = vmatpush1.msra.mxu0 0.0
    %2567 = vmatprep.subr.mxu0 0.0
    %2568 = vmatpush1.msra.mxu0 0.0
    %2569 = vmatprep.subr.mxu0 0.0
    %2570 = vmatpush1.msra.mxu0 0.0
    %2571 = vmatprep.subr.mxu0 0.0
    %2572 = vmatpush1.msra.mxu0 0.0
    %2573 = vmatprep.subr.mxu0 0.0
    %2574 = vmatpush1.msra.mxu0 0.0
    %2575 = vmatprep.subr.mxu0 0.0
    %2576 = vmatpush1.msra.mxu0 0.0
    %2577 = vmatprep.subr.mxu0 0.0
    %2578 = vmatpush1.msra.mxu0 0.0
    %2579 = vmatprep.subr.mxu0 0.0
    %2580 = vmatpush1.msra.mxu0 0.0
    %2581 = vmatprep.subr.mxu0 0.0
    %2582 = vmatpush1.msra.mxu0 0.0
    %2583 = vmatprep.subr.mxu0 0.0
    %2584 = vmatpush1.msra.mxu0 0.0
    %2585 = vmatprep.subr.mxu0 0.0
    %2586 = vmatpush1.msra.mxu0 0.0
    %2587 = vmatprep.subr.mxu0 0.0
    %2588 = vmatpush1.msra.mxu0 0.0
    %2589 = vmatprep.subr.mxu0 0.0
    %2590 = vmatpush1.msra.mxu0 0.0
    %2591 = vmatprep.subr.mxu0 0.0
    %2592 = vmatpush1.msra.mxu0 0.0
    %2593 = vmatprep.mubr.f32.mxu0 0.0
    %2594 = vmatmul.mubr.f32.gmra.mrb[0].mxu0 %v2449
    %v2595 = vpop.f32.mrb[0].mxu0
    %v2596 = vadd.f32 0.0, %v2595
    %v2597 = vpop.f32.mrb[0].mxu0
    %2598 = vmatprep.mubr.f32.mxu0 0.0
    %2599 = vmatmul.mubr.f32.gmra.mrb[0].mxu0 %v2452
    %v2600 = vpop.f32.mrb[0].mxu0
    %v2601 = vadd.f32 0.0, %v2600
    %v2602 = vpop.f32.mrb[0].mxu0
    %2603 = vdwg.mxu0
    %v2605 = vsel %vm1692, %v2521, 0
    %v2608 = vsel %vm1692, %v2526, 0
    %2610 = vmatprep.subr.mxu0 0.0
    %2611 = vmatpush1.msra.mxu0 %v77
    %2612 = vmatprep.subr.mxu0 0.0
    %2613 = vmatpush1.msra.mxu0 %v78
    %2614 = vmatprep.subr.mxu0 0.0
    %2615 = vmatpush1.msra.mxu0 %v79
    %2616 = vmatprep.subr.mxu0 0.0
    %2617 = vmatpush1.msra.mxu0 %v80
    %2618 = vmatprep.subr.mxu0 0.0
    %2619 = vmatpush1.msra.mxu0 0.0
    %2620 = vmatprep.subr.mxu0 0.0
    %2621 = vmatpush1.msra.mxu0 0.0
    %2622 = vmatprep.subr.mxu0 0.0
    %2623 = vmatpush1.msra.mxu0 0.0
    %2624 = vmatprep.subr.mxu0 0.0
    %2625 = vmatpush1.msra.mxu0 0.0
    %2626 = vmatprep.subr.mxu0 0.0
    %2627 = vmatpush1.msra.mxu0 0.0
    %2628 = vmatprep.subr.mxu0 0.0
    %2629 = vmatpush1.msra.mxu0 0.0
    %2630 = vmatprep.subr.mxu0 0.0
    %2631 = vmatpush1.msra.mxu0 0.0
    %2632 = vmatprep.subr.mxu0 0.0
    %2633 = vmatpush1.msra.mxu0 0.0
    %2634 = vmatprep.subr.mxu0 0.0
    %2635 = vmatpush1.msra.mxu0 0.0
    %2636 = vmatprep.subr.mxu0 0.0
    %2637 = vmatpush1.msra.mxu0 0.0
    %2638 = vmatprep.subr.mxu0 0.0
    %2639 = vmatpush1.msra.mxu0 0.0
    %2640 = vmatprep.subr.mxu0 0.0
    %2641 = vmatpush1.msra.mxu0 0.0
    %2642 = vmatprep.subr.mxu0 0.0
    %2643 = vmatpush1.msra.mxu0 0.0
    %2644 = vmatprep.subr.mxu0 0.0
    %2645 = vmatpush1.msra.mxu0 0.0
    %2646 = vmatprep.subr.mxu0 0.0
    %2647 = vmatpush1.msra.mxu0 0.0
    %2648 = vmatprep.subr.mxu0 0.0
    %2649 = vmatpush1.msra.mxu0 0.0
    %2650 = vmatprep.subr.mxu0 0.0
    %2651 = vmatpush1.msra.mxu0 0.0
    %2652 = vmatprep.subr.mxu0 0.0
    %2653 = vmatpush1.msra.mxu0 0.0
    %2654 = vmatprep.subr.mxu0 0.0
    %2655 = vmatpush1.msra.mxu0 0.0
    %2656 = vmatprep.subr.mxu0 0.0
    %2657 = vmatpush1.msra.mxu0 0.0
    %2658 = vmatprep.subr.mxu0 0.0
    %2659 = vmatpush1.msra.mxu0 0.0
    %2660 = vmatprep.subr.mxu0 0.0
    %2661 = vmatpush1.msra.mxu0 0.0
    %2662 = vmatprep.subr.mxu0 0.0
    %2663 = vmatpush1.msra.mxu0 0.0
    %2664 = vmatprep.subr.mxu0 0.0
    %2665 = vmatpush1.msra.mxu0 0.0
    %2666 = vmatprep.subr.mxu0 0.0
    %2667 = vmatpush1.msra.mxu0 0.0
    %2668 = vmatprep.subr.mxu0 0.0
    %2669 = vmatpush1.msra.mxu0 0.0
    %2670 = vmatprep.subr.mxu0 0.0
    %2671 = vmatpush1.msra.mxu0 0.0
    %2672 = vmatprep.subr.mxu0 0.0
    %2673 = vmatpush1.msra.mxu0 0.0
    %2674 = vmatprep.mubr.f32.mxu0 0.0
    %2675 = vmatmul.mubr.f32.gmra.mrb[0].mxu0 %v2605
    %v2676 = vpop.f32.mrb[0].mxu0
    %v2677 = vadd.f32 0.0, %v2676
    %v2678 = vpop.f32.mrb[0].mxu0
    %2679 = vmatprep.mubr.f32.mxu0 0.0
    %2680 = vmatmul.mubr.f32.gmra.mrb[0].mxu0 %v2608
    %v2681 = vpop.f32.mrb[0].mxu0
    %v2682 = vadd.f32 0.0, %v2681
    %v2683 = vpop.f32.mrb[0].mxu0
    %2684 = vdwg.mxu0
    %v2685 = vmax.f32 %v2677, 0.0
    %v2686 = vmax.f32 %v2682, 0.0
    %v2688 = vsel %vm1692, %v2596, 0
    %v2691 = vsel %vm1692, %v2601, 0
    %2693 = vmatprep.subr.mxu0 0.0
    %2694 = vmatpush1.msra.mxu0 %v81
    %2695 = vmatprep.subr.mxu0 0.0
    %2696 = vmatpush1.msra.mxu0 %v82
    %2697 = vmatprep.subr.mxu0 0.0
    %2698 = vmatpush1.msra.mxu0 %v83
    %2699 = vmatprep.subr.mxu0 0.0
    %2700 = vmatpush1.msra.mxu0 %v84
    %2701 = vmatprep.subr.mxu0 0.0
    %2702 = vmatpush1.msra.mxu0 0.0
    %2703 = vmatprep.subr.mxu0 0.0
    %2704 = vmatpush1.msra.mxu0 0.0
    %2705 = vmatprep.subr.mxu0 0.0
    %2706 = vmatpush1.msra.mxu0 0.0
    %2707 = vmatprep.subr.mxu0 0.0
    %2708 = vmatpush1.msra.mxu0 0.0
    %2709 = vmatprep.subr.mxu0 0.0
    %2710 = vmatpush1.msra.mxu0 0.0
    %2711 = vmatprep.subr.mxu0 0.0
    %2712 = vmatpush1.msra.mxu0 0.0
    %2713 = vmatprep.subr.mxu0 0.0
    %2714 = vmatpush1.msra.mxu0 0.0
    %2715 = vmatprep.subr.mxu0 0.0
    %2716 = vmatpush1.msra.mxu0 0.0
    %2717 = vmatprep.subr.mxu0 0.0
    %2718 = vmatpush1.msra.mxu0 0.0
    %2719 = vmatprep.subr.mxu0 0.0
    %2720 = vmatpush1.msra.mxu0 0.0
    %2721 = vmatprep.subr.mxu0 0.0
    %2722 = vmatpush1.msra.mxu0 0.0
    %2723 = vmatprep.subr.mxu0 0.0
    %2724 = vmatpush1.msra.mxu0 0.0
    %2725 = vmatprep.subr.mxu0 0.0
    %2726 = vmatpush1.msra.mxu0 0.0
    %2727 = vmatprep.subr.mxu0 0.0
    %2728 = vmatpush1.msra.mxu0 0.0
    %2729 = vmatprep.subr.mxu0 0.0
    %2730 = vmatpush1.msra.mxu0 0.0
    %2731 = vmatprep.subr.mxu0 0.0
    %2732 = vmatpush1.msra.mxu0 0.0
    %2733 = vmatprep.subr.mxu0 0.0
    %2734 = vmatpush1.msra.mxu0 0.0
    %2735 = vmatprep.subr.mxu0 0.0
    %2736 = vmatpush1.msra.mxu0 0.0
    %2737 = vmatprep.subr.mxu0 0.0
    %2738 = vmatpush1.msra.mxu0 0.0
    %2739 = vmatprep.subr.mxu0 0.0
    %2740 = vmatpush1.msra.mxu0 0.0
    %2741 = vmatprep.subr.mxu0 0.0
    %2742 = vmatpush1.msra.mxu0 0.0
    %2743 = vmatprep.subr.mxu0 0.0
    %2744 = vmatpush1.msra.mxu0 0.0
    %2745 = vmatprep.subr.mxu0 0.0
    %2746 = vmatpush1.msra.mxu0 0.0
    %2747 = vmatprep.subr.mxu0 0.0
    %2748 = vmatpush1.msra.mxu0 0.0
    %2749 = vmatprep.subr.mxu0 0.0
    %2750 = vmatpush1.msra.mxu0 0.0
    %2751 = vmatprep.subr.mxu0 0.0
    %2752 = vmatpush1.msra.mxu0 0.0
    %2753 = vmatprep.subr.mxu0 0.0
    %2754 = vmatpush1.msra.mxu0 0.0
    %2755 = vmatprep.subr.mxu0 0.0
    %2756 = vmatpush1.msra.mxu0 0.0
    %2757 = vmatprep.mubr.f32.mxu0 0.0
    %2758 = vmatmul.mubr.f32.gmra.mrb[0].mxu0 %v2688
    %v2759 = vpop.f32.mrb[0].mxu0
    %v2760 = vadd.f32 0.0, %v2759
    %v2761 = vpop.f32.mrb[0].mxu0
    %2762 = vmatprep.mubr.f32.mxu0 0.0
    %2763 = vmatmul.mubr.f32.gmra.mrb[0].mxu0 %v2691
    %v2764 = vpop.f32.mrb[0].mxu0
    %v2765 = vadd.f32 0.0, %v2764
    %v2766 = vpop.f32.mrb[0].mxu0
    %2767 = vdwg.mxu0
    %v2768 = vmax.f32 %v2760, 0.0
    %v2769 = vmax.f32 %v2765, 0.0
    %v2770 = vld [vmem:[%s3 + $0x1] sm:$0x1]
    %v2771 = vlaneseq
    %v2772 = vshrl.u32 %v2771, 7
    %v2773 = vsub.s32 0, %v2772
    %v2774 = vrot.slane %v2770, %v2773
    %vm2775 = vcmp.eq.s32.totalorder %v2435, %v2774
    %vm2776 = vcmp.eq.s32.totalorder %v2436, %v2774
    %v2777 = vsel %vm2775, 1, 0
    %v2778 = vsel %vm2776, 1, 0
    %v2779 = vcvt.s32.f32 %v2777
    %v2780 = vcvt.s32.f32 %v2778
    %v2782 = vsel %vm249, %v2779, 0
    %v2785 = vsel %vm249, %v2780, 0
    %2787 = vmatprep.subr.mxu0 0.0
    %2788 = vmatpush1.msra.mxu0 %v247
    %2789 = vmatprep.subr.mxu0 0.0
    %2790 = vmatpush1.msra.mxu0 %v248
    %2791 = vmatprep.subr.mxu0 0.0
    %2792 = vmatpush1.msra.mxu0 0.0
    %2793 = vmatprep.subr.mxu0 0.0
    %2794 = vmatpush1.msra.mxu0 0.0
    %2795 = vmatprep.subr.mxu0 0.0
    %2796 = vmatpush1.msra.mxu0 0.0
    %2797 = vmatprep.subr.mxu0 0.0
    %2798 = vmatpush1.msra.mxu0 0.0
    %2799 = vmatprep.subr.mxu0 0.0
    %2800 = vmatpush1.msra.mxu0 0.0
    %2801 = vmatprep.subr.mxu0 0.0
    %2802 = vmatpush1.msra.mxu0 0.0
    %2803 = vmatprep.subr.mxu0 0.0
    %2804 = vmatpush1.msra.mxu0 0.0
    %2805 = vmatprep.subr.mxu0 0.0
    %2806 = vmatpush1.msra.mxu0 0.0
    %2807 = vmatprep.subr.mxu0 0.0
    %2808 = vmatpush1.msra.mxu0 0.0
    %2809 = vmatprep.subr.mxu0 0.0
    %2810 = vmatpush1.msra.mxu0 0.0
    %2811 = vmatprep.subr.mxu0 0.0
    %2812 = vmatpush1.msra.mxu0 0.0
    %2813 = vmatprep.subr.mxu0 0.0
    %2814 = vmatpush1.msra.mxu0 0.0
    %2815 = vmatprep.subr.mxu0 0.0
    %2816 = vmatpush1.msra.mxu0 0.0
    %2817 = vmatprep.subr.mxu0 0.0
    %2818 = vmatpush1.msra.mxu0 0.0
    %2819 = vmatprep.subr.mxu0 0.0
    %2820 = vmatpush1.msra.mxu0 0.0
    %2821 = vmatprep.subr.mxu0 0.0
    %2822 = vmatpush1.msra.mxu0 0.0
    %2823 = vmatprep.subr.mxu0 0.0
    %2824 = vmatpush1.msra.mxu0 0.0
    %2825 = vmatprep.subr.mxu0 0.0
    %2826 = vmatpush1.msra.mxu0 0.0
    %2827 = vmatprep.subr.mxu0 0.0
    %2828 = vmatpush1.msra.mxu0 0.0
    %2829 = vmatprep.subr.mxu0 0.0
    %2830 = vmatpush1.msra.mxu0 0.0
    %2831 = vmatprep.subr.mxu0 0.0
    %2832 = vmatpush1.msra.mxu0 0.0
    %2833 = vmatprep.subr.mxu0 0.0
    %2834 = vmatpush1.msra.mxu0 0.0
    %2835 = vmatprep.subr.mxu0 0.0
    %2836 = vmatpush1.msra.mxu0 0.0
    %2837 = vmatprep.subr.mxu0 0.0
    %2838 = vmatpush1.msra.mxu0 0.0
    %2839 = vmatprep.subr.mxu0 0.0
    %2840 = vmatpush1.msra.mxu0 0.0
    %2841 = vmatprep.subr.mxu0 0.0
    %2842 = vmatpush1.msra.mxu0 0.0
    %2843 = vmatprep.subr.mxu0 0.0
    %2844 = vmatpush1.msra.mxu0 0.0
    %2845 = vmatprep.subr.mxu0 0.0
    %2846 = vmatpush1.msra.mxu0 0.0
    %2847 = vmatprep.subr.mxu0 0.0
    %2848 = vmatpush1.msra.mxu0 0.0
    %2849 = vmatprep.subr.mxu0 0.0
    %2850 = vmatpush1.msra.mxu0 0.0
    %2851 = vmatprep.mubr.f32.mxu0 0.0
    %2852 = vmatmul.mubr.f32.gmra.mrb[0].mxu0 %v2782
    %v2853 = vpop.f32.mrb[0].mxu0
    %v2854 = vadd.f32 0.0, %v2853
    %v2855 = vpop.f32.mrb[0].mxu0
    %2856 = vmatprep.mubr.f32.mxu0 0.0
    %2857 = vmatmul.mubr.f32.gmra.mrb[0].mxu0 %v2785
    %v2858 = vpop.f32.mrb[0].mxu0
    %v2859 = vadd.f32 0.0, %v2858
    %v2860 = vpop.f32.mrb[0].mxu0
    %2861 = vdwg.mxu0
    %v2862 = vld [vmem:[#allocation3 + $0x1e0] sm:$0xff]
    %v2863 = vld [vmem:[#allocation3 + $0x1e8] sm:$0xff]
    %v2864 = vld [vmem:[#allocation3 + $0x1f0] sm:$0xff]
    %v2865 = vld [vmem:[#allocation3 + $0x1f8] sm:$0xff]
    %v2866 = vld [vmem:[#allocation3 + $0x200] sm:$0xff]
    %v2867 = vld [vmem:[#allocation3 + $0x208] sm:$0xff]
    %v2868 = vld [vmem:[#allocation3 + $0x210] sm:$0xff]
    %v2869 = vld [vmem:[#allocation3 + $0x218] sm:$0xff]
    %v2870 = vld [vmem:[#allocation3 + $0x220] sm:$0xff]
    %v2871 = vld [vmem:[#allocation3 + $0x228] sm:$0xff]
    %v2872 = vld [vmem:[#allocation3 + $0x230] sm:$0xff]
    %v2873 = vld [vmem:[#allocation3 + $0x238] sm:$0xff]
    %v2874 = vld [vmem:[#allocation3 + $0x240] sm:$0xff]
    %v2875 = vld [vmem:[#allocation3 + $0x248] sm:$0xff]
    %v2876 = vld [vmem:[#allocation3 + $0x250] sm:$0xff]
    %v2877 = vld [vmem:[#allocation3 + $0x258] sm:$0xff]
    %v2879 = vsel %vm1692, %v2768, 0
    %v2882 = vsel %vm1692, %v2769, 0
    %2884 = vmatprep.subr.mxu0 %v2871
    %2885 = vmatpush1.msra.mxu0 %v2870
    %2886 = vmatprep.subr.mxu0 %v2873
    %2887 = vmatpush1.msra.mxu0 %v2872
    %2888 = vmatprep.subr.mxu0 %v2875
    %2889 = vmatpush1.msra.mxu0 %v2874
    %2890 = vmatprep.subr.mxu0 %v2877
    %2891 = vmatpush1.msra.mxu0 %v2876
    %2892 = vmatprep.subr.mxu0 0.0
    %2893 = vmatpush1.msra.mxu0 0.0
    %2894 = vmatprep.subr.mxu0 0.0
    %2895 = vmatpush1.msra.mxu0 0.0
    %2896 = vmatprep.subr.mxu0 0.0
    %2897 = vmatpush1.msra.mxu0 0.0
    %2898 = vmatprep.subr.mxu0 0.0
    %2899 = vmatpush1.msra.mxu0 0.0
    %2900 = vmatprep.subr.mxu0 0.0
    %2901 = vmatpush1.msra.mxu0 0.0
    %2902 = vmatprep.subr.mxu0 0.0
    %2903 = vmatpush1.msra.mxu0 0.0
    %2904 = vmatprep.subr.mxu0 0.0
    %2905 = vmatpush1.msra.mxu0 0.0
    %2906 = vmatprep.subr.mxu0 0.0
    %2907 = vmatpush1.msra.mxu0 0.0
    %2908 = vmatprep.subr.mxu0 0.0
    %2909 = vmatpush1.msra.mxu0 0.0
    %2910 = vmatprep.subr.mxu0 0.0
    %2911 = vmatpush1.msra.mxu0 0.0
    %2912 = vmatprep.subr.mxu0 0.0
    %2913 = vmatpush1.msra.mxu0 0.0
    %2914 = vmatprep.subr.mxu0 0.0
    %2915 = vmatpush1.msra.mxu0 0.0
    %2916 = vmatprep.subr.mxu0 0.0
    %2917 = vmatpush1.msra.mxu0 0.0
    %2918 = vmatprep.subr.mxu0 0.0
    %2919 = vmatpush1.msra.mxu0 0.0
    %2920 = vmatprep.subr.mxu0 0.0
    %2921 = vmatpush1.msra.mxu0 0.0
    %2922 = vmatprep.subr.mxu0 0.0
    %2923 = vmatpush1.msra.mxu0 0.0
    %2924 = vmatprep.subr.mxu0 0.0
    %2925 = vmatpush1.msra.mxu0 0.0
    %2926 = vmatprep.subr.mxu0 0.0
    %2927 = vmatpush1.msra.mxu0 0.0
    %2928 = vmatprep.subr.mxu0 0.0
    %2929 = vmatpush1.msra.mxu0 0.0
    %2930 = vmatprep.subr.mxu0 0.0
    %2931 = vmatpush1.msra.mxu0 0.0
    %2932 = vmatprep.subr.mxu0 0.0
    %2933 = vmatpush1.msra.mxu0 0.0
    %2934 = vmatprep.subr.mxu0 0.0
    %2935 = vmatpush1.msra.mxu0 0.0
    %2936 = vmatprep.subr.mxu0 0.0
    %2937 = vmatpush1.msra.mxu0 0.0
    %2938 = vmatprep.subr.mxu0 0.0
    %2939 = vmatpush1.msra.mxu0 0.0
    %2940 = vmatprep.subr.mxu0 0.0
    %2941 = vmatpush1.msra.mxu0 0.0
    %2942 = vmatprep.subr.mxu0 0.0
    %2943 = vmatpush1.msra.mxu0 0.0
    %2944 = vmatprep.subr.mxu0 0.0
    %2945 = vmatpush1.msra.mxu0 0.0
    %2946 = vmatprep.subr.mxu0 0.0
    %2947 = vmatpush1.msra.mxu0 0.0
    %2948 = vmatprep.mubr.f32.mxu0 0.0
    %2949 = vmatmul.mubr.f32.gmra.mrb[0].mxu0 %v2879
    %v2950 = vpop.f32.mrb[0].mxu0
    %v2951 = vadd.f32 0.0, %v2950
    %v2952 = vpop.f32.mrb[0].mxu0
    %v2953 = vadd.f32 0.0, %v2952
    %2954 = vmatprep.mubr.f32.mxu0 0.0
    %2955 = vmatmul.mubr.f32.gmra.mrb[0].mxu0 %v2882
    %v2956 = vpop.f32.mrb[0].mxu0
    %v2957 = vadd.f32 0.0, %v2956
    %v2958 = vpop.f32.mrb[0].mxu0
    %v2959 = vadd.f32 0.0, %v2958
    %2960 = vdwg.mxu0
    %v2962 = vsel %vm1692, %v2685, 0
    %v2965 = vsel %vm1692, %v2686, 0
    %2967 = vmatprep.subr.mxu0 %v2863
    %2968 = vmatpush1.msra.mxu0 %v2862
    %2969 = vmatprep.subr.mxu0 %v2865
    %2970 = vmatpush1.msra.mxu0 %v2864
    %2971 = vmatprep.subr.mxu0 %v2867
    %2972 = vmatpush1.msra.mxu0 %v2866
    %2973 = vmatprep.subr.mxu0 %v2869
    %2974 = vmatpush1.msra.mxu0 %v2868
    %2975 = vmatprep.subr.mxu0 0.0
    %2976 = vmatpush1.msra.mxu0 0.0
    %2977 = vmatprep.subr.mxu0 0.0
    %2978 = vmatpush1.msra.mxu0 0.0
    %2979 = vmatprep.subr.mxu0 0.0
    %2980 = vmatpush1.msra.mxu0 0.0
    %2981 = vmatprep.subr.mxu0 0.0
    %2982 = vmatpush1.msra.mxu0 0.0
    %2983 = vmatprep.subr.mxu0 0.0
    %2984 = vmatpush1.msra.mxu0 0.0
    %2985 = vmatprep.subr.mxu0 0.0
    %2986 = vmatpush1.msra.mxu0 0.0
    %2987 = vmatprep.subr.mxu0 0.0
    %2988 = vmatpush1.msra.mxu0 0.0
    %2989 = vmatprep.subr.mxu0 0.0
    %2990 = vmatpush1.msra.mxu0 0.0
    %2991 = vmatprep.subr.mxu0 0.0
    %2992 = vmatpush1.msra.mxu0 0.0
    %2993 = vmatprep.subr.mxu0 0.0
    %2994 = vmatpush1.msra.mxu0 0.0
    %2995 = vmatprep.subr.mxu0 0.0
    %2996 = vmatpush1.msra.mxu0 0.0
    %2997 = vmatprep.subr.mxu0 0.0
    %2998 = vmatpush1.msra.mxu0 0.0
    %2999 = vmatprep.subr.mxu0 0.0
    %3000 = vmatpush1.msra.mxu0 0.0
    %3001 = vmatprep.subr.mxu0 0.0
    %3002 = vmatpush1.msra.mxu0 0.0
    %3003 = vmatprep.subr.mxu0 0.0
    %3004 = vmatpush1.msra.mxu0 0.0
    %3005 = vmatprep.subr.mxu0 0.0
    %3006 = vmatpush1.msra.mxu0 0.0
    %3007 = vmatprep.subr.mxu0 0.0
    %3008 = vmatpush1.msra.mxu0 0.0
    %3009 = vmatprep.subr.mxu0 0.0
    %3010 = vmatpush1.msra.mxu0 0.0
    %3011 = vmatprep.subr.mxu0 0.0
    %3012 = vmatpush1.msra.mxu0 0.0
    %3013 = vmatprep.subr.mxu0 0.0
    %3014 = vmatpush1.msra.mxu0 0.0
    %3015 = vmatprep.subr.mxu0 0.0
    %3016 = vmatpush1.msra.mxu0 0.0
    %3017 = vmatprep.subr.mxu0 0.0
    %3018 = vmatpush1.msra.mxu0 0.0
    %3019 = vmatprep.subr.mxu0 0.0
    %3020 = vmatpush1.msra.mxu0 0.0
    %3021 = vmatprep.subr.mxu0 0.0
    %3022 = vmatpush1.msra.mxu0 0.0
    %3023 = vmatprep.subr.mxu0 0.0
    %3024 = vmatpush1.msra.mxu0 0.0
    %3025 = vmatprep.subr.mxu0 0.0
    %3026 = vmatpush1.msra.mxu0 0.0
    %3027 = vmatprep.subr.mxu0 0.0
    %3028 = vmatpush1.msra.mxu0 0.0
    %3029 = vmatprep.subr.mxu0 0.0
    %3030 = vmatpush1.msra.mxu0 0.0
    %3031 = vmatprep.mubr.f32.mxu0 0.0
    %3032 = vmatmul.mubr.f32.gmra.mrb[0].mxu0 %v2962
    %v3033 = vpop.f32.mrb[0].mxu0
    %v3034 = vadd.f32 %v2951, %v3033
    %v3035 = vpop.f32.mrb[0].mxu0
    %v3036 = vadd.f32 %v2953, %v3035
    %3037 = vmatprep.mubr.f32.mxu0 0.0
    %3038 = vmatmul.mubr.f32.gmra.mrb[0].mxu0 %v2965
    %v3039 = vpop.f32.mrb[0].mxu0
    %v3040 = vadd.f32 %v2957, %v3039
    %v3041 = vpop.f32.mrb[0].mxu0
    %v3042 = vadd.f32 %v2959, %v3041
    %3043 = vdwg.mxu0
    %v3044 = vld [vmem:[#allocation3 + $0x260] sm:$0xff]
    %v3045 = vld [vmem:[#allocation3 + $0x268] sm:$0xff]
    %v3046 = vld [vmem:[#allocation3 + $0x270] sm:$0xff]
    %v3047 = vld [vmem:[#allocation3 + $0x278] sm:$0xff]
    %v3048 = vld [vmem:[#allocation3 + $0x280] sm:$0xff]
    %v3049 = vld [vmem:[#allocation3 + $0x288] sm:$0xff]
    %v3050 = vld [vmem:[#allocation3 + $0x290] sm:$0xff]
    %v3051 = vld [vmem:[#allocation3 + $0x298] sm:$0xff]
    %v3052 = vld [vmem:[#allocation3 + $0x2a0] sm:$0xff]
    %v3053 = vld [vmem:[#allocation3 + $0x2a8] sm:$0xff]
    %v3054 = vld [vmem:[#allocation3 + $0x2b0] sm:$0xff]
    %v3055 = vld [vmem:[#allocation3 + $0x2b8] sm:$0xff]
    %v3056 = vld [vmem:[#allocation3 + $0x2c0] sm:$0xff]
    %v3057 = vld [vmem:[#allocation3 + $0x2c8] sm:$0xff]
    %v3058 = vld [vmem:[#allocation3 + $0x2d0] sm:$0xff]
    %v3059 = vld [vmem:[#allocation3 + $0x2d8] sm:$0xff]
    %v3061 = vsel %vm2447, %v2854, 0
    %v3064 = vsel %vm2447, %v2859, 0
    %3066 = vmatprep.subr.mxu0 %v3045
    %3067 = vmatpush1.msra.mxu0 %v3044
    %3068 = vmatprep.subr.mxu0 %v3047
    %3069 = vmatpush1.msra.mxu0 %v3046
    %3070 = vmatprep.subr.mxu0 %v3049
    %3071 = vmatpush1.msra.mxu0 %v3048
    %3072 = vmatprep.subr.mxu0 %v3051
    %3073 = vmatpush1.msra.mxu0 %v3050
    %3074 = vmatprep.subr.mxu0 %v3053
    %3075 = vmatpush1.msra.mxu0 %v3052
    %3076 = vmatprep.subr.mxu0 %v3055
    %3077 = vmatpush1.msra.mxu0 %v3054
    %3078 = vmatprep.subr.mxu0 %v3057
    %3079 = vmatpush1.msra.mxu0 %v3056
    %3080 = vmatprep.subr.mxu0 %v3059
    %3081 = vmatpush1.msra.mxu0 %v3058
    %3082 = vmatprep.subr.mxu0 0.0
    %3083 = vmatpush1.msra.mxu0 0.0
    %3084 = vmatprep.subr.mxu0 0.0
    %3085 = vmatpush1.msra.mxu0 0.0
    %3086 = vmatprep.subr.mxu0 0.0
    %3087 = vmatpush1.msra.mxu0 0.0
    %3088 = vmatprep.subr.mxu0 0.0
    %3089 = vmatpush1.msra.mxu0 0.0
    %3090 = vmatprep.subr.mxu0 0.0
    %3091 = vmatpush1.msra.mxu0 0.0
    %3092 = vmatprep.subr.mxu0 0.0
    %3093 = vmatpush1.msra.mxu0 0.0
    %3094 = vmatprep.subr.mxu0 0.0
    %3095 = vmatpush1.msra.mxu0 0.0
    %3096 = vmatprep.subr.mxu0 0.0
    %3097 = vmatpush1.msra.mxu0 0.0
    %3098 = vmatprep.subr.mxu0 0.0
    %3099 = vmatpush1.msra.mxu0 0.0
    %3100 = vmatprep.subr.mxu0 0.0
    %3101 = vmatpush1.msra.mxu0 0.0
    %3102 = vmatprep.subr.mxu0 0.0
    %3103 = vmatpush1.msra.mxu0 0.0
    %3104 = vmatprep.subr.mxu0 0.0
    %3105 = vmatpush1.msra.mxu0 0.0
    %3106 = vmatprep.subr.mxu0 0.0
    %3107 = vmatpush1.msra.mxu0 0.0
    %3108 = vmatprep.subr.mxu0 0.0
    %3109 = vmatpush1.msra.mxu0 0.0
    %3110 = vmatprep.subr.mxu0 0.0
    %3111 = vmatpush1.msra.mxu0 0.0
    %3112 = vmatprep.subr.mxu0 0.0
    %3113 = vmatpush1.msra.mxu0 0.0
    %3114 = vmatprep.subr.mxu0 0.0
    %3115 = vmatpush1.msra.mxu0 0.0
    %3116 = vmatprep.subr.mxu0 0.0
    %3117 = vmatpush1.msra.mxu0 0.0
    %3118 = vmatprep.subr.mxu0 0.0
    %3119 = vmatpush1.msra.mxu0 0.0
    %3120 = vmatprep.subr.mxu0 0.0
    %3121 = vmatpush1.msra.mxu0 0.0
    %3122 = vmatprep.subr.mxu0 0.0
    %3123 = vmatpush1.msra.mxu0 0.0
    %3124 = vmatprep.subr.mxu0 0.0
    %3125 = vmatpush1.msra.mxu0 0.0
    %3126 = vmatprep.subr.mxu0 0.0
    %3127 = vmatpush1.msra.mxu0 0.0
    %3128 = vmatprep.subr.mxu0 0.0
    %3129 = vmatpush1.msra.mxu0 0.0
    %3130 = vmatprep.mubr.f32.mxu0 0.0
    %3131 = vmatmul.mubr.f32.gmra.mrb[0].mxu0 %v3061
    %v3132 = vpop.f32.mrb[0].mxu0
    %v3133 = vadd.f32 0.0, %v3132
    %v3134 = vpop.f32.mrb[0].mxu0
    %v3135 = vadd.f32 0.0, %v3134
    %3136 = vmatprep.mubr.f32.mxu0 0.0
    %3137 = vmatmul.mubr.f32.gmra.mrb[0].mxu0 %v3064
    %v3138 = vpop.f32.mrb[0].mxu0
    %v3139 = vadd.f32 0.0, %v3138
    %v3140 = vpop.f32.mrb[0].mxu0
    %v3141 = vadd.f32 0.0, %v3140
    %3142 = vdwg.mxu0
    %v3143 = vadd.f32 %v3034, %v3133
    %v3144 = vadd.f32 %v3036, %v3135
    %v3145 = vadd.f32 %v3040, %v3139
    %v3146 = vadd.f32 %v3042, %v3141
    %v3148 = vlaneseq
    %v3149 = vshrl.u32 %v3148, 7
    %v3150 = vsub.s32 0, %v3149
    %v3151 = vrot.slane %v86, %v3150
    %v3152 = vlaneseq
    %v3153 = vshrl.u32 %v3152, 7
    %v3154 = vsub.s32 1, %v3153
    %v3155 = vrot.slane %v86, %v3154
    %v3158 = vadd.f32 %v3143, %v3151
    %v3159 = vadd.f32 %v3144, %v3155
    %v3160 = vadd.f32 %v3145, %v3151
    %v3161 = vadd.f32 %v3146, %v3155
    %v3162 = vxor.u32 %v3158, 2147483648
    %v3163 = vxor.u32 %v3160, 2147483648
    %v3164 = vmul.f32 %v3162, 1.442695
    %v3165 = vpow.pop %v3164
    %v3166 = vmul.f32 %v3163, 1.442695
    %v3167 = vpow.pop %v3166
    %v3168 = vadd.f32 %v3165, 1.0
    %v3169 = vadd.f32 %v3167, 1.0
    %v3170 = vrcp.pop %v3168
    %v3171 = vmul.f32 1.0, %v3170
    %v3172 = vrcp.pop %v3169
    %v3173 = vmul.f32 1.0, %v3172
    %3176 = vrot.lane.b32.xlu0 %v3159, 64
    %v3177 = vpop.permute.xlu0 %3176
    %3178 = vrot.lane.b32.xlu0 %v3161, 64
    %v3179 = vpop.permute.xlu0 %3178
    %v3182 = vmul.f32 %v3171, %v3177
    %v3183 = vmul.f32 %v3173, %v3179
    %v3184 = vadd.f32 %v3159, %v3182
    %v3185 = vadd.f32 %v3161, %v3183
    %v3186 = vtanh.pop %v3184
    %v3187 = vtanh.pop %v3185
    %v3188 = vsub.f32 1.0, %v3171
    %v3189 = vsub.f32 1.0, %v3173
    %3192 = vrot.lane.b32.xlu0 %v3186, 64
    %v3193 = vpop.permute.xlu0 %3192
    %3194 = vrot.lane.b32.xlu0 %v3187, 64
    %v3195 = vpop.permute.xlu0 %3194
    %v3198 = vmul.f32 %v3188, %v3193
    %v3199 = vmul.f32 %v3189, %v3195
    %3200 = vrot.lane.b32.xlu0 %v2854, 64
    %v3201 = vpop.permute.xlu0 %3200
    %3202 = vrot.lane.b32.xlu0 %v2859, 64
    %v3203 = vpop.permute.xlu0 %3202
    %v3206 = vmul.f32 %v3171, %v3201
    %v3207 = vmul.f32 %v3173, %v3203
    %v3208 = vadd.f32 %v3198, %v3206
    %v3209 = vadd.f32 %v3199, %v3207
    %3212 = vrot.lane.b32.xlu0 %v3208, 64
    %v3213 = vpop.permute.xlu0 %3212
    %3214 = vrot.lane.b32.xlu0 %v3209, 64
    %v3215 = vpop.permute.xlu0 %3214
    %v3218 = vsel %vm2447, %v3213, 0.0
    %v3219 = vsel %vm2447, %v3215, 0.0
    %3220 = vst [vmem:[%s6] sm:$0xff] %v3218
    %3221 = vst [vmem:[%s6 + $0x8] sm:$0xff] %v3219
    // Predicated region
    $region30: #{forward.3} parent=1 // pred_check
      _
    $region31: #{forward.3} parent=1 // pred_check_branch
      %3223 = sbr.rel (0) target = $region33
    $region32: #{forward.3} parent=1 // pred_region
      _
    $region33: #{forward.3} parent=1 // pred_fallthru
      _
    // Predicated region
    $region34: #{forward.3} parent=1 // pred_check
      _
    $region35: #{forward.3} parent=1 // pred_check_branch
      %3225 = sbr.rel (0) target = $region37
    $region36: #{forward.3} parent=1 // pred_region
      _
    $region37: #{forward.3} parent=1 // pred_fallthru
      _
    %3226 = vsyncpa [#allocation4], 1

</llo_original>
